<compile_context>
chip_gen: v5e
topology: v5e:2x2
jax: 0.10.0
libtpu: 0.0.40
codegen_flags: <defaults>
</compile_context>

<pallas_src>
import math
from functools import partial

import numpy as np
import jax
import jax.numpy as jnp
from jax import lax
from jax.experimental import pallas as pl
from jax.experimental.pallas import tpu as pltpu

NUM_NODE = 17
SELF_LINK = [(i, i) for i in range(NUM_NODE)]
INWARD = [(0, 1), (0, 2), (1, 3), (2, 4), (3, 5), (4, 6), (5, 6), (5, 7), (6, 8),
          (7, 9), (8, 10), (5, 11), (6, 12), (11, 12), (11, 13), (12, 14),
          (13, 15), (14, 16)]
OUTWARD = [(j, i) for i, j in INWARD]


# ----------------------------------------------------------------------------
# Pallas kernels
# ----------------------------------------------------------------------------

def _unit_gcn_body(xv, aT_ref, wa_ref, ba_ref, wb_ref, bb_ref,
                   wd_ref, bd_ref, wdn_ref, bdn_ref, inv_it):
    """One 2s-AGCN unit_gcn on a per-batch (V, C_in*T) slab -> (V, C_out*T).

    All conv weights are pre-folded into block-diagonal-over-time matrices so
    every step is a plain 2-D matmul; BN (eval) is folded into wd/wdn & biases.
    """
    y = None
    for i in range(3):
        # conv_a / conv_b for subset i, already laid out as (V, inter*T)
        a1 = jnp.dot(xv, wa_ref[i], preferred_element_type=jnp.float32) + ba_ref[i]
        a2 = jnp.dot(xv, wb_ref[i], preferred_element_type=jnp.float32) + bb_ref[i]
        # st[w, v] = S[v, w] = sum_k A1[v,k] * A2[k,w]   (contract over inter*T)
        st = lax.dot_general(a2, a1, dimension_numbers=(((1,), (1,)), ((), ())),
                             preferred_element_type=jnp.float32) * inv_it
        # softmax over dim -2 of S == softmax along lanes of st
        m = jnp.max(st, axis=1, keepdims=True)
        e = jnp.exp(st - m)
        softT = e * pl.reciprocal(jnp.sum(e, axis=1, keepdims=True), approx=True)
        aeffT = softT + aT_ref[i]                      # (A[i] + PA[i])^T pre-folded
        # aggT[v', c*T+t] = sum_v aeff[v, v'] * x[c,t,v]
        aggT = jnp.dot(aeffT, xv, preferred_element_type=jnp.float32)
        # conv_d (BN-folded), block-diagonal over time: (V, C_out*T)
        z = jnp.dot(aggT, wd_ref[i], preferred_element_type=jnp.float32)
        y = z if y is None else y + z
    y = y + bd_ref[...]
    # residual "down" 1x1 conv + BN (folded)
    d = jnp.dot(xv, wdn_ref[...], preferred_element_type=jnp.float32) + bdn_ref[...]
    return jnp.maximum(y + d, 0.0)


def _agcn_kernel(x_ref, dbns_ref, dbnb_ref,
                 a1T_ref, wa1_ref, ba1_ref, wb1_ref, bb1_ref,
                 wd1_ref, bd1_ref, wdn1_ref, bdn1_ref,
                 a2T_ref, wa2_ref, ba2_ref, wb2_ref, bb2_ref,
                 wd2_ref, bd2_ref, wdn2_ref, bdn2_ref,
                 o_ref, *, inv1, inv2):
    """data_bn + unit_gcn1 + unit_gcn2 + max over joints, for one batch elem."""
    xv = x_ref[0] * dbns_ref[...] + dbnb_ref[...]                 # (V, 2*T)
    h1 = _unit_gcn_body(xv, a1T_ref, wa1_ref, ba1_ref, wb1_ref, bb1_ref,
                        wd1_ref, bd1_ref, wdn1_ref, bdn1_ref, inv1)
    h2 = _unit_gcn_body(h1, a2T_ref, wa2_ref, ba2_ref, wb2_ref, bb2_ref,
                        wd2_ref, bd2_ref, wdn2_ref, bdn2_ref, inv2)
    o_ref[0] = jnp.max(h2, axis=0, keepdims=True)                 # (1, d_model*T)


def _transformer_kernel(x_ref, pe_ref, kb_ref,
                        wq_ref, bq_ref, wk_ref, bk_ref, wv_ref, bv_ref,
                        wo_ref, bo_ref, g1_ref, b1_ref,
                        w1_ref, bb1_ref, w2_ref, bb2_ref, g2_ref, b2_ref,
                        gf_ref, bf_ref, wc_ref, bc_ref,
                        o_ref, *, nlayers, nhead, dh, eps, sqrt_d):
    """Pos-enc + full TransformerEncoder (post-norm) + classifier + log_softmax
    for one batch element (T, d_model)."""
    scale = 1.0 / math.sqrt(dh)

    def layer_norm(t, g, b):
        mu = jnp.mean(t, axis=-1, keepdims=True)
        c = t - mu
        var = jnp.mean(c * c, axis=-1, keepdims=True)
        return c * lax.rsqrt(var + eps) * g + b

    # x*sqrt(d) + pe[batch]  (replicates the module's batch-indexed PE)
    x = x_ref[0] * sqrt_d + pe_ref[0]                             # (T, d)
    kbias = kb_ref[0]                                             # (1, T) key-pad bias

    for l in range(nlayers):
        acc = None
        for h in range(nhead):
            q = jnp.dot(x, wq_ref[l, h], preferred_element_type=jnp.float32) + bq_ref[l, h]
            k = jnp.dot(x, wk_ref[l, h], preferred_element_type=jnp.float32) + bk_ref[l, h]
            v = jnp.dot(x, wv_ref[l, h], preferred_element_type=jnp.float32) + bv_ref[l, h]
            s = lax.dot_general(q, k, dimension_numbers=(((1,), (1,)), ((), ())),
                                preferred_element_type=jnp.float32) * scale + kbias
            m = jnp.max(s, axis=-1, keepdims=True)
            e = jnp.exp(s - m)
            p = e * pl.reciprocal(jnp.sum(e, axis=-1, keepdims=True), approx=True)
            oh = jnp.dot(p, v, preferred_element_type=jnp.float32)          # (T, dh)
            z = jnp.dot(oh, wo_ref[l, h], preferred_element_type=jnp.float32)  # (T, d)
            acc = z if acc is None else acc + z
        x = layer_norm(x + acc + bo_ref[l], g1_ref[l], b1_ref[l])
        ff = jnp.maximum(jnp.dot(x, w1_ref[l], preferred_element_type=jnp.float32)
                         + bb1_ref[l], 0.0)
        ff = jnp.dot(ff, w2_ref[l], preferred_element_type=jnp.float32) + bb2_ref[l]
        x = layer_norm(x + ff, g2_ref[l], b2_ref[l])

    x = layer_norm(x, gf_ref[...], bf_ref[...])
    logits = jnp.dot(x, wc_ref[...], preferred_element_type=jnp.float32) + bc_ref[...]
    mx = jnp.max(logits, axis=-1, keepdims=True)
    sh = logits - mx
    lse = jnp.log(jnp.sum(jnp.exp(sh), axis=-1, keepdims=True))
    o_ref[0] = sh - lse


# ----------------------------------------------------------------------------
# pallas_call wrappers
# ----------------------------------------------------------------------------

def _full_spec(arr):
    nd = arr.ndim
    return pl.BlockSpec(arr.shape, lambda n, _nd=nd: (0,) * _nd)


def agcn_forward(folded, x0):
    """x0: (N, V, 2*T) -> pooled GCN features (N, 1, d_model*T)."""
    N, V, _ = x0.shape
    T = folded['T']
    d = folded['d_model']
    g1, g2 = folded['gcn1'], folded['gcn2']
    weights = [folded['dbn_s'], folded['dbn_b'],
               g1['aT'], g1['wa'], g1['ba'], g1['wb'], g1['bb'],
               g1['wd'], g1['bd'], g1['wdn'], g1['bdn'],
               g2['aT'], g2['wa'], g2['ba'], g2['wb'], g2['bb'],
               g2['wd'], g2['bd'], g2['wdn'], g2['bdn']]
    in_specs = ([pl.BlockSpec((1, V, 2 * T), lambda n: (n, 0, 0))]
                + [_full_spec(w) for w in weights])
    return pl.pallas_call(
        partial(_agcn_kernel,
                inv1=1.0 / float(g1['inter'] * T),
                inv2=1.0 / float(g2['inter'] * T)),
        out_shape=jax.ShapeDtypeStruct((N, 1, d * T), jnp.float32),
        grid=(N,),
        in_specs=in_specs,
        out_specs=pl.BlockSpec((1, 1, d * T), lambda n: (n, 0, 0)),
        compiler_params=pltpu.CompilerParams(dimension_semantics=("parallel",)),
    )(x0, *weights)


def transformer_forward(folded, seq, pe_n, kbias):
    """seq: (N, T, d), pe_n: (N, 1, d), kbias: (N, 1, T) -> (N, T, num_class)."""
    N, T, d = seq.shape
    tr = folded['tr']
    H = folded['nhead']
    ncls = folded['num_class']
    weights = [tr['wq'], tr['bq'], tr['wk'], tr['bk'], tr['wv'], tr['bv'],
               tr['wo'], tr['bo'], tr['g1'], tr['b1'],
               tr['w1'], tr['bb1'], tr['w2'], tr['bb2'], tr['g2'], tr['b2'],
               tr['gf'], tr['bf'], tr['wc'], tr['bc']]
    in_specs = ([pl.BlockSpec((1, T, d), lambda n: (n, 0, 0)),
                 pl.BlockSpec((1, 1, d), lambda n: (n, 0, 0)),
                 pl.BlockSpec((1, 1, T), lambda n: (n, 0, 0))]
                + [_full_spec(w) for w in weights])
    return pl.pallas_call(
        partial(_transformer_kernel, nlayers=folded['nlayers'], nhead=H,
                dh=d // H, eps=1e-5, sqrt_d=math.sqrt(d)),
        out_shape=jax.ShapeDtypeStruct((N, T, ncls), jnp.float32),
        grid=(N,),
        in_specs=in_specs,
        out_specs=pl.BlockSpec((1, T, ncls), lambda n: (n, 0, 0)),
        compiler_params=pltpu.CompilerParams(dimension_semantics=("parallel",)),
    )(seq, pe_n, kbias, *weights)


# ----------------------------------------------------------------------------
# Graph / raw parameters (deterministic, in-script)
# ----------------------------------------------------------------------------

def _edge2mat(link, n):
    A = np.zeros((n, n), dtype=np.float32)
    for i, j in link:
        A[j, i] = 1.0
    return A


def _normalize_digraph(A):
    Dl = A.sum(0)
    Dn = np.zeros_like(A)
    for i in range(A.shape[1]):
        if Dl[i] > 0:
            Dn[i, i] = Dl[i] ** (-1)
    return A @ Dn


def build_graph_A():
    I = _edge2mat(SELF_LINK, NUM_NODE)
    In = _normalize_digraph(_edge2mat(INWARD, NUM_NODE))
    Out = _normalize_digraph(_edge2mat(OUTWARD, NUM_NODE))
    return np.stack((I, In, Out)).astype(np.float32)  # (3, 17, 17)


def build_pe(max_len, d_model):
    pe = np.zeros((max_len, d_model), dtype=np.float32)
    position = np.arange(0, max_len, dtype=np.float32)[:, None]
    div_term = np.exp(np.arange(0, d_model, 2).astype(np.float32)
                      * (-math.log(10000.0) / d_model))
    pe[:, 0::2] = np.sin(position * div_term)
    if d_model % 2 != 0:
        pe[:, 1::2] = np.cos(position * div_term)[:, :-1]
    else:
        pe[:, 1::2] = np.cos(position * div_term)
    return jnp.asarray(pe)  # (max_len, d_model); torch buffer is (max_len, 1, d)


def init_params(key, hidden, out_c, nhead, nlayers, dff, num_class):
    A = build_graph_A()
    bn_eps = 1e-5
    ks = list(jax.random.split(key, 64))
    it = iter(ks)

    def nrm(shape, s=0.1):
        return jax.random.normal(next(it), shape, jnp.float32) * s

    def gcn(c_in, c_out):
        inter = c_out // 4
        return dict(
            A=jnp.asarray(A),
            PA=jnp.full((3, NUM_NODE, NUM_NODE), 1e-6, jnp.float32),
            wa=nrm((3, inter, c_in)), ba=nrm((3, inter), 0.01),
            wb=nrm((3, inter, c_in)), bb=nrm((3, inter), 0.01),
            wd=nrm((3, c_out, c_in)), bd=nrm((3, c_out), 0.01),
            wdown=nrm((c_out, c_in)), bdown=nrm((c_out,), 0.01),
            # fresh BatchNorm2d running stats (mean=0, var=1, gamma=1, beta=0)
            bn_scale=jnp.ones((c_out,)) / jnp.sqrt(1.0 + bn_eps),
            bn_shift=jnp.zeros((c_out,)),
            down_bn_scale=jnp.ones((c_out,)) / jnp.sqrt(1.0 + bn_eps),
            down_bn_shift=jnp.zeros((c_out,)),
        )

    d = out_c
    layers = []
    for _ in range(nlayers):
        layers.append(dict(
            w_in=nrm((3 * d, d)), b_in=nrm((3 * d,), 0.01),
            w_out=nrm((d, d)), b_out=nrm((d,), 0.01),
            w1=nrm((dff, d)), bb1=nrm((dff,), 0.01),
            w2=nrm((d, dff)), bb2=nrm((d,), 0.01),
            g1=jnp.ones((d,)), b1=jnp.zeros((d,)),
            g2=jnp.ones((d,)), b2=jnp.zeros((d,)),
        ))

    return dict(
        dbn_scale=jnp.ones((2 * NUM_NODE,)) / jnp.sqrt(1.0 + bn_eps),
        dbn_shift=jnp.zeros((2 * NUM_NODE,)),
        agcn1=gcn(2, hidden),
        agcn2=gcn(hidden, out_c),
        layers=layers,
        gf=jnp.ones((d,)), bf=jnp.zeros((d,)),
        w_cls=nrm((num_class, d)), b_cls=nrm((num_class,), 0.01),
        pe=build_pe(300, d),
        nhead=nhead, d_model=d, num_class=num_class,
    )


# ----------------------------------------------------------------------------
# One-time weight folding into kernel-ready layouts
# ----------------------------------------------------------------------------

def _blockdiag_t(w_oc, T):
    """1x1-conv weight (out_ch, in_ch) -> block-diag-over-time (in_ch*T, out_ch*T):
       W[c*T + t, o*T + t'] = w[o, c] * delta(t, t')."""
    o, c = w_oc.shape
    eyeT = jnp.eye(T, dtype=jnp.float32)
    return jnp.einsum('oc,tu->ctou', w_oc.astype(jnp.float32), eyeT).reshape(c * T, o * T)


def _fold_gcn(p, T):
    s_bn, b_bn = p['bn_scale'], p['bn_shift']
    s_dn, b_dn = p['down_bn_scale'], p['down_bn_shift']
    wa = jnp.stack([_blockdiag_t(p['wa'][i], T) for i in range(3)])
    wb = jnp.stack([_blockdiag_t(p['wb'][i], T) for i in range(3)])
    ba = jnp.stack([jnp.repeat(p['ba'][i], T).reshape(1, -1) for i in range(3)])
    bb = jnp.stack([jnp.repeat(p['bb'][i], T).reshape(1, -1) for i in range(3)])
    # BN (eval) folded into conv_d / down weights & biases
    wd = jnp.stack([_blockdiag_t(p['wd'][i] * s_bn[:, None], T) for i in range(3)])
    bd = jnp.repeat(p['bd'].sum(axis=0) * s_bn + b_bn, T).reshape(1, -1)
    wdn = _blockdiag_t(p['wdown'] * s_dn[:, None], T)
    bdn = jnp.repeat(p['bdown'] * s_dn + b_dn, T).reshape(1, -1)
    aT = jnp.transpose(p['A'] + p['PA'], (0, 2, 1))   # (A + PA)^T per subset
    return dict(aT=aT, wa=wa, ba=ba, wb=wb, bb=bb, wd=wd, bd=bd, wdn=wdn, bdn=bdn,
                inter=int(p['wa'].shape[1]))


def _fold_transformer(raw, d, H):
    dh = d // H
    layers = raw['layers']

    def per_head_w(mat, base):   # rows of (3d, d) in_proj -> (H, d, dh)
        return jnp.stack([mat[base + h * dh: base + (h + 1) * dh, :].T for h in range(H)])

    def per_head_b(vec, base):
        return jnp.stack([vec[base + h * dh: base + (h + 1) * dh].reshape(1, dh)
                          for h in range(H)])

    return dict(
        wq=jnp.stack([per_head_w(lp['w_in'], 0) for lp in layers]),        # (L,H,d,dh)
        bq=jnp.stack([per_head_b(lp['b_in'], 0) for lp in layers]),        # (L,H,1,dh)
        wk=jnp.stack([per_head_w(lp['w_in'], d) for lp in layers]),
        bk=jnp.stack([per_head_b(lp['b_in'], d) for lp in layers]),
        wv=jnp.stack([per_head_w(lp['w_in'], 2 * d) for lp in layers]),
        bv=jnp.stack([per_head_b(lp['b_in'], 2 * d) for lp in layers]),
        wo=jnp.stack([jnp.stack([lp['w_out'][:, h * dh:(h + 1) * dh].T for h in range(H)])
                      for lp in layers]),                                  # (L,H,dh,d)
        bo=jnp.stack([lp['b_out'].reshape(1, d) for lp in layers]),
        g1=jnp.stack([lp['g1'].reshape(1, d) for lp in layers]),
        b1=jnp.stack([lp['b1'].reshape(1, d) for lp in layers]),
        w1=jnp.stack([lp['w1'].T for lp in layers]),                       # (L,d,dff)
        bb1=jnp.stack([lp['bb1'].reshape(1, -1) for lp in layers]),
        w2=jnp.stack([lp['w2'].T for lp in layers]),                       # (L,dff,d)
        bb2=jnp.stack([lp['bb2'].reshape(1, d) for lp in layers]),
        g2=jnp.stack([lp['g2'].reshape(1, d) for lp in layers]),
        b2=jnp.stack([lp['b2'].reshape(1, d) for lp in layers]),
        gf=raw['gf'].reshape(1, d), bf=raw['bf'].reshape(1, d),
        wc=raw['w_cls'].T, bc=raw['b_cls'].reshape(1, -1),
    )


def fold_params(raw, T):
    V = NUM_NODE
    d = raw['d_model']
    H = raw['nhead']
    return dict(
        T=T, d_model=d, nhead=H, num_class=raw['num_class'],
        nlayers=len(raw['layers']), pe=raw['pe'],
        # data_bn (BatchNorm1d(34)) affine rearranged to the (V, 2*T) slab layout
        dbn_s=jnp.repeat(raw['dbn_scale'].reshape(V, 2), T, axis=1),
        dbn_b=jnp.repeat(raw['dbn_shift'].reshape(V, 2), T, axis=1),
        gcn1=_fold_gcn(raw['agcn1'], T),
        gcn2=_fold_gcn(raw['agcn2'], T),
        tr=_fold_transformer(raw, d, H),
    )


# ----------------------------------------------------------------------------
# Model forward (2 Pallas launches + tiny layout glue)
# ----------------------------------------------------------------------------

def agcn_transformer_forward(folded, src, mask):
    """src: (N, T, 34) float32, mask: (N, T) bool.  Returns (N*T, num_class) log-probs."""
    N, T, _ = src.shape
    V = NUM_NODE
    d = folded['d_model']
    assert T == folded['T'], "params were folded for a different T"

    # (N, T, 34) -> per-batch slab (N, V, 2*T) with column index c*T + t
    x0 = jnp.transpose(src.reshape(N, T, V, 2), (0, 2, 3, 1)).reshape(N, V, 2 * T)
    pooled = agcn_forward(folded, x0.astype(jnp.float32))        # (N, 1, d*T)

    # max-pooled GCN features -> (N, T, d)
    seq = jnp.transpose(pooled.reshape(N, d, T), (0, 2, 1))

    # batch-indexed PE (replicates the module) and key-padding bias
    pe_n = folded['pe'][:N].reshape(N, 1, d)
    kbias = jnp.where(mask, 0.0, -1e30).astype(jnp.float32).reshape(N, 1, T)

    out = transformer_forward(folded, seq, pe_n, kbias)          # (N, T, num_class)
    # use_crf=False path: view(N*T, -1) -> log_softmax (done in-kernel)
    # TODO(synk): CRF decode (use_crf=True) has no clean Pallas equivalent here.
    return out.reshape(N * T, folded['num_class'])


# ----------------------------------------------------------------------------
# Driver
# ----------------------------------------------------------------------------

if __name__ == "__main__":
    hidden_channel, out_channel = 16, 32
    nhead, num_encoder_layers, dim_feedforward, num_class = 4, 2, 64, 5
    N, T = 2, 16

    key = jax.random.PRNGKey(0)
    kp, kx = jax.random.split(key)
    raw = init_params(kp, hidden_channel, out_channel, nhead,
                      num_encoder_layers, dim_feedforward, num_class)
    folded = fold_params(raw, T)

    src = jax.random.normal(kx, (N, T, 2 * NUM_NODE), jnp.float32)
    # valid-length mask: batch 0 fully valid, batch 1 valid for first 12 frames
    mask = jnp.stack([jnp.ones((T,), bool), jnp.arange(T) < 12], axis=0)

    fwd = jax.jit(partial(agcn_transformer_forward, folded))
    out = jax.block_until_ready(fwd(src, mask))

    assert out.shape == (N * T, num_class), out.shape
    assert not bool(jnp.any(jnp.isnan(out)))
    print("KERNEL_OK")
</pallas_src>

<mosaic_0001>
module attributes {stable_mosaic.version = 11 : i64} {
  func.func @_agcn_kernel(%arg0: i32, %arg1: memref<1x17x32xf32, #tpu.memory_space<vmem>>, %arg2: memref<17x32xf32, #tpu.memory_space<vmem>>, %arg3: memref<17x32xf32, #tpu.memory_space<vmem>>, %arg4: memref<3x17x17xf32, #tpu.memory_space<vmem>>, %arg5: memref<3x32x64xf32, #tpu.memory_space<vmem>>, %arg6: memref<3x1x64xf32, #tpu.memory_space<vmem>>, %arg7: memref<3x32x64xf32, #tpu.memory_space<vmem>>, %arg8: memref<3x1x64xf32, #tpu.memory_space<vmem>>, %arg9: memref<3x32x256xf32, #tpu.memory_space<vmem>>, %arg10: memref<1x256xf32, #tpu.memory_space<vmem>>, %arg11: memref<32x256xf32, #tpu.memory_space<vmem>>, %arg12: memref<1x256xf32, #tpu.memory_space<vmem>>, %arg13: memref<3x17x17xf32, #tpu.memory_space<vmem>>, %arg14: memref<3x256x128xf32, #tpu.memory_space<vmem>>, %arg15: memref<3x1x128xf32, #tpu.memory_space<vmem>>, %arg16: memref<3x256x128xf32, #tpu.memory_space<vmem>>, %arg17: memref<3x1x128xf32, #tpu.memory_space<vmem>>, %arg18: memref<3x256x512xf32, #tpu.memory_space<vmem>>, %arg19: memref<1x512xf32, #tpu.memory_space<vmem>>, %arg20: memref<256x512xf32, #tpu.memory_space<vmem>>, %arg21: memref<1x512xf32, #tpu.memory_space<vmem>>, %arg22: memref<1x1x512xf32, #tpu.memory_space<vmem>>) attributes {dimension_semantics = [#tpu.dimension_semantics<parallel>], iteration_bounds = array<i64: 2>, scalar_prefetch = 0 : i64, scratch_operands = 0 : i64, tpu.core_type = #tpu.core_type<tc>, window_params = [{transform_indices = @transform_0, window_bounds = array<i64: 1, 17, 32>}, {pipeline_mode = #tpu.pipeline_mode<synchronous>, transform_indices = @transform_1, window_bounds = array<i64: 17, 32>}, {pipeline_mode = #tpu.pipeline_mode<synchronous>, transform_indices = @transform_2, window_bounds = array<i64: 17, 32>}, {pipeline_mode = #tpu.pipeline_mode<synchronous>, transform_indices = @transform_3, window_bounds = array<i64: 3, 17, 17>}, {pipeline_mode = #tpu.pipeline_mode<synchronous>, transform_indices = @transform_4, window_bounds = array<i64: 3, 32, 64>}, {pipeline_mode = #tpu.pipeline_mode<synchronous>, transform_indices = @transform_5, window_bounds = array<i64: 3, 1, 64>}, {pipeline_mode = #tpu.pipeline_mode<synchronous>, transform_indices = @transform_6, window_bounds = array<i64: 3, 32, 64>}, {pipeline_mode = #tpu.pipeline_mode<synchronous>, transform_indices = @transform_7, window_bounds = array<i64: 3, 1, 64>}, {pipeline_mode = #tpu.pipeline_mode<synchronous>, transform_indices = @transform_8, window_bounds = array<i64: 3, 32, 256>}, {pipeline_mode = #tpu.pipeline_mode<synchronous>, transform_indices = @transform_9, window_bounds = array<i64: 1, 256>}, {pipeline_mode = #tpu.pipeline_mode<synchronous>, transform_indices = @transform_10, window_bounds = array<i64: 32, 256>}, {pipeline_mode = #tpu.pipeline_mode<synchronous>, transform_indices = @transform_11, window_bounds = array<i64: 1, 256>}, {pipeline_mode = #tpu.pipeline_mode<synchronous>, transform_indices = @transform_12, window_bounds = array<i64: 3, 17, 17>}, {pipeline_mode = #tpu.pipeline_mode<synchronous>, transform_indices = @transform_13, window_bounds = array<i64: 3, 256, 128>}, {pipeline_mode = #tpu.pipeline_mode<synchronous>, transform_indices = @transform_14, window_bounds = array<i64: 3, 1, 128>}, {pipeline_mode = #tpu.pipeline_mode<synchronous>, transform_indices = @transform_15, window_bounds = array<i64: 3, 256, 128>}, {pipeline_mode = #tpu.pipeline_mode<synchronous>, transform_indices = @transform_16, window_bounds = array<i64: 3, 1, 128>}, {pipeline_mode = #tpu.pipeline_mode<synchronous>, transform_indices = @transform_17, window_bounds = array<i64: 3, 256, 512>}, {pipeline_mode = #tpu.pipeline_mode<synchronous>, transform_indices = @transform_18, window_bounds = array<i64: 1, 512>}, {pipeline_mode = #tpu.pipeline_mode<synchronous>, transform_indices = @transform_19, window_bounds = array<i64: 256, 512>}, {pipeline_mode = #tpu.pipeline_mode<synchronous>, transform_indices = @transform_20, window_bounds = array<i64: 1, 512>}, {transform_indices = @transform_21, window_bounds = array<i64: 1, 1, 512>}]} {
    %c0 = arith.constant 0 : index
    %c0_0 = arith.constant 0 : index
    %c0_1 = arith.constant 0 : index
    %0 = vector.load %arg1[%c0, %c0_0, %c0_1] : memref<1x17x32xf32, #tpu.memory_space<vmem>>, vector<1x17x32xf32>
    %1 = vector.shape_cast %0 : vector<1x17x32xf32> to vector<17x32xf32>
    %c0_2 = arith.constant 0 : index
    %c0_3 = arith.constant 0 : index
    %2 = vector.load %arg2[%c0_2, %c0_3] : memref<17x32xf32, #tpu.memory_space<vmem>>, vector<17x32xf32>
    %3 = arith.mulf %1, %2 : vector<17x32xf32>
    %c0_4 = arith.constant 0 : index
    %c0_5 = arith.constant 0 : index
    %4 = vector.load %arg3[%c0_4, %c0_5] : memref<17x32xf32, #tpu.memory_space<vmem>>, vector<17x32xf32>
    %5 = arith.addf %3, %4 : vector<17x32xf32>
    %c0_6 = arith.constant 0 : index
    %c0_7 = arith.constant 0 : index
    %c0_8 = arith.constant 0 : index
    %6 = vector.load %arg5[%c0_6, %c0_7, %c0_8] : memref<3x32x64xf32, #tpu.memory_space<vmem>>, vector<1x32x64xf32>
    %7 = vector.shape_cast %6 : vector<1x32x64xf32> to vector<32x64xf32>
    %cst = arith.constant dense<0.000000e+00> : vector<17x64xf32>
    %8 = tpu.matmul %5, %7, %cst {dimension_numbers = #tpu.dot_dimension_numbers<[1], [0], [0], [1], [0, 0, 1, 1], [], []>} : vector<17x32xf32>, vector<32x64xf32>, vector<17x64xf32> -> vector<17x64xf32>
    %c0_9 = arith.constant 0 : index
    %c0_10 = arith.constant 0 : index
    %c0_11 = arith.constant 0 : index
    %9 = vector.load %arg6[%c0_9, %c0_10, %c0_11] : memref<3x1x64xf32, #tpu.memory_space<vmem>>, vector<1x1x64xf32>
    %10 = vector.shape_cast %9 : vector<1x1x64xf32> to vector<1x64xf32>
    %11 = vector.broadcast %10 : vector<1x64xf32> to vector<17x64xf32>
    %12 = arith.addf %8, %11 : vector<17x64xf32>
    %c0_12 = arith.constant 0 : index
    %c0_13 = arith.constant 0 : index
    %c0_14 = arith.constant 0 : index
    %13 = vector.load %arg7[%c0_12, %c0_13, %c0_14] : memref<3x32x64xf32, #tpu.memory_space<vmem>>, vector<1x32x64xf32>
    %14 = vector.shape_cast %13 : vector<1x32x64xf32> to vector<32x64xf32>
    %cst_15 = arith.constant dense<0.000000e+00> : vector<17x64xf32>
    %15 = tpu.matmul %5, %14, %cst_15 {dimension_numbers = #tpu.dot_dimension_numbers<[1], [0], [0], [1], [0, 0, 1, 1], [], []>} : vector<17x32xf32>, vector<32x64xf32>, vector<17x64xf32> -> vector<17x64xf32>
    %c0_16 = arith.constant 0 : index
    %c0_17 = arith.constant 0 : index
    %c0_18 = arith.constant 0 : index
    %16 = vector.load %arg8[%c0_16, %c0_17, %c0_18] : memref<3x1x64xf32, #tpu.memory_space<vmem>>, vector<1x1x64xf32>
    %17 = vector.shape_cast %16 : vector<1x1x64xf32> to vector<1x64xf32>
    %18 = vector.broadcast %17 : vector<1x64xf32> to vector<17x64xf32>
    %19 = arith.addf %15, %18 : vector<17x64xf32>
    %cst_19 = arith.constant dense<0.000000e+00> : vector<17x17xf32>
    %20 = tpu.matmul %19, %12, %cst_19 {dimension_numbers = #tpu.dot_dimension_numbers<[1], [1], [0], [0], [0, 0, 1, 0], [], []>} : vector<17x64xf32>, vector<17x64xf32>, vector<17x17xf32> -> vector<17x17xf32>
    %cst_20 = arith.constant 1.562500e-02 : f32
    %21 = vector.broadcast %cst_20 : f32 to vector<17x17xf32>
    %22 = arith.mulf %20, %21 : vector<17x17xf32>
    %cst_21 = arith.constant dense<0xFF800000> : vector<17xf32>
    %23 = vector.multi_reduction <maximumf>, %22, %cst_21 [1] : vector<17x17xf32> to vector<17xf32>
    %24 = vector.shape_cast %23 : vector<17xf32> to vector<17x1xf32>
    %25 = vector.broadcast %24 : vector<17x1xf32> to vector<17x17xf32>
    %26 = arith.subf %22, %25 : vector<17x17xf32>
    %27 = math.exp %26 : vector<17x17xf32>
    %cst_22 = arith.constant dense<0.000000e+00> : vector<17xf32>
    %28 = vector.multi_reduction <add>, %27, %cst_22 [1] : vector<17x17xf32> to vector<17xf32>
    %29 = vector.shape_cast %28 : vector<17xf32> to vector<17x1xf32>
    %30 = tpu.reciprocal %29 {approx = true} : vector<17x1xf32> -> vector<17x1xf32>
    %31 = vector.broadcast %30 : vector<17x1xf32> to vector<17x17xf32>
    %32 = arith.mulf %27, %31 : vector<17x17xf32>
    %c0_23 = arith.constant 0 : index
    %c0_24 = arith.constant 0 : index
    %c0_25 = arith.constant 0 : index
    %33 = vector.load %arg4[%c0_23, %c0_24, %c0_25] : memref<3x17x17xf32, #tpu.memory_space<vmem>>, vector<1x17x17xf32>
    %34 = vector.shape_cast %33 : vector<1x17x17xf32> to vector<17x17xf32>
    %35 = arith.addf %32, %34 : vector<17x17xf32>
    %cst_26 = arith.constant dense<0.000000e+00> : vector<17x32xf32>
    %36 = tpu.matmul %35, %5, %cst_26 {dimension_numbers = #tpu.dot_dimension_numbers<[1], [0], [0], [1], [0, 0, 1, 1], [], []>} : vector<17x17xf32>, vector<17x32xf32>, vector<17x32xf32> -> vector<17x32xf32>
    %c0_27 = arith.constant 0 : index
    %c0_28 = arith.constant 0 : index
    %c0_29 = arith.constant 0 : index
    %37 = vector.load %arg9[%c0_27, %c0_28, %c0_29] : memref<3x32x256xf32, #tpu.memory_space<vmem>>, vector<1x32x256xf32>
    %38 = vector.shape_cast %37 : vector<1x32x256xf32> to vector<32x256xf32>
    %cst_30 = arith.constant dense<0.000000e+00> : vector<17x256xf32>
    %39 = tpu.matmul %36, %38, %cst_30 {dimension_numbers = #tpu.dot_dimension_numbers<[1], [0], [0], [1], [0, 0, 1, 1], [], []>} : vector<17x32xf32>, vector<32x256xf32>, vector<17x256xf32> -> vector<17x256xf32>
    %c1 = arith.constant 1 : index
    %c0_31 = arith.constant 0 : index
    %c0_32 = arith.constant 0 : index
    %40 = vector.load %arg5[%c1, %c0_31, %c0_32] : memref<3x32x64xf32, #tpu.memory_space<vmem>>, vector<1x32x64xf32>
    %41 = vector.shape_cast %40 : vector<1x32x64xf32> to vector<32x64xf32>
    %cst_33 = arith.constant dense<0.000000e+00> : vector<17x64xf32>
    %42 = tpu.matmul %5, %41, %cst_33 {dimension_numbers = #tpu.dot_dimension_numbers<[1], [0], [0], [1], [0, 0, 1, 1], [], []>} : vector<17x32xf32>, vector<32x64xf32>, vector<17x64xf32> -> vector<17x64xf32>
    %c1_34 = arith.constant 1 : index
    %c0_35 = arith.constant 0 : index
    %c0_36 = arith.constant 0 : index
    %43 = vector.load %arg6[%c1_34, %c0_35, %c0_36] : memref<3x1x64xf32, #tpu.memory_space<vmem>>, vector<1x1x64xf32>
    %44 = vector.shape_cast %43 : vector<1x1x64xf32> to vector<1x64xf32>
    %45 = vector.broadcast %44 : vector<1x64xf32> to vector<17x64xf32>
    %46 = arith.addf %42, %45 : vector<17x64xf32>
    %c1_37 = arith.constant 1 : index
    %c0_38 = arith.constant 0 : index
    %c0_39 = arith.constant 0 : index
    %47 = vector.load %arg7[%c1_37, %c0_38, %c0_39] : memref<3x32x64xf32, #tpu.memory_space<vmem>>, vector<1x32x64xf32>
    %48 = vector.shape_cast %47 : vector<1x32x64xf32> to vector<32x64xf32>
    %cst_40 = arith.constant dense<0.000000e+00> : vector<17x64xf32>
    %49 = tpu.matmul %5, %48, %cst_40 {dimension_numbers = #tpu.dot_dimension_numbers<[1], [0], [0], [1], [0, 0, 1, 1], [], []>} : vector<17x32xf32>, vector<32x64xf32>, vector<17x64xf32> -> vector<17x64xf32>
    %c1_41 = arith.constant 1 : index
    %c0_42 = arith.constant 0 : index
    %c0_43 = arith.constant 0 : index
    %50 = vector.load %arg8[%c1_41, %c0_42, %c0_43] : memref<3x1x64xf32, #tpu.memory_space<vmem>>, vector<1x1x64xf32>
    %51 = vector.shape_cast %50 : vector<1x1x64xf32> to vector<1x64xf32>
    %52 = vector.broadcast %51 : vector<1x64xf32> to vector<17x64xf32>
    %53 = arith.addf %49, %52 : vector<17x64xf32>
    %cst_44 = arith.constant dense<0.000000e+00> : vector<17x17xf32>
    %54 = tpu.matmul %53, %46, %cst_44 {dimension_numbers = #tpu.dot_dimension_numbers<[1], [1], [0], [0], [0, 0, 1, 0], [], []>} : vector<17x64xf32>, vector<17x64xf32>, vector<17x17xf32> -> vector<17x17xf32>
    %cst_45 = arith.constant 1.562500e-02 : f32
    %55 = vector.broadcast %cst_45 : f32 to vector<17x17xf32>
    %56 = arith.mulf %54, %55 : vector<17x17xf32>
    %cst_46 = arith.constant dense<0xFF800000> : vector<17xf32>
    %57 = vector.multi_reduction <maximumf>, %56, %cst_46 [1] : vector<17x17xf32> to vector<17xf32>
    %58 = vector.shape_cast %57 : vector<17xf32> to vector<17x1xf32>
    %59 = vector.broadcast %58 : vector<17x1xf32> to vector<17x17xf32>
    %60 = arith.subf %56, %59 : vector<17x17xf32>
    %61 = math.exp %60 : vector<17x17xf32>
    %cst_47 = arith.constant dense<0.000000e+00> : vector<17xf32>
    %62 = vector.multi_reduction <add>, %61, %cst_47 [1] : vector<17x17xf32> to vector<17xf32>
    %63 = vector.shape_cast %62 : vector<17xf32> to vector<17x1xf32>
    %64 = tpu.reciprocal %63 {approx = true} : vector<17x1xf32> -> vector<17x1xf32>
    %65 = vector.broadcast %64 : vector<17x1xf32> to vector<17x17xf32>
    %66 = arith.mulf %61, %65 : vector<17x17xf32>
    %c1_48 = arith.constant 1 : index
    %c0_49 = arith.constant 0 : index
    %c0_50 = arith.constant 0 : index
    %67 = vector.load %arg4[%c1_48, %c0_49, %c0_50] : memref<3x17x17xf32, #tpu.memory_space<vmem>>, vector<1x17x17xf32>
    %68 = vector.shape_cast %67 : vector<1x17x17xf32> to vector<17x17xf32>
    %69 = arith.addf %66, %68 : vector<17x17xf32>
    %cst_51 = arith.constant dense<0.000000e+00> : vector<17x32xf32>
    %70 = tpu.matmul %69, %5, %cst_51 {dimension_numbers = #tpu.dot_dimension_numbers<[1], [0], [0], [1], [0, 0, 1, 1], [], []>} : vector<17x17xf32>, vector<17x32xf32>, vector<17x32xf32> -> vector<17x32xf32>
    %c1_52 = arith.constant 1 : index
    %c0_53 = arith.constant 0 : index
    %c0_54 = arith.constant 0 : index
    %71 = vector.load %arg9[%c1_52, %c0_53, %c0_54] : memref<3x32x256xf32, #tpu.memory_space<vmem>>, vector<1x32x256xf32>
    %72 = vector.shape_cast %71 : vector<1x32x256xf32> to vector<32x256xf32>
    %cst_55 = arith.constant dense<0.000000e+00> : vector<17x256xf32>
    %73 = tpu.matmul %70, %72, %cst_55 {dimension_numbers = #tpu.dot_dimension_numbers<[1], [0], [0], [1], [0, 0, 1, 1], [], []>} : vector<17x32xf32>, vector<32x256xf32>, vector<17x256xf32> -> vector<17x256xf32>
    %74 = arith.addf %39, %73 : vector<17x256xf32>
    %c2 = arith.constant 2 : index
    %c0_56 = arith.constant 0 : index
    %c0_57 = arith.constant 0 : index
    %75 = vector.load %arg5[%c2, %c0_56, %c0_57] : memref<3x32x64xf32, #tpu.memory_space<vmem>>, vector<1x32x64xf32>
    %76 = vector.shape_cast %75 : vector<1x32x64xf32> to vector<32x64xf32>
    %cst_58 = arith.constant dense<0.000000e+00> : vector<17x64xf32>
    %77 = tpu.matmul %5, %76, %cst_58 {dimension_numbers = #tpu.dot_dimension_numbers<[1], [0], [0], [1], [0, 0, 1, 1], [], []>} : vector<17x32xf32>, vector<32x64xf32>, vector<17x64xf32> -> vector<17x64xf32>
    %c2_59 = arith.constant 2 : index
    %c0_60 = arith.constant 0 : index
    %c0_61 = arith.constant 0 : index
    %78 = vector.load %arg6[%c2_59, %c0_60, %c0_61] : memref<3x1x64xf32, #tpu.memory_space<vmem>>, vector<1x1x64xf32>
    %79 = vector.shape_cast %78 : vector<1x1x64xf32> to vector<1x64xf32>
    %80 = vector.broadcast %79 : vector<1x64xf32> to vector<17x64xf32>
    %81 = arith.addf %77, %80 : vector<17x64xf32>
    %c2_62 = arith.constant 2 : index
    %c0_63 = arith.constant 0 : index
    %c0_64 = arith.constant 0 : index
    %82 = vector.load %arg7[%c2_62, %c0_63, %c0_64] : memref<3x32x64xf32, #tpu.memory_space<vmem>>, vector<1x32x64xf32>
    %83 = vector.shape_cast %82 : vector<1x32x64xf32> to vector<32x64xf32>
    %cst_65 = arith.constant dense<0.000000e+00> : vector<17x64xf32>
    %84 = tpu.matmul %5, %83, %cst_65 {dimension_numbers = #tpu.dot_dimension_numbers<[1], [0], [0], [1], [0, 0, 1, 1], [], []>} : vector<17x32xf32>, vector<32x64xf32>, vector<17x64xf32> -> vector<17x64xf32>
    %c2_66 = arith.constant 2 : index
    %c0_67 = arith.constant 0 : index
    %c0_68 = arith.constant 0 : index
    %85 = vector.load %arg8[%c2_66, %c0_67, %c0_68] : memref<3x1x64xf32, #tpu.memory_space<vmem>>, vector<1x1x64xf32>
    %86 = vector.shape_cast %85 : vector<1x1x64xf32> to vector<1x64xf32>
    %87 = vector.broadcast %86 : vector<1x64xf32> to vector<17x64xf32>
    %88 = arith.addf %84, %87 : vector<17x64xf32>
    %cst_69 = arith.constant dense<0.000000e+00> : vector<17x17xf32>
    %89 = tpu.matmul %88, %81, %cst_69 {dimension_numbers = #tpu.dot_dimension_numbers<[1], [1], [0], [0], [0, 0, 1, 0], [], []>} : vector<17x64xf32>, vector<17x64xf32>, vector<17x17xf32> -> vector<17x17xf32>
    %cst_70 = arith.constant 1.562500e-02 : f32
    %90 = vector.broadcast %cst_70 : f32 to vector<17x17xf32>
    %91 = arith.mulf %89, %90 : vector<17x17xf32>
    %cst_71 = arith.constant dense<0xFF800000> : vector<17xf32>
    %92 = vector.multi_reduction <maximumf>, %91, %cst_71 [1] : vector<17x17xf32> to vector<17xf32>
    %93 = vector.shape_cast %92 : vector<17xf32> to vector<17x1xf32>
    %94 = vector.broadcast %93 : vector<17x1xf32> to vector<17x17xf32>
    %95 = arith.subf %91, %94 : vector<17x17xf32>
    %96 = math.exp %95 : vector<17x17xf32>
    %cst_72 = arith.constant dense<0.000000e+00> : vector<17xf32>
    %97 = vector.multi_reduction <add>, %96, %cst_72 [1] : vector<17x17xf32> to vector<17xf32>
    %98 = vector.shape_cast %97 : vector<17xf32> to vector<17x1xf32>
    %99 = tpu.reciprocal %98 {approx = true} : vector<17x1xf32> -> vector<17x1xf32>
    %100 = vector.broadcast %99 : vector<17x1xf32> to vector<17x17xf32>
    %101 = arith.mulf %96, %100 : vector<17x17xf32>
    %c2_73 = arith.constant 2 : index
    %c0_74 = arith.constant 0 : index
    %c0_75 = arith.constant 0 : index
    %102 = vector.load %arg4[%c2_73, %c0_74, %c0_75] : memref<3x17x17xf32, #tpu.memory_space<vmem>>, vector<1x17x17xf32>
    %103 = vector.shape_cast %102 : vector<1x17x17xf32> to vector<17x17xf32>
    %104 = arith.addf %101, %103 : vector<17x17xf32>
    %cst_76 = arith.constant dense<0.000000e+00> : vector<17x32xf32>
    %105 = tpu.matmul %104, %5, %cst_76 {dimension_numbers = #tpu.dot_dimension_numbers<[1], [0], [0], [1], [0, 0, 1, 1], [], []>} : vector<17x17xf32>, vector<17x32xf32>, vector<17x32xf32> -> vector<17x32xf32>
    %c2_77 = arith.constant 2 : index
    %c0_78 = arith.constant 0 : index
    %c0_79 = arith.constant 0 : index
    %106 = vector.load %arg9[%c2_77, %c0_78, %c0_79] : memref<3x32x256xf32, #tpu.memory_space<vmem>>, vector<1x32x256xf32>
    %107 = vector.shape_cast %106 : vector<1x32x256xf32> to vector<32x256xf32>
    %cst_80 = arith.constant dense<0.000000e+00> : vector<17x256xf32>
    %108 = tpu.matmul %105, %107, %cst_80 {dimension_numbers = #tpu.dot_dimension_numbers<[1], [0], [0], [1], [0, 0, 1, 1], [], []>} : vector<17x32xf32>, vector<32x256xf32>, vector<17x256xf32> -> vector<17x256xf32>
    %109 = arith.addf %74, %108 : vector<17x256xf32>
    %c0_81 = arith.constant 0 : index
    %c0_82 = arith.constant 0 : index
    %110 = vector.load %arg10[%c0_81, %c0_82] : memref<1x256xf32, #tpu.memory_space<vmem>>, vector<1x256xf32>
    %111 = vector.broadcast %110 : vector<1x256xf32> to vector<17x256xf32>
    %112 = arith.addf %109, %111 : vector<17x256xf32>
    %c0_83 = arith.constant 0 : index
    %c0_84 = arith.constant 0 : index
    %113 = vector.load %arg11[%c0_83, %c0_84] : memref<32x256xf32, #tpu.memory_space<vmem>>, vector<32x256xf32>
    %cst_85 = arith.constant dense<0.000000e+00> : vector<17x256xf32>
    %114 = tpu.matmul %5, %113, %cst_85 {dimension_numbers = #tpu.dot_dimension_numbers<[1], [0], [0], [1], [0, 0, 1, 1], [], []>} : vector<17x32xf32>, vector<32x256xf32>, vector<17x256xf32> -> vector<17x256xf32>
    %c0_86 = arith.constant 0 : index
    %c0_87 = arith.constant 0 : index
    %115 = vector.load %arg12[%c0_86, %c0_87] : memref<1x256xf32, #tpu.memory_space<vmem>>, vector<1x256xf32>
    %116 = vector.broadcast %115 : vector<1x256xf32> to vector<17x256xf32>
    %117 = arith.addf %114, %116 : vector<17x256xf32>
    %118 = arith.addf %112, %117 : vector<17x256xf32>
    %cst_88 = arith.constant 0.000000e+00 : f32
    %119 = vector.broadcast %cst_88 : f32 to vector<17x256xf32>
    %120 = arith.maximumf %118, %119 : vector<17x256xf32>
    %c0_89 = arith.constant 0 : index
    %c0_90 = arith.constant 0 : index
    %c0_91 = arith.constant 0 : index
    %121 = vector.load %arg14[%c0_89, %c0_90, %c0_91] : memref<3x256x128xf32, #tpu.memory_space<vmem>>, vector<1x256x128xf32>
    %122 = vector.shape_cast %121 : vector<1x256x128xf32> to vector<256x128xf32>
    %cst_92 = arith.constant dense<0.000000e+00> : vector<17x128xf32>
    %123 = tpu.matmul %120, %122, %cst_92 {dimension_numbers = #tpu.dot_dimension_numbers<[1], [0], [0], [1], [0, 0, 1, 1], [], []>} : vector<17x256xf32>, vector<256x128xf32>, vector<17x128xf32> -> vector<17x128xf32>
    %c0_93 = arith.constant 0 : index
    %c0_94 = arith.constant 0 : index
    %c0_95 = arith.constant 0 : index
    %124 = vector.load %arg15[%c0_93, %c0_94, %c0_95] : memref<3x1x128xf32, #tpu.memory_space<vmem>>, vector<1x1x128xf32>
    %125 = vector.shape_cast %124 : vector<1x1x128xf32> to vector<1x128xf32>
    %126 = vector.broadcast %125 : vector<1x128xf32> to vector<17x128xf32>
    %127 = arith.addf %123, %126 : vector<17x128xf32>
    %c0_96 = arith.constant 0 : index
    %c0_97 = arith.constant 0 : index
    %c0_98 = arith.constant 0 : index
    %128 = vector.load %arg16[%c0_96, %c0_97, %c0_98] : memref<3x256x128xf32, #tpu.memory_space<vmem>>, vector<1x256x128xf32>
    %129 = vector.shape_cast %128 : vector<1x256x128xf32> to vector<256x128xf32>
    %cst_99 = arith.constant dense<0.000000e+00> : vector<17x128xf32>
    %130 = tpu.matmul %120, %129, %cst_99 {dimension_numbers = #tpu.dot_dimension_numbers<[1], [0], [0], [1], [0, 0, 1, 1], [], []>} : vector<17x256xf32>, vector<256x128xf32>, vector<17x128xf32> -> vector<17x128xf32>
    %c0_100 = arith.constant 0 : index
    %c0_101 = arith.constant 0 : index
    %c0_102 = arith.constant 0 : index
    %131 = vector.load %arg17[%c0_100, %c0_101, %c0_102] : memref<3x1x128xf32, #tpu.memory_space<vmem>>, vector<1x1x128xf32>
    %132 = vector.shape_cast %131 : vector<1x1x128xf32> to vector<1x128xf32>
    %133 = vector.broadcast %132 : vector<1x128xf32> to vector<17x128xf32>
    %134 = arith.addf %130, %133 : vector<17x128xf32>
    %cst_103 = arith.constant dense<0.000000e+00> : vector<17x17xf32>
    %135 = tpu.matmul %134, %127, %cst_103 {dimension_numbers = #tpu.dot_dimension_numbers<[1], [1], [0], [0], [0, 0, 1, 0], [], []>} : vector<17x128xf32>, vector<17x128xf32>, vector<17x17xf32> -> vector<17x17xf32>
    %cst_104 = arith.constant 7.812500e-03 : f32
    %136 = vector.broadcast %cst_104 : f32 to vector<17x17xf32>
    %137 = arith.mulf %135, %136 : vector<17x17xf32>
    %cst_105 = arith.constant dense<0xFF800000> : vector<17xf32>
    %138 = vector.multi_reduction <maximumf>, %137, %cst_105 [1] : vector<17x17xf32> to vector<17xf32>
    %139 = vector.shape_cast %138 : vector<17xf32> to vector<17x1xf32>
    %140 = vector.broadcast %139 : vector<17x1xf32> to vector<17x17xf32>
    %141 = arith.subf %137, %140 : vector<17x17xf32>
    %142 = math.exp %141 : vector<17x17xf32>
    %cst_106 = arith.constant dense<0.000000e+00> : vector<17xf32>
    %143 = vector.multi_reduction <add>, %142, %cst_106 [1] : vector<17x17xf32> to vector<17xf32>
    %144 = vector.shape_cast %143 : vector<17xf32> to vector<17x1xf32>
    %145 = tpu.reciprocal %144 {approx = true} : vector<17x1xf32> -> vector<17x1xf32>
    %146 = vector.broadcast %145 : vector<17x1xf32> to vector<17x17xf32>
    %147 = arith.mulf %142, %146 : vector<17x17xf32>
    %c0_107 = arith.constant 0 : index
    %c0_108 = arith.constant 0 : index
    %c0_109 = arith.constant 0 : index
    %148 = vector.load %arg13[%c0_107, %c0_108, %c0_109] : memref<3x17x17xf32, #tpu.memory_space<vmem>>, vector<1x17x17xf32>
    %149 = vector.shape_cast %148 : vector<1x17x17xf32> to vector<17x17xf32>
    %150 = arith.addf %147, %149 : vector<17x17xf32>
    %cst_110 = arith.constant dense<0.000000e+00> : vector<17x256xf32>
    %151 = tpu.matmul %150, %120, %cst_110 {dimension_numbers = #tpu.dot_dimension_numbers<[1], [0], [0], [1], [0, 0, 1, 1], [], []>} : vector<17x17xf32>, vector<17x256xf32>, vector<17x256xf32> -> vector<17x256xf32>
    %c0_111 = arith.constant 0 : index
    %c0_112 = arith.constant 0 : index
    %c0_113 = arith.constant 0 : index
    %152 = vector.load %arg18[%c0_111, %c0_112, %c0_113] : memref<3x256x512xf32, #tpu.memory_space<vmem>>, vector<1x256x512xf32>
    %153 = vector.shape_cast %152 : vector<1x256x512xf32> to vector<256x512xf32>
    %cst_114 = arith.constant dense<0.000000e+00> : vector<17x512xf32>
    %154 = tpu.matmul %151, %153, %cst_114 {dimension_numbers = #tpu.dot_dimension_numbers<[1], [0], [0], [1], [0, 0, 1, 1], [], []>} : vector<17x256xf32>, vector<256x512xf32>, vector<17x512xf32> -> vector<17x512xf32>
    %c1_115 = arith.constant 1 : index
    %c0_116 = arith.constant 0 : index
    %c0_117 = arith.constant 0 : index
    %155 = vector.load %arg14[%c1_115, %c0_116, %c0_117] : memref<3x256x128xf32, #tpu.memory_space<vmem>>, vector<1x256x128xf32>
    %156 = vector.shape_cast %155 : vector<1x256x128xf32> to vector<256x128xf32>
    %cst_118 = arith.constant dense<0.000000e+00> : vector<17x128xf32>
    %157 = tpu.matmul %120, %156, %cst_118 {dimension_numbers = #tpu.dot_dimension_numbers<[1], [0], [0], [1], [0, 0, 1, 1], [], []>} : vector<17x256xf32>, vector<256x128xf32>, vector<17x128xf32> -> vector<17x128xf32>
    %c1_119 = arith.constant 1 : index
    %c0_120 = arith.constant 0 : index
    %c0_121 = arith.constant 0 : index
    %158 = vector.load %arg15[%c1_119, %c0_120, %c0_121] : memref<3x1x128xf32, #tpu.memory_space<vmem>>, vector<1x1x128xf32>
    %159 = vector.shape_cast %158 : vector<1x1x128xf32> to vector<1x128xf32>
    %160 = vector.broadcast %159 : vector<1x128xf32> to vector<17x128xf32>
    %161 = arith.addf %157, %160 : vector<17x128xf32>
    %c1_122 = arith.constant 1 : index
    %c0_123 = arith.constant 0 : index
    %c0_124 = arith.constant 0 : index
    %162 = vector.load %arg16[%c1_122, %c0_123, %c0_124] : memref<3x256x128xf32, #tpu.memory_space<vmem>>, vector<1x256x128xf32>
    %163 = vector.shape_cast %162 : vector<1x256x128xf32> to vector<256x128xf32>
    %cst_125 = arith.constant dense<0.000000e+00> : vector<17x128xf32>
    %164 = tpu.matmul %120, %163, %cst_125 {dimension_numbers = #tpu.dot_dimension_numbers<[1], [0], [0], [1], [0, 0, 1, 1], [], []>} : vector<17x256xf32>, vector<256x128xf32>, vector<17x128xf32> -> vector<17x128xf32>
    %c1_126 = arith.constant 1 : index
    %c0_127 = arith.constant 0 : index
    %c0_128 = arith.constant 0 : index
    %165 = vector.load %arg17[%c1_126, %c0_127, %c0_128] : memref<3x1x128xf32, #tpu.memory_space<vmem>>, vector<1x1x128xf32>
    %166 = vector.shape_cast %165 : vector<1x1x128xf32> to vector<1x128xf32>
    %167 = vector.broadcast %166 : vector<1x128xf32> to vector<17x128xf32>
    %168 = arith.addf %164, %167 : vector<17x128xf32>
    %cst_129 = arith.constant dense<0.000000e+00> : vector<17x17xf32>
    %169 = tpu.matmul %168, %161, %cst_129 {dimension_numbers = #tpu.dot_dimension_numbers<[1], [1], [0], [0], [0, 0, 1, 0], [], []>} : vector<17x128xf32>, vector<17x128xf32>, vector<17x17xf32> -> vector<17x17xf32>
    %cst_130 = arith.constant 7.812500e-03 : f32
    %170 = vector.broadcast %cst_130 : f32 to vector<17x17xf32>
    %171 = arith.mulf %169, %170 : vector<17x17xf32>
    %cst_131 = arith.constant dense<0xFF800000> : vector<17xf32>
    %172 = vector.multi_reduction <maximumf>, %171, %cst_131 [1] : vector<17x17xf32> to vector<17xf32>
    %173 = vector.shape_cast %172 : vector<17xf32> to vector<17x1xf32>
    %174 = vector.broadcast %173 : vector<17x1xf32> to vector<17x17xf32>
    %175 = arith.subf %171, %174 : vector<17x17xf32>
    %176 = math.exp %175 : vector<17x17xf32>
    %cst_132 = arith.constant dense<0.000000e+00> : vector<17xf32>
    %177 = vector.multi_reduction <add>, %176, %cst_132 [1] : vector<17x17xf32> to vector<17xf32>
    %178 = vector.shape_cast %177 : vector<17xf32> to vector<17x1xf32>
    %179 = tpu.reciprocal %178 {approx = true} : vector<17x1xf32> -> vector<17x1xf32>
    %180 = vector.broadcast %179 : vector<17x1xf32> to vector<17x17xf32>
    %181 = arith.mulf %176, %180 : vector<17x17xf32>
    %c1_133 = arith.constant 1 : index
    %c0_134 = arith.constant 0 : index
    %c0_135 = arith.constant 0 : index
    %182 = vector.load %arg13[%c1_133, %c0_134, %c0_135] : memref<3x17x17xf32, #tpu.memory_space<vmem>>, vector<1x17x17xf32>
    %183 = vector.shape_cast %182 : vector<1x17x17xf32> to vector<17x17xf32>
    %184 = arith.addf %181, %183 : vector<17x17xf32>
    %cst_136 = arith.constant dense<0.000000e+00> : vector<17x256xf32>
    %185 = tpu.matmul %184, %120, %cst_136 {dimension_numbers = #tpu.dot_dimension_numbers<[1], [0], [0], [1], [0, 0, 1, 1], [], []>} : vector<17x17xf32>, vector<17x256xf32>, vector<17x256xf32> -> vector<17x256xf32>
    %c1_137 = arith.constant 1 : index
    %c0_138 = arith.constant 0 : index
    %c0_139 = arith.constant 0 : index
    %186 = vector.load %arg18[%c1_137, %c0_138, %c0_139] : memref<3x256x512xf32, #tpu.memory_space<vmem>>, vector<1x256x512xf32>
    %187 = vector.shape_cast %186 : vector<1x256x512xf32> to vector<256x512xf32>
    %cst_140 = arith.constant dense<0.000000e+00> : vector<17x512xf32>
    %188 = tpu.matmul %185, %187, %cst_140 {dimension_numbers = #tpu.dot_dimension_numbers<[1], [0], [0], [1], [0, 0, 1, 1], [], []>} : vector<17x256xf32>, vector<256x512xf32>, vector<17x512xf32> -> vector<17x512xf32>
    %189 = arith.addf %154, %188 : vector<17x512xf32>
    %c2_141 = arith.constant 2 : index
    %c0_142 = arith.constant 0 : index
    %c0_143 = arith.constant 0 : index
    %190 = vector.load %arg14[%c2_141, %c0_142, %c0_143] : memref<3x256x128xf32, #tpu.memory_space<vmem>>, vector<1x256x128xf32>
    %191 = vector.shape_cast %190 : vector<1x256x128xf32> to vector<256x128xf32>
    %cst_144 = arith.constant dense<0.000000e+00> : vector<17x128xf32>
    %192 = tpu.matmul %120, %191, %cst_144 {dimension_numbers = #tpu.dot_dimension_numbers<[1], [0], [0], [1], [0, 0, 1, 1], [], []>} : vector<17x256xf32>, vector<256x128xf32>, vector<17x128xf32> -> vector<17x128xf32>
    %c2_145 = arith.constant 2 : index
    %c0_146 = arith.constant 0 : index
    %c0_147 = arith.constant 0 : index
    %193 = vector.load %arg15[%c2_145, %c0_146, %c0_147] : memref<3x1x128xf32, #tpu.memory_space<vmem>>, vector<1x1x128xf32>
    %194 = vector.shape_cast %193 : vector<1x1x128xf32> to vector<1x128xf32>
    %195 = vector.broadcast %194 : vector<1x128xf32> to vector<17x128xf32>
    %196 = arith.addf %192, %195 : vector<17x128xf32>
    %c2_148 = arith.constant 2 : index
    %c0_149 = arith.constant 0 : index
    %c0_150 = arith.constant 0 : index
    %197 = vector.load %arg16[%c2_148, %c0_149, %c0_150] : memref<3x256x128xf32, #tpu.memory_space<vmem>>, vector<1x256x128xf32>
    %198 = vector.shape_cast %197 : vector<1x256x128xf32> to vector<256x128xf32>
    %cst_151 = arith.constant dense<0.000000e+00> : vector<17x128xf32>
    %199 = tpu.matmul %120, %198, %cst_151 {dimension_numbers = #tpu.dot_dimension_numbers<[1], [0], [0], [1], [0, 0, 1, 1], [], []>} : vector<17x256xf32>, vector<256x128xf32>, vector<17x128xf32> -> vector<17x128xf32>
    %c2_152 = arith.constant 2 : index
    %c0_153 = arith.constant 0 : index
    %c0_154 = arith.constant 0 : index
    %200 = vector.load %arg17[%c2_152, %c0_153, %c0_154] : memref<3x1x128xf32, #tpu.memory_space<vmem>>, vector<1x1x128xf32>
    %201 = vector.shape_cast %200 : vector<1x1x128xf32> to vector<1x128xf32>
    %202 = vector.broadcast %201 : vector<1x128xf32> to vector<17x128xf32>
    %203 = arith.addf %199, %202 : vector<17x128xf32>
    %cst_155 = arith.constant dense<0.000000e+00> : vector<17x17xf32>
    %204 = tpu.matmul %203, %196, %cst_155 {dimension_numbers = #tpu.dot_dimension_numbers<[1], [1], [0], [0], [0, 0, 1, 0], [], []>} : vector<17x128xf32>, vector<17x128xf32>, vector<17x17xf32> -> vector<17x17xf32>
    %cst_156 = arith.constant 7.812500e-03 : f32
    %205 = vector.broadcast %cst_156 : f32 to vector<17x17xf32>
    %206 = arith.mulf %204, %205 : vector<17x17xf32>
    %cst_157 = arith.constant dense<0xFF800000> : vector<17xf32>
    %207 = vector.multi_reduction <maximumf>, %206, %cst_157 [1] : vector<17x17xf32> to vector<17xf32>
    %208 = vector.shape_cast %207 : vector<17xf32> to vector<17x1xf32>
    %209 = vector.broadcast %208 : vector<17x1xf32> to vector<17x17xf32>
    %210 = arith.subf %206, %209 : vector<17x17xf32>
    %211 = math.exp %210 : vector<17x17xf32>
    %cst_158 = arith.constant dense<0.000000e+00> : vector<17xf32>
    %212 = vector.multi_reduction <add>, %211, %cst_158 [1] : vector<17x17xf32> to vector<17xf32>
    %213 = vector.shape_cast %212 : vector<17xf32> to vector<17x1xf32>
    %214 = tpu.reciprocal %213 {approx = true} : vector<17x1xf32> -> vector<17x1xf32>
    %215 = vector.broadcast %214 : vector<17x1xf32> to vector<17x17xf32>
    %216 = arith.mulf %211, %215 : vector<17x17xf32>
    %c2_159 = arith.constant 2 : index
    %c0_160 = arith.constant 0 : index
    %c0_161 = arith.constant 0 : index
    %217 = vector.load %arg13[%c2_159, %c0_160, %c0_161] : memref<3x17x17xf32, #tpu.memory_space<vmem>>, vector<1x17x17xf32>
    %218 = vector.shape_cast %217 : vector<1x17x17xf32> to vector<17x17xf32>
    %219 = arith.addf %216, %218 : vector<17x17xf32>
    %cst_162 = arith.constant dense<0.000000e+00> : vector<17x256xf32>
    %220 = tpu.matmul %219, %120, %cst_162 {dimension_numbers = #tpu.dot_dimension_numbers<[1], [0], [0], [1], [0, 0, 1, 1], [], []>} : vector<17x17xf32>, vector<17x256xf32>, vector<17x256xf32> -> vector<17x256xf32>
    %c2_163 = arith.constant 2 : index
    %c0_164 = arith.constant 0 : index
    %c0_165 = arith.constant 0 : index
    %221 = vector.load %arg18[%c2_163, %c0_164, %c0_165] : memref<3x256x512xf32, #tpu.memory_space<vmem>>, vector<1x256x512xf32>
    %222 = vector.shape_cast %221 : vector<1x256x512xf32> to vector<256x512xf32>
    %cst_166 = arith.constant dense<0.000000e+00> : vector<17x512xf32>
    %223 = tpu.matmul %220, %222, %cst_166 {dimension_numbers = #tpu.dot_dimension_numbers<[1], [0], [0], [1], [0, 0, 1, 1], [], []>} : vector<17x256xf32>, vector<256x512xf32>, vector<17x512xf32> -> vector<17x512xf32>
    %224 = arith.addf %189, %223 : vector<17x512xf32>
    %c0_167 = arith.constant 0 : index
    %c0_168 = arith.constant 0 : index
    %225 = vector.load %arg19[%c0_167, %c0_168] : memref<1x512xf32, #tpu.memory_space<vmem>>, vector<1x512xf32>
    %226 = vector.broadcast %225 : vector<1x512xf32> to vector<17x512xf32>
    %227 = arith.addf %224, %226 : vector<17x512xf32>
    %c0_169 = arith.constant 0 : index
    %c0_170 = arith.constant 0 : index
    %228 = vector.load %arg20[%c0_169, %c0_170] : memref<256x512xf32, #tpu.memory_space<vmem>>, vector<256x512xf32>
    %cst_171 = arith.constant dense<0.000000e+00> : vector<17x512xf32>
    %229 = tpu.matmul %120, %228, %cst_171 {dimension_numbers = #tpu.dot_dimension_numbers<[1], [0], [0], [1], [0, 0, 1, 1], [], []>} : vector<17x256xf32>, vector<256x512xf32>, vector<17x512xf32> -> vector<17x512xf32>
    %c0_172 = arith.constant 0 : index
    %c0_173 = arith.constant 0 : index
    %230 = vector.load %arg21[%c0_172, %c0_173] : memref<1x512xf32, #tpu.memory_space<vmem>>, vector<1x512xf32>
    %231 = vector.broadcast %230 : vector<1x512xf32> to vector<17x512xf32>
    %232 = arith.addf %229, %231 : vector<17x512xf32>
    %233 = arith.addf %227, %232 : vector<17x512xf32>
    %cst_174 = arith.constant 0.000000e+00 : f32
    %234 = vector.broadcast %cst_174 : f32 to vector<17x512xf32>
    %235 = arith.maximumf %233, %234 : vector<17x512xf32>
    %cst_175 = arith.constant dense<0xFF800000> : vector<512xf32>
    %236 = vector.multi_reduction <maximumf>, %235, %cst_175 [0] : vector<17x512xf32> to vector<512xf32>
    %237 = vector.shape_cast %236 : vector<512xf32> to vector<1x512xf32>
    %c0_176 = arith.constant 0 : index
    %c0_177 = arith.constant 0 : index
    %c0_178 = arith.constant 0 : index
    %238 = vector.load %arg22[%c0_176, %c0_177, %c0_178] : memref<1x1x512xf32, #tpu.memory_space<vmem>>, vector<1x1x512xf32>
    %239 = vector.shape_cast %238 : vector<1x1x512xf32> to vector<1x512xf32>
    %240 = vector.shape_cast %237 : vector<1x512xf32> to vector<1x1x512xf32>
    tpu.vector_store %arg22[%c0_176, %c0_177, %c0_178], %240 {strides = array<i32>} : memref<1x1x512xf32, #tpu.memory_space<vmem>>, vector<1x1x512xf32>,
    return
  }
  func.func @transform_0(%arg0: i32) -> (i32, i32, i32) {
    %c0_i32 = arith.constant 0 : i32
    %c0_i32_0 = arith.constant 0 : i32
    %c0_i32_1 = arith.constant 0 : i32
    return %arg0, %c0_i32, %c0_i32_0 : i32, i32, i32
  }
  func.func @transform_1(%arg0: i32) -> (i32, i32) {
    %c0_i32 = arith.constant 0 : i32
    %c0_i32_0 = arith.constant 0 : i32
    %c0_i32_1 = arith.constant 0 : i32
    return %c0_i32, %c0_i32_0 : i32, i32
  }
  func.func @transform_2(%arg0: i32) -> (i32, i32) {
    %c0_i32 = arith.constant 0 : i32
    %c0_i32_0 = arith.constant 0 : i32
    %c0_i32_1 = arith.constant 0 : i32
    return %c0_i32, %c0_i32_0 : i32, i32
  }
  func.func @transform_3(%arg0: i32) -> (i32, i32, i32) {
    %c0_i32 = arith.constant 0 : i32
    %c0_i32_0 = arith.constant 0 : i32
    %c0_i32_1 = arith.constant 0 : i32
    %c0_i32_2 = arith.constant 0 : i32
    return %c0_i32, %c0_i32_0, %c0_i32_1 : i32, i32, i32
  }
  func.func @transform_4(%arg0: i32) -> (i32, i32, i32) {
    %c0_i32 = arith.constant 0 : i32
    %c0_i32_0 = arith.constant 0 : i32
    %c0_i32_1 = arith.constant 0 : i32
    %c0_i32_2 = arith.constant 0 : i32
    return %c0_i32, %c0_i32_0, %c0_i32_1 : i32, i32, i32
  }
  func.func @transform_5(%arg0: i32) -> (i32, i32, i32) {
    %c0_i32 = arith.constant 0 : i32
    %c0_i32_0 = arith.constant 0 : i32
    %c0_i32_1 = arith.constant 0 : i32
    %c0_i32_2 = arith.constant 0 : i32
    return %c0_i32, %c0_i32_0, %c0_i32_1 : i32, i32, i32
  }
  func.func @transform_6(%arg0: i32) -> (i32, i32, i32) {
    %c0_i32 = arith.constant 0 : i32
    %c0_i32_0 = arith.constant 0 : i32
    %c0_i32_1 = arith.constant 0 : i32
    %c0_i32_2 = arith.constant 0 : i32
    return %c0_i32, %c0_i32_0, %c0_i32_1 : i32, i32, i32
  }
  func.func @transform_7(%arg0: i32) -> (i32, i32, i32) {
    %c0_i32 = arith.constant 0 : i32
    %c0_i32_0 = arith.constant 0 : i32
    %c0_i32_1 = arith.constant 0 : i32
    %c0_i32_2 = arith.constant 0 : i32
    return %c0_i32, %c0_i32_0, %c0_i32_1 : i32, i32, i32
  }
  func.func @transform_8(%arg0: i32) -> (i32, i32, i32) {
    %c0_i32 = arith.constant 0 : i32
    %c0_i32_0 = arith.constant 0 : i32
    %c0_i32_1 = arith.constant 0 : i32
    %c0_i32_2 = arith.constant 0 : i32
    return %c0_i32, %c0_i32_0, %c0_i32_1 : i32, i32, i32
  }
  func.func @transform_9(%arg0: i32) -> (i32, i32) {
    %c0_i32 = arith.constant 0 : i32
    %c0_i32_0 = arith.constant 0 : i32
    %c0_i32_1 = arith.constant 0 : i32
    return %c0_i32, %c0_i32_0 : i32, i32
  }
  func.func @transform_10(%arg0: i32) -> (i32, i32) {
    %c0_i32 = arith.constant 0 : i32
    %c0_i32_0 = arith.constant 0 : i32
    %c0_i32_1 = arith.constant 0 : i32
    return %c0_i32, %c0_i32_0 : i32, i32
  }
  func.func @transform_11(%arg0: i32) -> (i32, i32) {
    %c0_i32 = arith.constant 0 : i32
    %c0_i32_0 = arith.constant 0 : i32
    %c0_i32_1 = arith.constant 0 : i32
    return %c0_i32, %c0_i32_0 : i32, i32
  }
  func.func @transform_12(%arg0: i32) -> (i32, i32, i32) {
    %c0_i32 = arith.constant 0 : i32
    %c0_i32_0 = arith.constant 0 : i32
    %c0_i32_1 = arith.constant 0 : i32
    %c0_i32_2 = arith.constant 0 : i32
    return %c0_i32, %c0_i32_0, %c0_i32_1 : i32, i32, i32
  }
  func.func @transform_13(%arg0: i32) -> (i32, i32, i32) {
    %c0_i32 = arith.constant 0 : i32
    %c0_i32_0 = arith.constant 0 : i32
    %c0_i32_1 = arith.constant 0 : i32
    %c0_i32_2 = arith.constant 0 : i32
    return %c0_i32, %c0_i32_0, %c0_i32_1 : i32, i32, i32
  }
  func.func @transform_14(%arg0: i32) -> (i32, i32, i32) {
    %c0_i32 = arith.constant 0 : i32
    %c0_i32_0 = arith.constant 0 : i32
    %c0_i32_1 = arith.constant 0 : i32
    %c0_i32_2 = arith.constant 0 : i32
    return %c0_i32, %c0_i32_0, %c0_i32_1 : i32, i32, i32
  }
  func.func @transform_15(%arg0: i32) -> (i32, i32, i32) {
    %c0_i32 = arith.constant 0 : i32
    %c0_i32_0 = arith.constant 0 : i32
    %c0_i32_1 = arith.constant 0 : i32
    %c0_i32_2 = arith.constant 0 : i32
    return %c0_i32, %c0_i32_0, %c0_i32_1 : i32, i32, i32
  }
  func.func @transform_16(%arg0: i32) -> (i32, i32, i32) {
    %c0_i32 = arith.constant 0 : i32
    %c0_i32_0 = arith.constant 0 : i32
    %c0_i32_1 = arith.constant 0 : i32
    %c0_i32_2 = arith.constant 0 : i32
    return %c0_i32, %c0_i32_0, %c0_i32_1 : i32, i32, i32
  }
  func.func @transform_17(%arg0: i32) -> (i32, i32, i32) {
    %c0_i32 = arith.constant 0 : i32
    %c0_i32_0 = arith.constant 0 : i32
    %c0_i32_1 = arith.constant 0 : i32
    %c0_i32_2 = arith.constant 0 : i32
    return %c0_i32, %c0_i32_0, %c0_i32_1 : i32, i32, i32
  }
  func.func @transform_18(%arg0: i32) -> (i32, i32) {
    %c0_i32 = arith.constant 0 : i32
    %c0_i32_0 = arith.constant 0 : i32
    %c0_i32_1 = arith.constant 0 : i32
    return %c0_i32, %c0_i32_0 : i32, i32
  }
  func.func @transform_19(%arg0: i32) -> (i32, i32) {
    %c0_i32 = arith.constant 0 : i32
    %c0_i32_0 = arith.constant 0 : i32
    %c0_i32_1 = arith.constant 0 : i32
    return %c0_i32, %c0_i32_0 : i32, i32
  }
  func.func @transform_20(%arg0: i32) -> (i32, i32) {
    %c0_i32 = arith.constant 0 : i32
    %c0_i32_0 = arith.constant 0 : i32
    %c0_i32_1 = arith.constant 0 : i32
    return %c0_i32, %c0_i32_0 : i32, i32
  }
  func.func @transform_21(%arg0: i32) -> (i32, i32, i32) {
    %c0_i32 = arith.constant 0 : i32
    %c0_i32_0 = arith.constant 0 : i32
    %c0_i32_1 = arith.constant 0 : i32
    return %arg0, %c0_i32, %c0_i32_0 : i32, i32, i32
  }
}

module attributes {stable_mosaic.version = 11 : i64} {
  func.func @_transformer_kernel(%arg0: i32, %arg1: memref<1x16x32xf32, #tpu.memory_space<vmem>>, %arg2: memref<1x1x32xf32, #tpu.memory_space<vmem>>, %arg3: memref<1x1x16xf32, #tpu.memory_space<vmem>>, %arg4: memref<2x4x32x8xf32, #tpu.memory_space<vmem>>, %arg5: memref<2x4x1x8xf32, #tpu.memory_space<vmem>>, %arg6: memref<2x4x32x8xf32, #tpu.memory_space<vmem>>, %arg7: memref<2x4x1x8xf32, #tpu.memory_space<vmem>>, %arg8: memref<2x4x32x8xf32, #tpu.memory_space<vmem>>, %arg9: memref<2x4x1x8xf32, #tpu.memory_space<vmem>>, %arg10: memref<2x4x8x32xf32, #tpu.memory_space<vmem>>, %arg11: memref<2x1x32xf32, #tpu.memory_space<vmem>>, %arg12: memref<2x1x32xf32, #tpu.memory_space<vmem>>, %arg13: memref<2x1x32xf32, #tpu.memory_space<vmem>>, %arg14: memref<2x32x64xf32, #tpu.memory_space<vmem>>, %arg15: memref<2x1x64xf32, #tpu.memory_space<vmem>>, %arg16: memref<2x64x32xf32, #tpu.memory_space<vmem>>, %arg17: memref<2x1x32xf32, #tpu.memory_space<vmem>>, %arg18: memref<2x1x32xf32, #tpu.memory_space<vmem>>, %arg19: memref<2x1x32xf32, #tpu.memory_space<vmem>>, %arg20: memref<1x32xf32, #tpu.memory_space<vmem>>, %arg21: memref<1x32xf32, #tpu.memory_space<vmem>>, %arg22: memref<32x5xf32, #tpu.memory_space<vmem>>, %arg23: memref<1x5xf32, #tpu.memory_space<vmem>>, %arg24: memref<1x16x5xf32, #tpu.memory_space<vmem>>) attributes {dimension_semantics = [#tpu.dimension_semantics<parallel>], iteration_bounds = array<i64: 2>, scalar_prefetch = 0 : i64, scratch_operands = 0 : i64, tpu.core_type = #tpu.core_type<tc>, window_params = [{transform_indices = @transform_0, window_bounds = array<i64: 1, 16, 32>}, {transform_indices = @transform_1, window_bounds = array<i64: 1, 1, 32>}, {transform_indices = @transform_2, window_bounds = array<i64: 1, 1, 16>}, {pipeline_mode = #tpu.pipeline_mode<synchronous>, transform_indices = @transform_3, window_bounds = array<i64: 2, 4, 32, 8>}, {pipeline_mode = #tpu.pipeline_mode<synchronous>, transform_indices = @transform_4, window_bounds = array<i64: 2, 4, 1, 8>}, {pipeline_mode = #tpu.pipeline_mode<synchronous>, transform_indices = @transform_5, window_bounds = array<i64: 2, 4, 32, 8>}, {pipeline_mode = #tpu.pipeline_mode<synchronous>, transform_indices = @transform_6, window_bounds = array<i64: 2, 4, 1, 8>}, {pipeline_mode = #tpu.pipeline_mode<synchronous>, transform_indices = @transform_7, window_bounds = array<i64: 2, 4, 32, 8>}, {pipeline_mode = #tpu.pipeline_mode<synchronous>, transform_indices = @transform_8, window_bounds = array<i64: 2, 4, 1, 8>}, {pipeline_mode = #tpu.pipeline_mode<synchronous>, transform_indices = @transform_9, window_bounds = array<i64: 2, 4, 8, 32>}, {pipeline_mode = #tpu.pipeline_mode<synchronous>, transform_indices = @transform_10, window_bounds = array<i64: 2, 1, 32>}, {pipeline_mode = #tpu.pipeline_mode<synchronous>, transform_indices = @transform_11, window_bounds = array<i64: 2, 1, 32>}, {pipeline_mode = #tpu.pipeline_mode<synchronous>, transform_indices = @transform_12, window_bounds = array<i64: 2, 1, 32>}, {pipeline_mode = #tpu.pipeline_mode<synchronous>, transform_indices = @transform_13, window_bounds = array<i64: 2, 32, 64>}, {pipeline_mode = #tpu.pipeline_mode<synchronous>, transform_indices = @transform_14, window_bounds = array<i64: 2, 1, 64>}, {pipeline_mode = #tpu.pipeline_mode<synchronous>, transform_indices = @transform_15, window_bounds = array<i64: 2, 64, 32>}, {pipeline_mode = #tpu.pipeline_mode<synchronous>, transform_indices = @transform_16, window_bounds = array<i64: 2, 1, 32>}, {pipeline_mode = #tpu.pipeline_mode<synchronous>, transform_indices = @transform_17, window_bounds = array<i64: 2, 1, 32>}, {pipeline_mode = #tpu.pipeline_mode<synchronous>, transform_indices = @transform_18, window_bounds = array<i64: 2, 1, 32>}, {pipeline_mode = #tpu.pipeline_mode<synchronous>, transform_indices = @transform_19, window_bounds = array<i64: 1, 32>}, {pipeline_mode = #tpu.pipeline_mode<synchronous>, transform_indices = @transform_20, window_bounds = array<i64: 1, 32>}, {pipeline_mode = #tpu.pipeline_mode<synchronous>, transform_indices = @transform_21, window_bounds = array<i64: 32, 5>}, {pipeline_mode = #tpu.pipeline_mode<synchronous>, transform_indices = @transform_22, window_bounds = array<i64: 1, 5>}, {transform_indices = @transform_23, window_bounds = array<i64: 1, 16, 5>}]} {
    %c0 = arith.constant 0 : index
    %c0_0 = arith.constant 0 : index
    %c0_1 = arith.constant 0 : index
    %0 = vector.load %arg1[%c0, %c0_0, %c0_1] : memref<1x16x32xf32, #tpu.memory_space<vmem>>, vector<1x16x32xf32>
    %1 = vector.shape_cast %0 : vector<1x16x32xf32> to vector<16x32xf32>
    %cst = arith.constant 5.65685415 : f32
    %2 = vector.broadcast %cst : f32 to vector<16x32xf32>
    %3 = arith.mulf %1, %2 : vector<16x32xf32>
    %c0_2 = arith.constant 0 : index
    %c0_3 = arith.constant 0 : index
    %c0_4 = arith.constant 0 : index
    %4 = vector.load %arg2[%c0_2, %c0_3, %c0_4] : memref<1x1x32xf32, #tpu.memory_space<vmem>>, vector<1x1x32xf32>
    %5 = vector.shape_cast %4 : vector<1x1x32xf32> to vector<1x32xf32>
    %6 = vector.broadcast %5 : vector<1x32xf32> to vector<16x32xf32>
    %7 = arith.addf %3, %6 : vector<16x32xf32>
    %c0_5 = arith.constant 0 : index
    %c0_6 = arith.constant 0 : index
    %c0_7 = arith.constant 0 : index
    %8 = vector.load %arg3[%c0_5, %c0_6, %c0_7] : memref<1x1x16xf32, #tpu.memory_space<vmem>>, vector<1x1x16xf32>
    %9 = vector.shape_cast %8 : vector<1x1x16xf32> to vector<1x16xf32>
    %c0_8 = arith.constant 0 : index
    %c0_9 = arith.constant 0 : index
    %c0_10 = arith.constant 0 : index
    %c0_11 = arith.constant 0 : index
    %10 = vector.load %arg4[%c0_8, %c0_9, %c0_10, %c0_11] : memref<2x4x32x8xf32, #tpu.memory_space<vmem>>, vector<1x1x32x8xf32>
    %11 = vector.shape_cast %10 : vector<1x1x32x8xf32> to vector<32x8xf32>
    %cst_12 = arith.constant dense<0.000000e+00> : vector<16x8xf32>
    %12 = tpu.matmul %7, %11, %cst_12 {dimension_numbers = #tpu.dot_dimension_numbers<[1], [0], [0], [1], [0, 0, 1, 1], [], []>} : vector<16x32xf32>, vector<32x8xf32>, vector<16x8xf32> -> vector<16x8xf32>
    %c0_13 = arith.constant 0 : index
    %c0_14 = arith.constant 0 : index
    %c0_15 = arith.constant 0 : index
    %c0_16 = arith.constant 0 : index
    %13 = vector.load %arg5[%c0_13, %c0_14, %c0_15, %c0_16] : memref<2x4x1x8xf32, #tpu.memory_space<vmem>>, vector<1x1x1x8xf32>
    %14 = vector.shape_cast %13 : vector<1x1x1x8xf32> to vector<1x8xf32>
    %15 = vector.broadcast %14 : vector<1x8xf32> to vector<16x8xf32>
    %16 = arith.addf %12, %15 : vector<16x8xf32>
    %c0_17 = arith.constant 0 : index
    %c0_18 = arith.constant 0 : index
    %c0_19 = arith.constant 0 : index
    %c0_20 = arith.constant 0 : index
    %17 = vector.load %arg6[%c0_17, %c0_18, %c0_19, %c0_20] : memref<2x4x32x8xf32, #tpu.memory_space<vmem>>, vector<1x1x32x8xf32>
    %18 = vector.shape_cast %17 : vector<1x1x32x8xf32> to vector<32x8xf32>
    %cst_21 = arith.constant dense<0.000000e+00> : vector<16x8xf32>
    %19 = tpu.matmul %7, %18, %cst_21 {dimension_numbers = #tpu.dot_dimension_numbers<[1], [0], [0], [1], [0, 0, 1, 1], [], []>} : vector<16x32xf32>, vector<32x8xf32>, vector<16x8xf32> -> vector<16x8xf32>
    %c0_22 = arith.constant 0 : index
    %c0_23 = arith.constant 0 : index
    %c0_24 = arith.constant 0 : index
    %c0_25 = arith.constant 0 : index
    %20 = vector.load %arg7[%c0_22, %c0_23, %c0_24, %c0_25] : memref<2x4x1x8xf32, #tpu.memory_space<vmem>>, vector<1x1x1x8xf32>
    %21 = vector.shape_cast %20 : vector<1x1x1x8xf32> to vector<1x8xf32>
    %22 = vector.broadcast %21 : vector<1x8xf32> to vector<16x8xf32>
    %23 = arith.addf %19, %22 : vector<16x8xf32>
    %c0_26 = arith.constant 0 : index
    %c0_27 = arith.constant 0 : index
    %c0_28 = arith.constant 0 : index
    %c0_29 = arith.constant 0 : index
    %24 = vector.load %arg8[%c0_26, %c0_27, %c0_28, %c0_29] : memref<2x4x32x8xf32, #tpu.memory_space<vmem>>, vector<1x1x32x8xf32>
    %25 = vector.shape_cast %24 : vector<1x1x32x8xf32> to vector<32x8xf32>
    %cst_30 = arith.constant dense<0.000000e+00> : vector<16x8xf32>
    %26 = tpu.matmul %7, %25, %cst_30 {dimension_numbers = #tpu.dot_dimension_numbers<[1], [0], [0], [1], [0, 0, 1, 1], [], []>} : vector<16x32xf32>, vector<32x8xf32>, vector<16x8xf32> -> vector<16x8xf32>
    %c0_31 = arith.constant 0 : index
    %c0_32 = arith.constant 0 : index
    %c0_33 = arith.constant 0 : index
    %c0_34 = arith.constant 0 : index
    %27 = vector.load %arg9[%c0_31, %c0_32, %c0_33, %c0_34] : memref<2x4x1x8xf32, #tpu.memory_space<vmem>>, vector<1x1x1x8xf32>
    %28 = vector.shape_cast %27 : vector<1x1x1x8xf32> to vector<1x8xf32>
    %29 = vector.broadcast %28 : vector<1x8xf32> to vector<16x8xf32>
    %30 = arith.addf %26, %29 : vector<16x8xf32>
    %cst_35 = arith.constant dense<0.000000e+00> : vector<16x16xf32>
    %31 = tpu.matmul %16, %23, %cst_35 {dimension_numbers = #tpu.dot_dimension_numbers<[1], [1], [0], [0], [0, 0, 1, 0], [], []>} : vector<16x8xf32>, vector<16x8xf32>, vector<16x16xf32> -> vector<16x16xf32>
    %cst_36 = arith.constant 0.353553385 : f32
    %32 = vector.broadcast %cst_36 : f32 to vector<16x16xf32>
    %33 = arith.mulf %31, %32 : vector<16x16xf32>
    %34 = vector.broadcast %9 : vector<1x16xf32> to vector<16x16xf32>
    %35 = arith.addf %33, %34 : vector<16x16xf32>
    %cst_37 = arith.constant dense<0xFF800000> : vector<16xf32>
    %36 = vector.multi_reduction <maximumf>, %35, %cst_37 [1] : vector<16x16xf32> to vector<16xf32>
    %37 = vector.shape_cast %36 : vector<16xf32> to vector<16x1xf32>
    %38 = vector.broadcast %37 : vector<16x1xf32> to vector<16x16xf32>
    %39 = arith.subf %35, %38 : vector<16x16xf32>
    %40 = math.exp %39 : vector<16x16xf32>
    %cst_38 = arith.constant dense<0.000000e+00> : vector<16xf32>
    %41 = vector.multi_reduction <add>, %40, %cst_38 [1] : vector<16x16xf32> to vector<16xf32>
    %42 = vector.shape_cast %41 : vector<16xf32> to vector<16x1xf32>
    %43 = tpu.reciprocal %42 {approx = true} : vector<16x1xf32> -> vector<16x1xf32>
    %44 = vector.broadcast %43 : vector<16x1xf32> to vector<16x16xf32>
    %45 = arith.mulf %40, %44 : vector<16x16xf32>
    %cst_39 = arith.constant dense<0.000000e+00> : vector<16x8xf32>
    %46 = tpu.matmul %45, %30, %cst_39 {dimension_numbers = #tpu.dot_dimension_numbers<[1], [0], [0], [1], [0, 0, 1, 1], [], []>} : vector<16x16xf32>, vector<16x8xf32>, vector<16x8xf32> -> vector<16x8xf32>
    %c0_40 = arith.constant 0 : index
    %c0_41 = arith.constant 0 : index
    %c0_42 = arith.constant 0 : index
    %c0_43 = arith.constant 0 : index
    %47 = vector.load %arg10[%c0_40, %c0_41, %c0_42, %c0_43] : memref<2x4x8x32xf32, #tpu.memory_space<vmem>>, vector<1x1x8x32xf32>
    %48 = vector.shape_cast %47 : vector<1x1x8x32xf32> to vector<8x32xf32>
    %cst_44 = arith.constant dense<0.000000e+00> : vector<16x32xf32>
    %49 = tpu.matmul %46, %48, %cst_44 {dimension_numbers = #tpu.dot_dimension_numbers<[1], [0], [0], [1], [0, 0, 1, 1], [], []>} : vector<16x8xf32>, vector<8x32xf32>, vector<16x32xf32> -> vector<16x32xf32>
    %c0_45 = arith.constant 0 : index
    %c1 = arith.constant 1 : index
    %c0_46 = arith.constant 0 : index
    %c0_47 = arith.constant 0 : index
    %50 = vector.load %arg4[%c0_45, %c1, %c0_46, %c0_47] : memref<2x4x32x8xf32, #tpu.memory_space<vmem>>, vector<1x1x32x8xf32>
    %51 = vector.shape_cast %50 : vector<1x1x32x8xf32> to vector<32x8xf32>
    %cst_48 = arith.constant dense<0.000000e+00> : vector<16x8xf32>
    %52 = tpu.matmul %7, %51, %cst_48 {dimension_numbers = #tpu.dot_dimension_numbers<[1], [0], [0], [1], [0, 0, 1, 1], [], []>} : vector<16x32xf32>, vector<32x8xf32>, vector<16x8xf32> -> vector<16x8xf32>
    %c0_49 = arith.constant 0 : index
    %c1_50 = arith.constant 1 : index
    %c0_51 = arith.constant 0 : index
    %c0_52 = arith.constant 0 : index
    %53 = vector.load %arg5[%c0_49, %c1_50, %c0_51, %c0_52] : memref<2x4x1x8xf32, #tpu.memory_space<vmem>>, vector<1x1x1x8xf32>
    %54 = vector.shape_cast %53 : vector<1x1x1x8xf32> to vector<1x8xf32>
    %55 = vector.broadcast %54 : vector<1x8xf32> to vector<16x8xf32>
    %56 = arith.addf %52, %55 : vector<16x8xf32>
    %c0_53 = arith.constant 0 : index
    %c1_54 = arith.constant 1 : index
    %c0_55 = arith.constant 0 : index
    %c0_56 = arith.constant 0 : index
    %57 = vector.load %arg6[%c0_53, %c1_54, %c0_55, %c0_56] : memref<2x4x32x8xf32, #tpu.memory_space<vmem>>, vector<1x1x32x8xf32>
    %58 = vector.shape_cast %57 : vector<1x1x32x8xf32> to vector<32x8xf32>
    %cst_57 = arith.constant dense<0.000000e+00> : vector<16x8xf32>
    %59 = tpu.matmul %7, %58, %cst_57 {dimension_numbers = #tpu.dot_dimension_numbers<[1], [0], [0], [1], [0, 0, 1, 1], [], []>} : vector<16x32xf32>, vector<32x8xf32>, vector<16x8xf32> -> vector<16x8xf32>
    %c0_58 = arith.constant 0 : index
    %c1_59 = arith.constant 1 : index
    %c0_60 = arith.constant 0 : index
    %c0_61 = arith.constant 0 : index
    %60 = vector.load %arg7[%c0_58, %c1_59, %c0_60, %c0_61] : memref<2x4x1x8xf32, #tpu.memory_space<vmem>>, vector<1x1x1x8xf32>
    %61 = vector.shape_cast %60 : vector<1x1x1x8xf32> to vector<1x8xf32>
    %62 = vector.broadcast %61 : vector<1x8xf32> to vector<16x8xf32>
    %63 = arith.addf %59, %62 : vector<16x8xf32>
    %c0_62 = arith.constant 0 : index
    %c1_63 = arith.constant 1 : index
    %c0_64 = arith.constant 0 : index
    %c0_65 = arith.constant 0 : index
    %64 = vector.load %arg8[%c0_62, %c1_63, %c0_64, %c0_65] : memref<2x4x32x8xf32, #tpu.memory_space<vmem>>, vector<1x1x32x8xf32>
    %65 = vector.shape_cast %64 : vector<1x1x32x8xf32> to vector<32x8xf32>
    %cst_66 = arith.constant dense<0.000000e+00> : vector<16x8xf32>
    %66 = tpu.matmul %7, %65, %cst_66 {dimension_numbers = #tpu.dot_dimension_numbers<[1], [0], [0], [1], [0, 0, 1, 1], [], []>} : vector<16x32xf32>, vector<32x8xf32>, vector<16x8xf32> -> vector<16x8xf32>
    %c0_67 = arith.constant 0 : index
    %c1_68 = arith.constant 1 : index
    %c0_69 = arith.constant 0 : index
    %c0_70 = arith.constant 0 : index
    %67 = vector.load %arg9[%c0_67, %c1_68, %c0_69, %c0_70] : memref<2x4x1x8xf32, #tpu.memory_space<vmem>>, vector<1x1x1x8xf32>
    %68 = vector.shape_cast %67 : vector<1x1x1x8xf32> to vector<1x8xf32>
    %69 = vector.broadcast %68 : vector<1x8xf32> to vector<16x8xf32>
    %70 = arith.addf %66, %69 : vector<16x8xf32>
    %cst_71 = arith.constant dense<0.000000e+00> : vector<16x16xf32>
    %71 = tpu.matmul %56, %63, %cst_71 {dimension_numbers = #tpu.dot_dimension_numbers<[1], [1], [0], [0], [0, 0, 1, 0], [], []>} : vector<16x8xf32>, vector<16x8xf32>, vector<16x16xf32> -> vector<16x16xf32>
    %cst_72 = arith.constant 0.353553385 : f32
    %72 = vector.broadcast %cst_72 : f32 to vector<16x16xf32>
    %73 = arith.mulf %71, %72 : vector<16x16xf32>
    %74 = vector.broadcast %9 : vector<1x16xf32> to vector<16x16xf32>
    %75 = arith.addf %73, %74 : vector<16x16xf32>
    %cst_73 = arith.constant dense<0xFF800000> : vector<16xf32>
    %76 = vector.multi_reduction <maximumf>, %75, %cst_73 [1] : vector<16x16xf32> to vector<16xf32>
    %77 = vector.shape_cast %76 : vector<16xf32> to vector<16x1xf32>
    %78 = vector.broadcast %77 : vector<16x1xf32> to vector<16x16xf32>
    %79 = arith.subf %75, %78 : vector<16x16xf32>
    %80 = math.exp %79 : vector<16x16xf32>
    %cst_74 = arith.constant dense<0.000000e+00> : vector<16xf32>
    %81 = vector.multi_reduction <add>, %80, %cst_74 [1] : vector<16x16xf32> to vector<16xf32>
    %82 = vector.shape_cast %81 : vector<16xf32> to vector<16x1xf32>
    %83 = tpu.reciprocal %82 {approx = true} : vector<16x1xf32> -> vector<16x1xf32>
    %84 = vector.broadcast %83 : vector<16x1xf32> to vector<16x16xf32>
    %85 = arith.mulf %80, %84 : vector<16x16xf32>
    %cst_75 = arith.constant dense<0.000000e+00> : vector<16x8xf32>
    %86 = tpu.matmul %85, %70, %cst_75 {dimension_numbers = #tpu.dot_dimension_numbers<[1], [0], [0], [1], [0, 0, 1, 1], [], []>} : vector<16x16xf32>, vector<16x8xf32>, vector<16x8xf32> -> vector<16x8xf32>
    %c0_76 = arith.constant 0 : index
    %c1_77 = arith.constant 1 : index
    %c0_78 = arith.constant 0 : index
    %c0_79 = arith.constant 0 : index
    %87 = vector.load %arg10[%c0_76, %c1_77, %c0_78, %c0_79] : memref<2x4x8x32xf32, #tpu.memory_space<vmem>>, vector<1x1x8x32xf32>
    %88 = vector.shape_cast %87 : vector<1x1x8x32xf32> to vector<8x32xf32>
    %cst_80 = arith.constant dense<0.000000e+00> : vector<16x32xf32>
    %89 = tpu.matmul %86, %88, %cst_80 {dimension_numbers = #tpu.dot_dimension_numbers<[1], [0], [0], [1], [0, 0, 1, 1], [], []>} : vector<16x8xf32>, vector<8x32xf32>, vector<16x32xf32> -> vector<16x32xf32>
    %90 = arith.addf %49, %89 : vector<16x32xf32>
    %c0_81 = arith.constant 0 : index
    %c2 = arith.constant 2 : index
    %c0_82 = arith.constant 0 : index
    %c0_83 = arith.constant 0 : index
    %91 = vector.load %arg4[%c0_81, %c2, %c0_82, %c0_83] : memref<2x4x32x8xf32, #tpu.memory_space<vmem>>, vector<1x1x32x8xf32>
    %92 = vector.shape_cast %91 : vector<1x1x32x8xf32> to vector<32x8xf32>
    %cst_84 = arith.constant dense<0.000000e+00> : vector<16x8xf32>
    %93 = tpu.matmul %7, %92, %cst_84 {dimension_numbers = #tpu.dot_dimension_numbers<[1], [0], [0], [1], [0, 0, 1, 1], [], []>} : vector<16x32xf32>, vector<32x8xf32>, vector<16x8xf32> -> vector<16x8xf32>
    %c0_85 = arith.constant 0 : index
    %c2_86 = arith.constant 2 : index
    %c0_87 = arith.constant 0 : index
    %c0_88 = arith.constant 0 : index
    %94 = vector.load %arg5[%c0_85, %c2_86, %c0_87, %c0_88] : memref<2x4x1x8xf32, #tpu.memory_space<vmem>>, vector<1x1x1x8xf32>
    %95 = vector.shape_cast %94 : vector<1x1x1x8xf32> to vector<1x8xf32>
    %96 = vector.broadcast %95 : vector<1x8xf32> to vector<16x8xf32>
    %97 = arith.addf %93, %96 : vector<16x8xf32>
    %c0_89 = arith.constant 0 : index
    %c2_90 = arith.constant 2 : index
    %c0_91 = arith.constant 0 : index
    %c0_92 = arith.constant 0 : index
    %98 = vector.load %arg6[%c0_89, %c2_90, %c0_91, %c0_92] : memref<2x4x32x8xf32, #tpu.memory_space<vmem>>, vector<1x1x32x8xf32>
    %99 = vector.shape_cast %98 : vector<1x1x32x8xf32> to vector<32x8xf32>
    %cst_93 = arith.constant dense<0.000000e+00> : vector<16x8xf32>
    %100 = tpu.matmul %7, %99, %cst_93 {dimension_numbers = #tpu.dot_dimension_numbers<[1], [0], [0], [1], [0, 0, 1, 1], [], []>} : vector<16x32xf32>, vector<32x8xf32>, vector<16x8xf32> -> vector<16x8xf32>
    %c0_94 = arith.constant 0 : index
    %c2_95 = arith.constant 2 : index
    %c0_96 = arith.constant 0 : index
    %c0_97 = arith.constant 0 : index
    %101 = vector.load %arg7[%c0_94, %c2_95, %c0_96, %c0_97] : memref<2x4x1x8xf32, #tpu.memory_space<vmem>>, vector<1x1x1x8xf32>
    %102 = vector.shape_cast %101 : vector<1x1x1x8xf32> to vector<1x8xf32>
    %103 = vector.broadcast %102 : vector<1x8xf32> to vector<16x8xf32>
    %104 = arith.addf %100, %103 : vector<16x8xf32>
    %c0_98 = arith.constant 0 : index
    %c2_99 = arith.constant 2 : index
    %c0_100 = arith.constant 0 : index
    %c0_101 = arith.constant 0 : index
    %105 = vector.load %arg8[%c0_98, %c2_99, %c0_100, %c0_101] : memref<2x4x32x8xf32, #tpu.memory_space<vmem>>, vector<1x1x32x8xf32>
    %106 = vector.shape_cast %105 : vector<1x1x32x8xf32> to vector<32x8xf32>
    %cst_102 = arith.constant dense<0.000000e+00> : vector<16x8xf32>
    %107 = tpu.matmul %7, %106, %cst_102 {dimension_numbers = #tpu.dot_dimension_numbers<[1], [0], [0], [1], [0, 0, 1, 1], [], []>} : vector<16x32xf32>, vector<32x8xf32>, vector<16x8xf32> -> vector<16x8xf32>
    %c0_103 = arith.constant 0 : index
    %c2_104 = arith.constant 2 : index
    %c0_105 = arith.constant 0 : index
    %c0_106 = arith.constant 0 : index
    %108 = vector.load %arg9[%c0_103, %c2_104, %c0_105, %c0_106] : memref<2x4x1x8xf32, #tpu.memory_space<vmem>>, vector<1x1x1x8xf32>
    %109 = vector.shape_cast %108 : vector<1x1x1x8xf32> to vector<1x8xf32>
    %110 = vector.broadcast %109 : vector<1x8xf32> to vector<16x8xf32>
    %111 = arith.addf %107, %110 : vector<16x8xf32>
    %cst_107 = arith.constant dense<0.000000e+00> : vector<16x16xf32>
    %112 = tpu.matmul %97, %104, %cst_107 {dimension_numbers = #tpu.dot_dimension_numbers<[1], [1], [0], [0], [0, 0, 1, 0], [], []>} : vector<16x8xf32>, vector<16x8xf32>, vector<16x16xf32> -> vector<16x16xf32>
    %cst_108 = arith.constant 0.353553385 : f32
    %113 = vector.broadcast %cst_108 : f32 to vector<16x16xf32>
    %114 = arith.mulf %112, %113 : vector<16x16xf32>
    %115 = vector.broadcast %9 : vector<1x16xf32> to vector<16x16xf32>
    %116 = arith.addf %114, %115 : vector<16x16xf32>
    %cst_109 = arith.constant dense<0xFF800000> : vector<16xf32>
    %117 = vector.multi_reduction <maximumf>, %116, %cst_109 [1] : vector<16x16xf32> to vector<16xf32>
    %118 = vector.shape_cast %117 : vector<16xf32> to vector<16x1xf32>
    %119 = vector.broadcast %118 : vector<16x1xf32> to vector<16x16xf32>
    %120 = arith.subf %116, %119 : vector<16x16xf32>
    %121 = math.exp %120 : vector<16x16xf32>
    %cst_110 = arith.constant dense<0.000000e+00> : vector<16xf32>
    %122 = vector.multi_reduction <add>, %121, %cst_110 [1] : vector<16x16xf32> to vector<16xf32>
    %123 = vector.shape_cast %122 : vector<16xf32> to vector<16x1xf32>
    %124 = tpu.reciprocal %123 {approx = true} : vector<16x1xf32> -> vector<16x1xf32>
    %125 = vector.broadcast %124 : vector<16x1xf32> to vector<16x16xf32>
    %126 = arith.mulf %121, %125 : vector<16x16xf32>
    %cst_111 = arith.constant dense<0.000000e+00> : vector<16x8xf32>
    %127 = tpu.matmul %126, %111, %cst_111 {dimension_numbers = #tpu.dot_dimension_numbers<[1], [0], [0], [1], [0, 0, 1, 1], [], []>} : vector<16x16xf32>, vector<16x8xf32>, vector<16x8xf32> -> vector<16x8xf32>
    %c0_112 = arith.constant 0 : index
    %c2_113 = arith.constant 2 : index
    %c0_114 = arith.constant 0 : index
    %c0_115 = arith.constant 0 : index
    %128 = vector.load %arg10[%c0_112, %c2_113, %c0_114, %c0_115] : memref<2x4x8x32xf32, #tpu.memory_space<vmem>>, vector<1x1x8x32xf32>
    %129 = vector.shape_cast %128 : vector<1x1x8x32xf32> to vector<8x32xf32>
    %cst_116 = arith.constant dense<0.000000e+00> : vector<16x32xf32>
    %130 = tpu.matmul %127, %129, %cst_116 {dimension_numbers = #tpu.dot_dimension_numbers<[1], [0], [0], [1], [0, 0, 1, 1], [], []>} : vector<16x8xf32>, vector<8x32xf32>, vector<16x32xf32> -> vector<16x32xf32>
    %131 = arith.addf %90, %130 : vector<16x32xf32>
    %c0_117 = arith.constant 0 : index
    %c3 = arith.constant 3 : index
    %c0_118 = arith.constant 0 : index
    %c0_119 = arith.constant 0 : index
    %132 = vector.load %arg4[%c0_117, %c3, %c0_118, %c0_119] : memref<2x4x32x8xf32, #tpu.memory_space<vmem>>, vector<1x1x32x8xf32>
    %133 = vector.shape_cast %132 : vector<1x1x32x8xf32> to vector<32x8xf32>
    %cst_120 = arith.constant dense<0.000000e+00> : vector<16x8xf32>
    %134 = tpu.matmul %7, %133, %cst_120 {dimension_numbers = #tpu.dot_dimension_numbers<[1], [0], [0], [1], [0, 0, 1, 1], [], []>} : vector<16x32xf32>, vector<32x8xf32>, vector<16x8xf32> -> vector<16x8xf32>
    %c0_121 = arith.constant 0 : index
    %c3_122 = arith.constant 3 : index
    %c0_123 = arith.constant 0 : index
    %c0_124 = arith.constant 0 : index
    %135 = vector.load %arg5[%c0_121, %c3_122, %c0_123, %c0_124] : memref<2x4x1x8xf32, #tpu.memory_space<vmem>>, vector<1x1x1x8xf32>
    %136 = vector.shape_cast %135 : vector<1x1x1x8xf32> to vector<1x8xf32>
    %137 = vector.broadcast %136 : vector<1x8xf32> to vector<16x8xf32>
    %138 = arith.addf %134, %137 : vector<16x8xf32>
    %c0_125 = arith.constant 0 : index
    %c3_126 = arith.constant 3 : index
    %c0_127 = arith.constant 0 : index
    %c0_128 = arith.constant 0 : index
    %139 = vector.load %arg6[%c0_125, %c3_126, %c0_127, %c0_128] : memref<2x4x32x8xf32, #tpu.memory_space<vmem>>, vector<1x1x32x8xf32>
    %140 = vector.shape_cast %139 : vector<1x1x32x8xf32> to vector<32x8xf32>
    %cst_129 = arith.constant dense<0.000000e+00> : vector<16x8xf32>
    %141 = tpu.matmul %7, %140, %cst_129 {dimension_numbers = #tpu.dot_dimension_numbers<[1], [0], [0], [1], [0, 0, 1, 1], [], []>} : vector<16x32xf32>, vector<32x8xf32>, vector<16x8xf32> -> vector<16x8xf32>
    %c0_130 = arith.constant 0 : index
    %c3_131 = arith.constant 3 : index
    %c0_132 = arith.constant 0 : index
    %c0_133 = arith.constant 0 : index
    %142 = vector.load %arg7[%c0_130, %c3_131, %c0_132, %c0_133] : memref<2x4x1x8xf32, #tpu.memory_space<vmem>>, vector<1x1x1x8xf32>
    %143 = vector.shape_cast %142 : vector<1x1x1x8xf32> to vector<1x8xf32>
    %144 = vector.broadcast %143 : vector<1x8xf32> to vector<16x8xf32>
    %145 = arith.addf %141, %144 : vector<16x8xf32>
    %c0_134 = arith.constant 0 : index
    %c3_135 = arith.constant 3 : index
    %c0_136 = arith.constant 0 : index
    %c0_137 = arith.constant 0 : index
    %146 = vector.load %arg8[%c0_134, %c3_135, %c0_136, %c0_137] : memref<2x4x32x8xf32, #tpu.memory_space<vmem>>, vector<1x1x32x8xf32>
    %147 = vector.shape_cast %146 : vector<1x1x32x8xf32> to vector<32x8xf32>
    %cst_138 = arith.constant dense<0.000000e+00> : vector<16x8xf32>
    %148 = tpu.matmul %7, %147, %cst_138 {dimension_numbers = #tpu.dot_dimension_numbers<[1], [0], [0], [1], [0, 0, 1, 1], [], []>} : vector<16x32xf32>, vector<32x8xf32>, vector<16x8xf32> -> vector<16x8xf32>
    %c0_139 = arith.constant 0 : index
    %c3_140 = arith.constant 3 : index
    %c0_141 = arith.constant 0 : index
    %c0_142 = arith.constant 0 : index
    %149 = vector.load %arg9[%c0_139, %c3_140, %c0_141, %c0_142] : memref<2x4x1x8xf32, #tpu.memory_space<vmem>>, vector<1x1x1x8xf32>
    %150 = vector.shape_cast %149 : vector<1x1x1x8xf32> to vector<1x8xf32>
    %151 = vector.broadcast %150 : vector<1x8xf32> to vector<16x8xf32>
    %152 = arith.addf %148, %151 : vector<16x8xf32>
    %cst_143 = arith.constant dense<0.000000e+00> : vector<16x16xf32>
    %153 = tpu.matmul %138, %145, %cst_143 {dimension_numbers = #tpu.dot_dimension_numbers<[1], [1], [0], [0], [0, 0, 1, 0], [], []>} : vector<16x8xf32>, vector<16x8xf32>, vector<16x16xf32> -> vector<16x16xf32>
    %cst_144 = arith.constant 0.353553385 : f32
    %154 = vector.broadcast %cst_144 : f32 to vector<16x16xf32>
    %155 = arith.mulf %153, %154 : vector<16x16xf32>
    %156 = vector.broadcast %9 : vector<1x16xf32> to vector<16x16xf32>
    %157 = arith.addf %155, %156 : vector<16x16xf32>
    %cst_145 = arith.constant dense<0xFF800000> : vector<16xf32>
    %158 = vector.multi_reduction <maximumf>, %157, %cst_145 [1] : vector<16x16xf32> to vector<16xf32>
    %159 = vector.shape_cast %158 : vector<16xf32> to vector<16x1xf32>
    %160 = vector.broadcast %159 : vector<16x1xf32> to vector<16x16xf32>
    %161 = arith.subf %157, %160 : vector<16x16xf32>
    %162 = math.exp %161 : vector<16x16xf32>
    %cst_146 = arith.constant dense<0.000000e+00> : vector<16xf32>
    %163 = vector.multi_reduction <add>, %162, %cst_146 [1] : vector<16x16xf32> to vector<16xf32>
    %164 = vector.shape_cast %163 : vector<16xf32> to vector<16x1xf32>
    %165 = tpu.reciprocal %164 {approx = true} : vector<16x1xf32> -> vector<16x1xf32>
    %166 = vector.broadcast %165 : vector<16x1xf32> to vector<16x16xf32>
    %167 = arith.mulf %162, %166 : vector<16x16xf32>
    %cst_147 = arith.constant dense<0.000000e+00> : vector<16x8xf32>
    %168 = tpu.matmul %167, %152, %cst_147 {dimension_numbers = #tpu.dot_dimension_numbers<[1], [0], [0], [1], [0, 0, 1, 1], [], []>} : vector<16x16xf32>, vector<16x8xf32>, vector<16x8xf32> -> vector<16x8xf32>
    %c0_148 = arith.constant 0 : index
    %c3_149 = arith.constant 3 : index
    %c0_150 = arith.constant 0 : index
    %c0_151 = arith.constant 0 : index
    %169 = vector.load %arg10[%c0_148, %c3_149, %c0_150, %c0_151] : memref<2x4x8x32xf32, #tpu.memory_space<vmem>>, vector<1x1x8x32xf32>
    %170 = vector.shape_cast %169 : vector<1x1x8x32xf32> to vector<8x32xf32>
    %cst_152 = arith.constant dense<0.000000e+00> : vector<16x32xf32>
    %171 = tpu.matmul %168, %170, %cst_152 {dimension_numbers = #tpu.dot_dimension_numbers<[1], [0], [0], [1], [0, 0, 1, 1], [], []>} : vector<16x8xf32>, vector<8x32xf32>, vector<16x32xf32> -> vector<16x32xf32>
    %172 = arith.addf %131, %171 : vector<16x32xf32>
    %173 = arith.addf %7, %172 : vector<16x32xf32>
    %c0_153 = arith.constant 0 : index
    %c0_154 = arith.constant 0 : index
    %c0_155 = arith.constant 0 : index
    %174 = vector.load %arg11[%c0_153, %c0_154, %c0_155] : memref<2x1x32xf32, #tpu.memory_space<vmem>>, vector<1x1x32xf32>
    %175 = vector.shape_cast %174 : vector<1x1x32xf32> to vector<1x32xf32>
    %176 = vector.broadcast %175 : vector<1x32xf32> to vector<16x32xf32>
    %177 = arith.addf %173, %176 : vector<16x32xf32>
    %c0_156 = arith.constant 0 : index
    %c0_157 = arith.constant 0 : index
    %c0_158 = arith.constant 0 : index
    %178 = vector.load %arg12[%c0_156, %c0_157, %c0_158] : memref<2x1x32xf32, #tpu.memory_space<vmem>>, vector<1x1x32xf32>
    %179 = vector.shape_cast %178 : vector<1x1x32xf32> to vector<1x32xf32>
    %c0_159 = arith.constant 0 : index
    %c0_160 = arith.constant 0 : index
    %c0_161 = arith.constant 0 : index
    %180 = vector.load %arg13[%c0_159, %c0_160, %c0_161] : memref<2x1x32xf32, #tpu.memory_space<vmem>>, vector<1x1x32xf32>
    %181 = vector.shape_cast %180 : vector<1x1x32xf32> to vector<1x32xf32>
    %cst_162 = arith.constant dense<0.000000e+00> : vector<16xf32>
    %182 = vector.multi_reduction <add>, %177, %cst_162 [1] : vector<16x32xf32> to vector<16xf32>
    %183 = vector.shape_cast %182 : vector<16xf32> to vector<16x1xf32>
    %cst_163 = arith.constant 3.200000e+01 : f32
    %184 = vector.broadcast %cst_163 : f32 to vector<16x1xf32>
    %185 = arith.divf %183, %184 : vector<16x1xf32>
    %186 = vector.broadcast %185 : vector<16x1xf32> to vector<16x32xf32>
    %187 = arith.subf %177, %186 : vector<16x32xf32>
    %188 = arith.mulf %187, %187 : vector<16x32xf32>
    %cst_164 = arith.constant dense<0.000000e+00> : vector<16xf32>
    %189 = vector.multi_reduction <add>, %188, %cst_164 [1] : vector<16x32xf32> to vector<16xf32>
    %190 = vector.shape_cast %189 : vector<16xf32> to vector<16x1xf32>
    %cst_165 = arith.constant 3.200000e+01 : f32
    %191 = vector.broadcast %cst_165 : f32 to vector<16x1xf32>
    %192 = arith.divf %190, %191 : vector<16x1xf32>
    %cst_166 = arith.constant 9.99999974E-6 : f32
    %193 = vector.broadcast %cst_166 : f32 to vector<16x1xf32>
    %194 = arith.addf %192, %193 : vector<16x1xf32>
    %195 = math.rsqrt %194 : vector<16x1xf32>
    %196 = vector.broadcast %195 : vector<16x1xf32> to vector<16x32xf32>
    %197 = arith.mulf %187, %196 : vector<16x32xf32>
    %198 = vector.broadcast %179 : vector<1x32xf32> to vector<16x32xf32>
    %199 = arith.mulf %197, %198 : vector<16x32xf32>
    %200 = vector.broadcast %181 : vector<1x32xf32> to vector<16x32xf32>
    %201 = arith.addf %199, %200 : vector<16x32xf32>
    %c0_167 = arith.constant 0 : index
    %c0_168 = arith.constant 0 : index
    %c0_169 = arith.constant 0 : index
    %202 = vector.load %arg14[%c0_167, %c0_168, %c0_169] : memref<2x32x64xf32, #tpu.memory_space<vmem>>, vector<1x32x64xf32>
    %203 = vector.shape_cast %202 : vector<1x32x64xf32> to vector<32x64xf32>
    %cst_170 = arith.constant dense<0.000000e+00> : vector<16x64xf32>
    %204 = tpu.matmul %201, %203, %cst_170 {dimension_numbers = #tpu.dot_dimension_numbers<[1], [0], [0], [1], [0, 0, 1, 1], [], []>} : vector<16x32xf32>, vector<32x64xf32>, vector<16x64xf32> -> vector<16x64xf32>
    %c0_171 = arith.constant 0 : index
    %c0_172 = arith.constant 0 : index
    %c0_173 = arith.constant 0 : index
    %205 = vector.load %arg15[%c0_171, %c0_172, %c0_173] : memref<2x1x64xf32, #tpu.memory_space<vmem>>, vector<1x1x64xf32>
    %206 = vector.shape_cast %205 : vector<1x1x64xf32> to vector<1x64xf32>
    %207 = vector.broadcast %206 : vector<1x64xf32> to vector<16x64xf32>
    %208 = arith.addf %204, %207 : vector<16x64xf32>
    %cst_174 = arith.constant 0.000000e+00 : f32
    %209 = vector.broadcast %cst_174 : f32 to vector<16x64xf32>
    %210 = arith.maximumf %208, %209 : vector<16x64xf32>
    %c0_175 = arith.constant 0 : index
    %c0_176 = arith.constant 0 : index
    %c0_177 = arith.constant 0 : index
    %211 = vector.load %arg16[%c0_175, %c0_176, %c0_177] : memref<2x64x32xf32, #tpu.memory_space<vmem>>, vector<1x64x32xf32>
    %212 = vector.shape_cast %211 : vector<1x64x32xf32> to vector<64x32xf32>
    %cst_178 = arith.constant dense<0.000000e+00> : vector<16x32xf32>
    %213 = tpu.matmul %210, %212, %cst_178 {dimension_numbers = #tpu.dot_dimension_numbers<[1], [0], [0], [1], [0, 0, 1, 1], [], []>} : vector<16x64xf32>, vector<64x32xf32>, vector<16x32xf32> -> vector<16x32xf32>
    %c0_179 = arith.constant 0 : index
    %c0_180 = arith.constant 0 : index
    %c0_181 = arith.constant 0 : index
    %214 = vector.load %arg17[%c0_179, %c0_180, %c0_181] : memref<2x1x32xf32, #tpu.memory_space<vmem>>, vector<1x1x32xf32>
    %215 = vector.shape_cast %214 : vector<1x1x32xf32> to vector<1x32xf32>
    %216 = vector.broadcast %215 : vector<1x32xf32> to vector<16x32xf32>
    %217 = arith.addf %213, %216 : vector<16x32xf32>
    %218 = arith.addf %201, %217 : vector<16x32xf32>
    %c0_182 = arith.constant 0 : index
    %c0_183 = arith.constant 0 : index
    %c0_184 = arith.constant 0 : index
    %219 = vector.load %arg18[%c0_182, %c0_183, %c0_184] : memref<2x1x32xf32, #tpu.memory_space<vmem>>, vector<1x1x32xf32>
    %220 = vector.shape_cast %219 : vector<1x1x32xf32> to vector<1x32xf32>
    %c0_185 = arith.constant 0 : index
    %c0_186 = arith.constant 0 : index
    %c0_187 = arith.constant 0 : index
    %221 = vector.load %arg19[%c0_185, %c0_186, %c0_187] : memref<2x1x32xf32, #tpu.memory_space<vmem>>, vector<1x1x32xf32>
    %222 = vector.shape_cast %221 : vector<1x1x32xf32> to vector<1x32xf32>
    %cst_188 = arith.constant dense<0.000000e+00> : vector<16xf32>
    %223 = vector.multi_reduction <add>, %218, %cst_188 [1] : vector<16x32xf32> to vector<16xf32>
    %224 = vector.shape_cast %223 : vector<16xf32> to vector<16x1xf32>
    %cst_189 = arith.constant 3.200000e+01 : f32
    %225 = vector.broadcast %cst_189 : f32 to vector<16x1xf32>
    %226 = arith.divf %224, %225 : vector<16x1xf32>
    %227 = vector.broadcast %226 : vector<16x1xf32> to vector<16x32xf32>
    %228 = arith.subf %218, %227 : vector<16x32xf32>
    %229 = arith.mulf %228, %228 : vector<16x32xf32>
    %cst_190 = arith.constant dense<0.000000e+00> : vector<16xf32>
    %230 = vector.multi_reduction <add>, %229, %cst_190 [1] : vector<16x32xf32> to vector<16xf32>
    %231 = vector.shape_cast %230 : vector<16xf32> to vector<16x1xf32>
    %cst_191 = arith.constant 3.200000e+01 : f32
    %232 = vector.broadcast %cst_191 : f32 to vector<16x1xf32>
    %233 = arith.divf %231, %232 : vector<16x1xf32>
    %cst_192 = arith.constant 9.99999974E-6 : f32
    %234 = vector.broadcast %cst_192 : f32 to vector<16x1xf32>
    %235 = arith.addf %233, %234 : vector<16x1xf32>
    %236 = math.rsqrt %235 : vector<16x1xf32>
    %237 = vector.broadcast %236 : vector<16x1xf32> to vector<16x32xf32>
    %238 = arith.mulf %228, %237 : vector<16x32xf32>
    %239 = vector.broadcast %220 : vector<1x32xf32> to vector<16x32xf32>
    %240 = arith.mulf %238, %239 : vector<16x32xf32>
    %241 = vector.broadcast %222 : vector<1x32xf32> to vector<16x32xf32>
    %242 = arith.addf %240, %241 : vector<16x32xf32>
    %c1_193 = arith.constant 1 : index
    %c0_194 = arith.constant 0 : index
    %c0_195 = arith.constant 0 : index
    %c0_196 = arith.constant 0 : index
    %243 = vector.load %arg4[%c1_193, %c0_194, %c0_195, %c0_196] : memref<2x4x32x8xf32, #tpu.memory_space<vmem>>, vector<1x1x32x8xf32>
    %244 = vector.shape_cast %243 : vector<1x1x32x8xf32> to vector<32x8xf32>
    %cst_197 = arith.constant dense<0.000000e+00> : vector<16x8xf32>
    %245 = tpu.matmul %242, %244, %cst_197 {dimension_numbers = #tpu.dot_dimension_numbers<[1], [0], [0], [1], [0, 0, 1, 1], [], []>} : vector<16x32xf32>, vector<32x8xf32>, vector<16x8xf32> -> vector<16x8xf32>
    %c1_198 = arith.constant 1 : index
    %c0_199 = arith.constant 0 : index
    %c0_200 = arith.constant 0 : index
    %c0_201 = arith.constant 0 : index
    %246 = vector.load %arg5[%c1_198, %c0_199, %c0_200, %c0_201] : memref<2x4x1x8xf32, #tpu.memory_space<vmem>>, vector<1x1x1x8xf32>
    %247 = vector.shape_cast %246 : vector<1x1x1x8xf32> to vector<1x8xf32>
    %248 = vector.broadcast %247 : vector<1x8xf32> to vector<16x8xf32>
    %249 = arith.addf %245, %248 : vector<16x8xf32>
    %c1_202 = arith.constant 1 : index
    %c0_203 = arith.constant 0 : index
    %c0_204 = arith.constant 0 : index
    %c0_205 = arith.constant 0 : index
    %250 = vector.load %arg6[%c1_202, %c0_203, %c0_204, %c0_205] : memref<2x4x32x8xf32, #tpu.memory_space<vmem>>, vector<1x1x32x8xf32>
    %251 = vector.shape_cast %250 : vector<1x1x32x8xf32> to vector<32x8xf32>
    %cst_206 = arith.constant dense<0.000000e+00> : vector<16x8xf32>
    %252 = tpu.matmul %242, %251, %cst_206 {dimension_numbers = #tpu.dot_dimension_numbers<[1], [0], [0], [1], [0, 0, 1, 1], [], []>} : vector<16x32xf32>, vector<32x8xf32>, vector<16x8xf32> -> vector<16x8xf32>
    %c1_207 = arith.constant 1 : index
    %c0_208 = arith.constant 0 : index
    %c0_209 = arith.constant 0 : index
    %c0_210 = arith.constant 0 : index
    %253 = vector.load %arg7[%c1_207, %c0_208, %c0_209, %c0_210] : memref<2x4x1x8xf32, #tpu.memory_space<vmem>>, vector<1x1x1x8xf32>
    %254 = vector.shape_cast %253 : vector<1x1x1x8xf32> to vector<1x8xf32>
    %255 = vector.broadcast %254 : vector<1x8xf32> to vector<16x8xf32>
    %256 = arith.addf %252, %255 : vector<16x8xf32>
    %c1_211 = arith.constant 1 : index
    %c0_212 = arith.constant 0 : index
    %c0_213 = arith.constant 0 : index
    %c0_214 = arith.constant 0 : index
    %257 = vector.load %arg8[%c1_211, %c0_212, %c0_213, %c0_214] : memref<2x4x32x8xf32, #tpu.memory_space<vmem>>, vector<1x1x32x8xf32>
    %258 = vector.shape_cast %257 : vector<1x1x32x8xf32> to vector<32x8xf32>
    %cst_215 = arith.constant dense<0.000000e+00> : vector<16x8xf32>
    %259 = tpu.matmul %242, %258, %cst_215 {dimension_numbers = #tpu.dot_dimension_numbers<[1], [0], [0], [1], [0, 0, 1, 1], [], []>} : vector<16x32xf32>, vector<32x8xf32>, vector<16x8xf32> -> vector<16x8xf32>
    %c1_216 = arith.constant 1 : index
    %c0_217 = arith.constant 0 : index
    %c0_218 = arith.constant 0 : index
    %c0_219 = arith.constant 0 : index
    %260 = vector.load %arg9[%c1_216, %c0_217, %c0_218, %c0_219] : memref<2x4x1x8xf32, #tpu.memory_space<vmem>>, vector<1x1x1x8xf32>
    %261 = vector.shape_cast %260 : vector<1x1x1x8xf32> to vector<1x8xf32>
    %262 = vector.broadcast %261 : vector<1x8xf32> to vector<16x8xf32>
    %263 = arith.addf %259, %262 : vector<16x8xf32>
    %cst_220 = arith.constant dense<0.000000e+00> : vector<16x16xf32>
    %264 = tpu.matmul %249, %256, %cst_220 {dimension_numbers = #tpu.dot_dimension_numbers<[1], [1], [0], [0], [0, 0, 1, 0], [], []>} : vector<16x8xf32>, vector<16x8xf32>, vector<16x16xf32> -> vector<16x16xf32>
    %cst_221 = arith.constant 0.353553385 : f32
    %265 = vector.broadcast %cst_221 : f32 to vector<16x16xf32>
    %266 = arith.mulf %264, %265 : vector<16x16xf32>
    %267 = vector.broadcast %9 : vector<1x16xf32> to vector<16x16xf32>
    %268 = arith.addf %266, %267 : vector<16x16xf32>
    %cst_222 = arith.constant dense<0xFF800000> : vector<16xf32>
    %269 = vector.multi_reduction <maximumf>, %268, %cst_222 [1] : vector<16x16xf32> to vector<16xf32>
    %270 = vector.shape_cast %269 : vector<16xf32> to vector<16x1xf32>
    %271 = vector.broadcast %270 : vector<16x1xf32> to vector<16x16xf32>
    %272 = arith.subf %268, %271 : vector<16x16xf32>
    %273 = math.exp %272 : vector<16x16xf32>
    %cst_223 = arith.constant dense<0.000000e+00> : vector<16xf32>
    %274 = vector.multi_reduction <add>, %273, %cst_223 [1] : vector<16x16xf32> to vector<16xf32>
    %275 = vector.shape_cast %274 : vector<16xf32> to vector<16x1xf32>
    %276 = tpu.reciprocal %275 {approx = true} : vector<16x1xf32> -> vector<16x1xf32>
    %277 = vector.broadcast %276 : vector<16x1xf32> to vector<16x16xf32>
    %278 = arith.mulf %273, %277 : vector<16x16xf32>
    %cst_224 = arith.constant dense<0.000000e+00> : vector<16x8xf32>
    %279 = tpu.matmul %278, %263, %cst_224 {dimension_numbers = #tpu.dot_dimension_numbers<[1], [0], [0], [1], [0, 0, 1, 1], [], []>} : vector<16x16xf32>, vector<16x8xf32>, vector<16x8xf32> -> vector<16x8xf32>
    %c1_225 = arith.constant 1 : index
    %c0_226 = arith.constant 0 : index
    %c0_227 = arith.constant 0 : index
    %c0_228 = arith.constant 0 : index
    %280 = vector.load %arg10[%c1_225, %c0_226, %c0_227, %c0_228] : memref<2x4x8x32xf32, #tpu.memory_space<vmem>>, vector<1x1x8x32xf32>
    %281 = vector.shape_cast %280 : vector<1x1x8x32xf32> to vector<8x32xf32>
    %cst_229 = arith.constant dense<0.000000e+00> : vector<16x32xf32>
    %282 = tpu.matmul %279, %281, %cst_229 {dimension_numbers = #tpu.dot_dimension_numbers<[1], [0], [0], [1], [0, 0, 1, 1], [], []>} : vector<16x8xf32>, vector<8x32xf32>, vector<16x32xf32> -> vector<16x32xf32>
    %c1_230 = arith.constant 1 : index
    %c1_231 = arith.constant 1 : index
    %c0_232 = arith.constant 0 : index
    %c0_233 = arith.constant 0 : index
    %283 = vector.load %arg4[%c1_230, %c1_231, %c0_232, %c0_233] : memref<2x4x32x8xf32, #tpu.memory_space<vmem>>, vector<1x1x32x8xf32>
    %284 = vector.shape_cast %283 : vector<1x1x32x8xf32> to vector<32x8xf32>
    %cst_234 = arith.constant dense<0.000000e+00> : vector<16x8xf32>
    %285 = tpu.matmul %242, %284, %cst_234 {dimension_numbers = #tpu.dot_dimension_numbers<[1], [0], [0], [1], [0, 0, 1, 1], [], []>} : vector<16x32xf32>, vector<32x8xf32>, vector<16x8xf32> -> vector<16x8xf32>
    %c1_235 = arith.constant 1 : index
    %c1_236 = arith.constant 1 : index
    %c0_237 = arith.constant 0 : index
    %c0_238 = arith.constant 0 : index
    %286 = vector.load %arg5[%c1_235, %c1_236, %c0_237, %c0_238] : memref<2x4x1x8xf32, #tpu.memory_space<vmem>>, vector<1x1x1x8xf32>
    %287 = vector.shape_cast %286 : vector<1x1x1x8xf32> to vector<1x8xf32>
    %288 = vector.broadcast %287 : vector<1x8xf32> to vector<16x8xf32>
    %289 = arith.addf %285, %288 : vector<16x8xf32>
    %c1_239 = arith.constant 1 : index
    %c1_240 = arith.constant 1 : index
    %c0_241 = arith.constant 0 : index
    %c0_242 = arith.constant 0 : index
    %290 = vector.load %arg6[%c1_239, %c1_240, %c0_241, %c0_242] : memref<2x4x32x8xf32, #tpu.memory_space<vmem>>, vector<1x1x32x8xf32>
    %291 = vector.shape_cast %290 : vector<1x1x32x8xf32> to vector<32x8xf32>
    %cst_243 = arith.constant dense<0.000000e+00> : vector<16x8xf32>
    %292 = tpu.matmul %242, %291, %cst_243 {dimension_numbers = #tpu.dot_dimension_numbers<[1], [0], [0], [1], [0, 0, 1, 1], [], []>} : vector<16x32xf32>, vector<32x8xf32>, vector<16x8xf32> -> vector<16x8xf32>
    %c1_244 = arith.constant 1 : index
    %c1_245 = arith.constant 1 : index
    %c0_246 = arith.constant 0 : index
    %c0_247 = arith.constant 0 : index
    %293 = vector.load %arg7[%c1_244, %c1_245, %c0_246, %c0_247] : memref<2x4x1x8xf32, #tpu.memory_space<vmem>>, vector<1x1x1x8xf32>
    %294 = vector.shape_cast %293 : vector<1x1x1x8xf32> to vector<1x8xf32>
    %295 = vector.broadcast %294 : vector<1x8xf32> to vector<16x8xf32>
    %296 = arith.addf %292, %295 : vector<16x8xf32>
    %c1_248 = arith.constant 1 : index
    %c1_249 = arith.constant 1 : index
    %c0_250 = arith.constant 0 : index
    %c0_251 = arith.constant 0 : index
    %297 = vector.load %arg8[%c1_248, %c1_249, %c0_250, %c0_251] : memref<2x4x32x8xf32, #tpu.memory_space<vmem>>, vector<1x1x32x8xf32>
    %298 = vector.shape_cast %297 : vector<1x1x32x8xf32> to vector<32x8xf32>
    %cst_252 = arith.constant dense<0.000000e+00> : vector<16x8xf32>
    %299 = tpu.matmul %242, %298, %cst_252 {dimension_numbers = #tpu.dot_dimension_numbers<[1], [0], [0], [1], [0, 0, 1, 1], [], []>} : vector<16x32xf32>, vector<32x8xf32>, vector<16x8xf32> -> vector<16x8xf32>
    %c1_253 = arith.constant 1 : index
    %c1_254 = arith.constant 1 : index
    %c0_255 = arith.constant 0 : index
    %c0_256 = arith.constant 0 : index
    %300 = vector.load %arg9[%c1_253, %c1_254, %c0_255, %c0_256] : memref<2x4x1x8xf32, #tpu.memory_space<vmem>>, vector<1x1x1x8xf32>
    %301 = vector.shape_cast %300 : vector<1x1x1x8xf32> to vector<1x8xf32>
    %302 = vector.broadcast %301 : vector<1x8xf32> to vector<16x8xf32>
    %303 = arith.addf %299, %302 : vector<16x8xf32>
    %cst_257 = arith.constant dense<0.000000e+00> : vector<16x16xf32>
    %304 = tpu.matmul %289, %296, %cst_257 {dimension_numbers = #tpu.dot_dimension_numbers<[1], [1], [0], [0], [0, 0, 1, 0], [], []>} : vector<16x8xf32>, vector<16x8xf32>, vector<16x16xf32> -> vector<16x16xf32>
    %cst_258 = arith.constant 0.353553385 : f32
    %305 = vector.broadcast %cst_258 : f32 to vector<16x16xf32>
    %306 = arith.mulf %304, %305 : vector<16x16xf32>
    %307 = vector.broadcast %9 : vector<1x16xf32> to vector<16x16xf32>
    %308 = arith.addf %306, %307 : vector<16x16xf32>
    %cst_259 = arith.constant dense<0xFF800000> : vector<16xf32>
    %309 = vector.multi_reduction <maximumf>, %308, %cst_259 [1] : vector<16x16xf32> to vector<16xf32>
    %310 = vector.shape_cast %309 : vector<16xf32> to vector<16x1xf32>
    %311 = vector.broadcast %310 : vector<16x1xf32> to vector<16x16xf32>
    %312 = arith.subf %308, %311 : vector<16x16xf32>
    %313 = math.exp %312 : vector<16x16xf32>
    %cst_260 = arith.constant dense<0.000000e+00> : vector<16xf32>
    %314 = vector.multi_reduction <add>, %313, %cst_260 [1] : vector<16x16xf32> to vector<16xf32>
    %315 = vector.shape_cast %314 : vector<16xf32> to vector<16x1xf32>
    %316 = tpu.reciprocal %315 {approx = true} : vector<16x1xf32> -> vector<16x1xf32>
    %317 = vector.broadcast %316 : vector<16x1xf32> to vector<16x16xf32>
    %318 = arith.mulf %313, %317 : vector<16x16xf32>
    %cst_261 = arith.constant dense<0.000000e+00> : vector<16x8xf32>
    %319 = tpu.matmul %318, %303, %cst_261 {dimension_numbers = #tpu.dot_dimension_numbers<[1], [0], [0], [1], [0, 0, 1, 1], [], []>} : vector<16x16xf32>, vector<16x8xf32>, vector<16x8xf32> -> vector<16x8xf32>
    %c1_262 = arith.constant 1 : index
    %c1_263 = arith.constant 1 : index
    %c0_264 = arith.constant 0 : index
    %c0_265 = arith.constant 0 : index
    %320 = vector.load %arg10[%c1_262, %c1_263, %c0_264, %c0_265] : memref<2x4x8x32xf32, #tpu.memory_space<vmem>>, vector<1x1x8x32xf32>
    %321 = vector.shape_cast %320 : vector<1x1x8x32xf32> to vector<8x32xf32>
    %cst_266 = arith.constant dense<0.000000e+00> : vector<16x32xf32>
    %322 = tpu.matmul %319, %321, %cst_266 {dimension_numbers = #tpu.dot_dimension_numbers<[1], [0], [0], [1], [0, 0, 1, 1], [], []>} : vector<16x8xf32>, vector<8x32xf32>, vector<16x32xf32> -> vector<16x32xf32>
    %323 = arith.addf %282, %322 : vector<16x32xf32>
    %c1_267 = arith.constant 1 : index
    %c2_268 = arith.constant 2 : index
    %c0_269 = arith.constant 0 : index
    %c0_270 = arith.constant 0 : index
    %324 = vector.load %arg4[%c1_267, %c2_268, %c0_269, %c0_270] : memref<2x4x32x8xf32, #tpu.memory_space<vmem>>, vector<1x1x32x8xf32>
    %325 = vector.shape_cast %324 : vector<1x1x32x8xf32> to vector<32x8xf32>
    %cst_271 = arith.constant dense<0.000000e+00> : vector<16x8xf32>
    %326 = tpu.matmul %242, %325, %cst_271 {dimension_numbers = #tpu.dot_dimension_numbers<[1], [0], [0], [1], [0, 0, 1, 1], [], []>} : vector<16x32xf32>, vector<32x8xf32>, vector<16x8xf32> -> vector<16x8xf32>
    %c1_272 = arith.constant 1 : index
    %c2_273 = arith.constant 2 : index
    %c0_274 = arith.constant 0 : index
    %c0_275 = arith.constant 0 : index
    %327 = vector.load %arg5[%c1_272, %c2_273, %c0_274, %c0_275] : memref<2x4x1x8xf32, #tpu.memory_space<vmem>>, vector<1x1x1x8xf32>
    %328 = vector.shape_cast %327 : vector<1x1x1x8xf32> to vector<1x8xf32>
    %329 = vector.broadcast %328 : vector<1x8xf32> to vector<16x8xf32>
    %330 = arith.addf %326, %329 : vector<16x8xf32>
    %c1_276 = arith.constant 1 : index
    %c2_277 = arith.constant 2 : index
    %c0_278 = arith.constant 0 : index
    %c0_279 = arith.constant 0 : index
    %331 = vector.load %arg6[%c1_276, %c2_277, %c0_278, %c0_279] : memref<2x4x32x8xf32, #tpu.memory_space<vmem>>, vector<1x1x32x8xf32>
    %332 = vector.shape_cast %331 : vector<1x1x32x8xf32> to vector<32x8xf32>
    %cst_280 = arith.constant dense<0.000000e+00> : vector<16x8xf32>
    %333 = tpu.matmul %242, %332, %cst_280 {dimension_numbers = #tpu.dot_dimension_numbers<[1], [0], [0], [1], [0, 0, 1, 1], [], []>} : vector<16x32xf32>, vector<32x8xf32>, vector<16x8xf32> -> vector<16x8xf32>
    %c1_281 = arith.constant 1 : index
    %c2_282 = arith.constant 2 : index
    %c0_283 = arith.constant 0 : index
    %c0_284 = arith.constant 0 : index
    %334 = vector.load %arg7[%c1_281, %c2_282, %c0_283, %c0_284] : memref<2x4x1x8xf32, #tpu.memory_space<vmem>>, vector<1x1x1x8xf32>
    %335 = vector.shape_cast %334 : vector<1x1x1x8xf32> to vector<1x8xf32>
    %336 = vector.broadcast %335 : vector<1x8xf32> to vector<16x8xf32>
    %337 = arith.addf %333, %336 : vector<16x8xf32>
    %c1_285 = arith.constant 1 : index
    %c2_286 = arith.constant 2 : index
    %c0_287 = arith.constant 0 : index
    %c0_288 = arith.constant 0 : index
    %338 = vector.load %arg8[%c1_285, %c2_286, %c0_287, %c0_288] : memref<2x4x32x8xf32, #tpu.memory_space<vmem>>, vector<1x1x32x8xf32>
    %339 = vector.shape_cast %338 : vector<1x1x32x8xf32> to vector<32x8xf32>
    %cst_289 = arith.constant dense<0.000000e+00> : vector<16x8xf32>
    %340 = tpu.matmul %242, %339, %cst_289 {dimension_numbers = #tpu.dot_dimension_numbers<[1], [0], [0], [1], [0, 0, 1, 1], [], []>} : vector<16x32xf32>, vector<32x8xf32>, vector<16x8xf32> -> vector<16x8xf32>
    %c1_290 = arith.constant 1 : index
    %c2_291 = arith.constant 2 : index
    %c0_292 = arith.constant 0 : index
    %c0_293 = arith.constant 0 : index
    %341 = vector.load %arg9[%c1_290, %c2_291, %c0_292, %c0_293] : memref<2x4x1x8xf32, #tpu.memory_space<vmem>>, vector<1x1x1x8xf32>
    %342 = vector.shape_cast %341 : vector<1x1x1x8xf32> to vector<1x8xf32>
    %343 = vector.broadcast %342 : vector<1x8xf32> to vector<16x8xf32>
    %344 = arith.addf %340, %343 : vector<16x8xf32>
    %cst_294 = arith.constant dense<0.000000e+00> : vector<16x16xf32>
    %345 = tpu.matmul %330, %337, %cst_294 {dimension_numbers = #tpu.dot_dimension_numbers<[1], [1], [0], [0], [0, 0, 1, 0], [], []>} : vector<16x8xf32>, vector<16x8xf32>, vector<16x16xf32> -> vector<16x16xf32>
    %cst_295 = arith.constant 0.353553385 : f32
    %346 = vector.broadcast %cst_295 : f32 to vector<16x16xf32>
    %347 = arith.mulf %345, %346 : vector<16x16xf32>
    %348 = vector.broadcast %9 : vector<1x16xf32> to vector<16x16xf32>
    %349 = arith.addf %347, %348 : vector<16x16xf32>
    %cst_296 = arith.constant dense<0xFF800000> : vector<16xf32>
    %350 = vector.multi_reduction <maximumf>, %349, %cst_296 [1] : vector<16x16xf32> to vector<16xf32>
    %351 = vector.shape_cast %350 : vector<16xf32> to vector<16x1xf32>
    %352 = vector.broadcast %351 : vector<16x1xf32> to vector<16x16xf32>
    %353 = arith.subf %349, %352 : vector<16x16xf32>
    %354 = math.exp %353 : vector<16x16xf32>
    %cst_297 = arith.constant dense<0.000000e+00> : vector<16xf32>
    %355 = vector.multi_reduction <add>, %354, %cst_297 [1] : vector<16x16xf32> to vector<16xf32>
    %356 = vector.shape_cast %355 : vector<16xf32> to vector<16x1xf32>
    %357 = tpu.reciprocal %356 {approx = true} : vector<16x1xf32> -> vector<16x1xf32>
    %358 = vector.broadcast %357 : vector<16x1xf32> to vector<16x16xf32>
    %359 = arith.mulf %354, %358 : vector<16x16xf32>
    %cst_298 = arith.constant dense<0.000000e+00> : vector<16x8xf32>
    %360 = tpu.matmul %359, %344, %cst_298 {dimension_numbers = #tpu.dot_dimension_numbers<[1], [0], [0], [1], [0, 0, 1, 1], [], []>} : vector<16x16xf32>, vector<16x8xf32>, vector<16x8xf32> -> vector<16x8xf32>
    %c1_299 = arith.constant 1 : index
    %c2_300 = arith.constant 2 : index
    %c0_301 = arith.constant 0 : index
    %c0_302 = arith.constant 0 : index
    %361 = vector.load %arg10[%c1_299, %c2_300, %c0_301, %c0_302] : memref<2x4x8x32xf32, #tpu.memory_space<vmem>>, vector<1x1x8x32xf32>
    %362 = vector.shape_cast %361 : vector<1x1x8x32xf32> to vector<8x32xf32>
    %cst_303 = arith.constant dense<0.000000e+00> : vector<16x32xf32>
    %363 = tpu.matmul %360, %362, %cst_303 {dimension_numbers = #tpu.dot_dimension_numbers<[1], [0], [0], [1], [0, 0, 1, 1], [], []>} : vector<16x8xf32>, vector<8x32xf32>, vector<16x32xf32> -> vector<16x32xf32>
    %364 = arith.addf %323, %363 : vector<16x32xf32>
    %c1_304 = arith.constant 1 : index
    %c3_305 = arith.constant 3 : index
    %c0_306 = arith.constant 0 : index
    %c0_307 = arith.constant 0 : index
    %365 = vector.load %arg4[%c1_304, %c3_305, %c0_306, %c0_307] : memref<2x4x32x8xf32, #tpu.memory_space<vmem>>, vector<1x1x32x8xf32>
    %366 = vector.shape_cast %365 : vector<1x1x32x8xf32> to vector<32x8xf32>
    %cst_308 = arith.constant dense<0.000000e+00> : vector<16x8xf32>
    %367 = tpu.matmul %242, %366, %cst_308 {dimension_numbers = #tpu.dot_dimension_numbers<[1], [0], [0], [1], [0, 0, 1, 1], [], []>} : vector<16x32xf32>, vector<32x8xf32>, vector<16x8xf32> -> vector<16x8xf32>
    %c1_309 = arith.constant 1 : index
    %c3_310 = arith.constant 3 : index
    %c0_311 = arith.constant 0 : index
    %c0_312 = arith.constant 0 : index
    %368 = vector.load %arg5[%c1_309, %c3_310, %c0_311, %c0_312] : memref<2x4x1x8xf32, #tpu.memory_space<vmem>>, vector<1x1x1x8xf32>
    %369 = vector.shape_cast %368 : vector<1x1x1x8xf32> to vector<1x8xf32>
    %370 = vector.broadcast %369 : vector<1x8xf32> to vector<16x8xf32>
    %371 = arith.addf %367, %370 : vector<16x8xf32>
    %c1_313 = arith.constant 1 : index
    %c3_314 = arith.constant 3 : index
    %c0_315 = arith.constant 0 : index
    %c0_316 = arith.constant 0 : index
    %372 = vector.load %arg6[%c1_313, %c3_314, %c0_315, %c0_316] : memref<2x4x32x8xf32, #tpu.memory_space<vmem>>, vector<1x1x32x8xf32>
    %373 = vector.shape_cast %372 : vector<1x1x32x8xf32> to vector<32x8xf32>
    %cst_317 = arith.constant dense<0.000000e+00> : vector<16x8xf32>
    %374 = tpu.matmul %242, %373, %cst_317 {dimension_numbers = #tpu.dot_dimension_numbers<[1], [0], [0], [1], [0, 0, 1, 1], [], []>} : vector<16x32xf32>, vector<32x8xf32>, vector<16x8xf32> -> vector<16x8xf32>
    %c1_318 = arith.constant 1 : index
    %c3_319 = arith.constant 3 : index
    %c0_320 = arith.constant 0 : index
    %c0_321 = arith.constant 0 : index
    %375 = vector.load %arg7[%c1_318, %c3_319, %c0_320, %c0_321] : memref<2x4x1x8xf32, #tpu.memory_space<vmem>>, vector<1x1x1x8xf32>
    %376 = vector.shape_cast %375 : vector<1x1x1x8xf32> to vector<1x8xf32>
    %377 = vector.broadcast %376 : vector<1x8xf32> to vector<16x8xf32>
    %378 = arith.addf %374, %377 : vector<16x8xf32>
    %c1_322 = arith.constant 1 : index
    %c3_323 = arith.constant 3 : index
    %c0_324 = arith.constant 0 : index
    %c0_325 = arith.constant 0 : index
    %379 = vector.load %arg8[%c1_322, %c3_323, %c0_324, %c0_325] : memref<2x4x32x8xf32, #tpu.memory_space<vmem>>, vector<1x1x32x8xf32>
    %380 = vector.shape_cast %379 : vector<1x1x32x8xf32> to vector<32x8xf32>
    %cst_326 = arith.constant dense<0.000000e+00> : vector<16x8xf32>
    %381 = tpu.matmul %242, %380, %cst_326 {dimension_numbers = #tpu.dot_dimension_numbers<[1], [0], [0], [1], [0, 0, 1, 1], [], []>} : vector<16x32xf32>, vector<32x8xf32>, vector<16x8xf32> -> vector<16x8xf32>
    %c1_327 = arith.constant 1 : index
    %c3_328 = arith.constant 3 : index
    %c0_329 = arith.constant 0 : index
    %c0_330 = arith.constant 0 : index
    %382 = vector.load %arg9[%c1_327, %c3_328, %c0_329, %c0_330] : memref<2x4x1x8xf32, #tpu.memory_space<vmem>>, vector<1x1x1x8xf32>
    %383 = vector.shape_cast %382 : vector<1x1x1x8xf32> to vector<1x8xf32>
    %384 = vector.broadcast %383 : vector<1x8xf32> to vector<16x8xf32>
    %385 = arith.addf %381, %384 : vector<16x8xf32>
    %cst_331 = arith.constant dense<0.000000e+00> : vector<16x16xf32>
    %386 = tpu.matmul %371, %378, %cst_331 {dimension_numbers = #tpu.dot_dimension_numbers<[1], [1], [0], [0], [0, 0, 1, 0], [], []>} : vector<16x8xf32>, vector<16x8xf32>, vector<16x16xf32> -> vector<16x16xf32>
    %cst_332 = arith.constant 0.353553385 : f32
    %387 = vector.broadcast %cst_332 : f32 to vector<16x16xf32>
    %388 = arith.mulf %386, %387 : vector<16x16xf32>
    %389 = vector.broadcast %9 : vector<1x16xf32> to vector<16x16xf32>
    %390 = arith.addf %388, %389 : vector<16x16xf32>
    %cst_333 = arith.constant dense<0xFF800000> : vector<16xf32>
    %391 = vector.multi_reduction <maximumf>, %390, %cst_333 [1] : vector<16x16xf32> to vector<16xf32>
    %392 = vector.shape_cast %391 : vector<16xf32> to vector<16x1xf32>
    %393 = vector.broadcast %392 : vector<16x1xf32> to vector<16x16xf32>
    %394 = arith.subf %390, %393 : vector<16x16xf32>
    %395 = math.exp %394 : vector<16x16xf32>
    %cst_334 = arith.constant dense<0.000000e+00> : vector<16xf32>
    %396 = vector.multi_reduction <add>, %395, %cst_334 [1] : vector<16x16xf32> to vector<16xf32>
    %397 = vector.shape_cast %396 : vector<16xf32> to vector<16x1xf32>
    %398 = tpu.reciprocal %397 {approx = true} : vector<16x1xf32> -> vector<16x1xf32>
    %399 = vector.broadcast %398 : vector<16x1xf32> to vector<16x16xf32>
    %400 = arith.mulf %395, %399 : vector<16x16xf32>
    %cst_335 = arith.constant dense<0.000000e+00> : vector<16x8xf32>
    %401 = tpu.matmul %400, %385, %cst_335 {dimension_numbers = #tpu.dot_dimension_numbers<[1], [0], [0], [1], [0, 0, 1, 1], [], []>} : vector<16x16xf32>, vector<16x8xf32>, vector<16x8xf32> -> vector<16x8xf32>
    %c1_336 = arith.constant 1 : index
    %c3_337 = arith.constant 3 : index
    %c0_338 = arith.constant 0 : index
    %c0_339 = arith.constant 0 : index
    %402 = vector.load %arg10[%c1_336, %c3_337, %c0_338, %c0_339] : memref<2x4x8x32xf32, #tpu.memory_space<vmem>>, vector<1x1x8x32xf32>
    %403 = vector.shape_cast %402 : vector<1x1x8x32xf32> to vector<8x32xf32>
    %cst_340 = arith.constant dense<0.000000e+00> : vector<16x32xf32>
    %404 = tpu.matmul %401, %403, %cst_340 {dimension_numbers = #tpu.dot_dimension_numbers<[1], [0], [0], [1], [0, 0, 1, 1], [], []>} : vector<16x8xf32>, vector<8x32xf32>, vector<16x32xf32> -> vector<16x32xf32>
    %405 = arith.addf %364, %404 : vector<16x32xf32>
    %406 = arith.addf %242, %405 : vector<16x32xf32>
    %c1_341 = arith.constant 1 : index
    %c0_342 = arith.constant 0 : index
    %c0_343 = arith.constant 0 : index
    %407 = vector.load %arg11[%c1_341, %c0_342, %c0_343] : memref<2x1x32xf32, #tpu.memory_space<vmem>>, vector<1x1x32xf32>
    %408 = vector.shape_cast %407 : vector<1x1x32xf32> to vector<1x32xf32>
    %409 = vector.broadcast %408 : vector<1x32xf32> to vector<16x32xf32>
    %410 = arith.addf %406, %409 : vector<16x32xf32>
    %c1_344 = arith.constant 1 : index
    %c0_345 = arith.constant 0 : index
    %c0_346 = arith.constant 0 : index
    %411 = vector.load %arg12[%c1_344, %c0_345, %c0_346] : memref<2x1x32xf32, #tpu.memory_space<vmem>>, vector<1x1x32xf32>
    %412 = vector.shape_cast %411 : vector<1x1x32xf32> to vector<1x32xf32>
    %c1_347 = arith.constant 1 : index
    %c0_348 = arith.constant 0 : index
    %c0_349 = arith.constant 0 : index
    %413 = vector.load %arg13[%c1_347, %c0_348, %c0_349] : memref<2x1x32xf32, #tpu.memory_space<vmem>>, vector<1x1x32xf32>
    %414 = vector.shape_cast %413 : vector<1x1x32xf32> to vector<1x32xf32>
    %cst_350 = arith.constant dense<0.000000e+00> : vector<16xf32>
    %415 = vector.multi_reduction <add>, %410, %cst_350 [1] : vector<16x32xf32> to vector<16xf32>
    %416 = vector.shape_cast %415 : vector<16xf32> to vector<16x1xf32>
    %cst_351 = arith.constant 3.200000e+01 : f32
    %417 = vector.broadcast %cst_351 : f32 to vector<16x1xf32>
    %418 = arith.divf %416, %417 : vector<16x1xf32>
    %419 = vector.broadcast %418 : vector<16x1xf32> to vector<16x32xf32>
    %420 = arith.subf %410, %419 : vector<16x32xf32>
    %421 = arith.mulf %420, %420 : vector<16x32xf32>
    %cst_352 = arith.constant dense<0.000000e+00> : vector<16xf32>
    %422 = vector.multi_reduction <add>, %421, %cst_352 [1] : vector<16x32xf32> to vector<16xf32>
    %423 = vector.shape_cast %422 : vector<16xf32> to vector<16x1xf32>
    %cst_353 = arith.constant 3.200000e+01 : f32
    %424 = vector.broadcast %cst_353 : f32 to vector<16x1xf32>
    %425 = arith.divf %423, %424 : vector<16x1xf32>
    %cst_354 = arith.constant 9.99999974E-6 : f32
    %426 = vector.broadcast %cst_354 : f32 to vector<16x1xf32>
    %427 = arith.addf %425, %426 : vector<16x1xf32>
    %428 = math.rsqrt %427 : vector<16x1xf32>
    %429 = vector.broadcast %428 : vector<16x1xf32> to vector<16x32xf32>
    %430 = arith.mulf %420, %429 : vector<16x32xf32>
    %431 = vector.broadcast %412 : vector<1x32xf32> to vector<16x32xf32>
    %432 = arith.mulf %430, %431 : vector<16x32xf32>
    %433 = vector.broadcast %414 : vector<1x32xf32> to vector<16x32xf32>
    %434 = arith.addf %432, %433 : vector<16x32xf32>
    %c1_355 = arith.constant 1 : index
    %c0_356 = arith.constant 0 : index
    %c0_357 = arith.constant 0 : index
    %435 = vector.load %arg14[%c1_355, %c0_356, %c0_357] : memref<2x32x64xf32, #tpu.memory_space<vmem>>, vector<1x32x64xf32>
    %436 = vector.shape_cast %435 : vector<1x32x64xf32> to vector<32x64xf32>
    %cst_358 = arith.constant dense<0.000000e+00> : vector<16x64xf32>
    %437 = tpu.matmul %434, %436, %cst_358 {dimension_numbers = #tpu.dot_dimension_numbers<[1], [0], [0], [1], [0, 0, 1, 1], [], []>} : vector<16x32xf32>, vector<32x64xf32>, vector<16x64xf32> -> vector<16x64xf32>
    %c1_359 = arith.constant 1 : index
    %c0_360 = arith.constant 0 : index
    %c0_361 = arith.constant 0 : index
    %438 = vector.load %arg15[%c1_359, %c0_360, %c0_361] : memref<2x1x64xf32, #tpu.memory_space<vmem>>, vector<1x1x64xf32>
    %439 = vector.shape_cast %438 : vector<1x1x64xf32> to vector<1x64xf32>
    %440 = vector.broadcast %439 : vector<1x64xf32> to vector<16x64xf32>
    %441 = arith.addf %437, %440 : vector<16x64xf32>
    %cst_362 = arith.constant 0.000000e+00 : f32
    %442 = vector.broadcast %cst_362 : f32 to vector<16x64xf32>
    %443 = arith.maximumf %441, %442 : vector<16x64xf32>
    %c1_363 = arith.constant 1 : index
    %c0_364 = arith.constant 0 : index
    %c0_365 = arith.constant 0 : index
    %444 = vector.load %arg16[%c1_363, %c0_364, %c0_365] : memref<2x64x32xf32, #tpu.memory_space<vmem>>, vector<1x64x32xf32>
    %445 = vector.shape_cast %444 : vector<1x64x32xf32> to vector<64x32xf32>
    %cst_366 = arith.constant dense<0.000000e+00> : vector<16x32xf32>
    %446 = tpu.matmul %443, %445, %cst_366 {dimension_numbers = #tpu.dot_dimension_numbers<[1], [0], [0], [1], [0, 0, 1, 1], [], []>} : vector<16x64xf32>, vector<64x32xf32>, vector<16x32xf32> -> vector<16x32xf32>
    %c1_367 = arith.constant 1 : index
    %c0_368 = arith.constant 0 : index
    %c0_369 = arith.constant 0 : index
    %447 = vector.load %arg17[%c1_367, %c0_368, %c0_369] : memref<2x1x32xf32, #tpu.memory_space<vmem>>, vector<1x1x32xf32>
    %448 = vector.shape_cast %447 : vector<1x1x32xf32> to vector<1x32xf32>
    %449 = vector.broadcast %448 : vector<1x32xf32> to vector<16x32xf32>
    %450 = arith.addf %446, %449 : vector<16x32xf32>
    %451 = arith.addf %434, %450 : vector<16x32xf32>
    %c1_370 = arith.constant 1 : index
    %c0_371 = arith.constant 0 : index
    %c0_372 = arith.constant 0 : index
    %452 = vector.load %arg18[%c1_370, %c0_371, %c0_372] : memref<2x1x32xf32, #tpu.memory_space<vmem>>, vector<1x1x32xf32>
    %453 = vector.shape_cast %452 : vector<1x1x32xf32> to vector<1x32xf32>
    %c1_373 = arith.constant 1 : index
    %c0_374 = arith.constant 0 : index
    %c0_375 = arith.constant 0 : index
    %454 = vector.load %arg19[%c1_373, %c0_374, %c0_375] : memref<2x1x32xf32, #tpu.memory_space<vmem>>, vector<1x1x32xf32>
    %455 = vector.shape_cast %454 : vector<1x1x32xf32> to vector<1x32xf32>
    %cst_376 = arith.constant dense<0.000000e+00> : vector<16xf32>
    %456 = vector.multi_reduction <add>, %451, %cst_376 [1] : vector<16x32xf32> to vector<16xf32>
    %457 = vector.shape_cast %456 : vector<16xf32> to vector<16x1xf32>
    %cst_377 = arith.constant 3.200000e+01 : f32
    %458 = vector.broadcast %cst_377 : f32 to vector<16x1xf32>
    %459 = arith.divf %457, %458 : vector<16x1xf32>
    %460 = vector.broadcast %459 : vector<16x1xf32> to vector<16x32xf32>
    %461 = arith.subf %451, %460 : vector<16x32xf32>
    %462 = arith.mulf %461, %461 : vector<16x32xf32>
    %cst_378 = arith.constant dense<0.000000e+00> : vector<16xf32>
    %463 = vector.multi_reduction <add>, %462, %cst_378 [1] : vector<16x32xf32> to vector<16xf32>
    %464 = vector.shape_cast %463 : vector<16xf32> to vector<16x1xf32>
    %cst_379 = arith.constant 3.200000e+01 : f32
    %465 = vector.broadcast %cst_379 : f32 to vector<16x1xf32>
    %466 = arith.divf %464, %465 : vector<16x1xf32>
    %cst_380 = arith.constant 9.99999974E-6 : f32
    %467 = vector.broadcast %cst_380 : f32 to vector<16x1xf32>
    %468 = arith.addf %466, %467 : vector<16x1xf32>
    %469 = math.rsqrt %468 : vector<16x1xf32>
    %470 = vector.broadcast %469 : vector<16x1xf32> to vector<16x32xf32>
    %471 = arith.mulf %461, %470 : vector<16x32xf32>
    %472 = vector.broadcast %453 : vector<1x32xf32> to vector<16x32xf32>
    %473 = arith.mulf %471, %472 : vector<16x32xf32>
    %474 = vector.broadcast %455 : vector<1x32xf32> to vector<16x32xf32>
    %475 = arith.addf %473, %474 : vector<16x32xf32>
    %c0_381 = arith.constant 0 : index
    %c0_382 = arith.constant 0 : index
    %476 = vector.load %arg20[%c0_381, %c0_382] : memref<1x32xf32, #tpu.memory_space<vmem>>, vector<1x32xf32>
    %c0_383 = arith.constant 0 : index
    %c0_384 = arith.constant 0 : index
    %477 = vector.load %arg21[%c0_383, %c0_384] : memref<1x32xf32, #tpu.memory_space<vmem>>, vector<1x32xf32>
    %cst_385 = arith.constant dense<0.000000e+00> : vector<16xf32>
    %478 = vector.multi_reduction <add>, %475, %cst_385 [1] : vector<16x32xf32> to vector<16xf32>
    %479 = vector.shape_cast %478 : vector<16xf32> to vector<16x1xf32>
    %cst_386 = arith.constant 3.200000e+01 : f32
    %480 = vector.broadcast %cst_386 : f32 to vector<16x1xf32>
    %481 = arith.divf %479, %480 : vector<16x1xf32>
    %482 = vector.broadcast %481 : vector<16x1xf32> to vector<16x32xf32>
    %483 = arith.subf %475, %482 : vector<16x32xf32>
    %484 = arith.mulf %483, %483 : vector<16x32xf32>
    %cst_387 = arith.constant dense<0.000000e+00> : vector<16xf32>
    %485 = vector.multi_reduction <add>, %484, %cst_387 [1] : vector<16x32xf32> to vector<16xf32>
    %486 = vector.shape_cast %485 : vector<16xf32> to vector<16x1xf32>
    %cst_388 = arith.constant 3.200000e+01 : f32
    %487 = vector.broadcast %cst_388 : f32 to vector<16x1xf32>
    %488 = arith.divf %486, %487 : vector<16x1xf32>
    %cst_389 = arith.constant 9.99999974E-6 : f32
    %489 = vector.broadcast %cst_389 : f32 to vector<16x1xf32>
    %490 = arith.addf %488, %489 : vector<16x1xf32>
    %491 = math.rsqrt %490 : vector<16x1xf32>
    %492 = vector.broadcast %491 : vector<16x1xf32> to vector<16x32xf32>
    %493 = arith.mulf %483, %492 : vector<16x32xf32>
    %494 = vector.broadcast %476 : vector<1x32xf32> to vector<16x32xf32>
    %495 = arith.mulf %493, %494 : vector<16x32xf32>
    %496 = vector.broadcast %477 : vector<1x32xf32> to vector<16x32xf32>
    %497 = arith.addf %495, %496 : vector<16x32xf32>
    %c0_390 = arith.constant 0 : index
    %c0_391 = arith.constant 0 : index
    %498 = vector.load %arg22[%c0_390, %c0_391] : memref<32x5xf32, #tpu.memory_space<vmem>>, vector<32x5xf32>
    %cst_392 = arith.constant dense<0.000000e+00> : vector<16x5xf32>
    %499 = tpu.matmul %497, %498, %cst_392 {dimension_numbers = #tpu.dot_dimension_numbers<[1], [0], [0], [1], [0, 0, 1, 1], [], []>} : vector<16x32xf32>, vector<32x5xf32>, vector<16x5xf32> -> vector<16x5xf32>
    %c0_393 = arith.constant 0 : index
    %c0_394 = arith.constant 0 : index
    %500 = vector.load %arg23[%c0_393, %c0_394] : memref<1x5xf32, #tpu.memory_space<vmem>>, vector<1x5xf32>
    %501 = vector.broadcast %500 : vector<1x5xf32> to vector<16x5xf32>
    %502 = arith.addf %499, %501 : vector<16x5xf32>
    %cst_395 = arith.constant dense<0xFF800000> : vector<16xf32>
    %503 = vector.multi_reduction <maximumf>, %502, %cst_395 [1] : vector<16x5xf32> to vector<16xf32>
    %504 = vector.shape_cast %503 : vector<16xf32> to vector<16x1xf32>
    %505 = vector.broadcast %504 : vector<16x1xf32> to vector<16x5xf32>
    %506 = arith.subf %502, %505 : vector<16x5xf32>
    %507 = math.exp %506 : vector<16x5xf32>
    %cst_396 = arith.constant dense<0.000000e+00> : vector<16xf32>
    %508 = vector.multi_reduction <add>, %507, %cst_396 [1] : vector<16x5xf32> to vector<16xf32>
    %509 = vector.shape_cast %508 : vector<16xf32> to vector<16x1xf32>
    %510 = math.log %509 : vector<16x1xf32>
    %511 = vector.broadcast %510 : vector<16x1xf32> to vector<16x5xf32>
    %512 = arith.subf %506, %511 : vector<16x5xf32>
    %c0_397 = arith.constant 0 : index
    %c0_398 = arith.constant 0 : index
    %c0_399 = arith.constant 0 : index
    %513 = vector.load %arg24[%c0_397, %c0_398, %c0_399] : memref<1x16x5xf32, #tpu.memory_space<vmem>>, vector<1x16x5xf32>
    %514 = vector.shape_cast %513 : vector<1x16x5xf32> to vector<16x5xf32>
    %515 = vector.shape_cast %512 : vector<16x5xf32> to vector<1x16x5xf32>
    tpu.vector_store %arg24[%c0_397, %c0_398, %c0_399], %515 {strides = array<i32>} : memref<1x16x5xf32, #tpu.memory_space<vmem>>, vector<1x16x5xf32>,
    return
  }
  func.func @transform_0(%arg0: i32) -> (i32, i32, i32) {
    %c0_i32 = arith.constant 0 : i32
    %c0_i32_0 = arith.constant 0 : i32
    %c0_i32_1 = arith.constant 0 : i32
    return %arg0, %c0_i32, %c0_i32_0 : i32, i32, i32
  }
  func.func @transform_1(%arg0: i32) -> (i32, i32, i32) {
    %c0_i32 = arith.constant 0 : i32
    %c0_i32_0 = arith.constant 0 : i32
    %c0_i32_1 = arith.constant 0 : i32
    return %arg0, %c0_i32, %c0_i32_0 : i32, i32, i32
  }
  func.func @transform_2(%arg0: i32) -> (i32, i32, i32) {
    %c0_i32 = arith.constant 0 : i32
    %c0_i32_0 = arith.constant 0 : i32
    %c0_i32_1 = arith.constant 0 : i32
    return %arg0, %c0_i32, %c0_i32_0 : i32, i32, i32
  }
  func.func @transform_3(%arg0: i32) -> (i32, i32, i32, i32) {
    %c0_i32 = arith.constant 0 : i32
    %c0_i32_0 = arith.constant 0 : i32
    %c0_i32_1 = arith.constant 0 : i32
    %c0_i32_2 = arith.constant 0 : i32
    %c0_i32_3 = arith.constant 0 : i32
    return %c0_i32, %c0_i32_0, %c0_i32_1, %c0_i32_2 : i32, i32, i32, i32
  }
  func.func @transform_4(%arg0: i32) -> (i32, i32, i32, i32) {
    %c0_i32 = arith.constant 0 : i32
    %c0_i32_0 = arith.constant 0 : i32
    %c0_i32_1 = arith.constant 0 : i32
    %c0_i32_2 = arith.constant 0 : i32
    %c0_i32_3 = arith.constant 0 : i32
    return %c0_i32, %c0_i32_0, %c0_i32_1, %c0_i32_2 : i32, i32, i32, i32
  }
  func.func @transform_5(%arg0: i32) -> (i32, i32, i32, i32) {
    %c0_i32 = arith.constant 0 : i32
    %c0_i32_0 = arith.constant 0 : i32
    %c0_i32_1 = arith.constant 0 : i32
    %c0_i32_2 = arith.constant 0 : i32
    %c0_i32_3 = arith.constant 0 : i32
    return %c0_i32, %c0_i32_0, %c0_i32_1, %c0_i32_2 : i32, i32, i32, i32
  }
  func.func @transform_6(%arg0: i32) -> (i32, i32, i32, i32) {
    %c0_i32 = arith.constant 0 : i32
    %c0_i32_0 = arith.constant 0 : i32
    %c0_i32_1 = arith.constant 0 : i32
    %c0_i32_2 = arith.constant 0 : i32
    %c0_i32_3 = arith.constant 0 : i32
    return %c0_i32, %c0_i32_0, %c0_i32_1, %c0_i32_2 : i32, i32, i32, i32
  }
  func.func @transform_7(%arg0: i32) -> (i32, i32, i32, i32) {
    %c0_i32 = arith.constant 0 : i32
    %c0_i32_0 = arith.constant 0 : i32
    %c0_i32_1 = arith.constant 0 : i32
    %c0_i32_2 = arith.constant 0 : i32
    %c0_i32_3 = arith.constant 0 : i32
    return %c0_i32, %c0_i32_0, %c0_i32_1, %c0_i32_2 : i32, i32, i32, i32
  }
  func.func @transform_8(%arg0: i32) -> (i32, i32, i32, i32) {
    %c0_i32 = arith.constant 0 : i32
    %c0_i32_0 = arith.constant 0 : i32
    %c0_i32_1 = arith.constant 0 : i32
    %c0_i32_2 = arith.constant 0 : i32
    %c0_i32_3 = arith.constant 0 : i32
    return %c0_i32, %c0_i32_0, %c0_i32_1, %c0_i32_2 : i32, i32, i32, i32
  }
  func.func @transform_9(%arg0: i32) -> (i32, i32, i32, i32) {
    %c0_i32 = arith.constant 0 : i32
    %c0_i32_0 = arith.constant 0 : i32
    %c0_i32_1 = arith.constant 0 : i32
    %c0_i32_2 = arith.constant 0 : i32
    %c0_i32_3 = arith.constant 0 : i32
    return %c0_i32, %c0_i32_0, %c0_i32_1, %c0_i32_2 : i32, i32, i32, i32
  }
  func.func @transform_10(%arg0: i32) -> (i32, i32, i32) {
    %c0_i32 = arith.constant 0 : i32
    %c0_i32_0 = arith.constant 0 : i32
    %c0_i32_1 = arith.constant 0 : i32
    %c0_i32_2 = arith.constant 0 : i32
    return %c0_i32, %c0_i32_0, %c0_i32_1 : i32, i32, i32
  }
  func.func @transform_11(%arg0: i32) -> (i32, i32, i32) {
    %c0_i32 = arith.constant 0 : i32
    %c0_i32_0 = arith.constant 0 : i32
    %c0_i32_1 = arith.constant 0 : i32
    %c0_i32_2 = arith.constant 0 : i32
    return %c0_i32, %c0_i32_0, %c0_i32_1 : i32, i32, i32
  }
  func.func @transform_12(%arg0: i32) -> (i32, i32, i32) {
    %c0_i32 = arith.constant 0 : i32
    %c0_i32_0 = arith.constant 0 : i32
    %c0_i32_1 = arith.constant 0 : i32
    %c0_i32_2 = arith.constant 0 : i32
    return %c0_i32, %c0_i32_0, %c0_i32_1 : i32, i32, i32
  }
  func.func @transform_13(%arg0: i32) -> (i32, i32, i32) {
    %c0_i32 = arith.constant 0 : i32
    %c0_i32_0 = arith.constant 0 : i32
    %c0_i32_1 = arith.constant 0 : i32
    %c0_i32_2 = arith.constant 0 : i32
    return %c0_i32, %c0_i32_0, %c0_i32_1 : i32, i32, i32
  }
  func.func @transform_14(%arg0: i32) -> (i32, i32, i32) {
    %c0_i32 = arith.constant 0 : i32
    %c0_i32_0 = arith.constant 0 : i32
    %c0_i32_1 = arith.constant 0 : i32
    %c0_i32_2 = arith.constant 0 : i32
    return %c0_i32, %c0_i32_0, %c0_i32_1 : i32, i32, i32
  }
  func.func @transform_15(%arg0: i32) -> (i32, i32, i32) {
    %c0_i32 = arith.constant 0 : i32
    %c0_i32_0 = arith.constant 0 : i32
    %c0_i32_1 = arith.constant 0 : i32
    %c0_i32_2 = arith.constant 0 : i32
    return %c0_i32, %c0_i32_0, %c0_i32_1 : i32, i32, i32
  }
  func.func @transform_16(%arg0: i32) -> (i32, i32, i32) {
    %c0_i32 = arith.constant 0 : i32
    %c0_i32_0 = arith.constant 0 : i32
    %c0_i32_1 = arith.constant 0 : i32
    %c0_i32_2 = arith.constant 0 : i32
    return %c0_i32, %c0_i32_0, %c0_i32_1 : i32, i32, i32
  }
  func.func @transform_17(%arg0: i32) -> (i32, i32, i32) {
    %c0_i32 = arith.constant 0 : i32
    %c0_i32_0 = arith.constant 0 : i32
    %c0_i32_1 = arith.constant 0 : i32
    %c0_i32_2 = arith.constant 0 : i32
    return %c0_i32, %c0_i32_0, %c0_i32_1 : i32, i32, i32
  }
  func.func @transform_18(%arg0: i32) -> (i32, i32, i32) {
    %c0_i32 = arith.constant 0 : i32
    %c0_i32_0 = arith.constant 0 : i32
    %c0_i32_1 = arith.constant 0 : i32
    %c0_i32_2 = arith.constant 0 : i32
    return %c0_i32, %c0_i32_0, %c0_i32_1 : i32, i32, i32
  }
  func.func @transform_19(%arg0: i32) -> (i32, i32) {
    %c0_i32 = arith.constant 0 : i32
    %c0_i32_0 = arith.constant 0 : i32
    %c0_i32_1 = arith.constant 0 : i32
    return %c0_i32, %c0_i32_0 : i32, i32
  }
  func.func @transform_20(%arg0: i32) -> (i32, i32) {
    %c0_i32 = arith.constant 0 : i32
    %c0_i32_0 = arith.constant 0 : i32
    %c0_i32_1 = arith.constant 0 : i32
    return %c0_i32, %c0_i32_0 : i32, i32
  }
  func.func @transform_21(%arg0: i32) -> (i32, i32) {
    %c0_i32 = arith.constant 0 : i32
    %c0_i32_0 = arith.constant 0 : i32
    %c0_i32_1 = arith.constant 0 : i32
    return %c0_i32, %c0_i32_0 : i32, i32
  }
  func.func @transform_22(%arg0: i32) -> (i32, i32) {
    %c0_i32 = arith.constant 0 : i32
    %c0_i32_0 = arith.constant 0 : i32
    %c0_i32_1 = arith.constant 0 : i32
    return %c0_i32, %c0_i32_0 : i32, i32
  }
  func.func @transform_23(%arg0: i32) -> (i32, i32, i32) {
    %c0_i32 = arith.constant 0 : i32
    %c0_i32_0 = arith.constant 0 : i32
    %c0_i32_1 = arith.constant 0 : i32
    return %arg0, %c0_i32, %c0_i32_0 : i32, i32, i32
  }
}

</mosaic_0001>

<llo_original>
// kernel: agcn_transformer_forward.3
$region0: #{agcn_transformer_forward.3}
  #allocation0 [shape = 'u32[]', space=smem, size = 0x4, offset = 0x4, fixed_abs, tag = 'smem constant byte address 0x4 - core index']
  #allocation1 [shape = 'u32[72,128]{1,0:T(1,128)}', space=vmem, size = 0x9000, scoped, tag = 'internal scratch']
  %s0 = inlined_call_operand.vmem [shape: f32[2,16,32], index: 0, kind: input, shape index: {}]
  %s1 = inlined_call_operand.hbm [shape: f32[2,1,32], index: 1, kind: input, shape index: {}]
  %s2 = inlined_call_operand.vmem [shape: f32[2,1,16], index: 2, kind: input, shape index: {}]
  %s3 = inlined_call_operand.hbm [shape: f32[2,4,32,8], index: 3, kind: input, shape index: {}]
  %s4 = inlined_call_operand.hbm [shape: f32[2,4,1,8], index: 4, kind: input, shape index: {}]
  %s5 = inlined_call_operand.hbm [shape: f32[2,4,32,8], index: 5, kind: input, shape index: {}]
  %s6 = inlined_call_operand.hbm [shape: f32[2,4,1,8], index: 6, kind: input, shape index: {}]
  %s7 = inlined_call_operand.hbm [shape: f32[2,4,32,8], index: 7, kind: input, shape index: {}]
  %s8 = inlined_call_operand.hbm [shape: f32[2,4,1,8], index: 8, kind: input, shape index: {}]
  %s9 = inlined_call_operand.hbm [shape: f32[2,4,8,32], index: 9, kind: input, shape index: {}]
  %s10 = inlined_call_operand.hbm [shape: f32[2,1,32], index: 10, kind: input, shape index: {}]
  %s11 = inlined_call_operand.vmem [shape: f32[2,1,32], index: 11, kind: input, shape index: {}, may-alias: {11,17}]
  %s12 = inlined_call_operand.vmem [shape: f32[2,1,32], index: 12, kind: input, shape index: {}, may-alias: {12,18}]
  %s13 = inlined_call_operand.hbm [shape: f32[2,32,64], index: 13, kind: input, shape index: {}]
  %s14 = inlined_call_operand.hbm [shape: f32[2,1,64], index: 14, kind: input, shape index: {}]
  %s15 = inlined_call_operand.hbm [shape: f32[2,64,32], index: 15, kind: input, shape index: {}]
  %s16 = inlined_call_operand.hbm [shape: f32[2,1,32], index: 16, kind: input, shape index: {}]
  %s17 = inlined_call_operand.vmem [shape: f32[2,1,32], index: 17, kind: input, shape index: {}, may-alias: {11,17}]
  %s18 = inlined_call_operand.vmem [shape: f32[2,1,32], index: 18, kind: input, shape index: {}, may-alias: {12,18}]
  %s19 = inlined_call_operand.vmem [shape: f32[1,32], index: 19, kind: input, shape index: {}]
  %s20 = inlined_call_operand.vmem [shape: f32[1,32], index: 20, kind: input, shape index: {}]
  %s21 = inlined_call_operand.hbm [shape: f32[32,5], index: 21, kind: input, shape index: {}]
  %s22 = inlined_call_operand.hbm [shape: f32[1,5], index: 22, kind: input, shape index: {}]
  %s23 = inlined_call_operand.vmem [shape: f32[2,16,5], index: 23, kind: output, shape index: {}]
  %s24 = sld [smem:[#allocation0]]
  $region185: #{agcn_transformer_forward.3} parent=0
    _
  %s26 = ssub.s32 1, %s24
  %s27 = scalar_select 0, %s26, %s24
  $region1: #{agcn_transformer_forward.3} parent=0
    #allocation2 [shape = 'u8[1024]{0}', space=vmem, size = 0x400, scoped, tag = 'input window, operand 1']
    #allocation3 [shape = 's32[2]{0}', space=sflag, size = 0x8, scoped, tag = 'scoped memory for agcn_transformer_forward.3']
    #allocation4 [shape = 'u8[131072]{0}', space=vmem, size = 0x20000, scoped, tag = 'input window, operand 3, single buffered']
    #allocation5 [shape = 's32[1]{0}', space=sflag, size = 0x4, scoped, tag = 'scoped memory for agcn_transformer_forward.3']
    #allocation6 [shape = 'u8[4096]{0}', space=vmem, size = 0x1000, scoped, tag = 'input window, operand 4, single buffered']
    #allocation7 [shape = 'u8[131072]{0}', space=vmem, size = 0x20000, scoped, tag = 'input window, operand 5, single buffered']
    #allocation8 [shape = 's32[1]{0}', space=sflag, size = 0x4, scoped, tag = 'scoped memory for agcn_transformer_forward.3']
    #allocation9 [shape = 'u8[4096]{0}', space=vmem, size = 0x1000, scoped, tag = 'input window, operand 6, single buffered']
    #allocation10 [shape = 'u8[131072]{0}', space=vmem, size = 0x20000, scoped, tag = 'input window, operand 7, single buffered']
    #allocation11 [shape = 's32[1]{0}', space=sflag, size = 0x4, scoped, tag = 'scoped memory for agcn_transformer_forward.3']
    #allocation12 [shape = 'u8[4096]{0}', space=vmem, size = 0x1000, scoped, tag = 'input window, operand 8, single buffered']
    #allocation13 [shape = 'u8[32768]{0}', space=vmem, size = 0x8000, scoped, tag = 'input window, operand 9, single buffered']
    #allocation14 [shape = 's32[1]{0}', space=sflag, size = 0x4, scoped, tag = 'scoped memory for agcn_transformer_forward.3']
    #allocation15 [shape = 'u8[1024]{0}', space=vmem, size = 0x400, scoped, tag = 'input window, operand 10, single buffered']
    #allocation16 [shape = 'u8[32768]{0}', space=vmem, size = 0x8000, scoped, tag = 'input window, operand 13, single buffered']
    #allocation17 [shape = 's32[1]{0}', space=sflag, size = 0x4, scoped, tag = 'scoped memory for agcn_transformer_forward.3']
    #allocation18 [shape = 'u8[1024]{0}', space=vmem, size = 0x400, scoped, tag = 'input window, operand 14, single buffered']
    #allocation19 [shape = 'u8[65536]{0}', space=vmem, size = 0x10000, scoped, tag = 'input window, operand 15, single buffered']
    #allocation20 [shape = 's32[1]{0}', space=sflag, size = 0x4, scoped, tag = 'scoped memory for agcn_transformer_forward.3']
    #allocation21 [shape = 'u8[1024]{0}', space=vmem, size = 0x400, scoped, tag = 'input window, operand 16, single buffered']
    #allocation22 [shape = 'u8[16384]{0}', space=vmem, size = 0x4000, scoped, tag = 'input window, operand 21, single buffered']
    #allocation23 [shape = 's32[1]{0}', space=sflag, size = 0x4, scoped, tag = 'scoped memory for agcn_transformer_forward.3']
    #allocation24 [shape = 'u8[512]{0}', space=vmem, size = 0x400, scoped, tag = 'input window, operand 22, single buffered']
    %28 = vsyncpa [#allocation3], 0
    %s29 = scalar_lea.sflag [#allocation3], 1
    %30 = vsyncpa %s29, 0
    %31 = vsyncpa [#allocation5], 0
    %32 = vsyncpa [#allocation8], 0
    %33 = vsyncpa [#allocation11], 0
    %34 = vsyncpa [#allocation14], 0
    %35 = vsyncpa [#allocation17], 0
    %36 = vsyncpa [#allocation20], 0
    %37 = vsyncpa [#allocation23], 0
    loop: start=0, step=1, limit=4
    $region2: #{agcn_transformer_forward.3} parent=1 // loop_pre_header
      _
    $region3: #{agcn_transformer_forward.3} parent=1 // loop_header
      %s39 = sphi 0, %s43
      %p40 = scmp.ge.s32.totalorder %s39, 4
      %s49 = sphi 0, %s51
      %s52 = sphi 0, %s49
      %s53 = sphi 0, %s52
      %s69 = sphi 0, %s53
      %s75 = sphi 0, %s77
      %s78 = sphi 0, %s75
      %s79 = sphi 0, %s78
      %s95 = sphi 0, %s79
      %s101 = sphi 0, %s103
      %s104 = sphi 0, %s101
      %s105 = sphi 0, %s104
      %s121 = sphi 0, %s105
      %s125 = sphi 0, %s125
      %s127 = sphi 0, %s125
      %s128 = sphi 0, %s127
      %s142 = sphi 0, %s128
      %s146 = sphi 0, %s146
      %s148 = sphi 0, %s146
      %s149 = sphi 0, %s148
      %s163 = sphi 0, %s149
      %s167 = sphi 0, %s167
      %s169 = sphi 0, %s167
      %s170 = sphi 0, %s169
      %s184 = sphi 0, %s170
      %s188 = sphi 0, %s188
      %s190 = sphi 0, %s188
      %s191 = sphi 0, %s190
      %s205 = sphi 0, %s191
      %s209 = sphi 0, %s209
      %s211 = sphi 0, %s209
      %s212 = sphi 0, %s211
      %s226 = sphi 0, %s212
      %s230 = sphi 0, %s230
      %s232 = sphi 0, %s230
      %s233 = sphi 0, %s232
      %s247 = sphi 0, %s233
      %s251 = sphi 0, %s251
      %s253 = sphi 0, %s251
      %s254 = sphi 0, %s253
      %s268 = sphi 0, %s254
      %s272 = sphi 0, %s272
      %s274 = sphi 0, %s272
      %s275 = sphi 0, %s274
      %s289 = sphi 0, %s275
      %s293 = sphi 0, %s293
      %s295 = sphi 0, %s293
      %s296 = sphi 0, %s295
      %s310 = sphi 0, %s296
      %s314 = sphi 0, %s314
      %s316 = sphi 0, %s314
      %s317 = sphi 0, %s316
      %s331 = sphi 0, %s317
      %s335 = sphi 0, %s335
      %s337 = sphi 0, %s335
      %s338 = sphi 0, %s337
      %s352 = sphi 0, %s338
      %s356 = sphi 0, %s356
      %s358 = sphi 0, %s356
      %s359 = sphi 0, %s358
      %s373 = sphi 0, %s359
      %s377 = sphi 0, %s377
      %s379 = sphi 0, %s377
      %s380 = sphi 0, %s379
      %s394 = sphi 0, %s380
      %s398 = sphi 0, %s398
      %s400 = sphi 0, %s398
      %s401 = sphi 0, %s400
      %s415 = sphi 0, %s401
      %s419 = sphi 0, %s419
      %s421 = sphi 0, %s419
      %s422 = sphi 0, %s421
      %s436 = sphi 0, %s422
      %s440 = sphi 0, %s440
      %s442 = sphi 0, %s440
      %s443 = sphi 0, %s442
      %s457 = sphi 0, %s443
      %s461 = sphi 0, %s461
      %s463 = sphi 0, %s461
      %s464 = sphi 0, %s463
      %s478 = sphi 0, %s464
      %s482 = sphi 0, %s482
      %s484 = sphi 0, %s482
      %s485 = sphi 0, %s484
      %s499 = sphi 0, %s485
      %s503 = sphi 0, %s503
      %s505 = sphi 0, %s503
      %s506 = sphi 0, %s505
      %s520 = sphi 0, %s506
      %s524 = sphi 0, %s524
      %s526 = sphi 0, %s524
      %s527 = sphi 0, %s526
      %s541 = sphi 0, %s527
      %s547 = sphi 0, %s549
      %s550 = sphi 0, %s547
      %s551 = sphi 0, %s550
      %s567 = sphi 0, %s551
    $region4: #{agcn_transformer_forward.3} parent=1 // loop_header_branch
      %42 = sbr.rel (%p40) target = $region8
    $region5: #{agcn_transformer_forward.3} parent=1 // loop_body
      %s44 = ssub.s32 %s39, 1
      %s45 = ssub.s32 %s39, 2
      %s46 = sadd.s32 %s39, 1
      %s47 = ssub.s32 %s39, %s46
      %p48 = scmp.eq.s32.totalorder %s47, 0
      %s50 = sadd.s32 %s49, 1
      %s51 = scalar_select %p48, %s49, %s50
      %p54 = pneg %p48
      %p55 = scmp.eq.s32.totalorder %s39, 1
      %p56 = por %p54, %p55
      %p57 = scmp.ne.s32.totalorder %s49, %s52
      %p58 = scmp.eq.s32.totalorder %s39, 0
      %p59 = por %p57, %p58
      %p60 = scmp.ne.s32.totalorder %s49, %s52
      %p61 = scmp.eq.s32.totalorder %s44, 1
      %p62 = por %p60, %p61
      %p63 = scmp.ne.s32.totalorder %s52, %s53
      %p64 = scmp.eq.s32.totalorder %s44, 0
      %p65 = por %p63, %p64
      %p66 = scmp.ne.s32.totalorder %s52, %s53
      %p67 = scmp.eq.s32.totalorder %s45, 1
      %p68 = por %p66, %p67
      %p70 = scmp.ne.s32.totalorder %s53, %s69
      %p71 = scmp.eq.s32.totalorder %s45, 0
      %p72 = por %p70, %p71
      %s73 = ssub.s32 %s39, %s46
      %p74 = scmp.eq.s32.totalorder %s73, 0
      %s76 = sadd.s32 %s75, 1
      %s77 = scalar_select %p74, %s75, %s76
      %p80 = pneg %p74
      %p81 = scmp.eq.s32.totalorder %s39, 1
      %p82 = por %p80, %p81
      %p83 = scmp.ne.s32.totalorder %s75, %s78
      %p84 = scmp.eq.s32.totalorder %s39, 0
      %p85 = por %p83, %p84
      %p86 = scmp.ne.s32.totalorder %s75, %s78
      %p87 = scmp.eq.s32.totalorder %s44, 1
      %p88 = por %p86, %p87
      %p89 = scmp.ne.s32.totalorder %s78, %s79
      %p90 = scmp.eq.s32.totalorder %s44, 0
      %p91 = por %p89, %p90
      %p92 = scmp.ne.s32.totalorder %s78, %s79
      %p93 = scmp.eq.s32.totalorder %s45, 1
      %p94 = por %p92, %p93
      %p96 = scmp.ne.s32.totalorder %s79, %s95
      %p97 = scmp.eq.s32.totalorder %s45, 0
      %p98 = por %p96, %p97
      %s99 = ssub.s32 %s39, %s46
      %p100 = scmp.eq.s32.totalorder %s99, 0
      %s102 = sadd.s32 %s101, 1
      %s103 = scalar_select %p100, %s101, %s102
      %p106 = pneg %p100
      %p107 = scmp.eq.s32.totalorder %s39, 1
      %p108 = por %p106, %p107
      %p109 = scmp.ne.s32.totalorder %s101, %s104
      %p110 = scmp.eq.s32.totalorder %s39, 0
      %p111 = por %p109, %p110
      %p112 = scmp.ne.s32.totalorder %s101, %s104
      %p113 = scmp.eq.s32.totalorder %s44, 1
      %p114 = por %p112, %p113
      %p115 = scmp.ne.s32.totalorder %s104, %s105
      %p116 = scmp.eq.s32.totalorder %s44, 0
      %p117 = por %p115, %p116
      %p118 = scmp.ne.s32.totalorder %s104, %s105
      %p119 = scmp.eq.s32.totalorder %s45, 1
      %p120 = por %p118, %p119
      %p122 = scmp.ne.s32.totalorder %s105, %s121
      %p123 = scmp.eq.s32.totalorder %s45, 0
      %p124 = por %p122, %p123
      %s126 = sadd.s32 %s125, 1
      %p129 = scmp.eq.s32.totalorder %s39, 1
      %p130 = scmp.ne.s32.totalorder %s125, %s127
      %p131 = scmp.eq.s32.totalorder %s39, 0
      %p132 = por %p130, %p131
      %p133 = scmp.ne.s32.totalorder %s125, %s127
      %p134 = scmp.eq.s32.totalorder %s44, 1
      %p135 = por %p133, %p134
      %p136 = scmp.ne.s32.totalorder %s127, %s128
      %p137 = scmp.eq.s32.totalorder %s44, 0
      %p138 = por %p136, %p137
      %p139 = scmp.ne.s32.totalorder %s127, %s128
      %p140 = scmp.eq.s32.totalorder %s45, 1
      %p141 = por %p139, %p140
      %p143 = scmp.ne.s32.totalorder %s128, %s142
      %p144 = scmp.eq.s32.totalorder %s45, 0
      %p145 = por %p143, %p144
      %s147 = sadd.s32 %s146, 1
      %p150 = scmp.eq.s32.totalorder %s39, 1
      %p151 = scmp.ne.s32.totalorder %s146, %s148
      %p152 = scmp.eq.s32.totalorder %s39, 0
      %p153 = por %p151, %p152
      %p154 = scmp.ne.s32.totalorder %s146, %s148
      %p155 = scmp.eq.s32.totalorder %s44, 1
      %p156 = por %p154, %p155
      %p157 = scmp.ne.s32.totalorder %s148, %s149
      %p158 = scmp.eq.s32.totalorder %s44, 0
      %p159 = por %p157, %p158
      %p160 = scmp.ne.s32.totalorder %s148, %s149
      %p161 = scmp.eq.s32.totalorder %s45, 1
      %p162 = por %p160, %p161
      %p164 = scmp.ne.s32.totalorder %s149, %s163
      %p165 = scmp.eq.s32.totalorder %s45, 0
      %p166 = por %p164, %p165
      %s168 = sadd.s32 %s167, 1
      %p171 = scmp.eq.s32.totalorder %s39, 1
      %p172 = scmp.ne.s32.totalorder %s167, %s169
      %p173 = scmp.eq.s32.totalorder %s39, 0
      %p174 = por %p172, %p173
      %p175 = scmp.ne.s32.totalorder %s167, %s169
      %p176 = scmp.eq.s32.totalorder %s44, 1
      %p177 = por %p175, %p176
      %p178 = scmp.ne.s32.totalorder %s169, %s170
      %p179 = scmp.eq.s32.totalorder %s44, 0
      %p180 = por %p178, %p179
      %p181 = scmp.ne.s32.totalorder %s169, %s170
      %p182 = scmp.eq.s32.totalorder %s45, 1
      %p183 = por %p181, %p182
      %p185 = scmp.ne.s32.totalorder %s170, %s184
      %p186 = scmp.eq.s32.totalorder %s45, 0
      %p187 = por %p185, %p186
      %s189 = sadd.s32 %s188, 1
      %p192 = scmp.eq.s32.totalorder %s39, 1
      %p193 = scmp.ne.s32.totalorder %s188, %s190
      %p194 = scmp.eq.s32.totalorder %s39, 0
      %p195 = por %p193, %p194
      %p196 = scmp.ne.s32.totalorder %s188, %s190
      %p197 = scmp.eq.s32.totalorder %s44, 1
      %p198 = por %p196, %p197
      %p199 = scmp.ne.s32.totalorder %s190, %s191
      %p200 = scmp.eq.s32.totalorder %s44, 0
      %p201 = por %p199, %p200
      %p202 = scmp.ne.s32.totalorder %s190, %s191
      %p203 = scmp.eq.s32.totalorder %s45, 1
      %p204 = por %p202, %p203
      %p206 = scmp.ne.s32.totalorder %s191, %s205
      %p207 = scmp.eq.s32.totalorder %s45, 0
      %p208 = por %p206, %p207
      %s210 = sadd.s32 %s209, 1
      %p213 = scmp.eq.s32.totalorder %s39, 1
      %p214 = scmp.ne.s32.totalorder %s209, %s211
      %p215 = scmp.eq.s32.totalorder %s39, 0
      %p216 = por %p214, %p215
      %p217 = scmp.ne.s32.totalorder %s209, %s211
      %p218 = scmp.eq.s32.totalorder %s44, 1
      %p219 = por %p217, %p218
      %p220 = scmp.ne.s32.totalorder %s211, %s212
      %p221 = scmp.eq.s32.totalorder %s44, 0
      %p222 = por %p220, %p221
      %p223 = scmp.ne.s32.totalorder %s211, %s212
      %p224 = scmp.eq.s32.totalorder %s45, 1
      %p225 = por %p223, %p224
      %p227 = scmp.ne.s32.totalorder %s212, %s226
      %p228 = scmp.eq.s32.totalorder %s45, 0
      %p229 = por %p227, %p228
      %s231 = sadd.s32 %s230, 1
      %p234 = scmp.eq.s32.totalorder %s39, 1
      %p235 = scmp.ne.s32.totalorder %s230, %s232
      %p236 = scmp.eq.s32.totalorder %s39, 0
      %p237 = por %p235, %p236
      %p238 = scmp.ne.s32.totalorder %s230, %s232
      %p239 = scmp.eq.s32.totalorder %s44, 1
      %p240 = por %p238, %p239
      %p241 = scmp.ne.s32.totalorder %s232, %s233
      %p242 = scmp.eq.s32.totalorder %s44, 0
      %p243 = por %p241, %p242
      %p244 = scmp.ne.s32.totalorder %s232, %s233
      %p245 = scmp.eq.s32.totalorder %s45, 1
      %p246 = por %p244, %p245
      %p248 = scmp.ne.s32.totalorder %s233, %s247
      %p249 = scmp.eq.s32.totalorder %s45, 0
      %p250 = por %p248, %p249
      %s252 = sadd.s32 %s251, 1
      %p255 = scmp.eq.s32.totalorder %s39, 1
      %p256 = scmp.ne.s32.totalorder %s251, %s253
      %p257 = scmp.eq.s32.totalorder %s39, 0
      %p258 = por %p256, %p257
      %p259 = scmp.ne.s32.totalorder %s251, %s253
      %p260 = scmp.eq.s32.totalorder %s44, 1
      %p261 = por %p259, %p260
      %p262 = scmp.ne.s32.totalorder %s253, %s254
      %p263 = scmp.eq.s32.totalorder %s44, 0
      %p264 = por %p262, %p263
      %p265 = scmp.ne.s32.totalorder %s253, %s254
      %p266 = scmp.eq.s32.totalorder %s45, 1
      %p267 = por %p265, %p266
      %p269 = scmp.ne.s32.totalorder %s254, %s268
      %p270 = scmp.eq.s32.totalorder %s45, 0
      %p271 = por %p269, %p270
      %s273 = sadd.s32 %s272, 1
      %p276 = scmp.eq.s32.totalorder %s39, 1
      %p277 = scmp.ne.s32.totalorder %s272, %s274
      %p278 = scmp.eq.s32.totalorder %s39, 0
      %p279 = por %p277, %p278
      %p280 = scmp.ne.s32.totalorder %s272, %s274
      %p281 = scmp.eq.s32.totalorder %s44, 1
      %p282 = por %p280, %p281
      %p283 = scmp.ne.s32.totalorder %s274, %s275
      %p284 = scmp.eq.s32.totalorder %s44, 0
      %p285 = por %p283, %p284
      %p286 = scmp.ne.s32.totalorder %s274, %s275
      %p287 = scmp.eq.s32.totalorder %s45, 1
      %p288 = por %p286, %p287
      %p290 = scmp.ne.s32.totalorder %s275, %s289
      %p291 = scmp.eq.s32.totalorder %s45, 0
      %p292 = por %p290, %p291
      %s294 = sadd.s32 %s293, 1
      %p297 = scmp.eq.s32.totalorder %s39, 1
      %p298 = scmp.ne.s32.totalorder %s293, %s295
      %p299 = scmp.eq.s32.totalorder %s39, 0
      %p300 = por %p298, %p299
      %p301 = scmp.ne.s32.totalorder %s293, %s295
      %p302 = scmp.eq.s32.totalorder %s44, 1
      %p303 = por %p301, %p302
      %p304 = scmp.ne.s32.totalorder %s295, %s296
      %p305 = scmp.eq.s32.totalorder %s44, 0
      %p306 = por %p304, %p305
      %p307 = scmp.ne.s32.totalorder %s295, %s296
      %p308 = scmp.eq.s32.totalorder %s45, 1
      %p309 = por %p307, %p308
      %p311 = scmp.ne.s32.totalorder %s296, %s310
      %p312 = scmp.eq.s32.totalorder %s45, 0
      %p313 = por %p311, %p312
      %s315 = sadd.s32 %s314, 1
      %p318 = scmp.eq.s32.totalorder %s39, 1
      %p319 = scmp.ne.s32.totalorder %s314, %s316
      %p320 = scmp.eq.s32.totalorder %s39, 0
      %p321 = por %p319, %p320
      %p322 = scmp.ne.s32.totalorder %s314, %s316
      %p323 = scmp.eq.s32.totalorder %s44, 1
      %p324 = por %p322, %p323
      %p325 = scmp.ne.s32.totalorder %s316, %s317
      %p326 = scmp.eq.s32.totalorder %s44, 0
      %p327 = por %p325, %p326
      %p328 = scmp.ne.s32.totalorder %s316, %s317
      %p329 = scmp.eq.s32.totalorder %s45, 1
      %p330 = por %p328, %p329
      %p332 = scmp.ne.s32.totalorder %s317, %s331
      %p333 = scmp.eq.s32.totalorder %s45, 0
      %p334 = por %p332, %p333
      %s336 = sadd.s32 %s335, 1
      %p339 = scmp.eq.s32.totalorder %s39, 1
      %p340 = scmp.ne.s32.totalorder %s335, %s337
      %p341 = scmp.eq.s32.totalorder %s39, 0
      %p342 = por %p340, %p341
      %p343 = scmp.ne.s32.totalorder %s335, %s337
      %p344 = scmp.eq.s32.totalorder %s44, 1
      %p345 = por %p343, %p344
      %p346 = scmp.ne.s32.totalorder %s337, %s338
      %p347 = scmp.eq.s32.totalorder %s44, 0
      %p348 = por %p346, %p347
      %p349 = scmp.ne.s32.totalorder %s337, %s338
      %p350 = scmp.eq.s32.totalorder %s45, 1
      %p351 = por %p349, %p350
      %p353 = scmp.ne.s32.totalorder %s338, %s352
      %p354 = scmp.eq.s32.totalorder %s45, 0
      %p355 = por %p353, %p354
      %s357 = sadd.s32 %s356, 1
      %p360 = scmp.eq.s32.totalorder %s39, 1
      %p361 = scmp.ne.s32.totalorder %s356, %s358
      %p362 = scmp.eq.s32.totalorder %s39, 0
      %p363 = por %p361, %p362
      %p364 = scmp.ne.s32.totalorder %s356, %s358
      %p365 = scmp.eq.s32.totalorder %s44, 1
      %p366 = por %p364, %p365
      %p367 = scmp.ne.s32.totalorder %s358, %s359
      %p368 = scmp.eq.s32.totalorder %s44, 0
      %p369 = por %p367, %p368
      %p370 = scmp.ne.s32.totalorder %s358, %s359
      %p371 = scmp.eq.s32.totalorder %s45, 1
      %p372 = por %p370, %p371
      %p374 = scmp.ne.s32.totalorder %s359, %s373
      %p375 = scmp.eq.s32.totalorder %s45, 0
      %p376 = por %p374, %p375
      %s378 = sadd.s32 %s377, 1
      %p381 = scmp.eq.s32.totalorder %s39, 1
      %p382 = scmp.ne.s32.totalorder %s377, %s379
      %p383 = scmp.eq.s32.totalorder %s39, 0
      %p384 = por %p382, %p383
      %p385 = scmp.ne.s32.totalorder %s377, %s379
      %p386 = scmp.eq.s32.totalorder %s44, 1
      %p387 = por %p385, %p386
      %p388 = scmp.ne.s32.totalorder %s379, %s380
      %p389 = scmp.eq.s32.totalorder %s44, 0
      %p390 = por %p388, %p389
      %p391 = scmp.ne.s32.totalorder %s379, %s380
      %p392 = scmp.eq.s32.totalorder %s45, 1
      %p393 = por %p391, %p392
      %p395 = scmp.ne.s32.totalorder %s380, %s394
      %p396 = scmp.eq.s32.totalorder %s45, 0
      %p397 = por %p395, %p396
      %s399 = sadd.s32 %s398, 1
      %p402 = scmp.eq.s32.totalorder %s39, 1
      %p403 = scmp.ne.s32.totalorder %s398, %s400
      %p404 = scmp.eq.s32.totalorder %s39, 0
      %p405 = por %p403, %p404
      %p406 = scmp.ne.s32.totalorder %s398, %s400
      %p407 = scmp.eq.s32.totalorder %s44, 1
      %p408 = por %p406, %p407
      %p409 = scmp.ne.s32.totalorder %s400, %s401
      %p410 = scmp.eq.s32.totalorder %s44, 0
      %p411 = por %p409, %p410
      %p412 = scmp.ne.s32.totalorder %s400, %s401
      %p413 = scmp.eq.s32.totalorder %s45, 1
      %p414 = por %p412, %p413
      %p416 = scmp.ne.s32.totalorder %s401, %s415
      %p417 = scmp.eq.s32.totalorder %s45, 0
      %p418 = por %p416, %p417
      %s420 = sadd.s32 %s419, 1
      %p423 = scmp.eq.s32.totalorder %s39, 1
      %p424 = scmp.ne.s32.totalorder %s419, %s421
      %p425 = scmp.eq.s32.totalorder %s39, 0
      %p426 = por %p424, %p425
      %p427 = scmp.ne.s32.totalorder %s419, %s421
      %p428 = scmp.eq.s32.totalorder %s44, 1
      %p429 = por %p427, %p428
      %p430 = scmp.ne.s32.totalorder %s421, %s422
      %p431 = scmp.eq.s32.totalorder %s44, 0
      %p432 = por %p430, %p431
      %p433 = scmp.ne.s32.totalorder %s421, %s422
      %p434 = scmp.eq.s32.totalorder %s45, 1
      %p435 = por %p433, %p434
      %p437 = scmp.ne.s32.totalorder %s422, %s436
      %p438 = scmp.eq.s32.totalorder %s45, 0
      %p439 = por %p437, %p438
      %s441 = sadd.s32 %s440, 1
      %p444 = scmp.eq.s32.totalorder %s39, 1
      %p445 = scmp.ne.s32.totalorder %s440, %s442
      %p446 = scmp.eq.s32.totalorder %s39, 0
      %p447 = por %p445, %p446
      %p448 = scmp.ne.s32.totalorder %s440, %s442
      %p449 = scmp.eq.s32.totalorder %s44, 1
      %p450 = por %p448, %p449
      %p451 = scmp.ne.s32.totalorder %s442, %s443
      %p452 = scmp.eq.s32.totalorder %s44, 0
      %p453 = por %p451, %p452
      %p454 = scmp.ne.s32.totalorder %s442, %s443
      %p455 = scmp.eq.s32.totalorder %s45, 1
      %p456 = por %p454, %p455
      %p458 = scmp.ne.s32.totalorder %s443, %s457
      %p459 = scmp.eq.s32.totalorder %s45, 0
      %p460 = por %p458, %p459
      %s462 = sadd.s32 %s461, 1
      %p465 = scmp.eq.s32.totalorder %s39, 1
      %p466 = scmp.ne.s32.totalorder %s461, %s463
      %p467 = scmp.eq.s32.totalorder %s39, 0
      %p468 = por %p466, %p467
      %p469 = scmp.ne.s32.totalorder %s461, %s463
      %p470 = scmp.eq.s32.totalorder %s44, 1
      %p471 = por %p469, %p470
      %p472 = scmp.ne.s32.totalorder %s463, %s464
      %p473 = scmp.eq.s32.totalorder %s44, 0
      %p474 = por %p472, %p473
      %p475 = scmp.ne.s32.totalorder %s463, %s464
      %p476 = scmp.eq.s32.totalorder %s45, 1
      %p477 = por %p475, %p476
      %p479 = scmp.ne.s32.totalorder %s464, %s478
      %p480 = scmp.eq.s32.totalorder %s45, 0
      %p481 = por %p479, %p480
      %s483 = sadd.s32 %s482, 1
      %p486 = scmp.eq.s32.totalorder %s39, 1
      %p487 = scmp.ne.s32.totalorder %s482, %s484
      %p488 = scmp.eq.s32.totalorder %s39, 0
      %p489 = por %p487, %p488
      %p490 = scmp.ne.s32.totalorder %s482, %s484
      %p491 = scmp.eq.s32.totalorder %s44, 1
      %p492 = por %p490, %p491
      %p493 = scmp.ne.s32.totalorder %s484, %s485
      %p494 = scmp.eq.s32.totalorder %s44, 0
      %p495 = por %p493, %p494
      %p496 = scmp.ne.s32.totalorder %s484, %s485
      %p497 = scmp.eq.s32.totalorder %s45, 1
      %p498 = por %p496, %p497
      %p500 = scmp.ne.s32.totalorder %s485, %s499
      %p501 = scmp.eq.s32.totalorder %s45, 0
      %p502 = por %p500, %p501
      %s504 = sadd.s32 %s503, 1
      %p507 = scmp.eq.s32.totalorder %s39, 1
      %p508 = scmp.ne.s32.totalorder %s503, %s505
      %p509 = scmp.eq.s32.totalorder %s39, 0
      %p510 = por %p508, %p509
      %p511 = scmp.ne.s32.totalorder %s503, %s505
      %p512 = scmp.eq.s32.totalorder %s44, 1
      %p513 = por %p511, %p512
      %p514 = scmp.ne.s32.totalorder %s505, %s506
      %p515 = scmp.eq.s32.totalorder %s44, 0
      %p516 = por %p514, %p515
      %p517 = scmp.ne.s32.totalorder %s505, %s506
      %p518 = scmp.eq.s32.totalorder %s45, 1
      %p519 = por %p517, %p518
      %p521 = scmp.ne.s32.totalorder %s506, %s520
      %p522 = scmp.eq.s32.totalorder %s45, 0
      %p523 = por %p521, %p522
      %s525 = sadd.s32 %s524, 1
      %p528 = scmp.eq.s32.totalorder %s39, 1
      %p529 = scmp.ne.s32.totalorder %s524, %s526
      %p530 = scmp.eq.s32.totalorder %s39, 0
      %p531 = por %p529, %p530
      %p532 = scmp.ne.s32.totalorder %s524, %s526
      %p533 = scmp.eq.s32.totalorder %s44, 1
      %p534 = por %p532, %p533
      %p535 = scmp.ne.s32.totalorder %s526, %s527
      %p536 = scmp.eq.s32.totalorder %s44, 0
      %p537 = por %p535, %p536
      %p538 = scmp.ne.s32.totalorder %s526, %s527
      %p539 = scmp.eq.s32.totalorder %s45, 1
      %p540 = por %p538, %p539
      %p542 = scmp.ne.s32.totalorder %s527, %s541
      %p543 = scmp.eq.s32.totalorder %s45, 0
      %p544 = por %p542, %p543
      %s545 = ssub.s32 %s39, %s46
      %p546 = scmp.eq.s32.totalorder %s545, 0
      %s548 = sadd.s32 %s547, 1
      %s549 = scalar_select %p546, %s547, %s548
      %p552 = pneg %p546
      %p553 = scmp.eq.s32.totalorder %s39, 1
      %p554 = por %p552, %p553
      %p555 = scmp.ne.s32.totalorder %s547, %s550
      %p556 = scmp.eq.s32.totalorder %s39, 0
      %p557 = por %p555, %p556
      %p558 = scmp.ne.s32.totalorder %s547, %s550
      %p559 = scmp.eq.s32.totalorder %s44, 1
      %p560 = por %p558, %p559
      %p561 = scmp.ne.s32.totalorder %s550, %s551
      %p562 = scmp.eq.s32.totalorder %s44, 0
      %p563 = por %p561, %p562
      %p564 = scmp.ne.s32.totalorder %s550, %s551
      %p565 = scmp.eq.s32.totalorder %s45, 1
      %p566 = por %p564, %p565
      %p568 = scmp.ne.s32.totalorder %s551, %s567
      %p569 = scmp.eq.s32.totalorder %s45, 0
      %p570 = por %p568, %p569
      %p571 = scmp.le.s32.totalorder 1, %s39
      %p572 = scmp.lt.s32.totalorder %s39, 3
      %p573 = pnand %p571, %p572
      %p574 = pneg %p573
      // Predicated region
      $region9: #{agcn_transformer_forward.3} parent=5 // pred_check
        _
      $region10: #{agcn_transformer_forward.3} parent=5 // pred_check_branch
        %576 = sbr.rel (%p573) target = $region12
      $region11: #{agcn_transformer_forward.3} parent=5 // pred_region
        %s577 = ssub.s32 %s39, 1
        // Predicated region
        $region13: #{agcn_transformer_forward.3} parent=11 // pred_check
          %p578 = pneg %p138
        $region14: #{agcn_transformer_forward.3} parent=11 // pred_check_branch
          %580 = sbr.rel (%p578) target = $region16
        $region15: #{agcn_transformer_forward.3} parent=11 // pred_region
          %582 = vsyncadd [#allocation5], 0
          %s583 = sshll.u32 %s3, 4
          %s584 = int_to_ptr.hbm [resolvable:$true] %s583
          %s585 = sshll.u32 [#allocation4], 4
          %s586 = int_to_ptr.vmem [resolvable:$true] %s585
          %591 = dma.hbm_to_vmem [thread:$0]  %s584, 4096, %s586, [#allocation5], 128, 128, 8
        $region16: #{agcn_transformer_forward.3} parent=11 // pred_fallthru
          _
        // Predicated region
        $region17: #{agcn_transformer_forward.3} parent=11 // pred_check
          %p592 = pneg %p159
        $region18: #{agcn_transformer_forward.3} parent=11 // pred_check_branch
          %594 = sbr.rel (%p592) target = $region20
        $region19: #{agcn_transformer_forward.3} parent=11 // pred_region
          %596 = vsyncadd [#allocation5], 0
          %s597 = sshll.u32 %s4, 4
          %s598 = int_to_ptr.hbm [resolvable:$true] %s597
          %s599 = sshll.u32 [#allocation6], 4
          %s600 = int_to_ptr.vmem [resolvable:$true] %s599
          %605 = dma.hbm_to_vmem [thread:$0]  %s598, 128, %s600, [#allocation5], 16, 16, 1
        $region20: #{agcn_transformer_forward.3} parent=11 // pred_fallthru
          _
        // Predicated region
        $region21: #{agcn_transformer_forward.3} parent=11 // pred_check
          %p606 = pneg %p180
        $region22: #{agcn_transformer_forward.3} parent=11 // pred_check_branch
          %608 = sbr.rel (%p606) target = $region24
        $region23: #{agcn_transformer_forward.3} parent=11 // pred_region
          %610 = vsyncadd [#allocation8], 0
          %s611 = sshll.u32 %s5, 4
          %s612 = int_to_ptr.hbm [resolvable:$true] %s611
          %s613 = sshll.u32 [#allocation7], 4
          %s614 = int_to_ptr.vmem [resolvable:$true] %s613
          %619 = dma.hbm_to_vmem [thread:$0]  %s612, 4096, %s614, [#allocation8], 128, 128, 8
        $region24: #{agcn_transformer_forward.3} parent=11 // pred_fallthru
          _
        // Predicated region
        $region25: #{agcn_transformer_forward.3} parent=11 // pred_check
          %p620 = pneg %p201
        $region26: #{agcn_transformer_forward.3} parent=11 // pred_check_branch
          %622 = sbr.rel (%p620) target = $region28
        $region27: #{agcn_transformer_forward.3} parent=11 // pred_region
          %624 = vsyncadd [#allocation8], 0
          %s625 = sshll.u32 %s6, 4
          %s626 = int_to_ptr.hbm [resolvable:$true] %s625
          %s627 = sshll.u32 [#allocation9], 4
          %s628 = int_to_ptr.vmem [resolvable:$true] %s627
          %633 = dma.hbm_to_vmem [thread:$0]  %s626, 128, %s628, [#allocation8], 16, 16, 1
        $region28: #{agcn_transformer_forward.3} parent=11 // pred_fallthru
          _
        // Predicated region
        $region29: #{agcn_transformer_forward.3} parent=11 // pred_check
          %p634 = pneg %p222
        $region30: #{agcn_transformer_forward.3} parent=11 // pred_check_branch
          %636 = sbr.rel (%p634) target = $region32
        $region31: #{agcn_transformer_forward.3} parent=11 // pred_region
          %638 = vsyncadd [#allocation11], 0
          %s639 = sshll.u32 %s7, 4
          %s640 = int_to_ptr.hbm [resolvable:$true] %s639
          %s641 = sshll.u32 [#allocation10], 4
          %s642 = int_to_ptr.vmem [resolvable:$true] %s641
          %647 = dma.hbm_to_vmem [thread:$0]  %s640, 4096, %s642, [#allocation11], 128, 128, 8
        $region32: #{agcn_transformer_forward.3} parent=11 // pred_fallthru
          _
        // Predicated region
        $region33: #{agcn_transformer_forward.3} parent=11 // pred_check
          %p648 = pneg %p243
        $region34: #{agcn_transformer_forward.3} parent=11 // pred_check_branch
          %650 = sbr.rel (%p648) target = $region36
        $region35: #{agcn_transformer_forward.3} parent=11 // pred_region
          %652 = vsyncadd [#allocation11], 0
          %s653 = sshll.u32 %s8, 4
          %s654 = int_to_ptr.hbm [resolvable:$true] %s653
          %s655 = sshll.u32 [#allocation12], 4
          %s656 = int_to_ptr.vmem [resolvable:$true] %s655
          %661 = dma.hbm_to_vmem [thread:$0]  %s654, 128, %s656, [#allocation11], 16, 16, 1
        $region36: #{agcn_transformer_forward.3} parent=11 // pred_fallthru
          _
        // Predicated region
        $region37: #{agcn_transformer_forward.3} parent=11 // pred_check
          %p662 = pneg %p264
        $region38: #{agcn_transformer_forward.3} parent=11 // pred_check_branch
          %664 = sbr.rel (%p662) target = $region40
        $region39: #{agcn_transformer_forward.3} parent=11 // pred_region
          %666 = vsyncadd [#allocation14], 0
          %s667 = sshll.u32 %s9, 4
          %s668 = int_to_ptr.hbm [resolvable:$true] %s667
          %s669 = sshll.u32 [#allocation13], 4
          %s670 = int_to_ptr.vmem [resolvable:$true] %s669
          %675 = dma.hbm_to_vmem [thread:$0]  %s668, 1024, %s670, [#allocation14], 128, 128, 8
        $region40: #{agcn_transformer_forward.3} parent=11 // pred_fallthru
          _
        // Predicated region
        $region41: #{agcn_transformer_forward.3} parent=11 // pred_check
          %p676 = pneg %p285
        $region42: #{agcn_transformer_forward.3} parent=11 // pred_check_branch
          %678 = sbr.rel (%p676) target = $region44
        $region43: #{agcn_transformer_forward.3} parent=11 // pred_region
          %680 = vsyncadd [#allocation14], 0
          %s681 = sshll.u32 %s10, 4
          %s682 = int_to_ptr.hbm [resolvable:$true] %s681
          %s683 = sshll.u32 [#allocation15], 4
          %s684 = int_to_ptr.vmem [resolvable:$true] %s683
          %689 = dma.hbm_to_vmem [thread:$0]  %s682, 32, %s684, [#allocation14], 16, 16, 1
        $region44: #{agcn_transformer_forward.3} parent=11 // pred_fallthru
          _
        // Predicated region
        $region45: #{agcn_transformer_forward.3} parent=11 // pred_check
          %p690 = pneg %p306
        $region46: #{agcn_transformer_forward.3} parent=11 // pred_check_branch
          %692 = sbr.rel (%p690) target = $region48
        $region47: #{agcn_transformer_forward.3} parent=11 // pred_region
          _
        $region48: #{agcn_transformer_forward.3} parent=11 // pred_fallthru
          _
        // Predicated region
        $region49: #{agcn_transformer_forward.3} parent=11 // pred_check
          %p693 = pneg %p327
        $region50: #{agcn_transformer_forward.3} parent=11 // pred_check_branch
          %695 = sbr.rel (%p693) target = $region52
        $region51: #{agcn_transformer_forward.3} parent=11 // pred_region
          _
        $region52: #{agcn_transformer_forward.3} parent=11 // pred_fallthru
          _
        // Predicated region
        $region53: #{agcn_transformer_forward.3} parent=11 // pred_check
          %p696 = pneg %p348
        $region54: #{agcn_transformer_forward.3} parent=11 // pred_check_branch
          %698 = sbr.rel (%p696) target = $region56
        $region55: #{agcn_transformer_forward.3} parent=11 // pred_region
          %700 = vsyncadd [#allocation17], 0
          %s701 = sshll.u32 %s13, 4
          %s702 = int_to_ptr.hbm [resolvable:$true] %s701
          %s703 = sshll.u32 [#allocation16], 4
          %s704 = int_to_ptr.vmem [resolvable:$true] %s703
          %709 = dma.hbm_to_vmem [thread:$0]  %s702, 1024, %s704, [#allocation17], 128, 128, 8
        $region56: #{agcn_transformer_forward.3} parent=11 // pred_fallthru
          _
        // Predicated region
        $region57: #{agcn_transformer_forward.3} parent=11 // pred_check
          %p710 = pneg %p369
        $region58: #{agcn_transformer_forward.3} parent=11 // pred_check_branch
          %712 = sbr.rel (%p710) target = $region60
        $region59: #{agcn_transformer_forward.3} parent=11 // pred_region
          %714 = vsyncadd [#allocation17], 0
          %s715 = sshll.u32 %s14, 4
          %s716 = int_to_ptr.hbm [resolvable:$true] %s715
          %s717 = sshll.u32 [#allocation18], 4
          %s718 = int_to_ptr.vmem [resolvable:$true] %s717
          %723 = dma.hbm_to_vmem [thread:$0]  %s716, 32, %s718, [#allocation17], 16, 16, 1
        $region60: #{agcn_transformer_forward.3} parent=11 // pred_fallthru
          _
        // Predicated region
        $region61: #{agcn_transformer_forward.3} parent=11 // pred_check
          %p724 = pneg %p390
        $region62: #{agcn_transformer_forward.3} parent=11 // pred_check_branch
          %726 = sbr.rel (%p724) target = $region64
        $region63: #{agcn_transformer_forward.3} parent=11 // pred_region
          %728 = vsyncadd [#allocation20], 0
          %s729 = sshll.u32 %s15, 4
          %s730 = int_to_ptr.hbm [resolvable:$true] %s729
          %s731 = sshll.u32 [#allocation19], 4
          %s732 = int_to_ptr.vmem [resolvable:$true] %s731
          %737 = dma.hbm_to_vmem [thread:$0]  %s730, 2048, %s732, [#allocation20], 128, 128, 8
        $region64: #{agcn_transformer_forward.3} parent=11 // pred_fallthru
          _
        // Predicated region
        $region65: #{agcn_transformer_forward.3} parent=11 // pred_check
          %p738 = pneg %p411
        $region66: #{agcn_transformer_forward.3} parent=11 // pred_check_branch
          %740 = sbr.rel (%p738) target = $region68
        $region67: #{agcn_transformer_forward.3} parent=11 // pred_region
          %742 = vsyncadd [#allocation20], 0
          %s743 = sshll.u32 %s16, 4
          %s744 = int_to_ptr.hbm [resolvable:$true] %s743
          %s745 = sshll.u32 [#allocation21], 4
          %s746 = int_to_ptr.vmem [resolvable:$true] %s745
          %751 = dma.hbm_to_vmem [thread:$0]  %s744, 32, %s746, [#allocation20], 16, 16, 1
        $region68: #{agcn_transformer_forward.3} parent=11 // pred_fallthru
          _
        // Predicated region
        $region69: #{agcn_transformer_forward.3} parent=11 // pred_check
          %p752 = pneg %p432
        $region70: #{agcn_transformer_forward.3} parent=11 // pred_check_branch
          %754 = sbr.rel (%p752) target = $region72
        $region71: #{agcn_transformer_forward.3} parent=11 // pred_region
          _
        $region72: #{agcn_transformer_forward.3} parent=11 // pred_fallthru
          _
        // Predicated region
        $region73: #{agcn_transformer_forward.3} parent=11 // pred_check
          %p755 = pneg %p453
        $region74: #{agcn_transformer_forward.3} parent=11 // pred_check_branch
          %757 = sbr.rel (%p755) target = $region76
        $region75: #{agcn_transformer_forward.3} parent=11 // pred_region
          _
        $region76: #{agcn_transformer_forward.3} parent=11 // pred_fallthru
          _
        // Predicated region
        $region77: #{agcn_transformer_forward.3} parent=11 // pred_check
          %p758 = pneg %p474
        $region78: #{agcn_transformer_forward.3} parent=11 // pred_check_branch
          %760 = sbr.rel (%p758) target = $region80
        $region79: #{agcn_transformer_forward.3} parent=11 // pred_region
          _
        $region80: #{agcn_transformer_forward.3} parent=11 // pred_fallthru
          _
        // Predicated region
        $region81: #{agcn_transformer_forward.3} parent=11 // pred_check
          %p761 = pneg %p495
        $region82: #{agcn_transformer_forward.3} parent=11 // pred_check_branch
          %763 = sbr.rel (%p761) target = $region84
        $region83: #{agcn_transformer_forward.3} parent=11 // pred_region
          _
        $region84: #{agcn_transformer_forward.3} parent=11 // pred_fallthru
          _
        // Predicated region
        $region85: #{agcn_transformer_forward.3} parent=11 // pred_check
          %p764 = pneg %p516
        $region86: #{agcn_transformer_forward.3} parent=11 // pred_check_branch
          %766 = sbr.rel (%p764) target = $region88
        $region87: #{agcn_transformer_forward.3} parent=11 // pred_region
          %768 = vsyncadd [#allocation23], 0
          %s769 = sshll.u32 %s21, 4
          %s770 = int_to_ptr.hbm [resolvable:$true] %s769
          %s771 = sshll.u32 [#allocation22], 4
          %s772 = int_to_ptr.vmem [resolvable:$true] %s771
          %777 = dma.hbm_to_vmem [thread:$0]  %s770, 512, %s772, [#allocation23], 128, 128, 8
        $region88: #{agcn_transformer_forward.3} parent=11 // pred_fallthru
          _
        // Predicated region
        $region89: #{agcn_transformer_forward.3} parent=11 // pred_check
          %p778 = pneg %p537
        $region90: #{agcn_transformer_forward.3} parent=11 // pred_check_branch
          %780 = sbr.rel (%p778) target = $region92
        $region91: #{agcn_transformer_forward.3} parent=11 // pred_region
          %782 = vsyncadd [#allocation23], 0
          %s784 = sshll.u32 %s22, 4
          %s785 = int_to_ptr.hbm [resolvable:$true] %s784
          %s786 = sshll.u32 [#allocation24], 4
          %s787 = int_to_ptr.vmem [resolvable:$true] %s786
          %789 = dma.hbm_to_vmem [thread:$0]  %s785, 16, %s787, [#allocation23]
        $region92: #{agcn_transformer_forward.3} parent=11 // pred_fallthru
          _
      $region12: #{agcn_transformer_forward.3} parent=5 // pred_fallthru
        _
      %p790 = scmp.lt.s32.totalorder %s39, 2
      // Predicated region
      $region93: #{agcn_transformer_forward.3} parent=5 // pred_check
        %p791 = pneg %p790
      $region94: #{agcn_transformer_forward.3} parent=5 // pred_check_branch
        %793 = sbr.rel (%p791) target = $region96
      $region95: #{agcn_transformer_forward.3} parent=5 // pred_region
        // Predicated region
        $region97: #{agcn_transformer_forward.3} parent=95 // pred_check
          %p794 = pneg %p59
        $region98: #{agcn_transformer_forward.3} parent=95 // pred_check_branch
          %796 = sbr.rel (%p794) target = $region100
        $region99: #{agcn_transformer_forward.3} parent=95 // pred_region
          %p797 = scmp.lt.s32.totalorder %s39, 1
          %s798 = scalar_select %p797, %s39, 1
          %s799 = smul.addr %s798, 2
          %s800 = smul.addr %s799, 8
          %s801 = scalar_lea.vmem %s0, %s800
        $region100: #{agcn_transformer_forward.3} parent=95 // pred_fallthru
          _
        // Predicated region
        $region101: #{agcn_transformer_forward.3} parent=95 // pred_check
          %p802 = pneg %p85
        $region102: #{agcn_transformer_forward.3} parent=95 // pred_check_branch
          %804 = sbr.rel (%p802) target = $region104
        $region103: #{agcn_transformer_forward.3} parent=95 // pred_region
          %s805 = sand.u32 %s75, 1
          %s806 = scalar_lea.sflag [#allocation3], %s805
          %s807 = sand.u32 %s75, 1
          %s808 = scalar_lea.vmem [#allocation2], %s807
          %810 = vsyncadd %s806, 0
          %s811 = scalar_lea.hbm %s1, %s39
          %s813 = sshll.u32 %s811, 4
          %s814 = int_to_ptr.hbm [resolvable:$true] %s813
          %s815 = sshll.u32 %s808, 4
          %s816 = int_to_ptr.vmem [resolvable:$true] %s815
          %818 = dma.hbm_to_vmem [thread:$0]  %s814, 16, %s816, %s806
        $region104: #{agcn_transformer_forward.3} parent=95 // pred_fallthru
          _
        // Predicated region
        $region105: #{agcn_transformer_forward.3} parent=95 // pred_check
          %p819 = pneg %p111
        $region106: #{agcn_transformer_forward.3} parent=95 // pred_check_branch
          %821 = sbr.rel (%p819) target = $region108
        $region107: #{agcn_transformer_forward.3} parent=95 // pred_region
          %p822 = scmp.lt.s32.totalorder %s39, 1
          %s823 = scalar_select %p822, %s39, 1
          %s824 = scalar_lea.vmem %s2, %s823
        $region108: #{agcn_transformer_forward.3} parent=95 // pred_fallthru
          _
      $region96: #{agcn_transformer_forward.3} parent=5 // pred_fallthru
        _
      %p825 = scmp.le.s32.totalorder 1, %s39
      %p826 = scmp.lt.s32.totalorder %s39, 3
      %p827 = pnand %p825, %p826
      %p828 = pneg %p827
      // Predicated region
      $region109: #{agcn_transformer_forward.3} parent=5 // pred_check
        _
      $region110: #{agcn_transformer_forward.3} parent=5 // pred_check_branch
        %830 = sbr.rel (%p827) target = $region112
      $region111: #{agcn_transformer_forward.3} parent=5 // pred_region
        %s831 = ssub.s32 %s39, 1
        %s832 = sand.u32 %s78, 1
        %s833 = scalar_lea.sflag [#allocation3], %s832
        %s834 = sand.u32 %s78, 1
        %s835 = scalar_lea.vmem [#allocation2], %s834
        // Predicated region
        $region113: #{agcn_transformer_forward.3} parent=111 // pred_check
          %p836 = pneg %p91
        $region114: #{agcn_transformer_forward.3} parent=111 // pred_check_branch
          %838 = sbr.rel (%p836) target = $region116
        $region115: #{agcn_transformer_forward.3} parent=111 // pred_region
          %840 = dma.done %s833, 16
        $region116: #{agcn_transformer_forward.3} parent=111 // pred_fallthru
          _
        // Predicated region
        $region117: #{agcn_transformer_forward.3} parent=111 // pred_check
          %p841 = pneg %p138
        $region118: #{agcn_transformer_forward.3} parent=111 // pred_check_branch
          %843 = sbr.rel (%p841) target = $region120
        $region119: #{agcn_transformer_forward.3} parent=111 // pred_region
          %845 = dma.done [#allocation5], 4096
        $region120: #{agcn_transformer_forward.3} parent=111 // pred_fallthru
          _
        // Predicated region
        $region121: #{agcn_transformer_forward.3} parent=111 // pred_check
          %p846 = pneg %p159
        $region122: #{agcn_transformer_forward.3} parent=111 // pred_check_branch
          %848 = sbr.rel (%p846) target = $region124
        $region123: #{agcn_transformer_forward.3} parent=111 // pred_region
          %850 = dma.done [#allocation5], 128
        $region124: #{agcn_transformer_forward.3} parent=111 // pred_fallthru
          _
        // Predicated region
        $region125: #{agcn_transformer_forward.3} parent=111 // pred_check
          %p851 = pneg %p180
        $region126: #{agcn_transformer_forward.3} parent=111 // pred_check_branch
          %853 = sbr.rel (%p851) target = $region128
        $region127: #{agcn_transformer_forward.3} parent=111 // pred_region
          %855 = dma.done [#allocation8], 4096
        $region128: #{agcn_transformer_forward.3} parent=111 // pred_fallthru
          _
        // Predicated region
        $region129: #{agcn_transformer_forward.3} parent=111 // pred_check
          %p856 = pneg %p201
        $region130: #{agcn_transformer_forward.3} parent=111 // pred_check_branch
          %858 = sbr.rel (%p856) target = $region132
        $region131: #{agcn_transformer_forward.3} parent=111 // pred_region
          %860 = dma.done [#allocation8], 128
        $region132: #{agcn_transformer_forward.3} parent=111 // pred_fallthru
          _
        // Predicated region
        $region133: #{agcn_transformer_forward.3} parent=111 // pred_check
          %p861 = pneg %p222
        $region134: #{agcn_transformer_forward.3} parent=111 // pred_check_branch
          %863 = sbr.rel (%p861) target = $region136
        $region135: #{agcn_transformer_forward.3} parent=111 // pred_region
          %865 = dma.done [#allocation11], 4096
        $region136: #{agcn_transformer_forward.3} parent=111 // pred_fallthru
          _
        // Predicated region
        $region137: #{agcn_transformer_forward.3} parent=111 // pred_check
          %p866 = pneg %p243
        $region138: #{agcn_transformer_forward.3} parent=111 // pred_check_branch
          %868 = sbr.rel (%p866) target = $region140
        $region139: #{agcn_transformer_forward.3} parent=111 // pred_region
          %870 = dma.done [#allocation11], 128
        $region140: #{agcn_transformer_forward.3} parent=111 // pred_fallthru
          _
        // Predicated region
        $region141: #{agcn_transformer_forward.3} parent=111 // pred_check
          %p871 = pneg %p264
        $region142: #{agcn_transformer_forward.3} parent=111 // pred_check_branch
          %873 = sbr.rel (%p871) target = $region144
        $region143: #{agcn_transformer_forward.3} parent=111 // pred_region
          %875 = dma.done [#allocation14], 1024
        $region144: #{agcn_transformer_forward.3} parent=111 // pred_fallthru
          _
        // Predicated region
        $region145: #{agcn_transformer_forward.3} parent=111 // pred_check
          %p876 = pneg %p285
        $region146: #{agcn_transformer_forward.3} parent=111 // pred_check_branch
          %878 = sbr.rel (%p876) target = $region148
        $region147: #{agcn_transformer_forward.3} parent=111 // pred_region
          %880 = dma.done [#allocation14], 32
        $region148: #{agcn_transformer_forward.3} parent=111 // pred_fallthru
          _
        // Predicated region
        $region149: #{agcn_transformer_forward.3} parent=111 // pred_check
          %p881 = pneg %p348
        $region150: #{agcn_transformer_forward.3} parent=111 // pred_check_branch
          %883 = sbr.rel (%p881) target = $region152
        $region151: #{agcn_transformer_forward.3} parent=111 // pred_region
          %885 = dma.done [#allocation17], 1024
        $region152: #{agcn_transformer_forward.3} parent=111 // pred_fallthru
          _
        // Predicated region
        $region153: #{agcn_transformer_forward.3} parent=111 // pred_check
          %p886 = pneg %p369
        $region154: #{agcn_transformer_forward.3} parent=111 // pred_check_branch
          %888 = sbr.rel (%p886) target = $region156
        $region155: #{agcn_transformer_forward.3} parent=111 // pred_region
          %890 = dma.done [#allocation17], 32
        $region156: #{agcn_transformer_forward.3} parent=111 // pred_fallthru
          _
        // Predicated region
        $region157: #{agcn_transformer_forward.3} parent=111 // pred_check
          %p891 = pneg %p390
        $region158: #{agcn_transformer_forward.3} parent=111 // pred_check_branch
          %893 = sbr.rel (%p891) target = $region160
        $region159: #{agcn_transformer_forward.3} parent=111 // pred_region
          %895 = dma.done [#allocation20], 2048
        $region160: #{agcn_transformer_forward.3} parent=111 // pred_fallthru
          _
        // Predicated region
        $region161: #{agcn_transformer_forward.3} parent=111 // pred_check
          %p896 = pneg %p411
        $region162: #{agcn_transformer_forward.3} parent=111 // pred_check_branch
          %898 = sbr.rel (%p896) target = $region164
        $region163: #{agcn_transformer_forward.3} parent=111 // pred_region
          %900 = dma.done [#allocation20], 32
        $region164: #{agcn_transformer_forward.3} parent=111 // pred_fallthru
          _
        // Predicated region
        $region165: #{agcn_transformer_forward.3} parent=111 // pred_check
          %p901 = pneg %p516
        $region166: #{agcn_transformer_forward.3} parent=111 // pred_check_branch
          %903 = sbr.rel (%p901) target = $region168
        $region167: #{agcn_transformer_forward.3} parent=111 // pred_region
          %905 = dma.done [#allocation23], 512
        $region168: #{agcn_transformer_forward.3} parent=111 // pred_fallthru
          _
        // Predicated region
        $region169: #{agcn_transformer_forward.3} parent=111 // pred_check
          %p906 = pneg %p537
        $region170: #{agcn_transformer_forward.3} parent=111 // pred_check_branch
          %908 = sbr.rel (%p906) target = $region172
        $region171: #{agcn_transformer_forward.3} parent=111 // pred_region
          %910 = dma.done [#allocation23], 16
        $region172: #{agcn_transformer_forward.3} parent=111 // pred_fallthru
          _
        %p911 = scmp.lt.s32.totalorder %s44, 1
        %s912 = scalar_select %p911, %s44, 1
        %s913 = smul.addr %s912, 2
        %s914 = smul.addr %s913, 8
        %s915 = scalar_lea.vmem %s0, %s914
        %p916 = pneg %p65
        %p917 = pneg %p62
        %s918 = sand.u32 %s78, 1
        %s919 = scalar_lea.sflag [#allocation3], %s918
        %s920 = sand.u32 %s78, 1
        %s921 = scalar_lea.vmem [#allocation2], %s920
        %p922 = pneg %p91
        %p923 = pneg %p88
        %p924 = scmp.lt.s32.totalorder %s44, 1
        %s925 = scalar_select %p924, %s44, 1
        %s926 = scalar_lea.vmem %s2, %s925
        %p927 = pneg %p117
        %p928 = pneg %p114
        %p929 = pneg %p138
        %p930 = pneg %p135
        %p931 = pneg %p159
        %p932 = pneg %p156
        %p933 = pneg %p180
        %p934 = pneg %p177
        %p935 = pneg %p201
        %p936 = pneg %p198
        %p937 = pneg %p222
        %p938 = pneg %p219
        %p939 = pneg %p243
        %p940 = pneg %p240
        %p941 = pneg %p264
        %p942 = pneg %p261
        %p943 = pneg %p285
        %p944 = pneg %p282
        %p945 = pneg %p306
        %p946 = pneg %p303
        %p947 = pneg %p327
        %p948 = pneg %p324
        %p949 = pneg %p348
        %p950 = pneg %p345
        %p951 = pneg %p369
        %p952 = pneg %p366
        %p953 = pneg %p390
        %p954 = pneg %p387
        %p955 = pneg %p411
        %p956 = pneg %p408
        %p957 = pneg %p432
        %p958 = pneg %p429
        %p959 = pneg %p453
        %p960 = pneg %p450
        %p961 = pneg %p474
        %p962 = pneg %p471
        %p963 = pneg %p495
        %p964 = pneg %p492
        %p965 = pneg %p516
        %p966 = pneg %p513
        %p967 = pneg %p537
        %p968 = pneg %p534
        %p969 = pneg %p563
        %p970 = pneg %p560
        %p971 = scmp.lt.s32.totalorder %s44, 1
        %s972 = scalar_select %p971, %s44, 1
        %s973 = smul.addr %s972, 2
        %s974 = smul.addr %s973, 8
        %s975 = scalar_lea.vmem %s23, %s974
        %p976 = scmp.lt.s32.totalorder %s44, 1
        %s977 = scalar_select %p976, %s44, 1
        %s978 = smul.addr %s977, 2
        %s979 = smul.addr %s978, 8
        %s980 = scalar_lea.vmem %s0, %s979
        %p981 = scmp.lt.s32.totalorder %s44, 1
        %s982 = scalar_select %p981, %s44, 1
        %s983 = scalar_lea.vmem %s2, %s982
        %p984 = scmp.lt.s32.totalorder %s44, 1
        %s985 = scalar_select %p984, %s44, 1
        %s986 = smul.addr %s985, 2
        %s987 = smul.addr %s986, 8
        %s988 = scalar_lea.vmem %s23, %s987
        %v989 = vld [vmem:[%s980] sm:$0xff]
        %v990 = vld [vmem:[%s980 + $0x8] sm:$0xff]
        %v991 = vmul.f32 %v989, 5.656854
        %v992 = vmul.f32 %v990, 5.656854
        %v993 = vld [vmem:[%s835] sm:$0x1]
        %v995 = vperm.slane %v993, 0
        %v997 = vadd.f32 %v991, %v995
        %v998 = vadd.f32 %v992, %v995
        %v999 = vld [vmem:[%s983] sm:$0x1]
        %v1000 = vld [vmem:[#allocation4] sm:$0xff]
        %v1001 = vld [vmem:[#allocation4 + $0x8] sm:$0xff]
        %v1002 = vld [vmem:[#allocation4 + $0x10] sm:$0xff]
        %v1003 = vld [vmem:[#allocation4 + $0x18] sm:$0xff]
        %v1004 = vld [vmem:[#allocation6] sm:$0x1]
        %v1006 = vperm.slane %v1004, 0
        %vm1008 = vcmask 261120
        %v1010 = vsel %vm1008, %v997, 0
        %v1013 = vsel %vm1008, %v998, 0
        %1015 = vmatpush.msra.mxu0 0.0
        %1016 = vmatpush.msra.mxu0 0.0
        %1017 = vmatpush.msra.mxu0 0.0
        %1018 = vmatpush.msra.mxu0 0.0
        %1019 = vmatpush.msra.mxu0 0.0
        %1020 = vmatpush.msra.mxu0 0.0
        %1021 = vmatpush.msra.mxu0 0.0
        %1022 = vmatpush.msra.mxu0 0.0
        %1023 = vmatpush.msra.mxu0 0.0
        %1024 = vmatpush.msra.mxu0 0.0
        %1025 = vmatpush.msra.mxu0 0.0
        %1026 = vmatpush.msra.mxu0 0.0
        %1027 = vmatpush.msra.mxu0 %v1003
        %1028 = vmatpush.msra.mxu0 %v1002
        %1029 = vmatpush.msra.mxu0 %v1001
        %1030 = vmatpush.msra.mxu0 %v1000
        %1031 = vmatmul.f32.gmra.mxu0 %v1010
        %v1032 = vpop.f32.mrf.mxu0
        %v1033 = vadd.f32 %v1006, %v1032
        %1034 = vmatmul.f32.gmra.mxu0 %v1013
        %v1035 = vpop.f32.mrf.mxu0
        %v1036 = vadd.f32 %v1006, %v1035
        %1037 = vdwg.mxu0
        %v1038 = vld [vmem:[#allocation7] sm:$0xff]
        %v1039 = vld [vmem:[#allocation7 + $0x8] sm:$0xff]
        %v1040 = vld [vmem:[#allocation7 + $0x10] sm:$0xff]
        %v1041 = vld [vmem:[#allocation7 + $0x18] sm:$0xff]
        %v1042 = vld [vmem:[#allocation9] sm:$0x1]
        %v1044 = vperm.slane %v1042, 0
        %1046 = vmatpush.msra.mxu0 0.0
        %1047 = vmatpush.msra.mxu0 0.0
        %1048 = vmatpush.msra.mxu0 0.0
        %1049 = vmatpush.msra.mxu0 0.0
        %1050 = vmatpush.msra.mxu0 0.0
        %1051 = vmatpush.msra.mxu0 0.0
        %1052 = vmatpush.msra.mxu0 0.0
        %1053 = vmatpush.msra.mxu0 0.0
        %1054 = vmatpush.msra.mxu0 0.0
        %1055 = vmatpush.msra.mxu0 0.0
        %1056 = vmatpush.msra.mxu0 0.0
        %1057 = vmatpush.msra.mxu0 0.0
        %1058 = vmatpush.msra.mxu0 %v1041
        %1059 = vmatpush.msra.mxu0 %v1040
        %1060 = vmatpush.msra.mxu0 %v1039
        %1061 = vmatpush.msra.mxu0 %v1038
        %1062 = vmatmul.f32.gmra.mxu0 %v1010
        %v1063 = vpop.f32.mrf.mxu0
        %v1064 = vadd.f32 %v1044, %v1063
        %1065 = vmatmul.f32.gmra.mxu0 %v1013
        %v1066 = vpop.f32.mrf.mxu0
        %v1067 = vadd.f32 %v1044, %v1066
        %1068 = vdwg.mxu0
        %v1069 = vld [vmem:[#allocation10] sm:$0xff]
        %v1070 = vld [vmem:[#allocation10 + $0x8] sm:$0xff]
        %v1071 = vld [vmem:[#allocation10 + $0x10] sm:$0xff]
        %v1072 = vld [vmem:[#allocation10 + $0x18] sm:$0xff]
        %v1073 = vld [vmem:[#allocation12] sm:$0x1]
        %v1075 = vperm.slane %v1073, 0
        %1077 = vmatpush.msra.mxu0 0.0
        %1078 = vmatpush.msra.mxu0 0.0
        %1079 = vmatpush.msra.mxu0 0.0
        %1080 = vmatpush.msra.mxu0 0.0
        %1081 = vmatpush.msra.mxu0 0.0
        %1082 = vmatpush.msra.mxu0 0.0
        %1083 = vmatpush.msra.mxu0 0.0
        %1084 = vmatpush.msra.mxu0 0.0
        %1085 = vmatpush.msra.mxu0 0.0
        %1086 = vmatpush.msra.mxu0 0.0
        %1087 = vmatpush.msra.mxu0 0.0
        %1088 = vmatpush.msra.mxu0 0.0
        %1089 = vmatpush.msra.mxu0 %v1072
        %1090 = vmatpush.msra.mxu0 %v1071
        %1091 = vmatpush.msra.mxu0 %v1070
        %1092 = vmatpush.msra.mxu0 %v1069
        %1093 = vmatmul.f32.gmra.mxu0 %v1010
        %v1094 = vpop.f32.mrf.mxu0
        %v1095 = vadd.f32 %v1075, %v1094
        %1096 = vmatmul.f32.gmra.mxu0 %v1013
        %v1097 = vpop.f32.mrf.mxu0
        %v1098 = vadd.f32 %v1075, %v1097
        %1099 = vdwg.mxu0
        %vm1100 = vcmask 64512
        %v1102 = vsel %vm1100, %v1033, 0
        %v1105 = vsel %vm1100, %v1036, 0
        %v1108 = vsel %vm1100, %v1064, 0
        %v1111 = vsel %vm1100, %v1067, 0
        %1113 = vmatpush.xpose.msra.mxu0 0.0
        %1114 = vmatpush.xpose.msra.mxu0 0.0
        %1115 = vmatpush.xpose.msra.mxu0 0.0
        %1116 = vmatpush.xpose.msra.mxu0 0.0
        %1117 = vmatpush.xpose.msra.mxu0 0.0
        %1118 = vmatpush.xpose.msra.mxu0 0.0
        %1119 = vmatpush.xpose.msra.mxu0 0.0
        %1120 = vmatpush.xpose.msra.mxu0 0.0
        %1121 = vmatpush.xpose.msra.mxu0 0.0
        %1122 = vmatpush.xpose.msra.mxu0 0.0
        %1123 = vmatpush.xpose.msra.mxu0 0.0
        %1124 = vmatpush.xpose.msra.mxu0 0.0
        %1125 = vmatpush.xpose.msra.mxu0 0.0
        %1126 = vmatpush.xpose.msra.mxu0 0.0
        %1127 = vmatpush.xpose.msra.mxu0 %v1111
        %1128 = vmatpush.xpose.msra.mxu0 %v1108
        %1129 = vmatmul.f32.gmra.mxu0 %v1102
        %v1130 = vpop.f32.mrf.mxu0
        %v1131 = vadd.f32 0.0, %v1130
        %1132 = vmatmul.f32.gmra.mxu0 %v1105
        %v1133 = vpop.f32.mrf.mxu0
        %v1134 = vadd.f32 0.0, %v1133
        %1135 = vdwg.mxu0
        %v1136 = vmul.f32 %v1131, 0.35355338
        %v1137 = vmul.f32 %v1134, 0.35355338
        %v1139 = vperm.slane %v999, 0
        %v1141 = vadd.f32 %v1136, %v1139
        %v1142 = vadd.f32 %v1137, %v1139
        %vm1143 = vcmask 130048
        %v1144 = vsel %vm1143, %v1141, -inf
        %1145 = vmax.xlane.f32.xlu0 %v1144
        %v1146 = vpop.xlane.xlu0 %1145
        %v1147 = vsel %vm1143, %v1142, -inf
        %1148 = vmax.xlane.f32.xlu0 %v1147
        %v1149 = vpop.xlane.xlu0 %1148
        %v1150 = vsub.f32 %v1141, %v1146
        %v1151 = vsub.f32 %v1142, %v1149
        %v1152 = vmul.f32 %v1150, 1.442695
        %v1153 = vpow.pop %v1152
        %v1154 = vmul.f32 %v1151, 1.442695
        %v1155 = vpow.pop %v1154
        %v1156 = vsel %vm1143, %v1153, 0.0
        %1157 = vadd.xlane.f32.xlu0 %v1156
        %v1158 = vpop.xlane.xlu0 %1157
        %v1159 = vsel %vm1143, %v1155, 0.0
        %1160 = vadd.xlane.f32.xlu0 %v1159
        %v1161 = vpop.xlane.xlu0 %1160
        %v1162 = vrcp.pop %v1158
        %v1163 = vrcp.pop %v1161
        %v1164 = vmul.f32 %v1153, %v1162
        %v1165 = vmul.f32 %v1155, %v1163
        %v1167 = vsel %vm1143, %v1164, 0
        %v1170 = vsel %vm1143, %v1165, 0
        %1172 = vmatpush.msra.mxu0 0.0
        %1173 = vmatpush.msra.mxu0 0.0
        %1174 = vmatpush.msra.mxu0 0.0
        %1175 = vmatpush.msra.mxu0 0.0
        %1176 = vmatpush.msra.mxu0 0.0
        %1177 = vmatpush.msra.mxu0 0.0
        %1178 = vmatpush.msra.mxu0 0.0
        %1179 = vmatpush.msra.mxu0 0.0
        %1180 = vmatpush.msra.mxu0 0.0
        %1181 = vmatpush.msra.mxu0 0.0
        %1182 = vmatpush.msra.mxu0 0.0
        %1183 = vmatpush.msra.mxu0 0.0
        %1184 = vmatpush.msra.mxu0 0.0
        %1185 = vmatpush.msra.mxu0 0.0
        %1186 = vmatpush.msra.mxu0 %v1098
        %1187 = vmatpush.msra.mxu0 %v1095
        %1188 = vmatmul.f32.gmra.mxu0 %v1167
        %v1189 = vpop.f32.mrf.mxu0
        %v1190 = vadd.f32 0.0, %v1189
        %1191 = vmatmul.f32.gmra.mxu0 %v1170
        %v1192 = vpop.f32.mrf.mxu0
        %v1193 = vadd.f32 0.0, %v1192
        %1194 = vdwg.mxu0
        %v1195 = vld [vmem:[#allocation13] sm:$0xff]
        %s1196 = scalar_lea.vmem [#allocation4], 32
        %v1197 = vld [vmem:[%s1196] sm:$0xff]
        %v1198 = vld [vmem:[%s1196 + $0x8] sm:$0xff]
        %v1199 = vld [vmem:[%s1196 + $0x10] sm:$0xff]
        %v1200 = vld [vmem:[%s1196 + $0x18] sm:$0xff]
        %s1201 = scalar_lea.vmem [#allocation6], 1
        %v1202 = vld [vmem:[%s1201] sm:$0x1]
        %v1204 = vperm.slane %v1202, 0
        %1206 = vmatpush.msra.mxu0 0.0
        %1207 = vmatpush.msra.mxu0 0.0
        %1208 = vmatpush.msra.mxu0 0.0
        %1209 = vmatpush.msra.mxu0 0.0
        %1210 = vmatpush.msra.mxu0 0.0
        %1211 = vmatpush.msra.mxu0 0.0
        %1212 = vmatpush.msra.mxu0 0.0
        %1213 = vmatpush.msra.mxu0 0.0
        %1214 = vmatpush.msra.mxu0 0.0
        %1215 = vmatpush.msra.mxu0 0.0
        %1216 = vmatpush.msra.mxu0 0.0
        %1217 = vmatpush.msra.mxu0 0.0
        %1218 = vmatpush.msra.mxu0 %v1200
        %1219 = vmatpush.msra.mxu0 %v1199
        %1220 = vmatpush.msra.mxu0 %v1198
        %1221 = vmatpush.msra.mxu0 %v1197
        %1222 = vmatmul.f32.gmra.mxu0 %v1010
        %v1223 = vpop.f32.mrf.mxu0
        %v1224 = vadd.f32 %v1204, %v1223
        %1225 = vmatmul.f32.gmra.mxu0 %v1013
        %v1226 = vpop.f32.mrf.mxu0
        %v1227 = vadd.f32 %v1204, %v1226
        %1228 = vdwg.mxu0
        %s1229 = scalar_lea.vmem [#allocation7], 32
        %v1230 = vld [vmem:[%s1229] sm:$0xff]
        %v1231 = vld [vmem:[%s1229 + $0x8] sm:$0xff]
        %v1232 = vld [vmem:[%s1229 + $0x10] sm:$0xff]
        %v1233 = vld [vmem:[%s1229 + $0x18] sm:$0xff]
        %s1234 = scalar_lea.vmem [#allocation9], 1
        %v1235 = vld [vmem:[%s1234] sm:$0x1]
        %v1237 = vperm.slane %v1235, 0
        %1239 = vmatpush.msra.mxu0 0.0
        %1240 = vmatpush.msra.mxu0 0.0
        %1241 = vmatpush.msra.mxu0 0.0
        %1242 = vmatpush.msra.mxu0 0.0
        %1243 = vmatpush.msra.mxu0 0.0
        %1244 = vmatpush.msra.mxu0 0.0
        %1245 = vmatpush.msra.mxu0 0.0
        %1246 = vmatpush.msra.mxu0 0.0
        %1247 = vmatpush.msra.mxu0 0.0
        %1248 = vmatpush.msra.mxu0 0.0
        %1249 = vmatpush.msra.mxu0 0.0
        %1250 = vmatpush.msra.mxu0 0.0
        %1251 = vmatpush.msra.mxu0 %v1233
        %1252 = vmatpush.msra.mxu0 %v1232
        %1253 = vmatpush.msra.mxu0 %v1231
        %1254 = vmatpush.msra.mxu0 %v1230
        %1255 = vmatmul.f32.gmra.mxu0 %v1010
        %v1256 = vpop.f32.mrf.mxu0
        %v1257 = vadd.f32 %v1237, %v1256
        %1258 = vmatmul.f32.gmra.mxu0 %v1013
        %v1259 = vpop.f32.mrf.mxu0
        %v1260 = vadd.f32 %v1237, %v1259
        %1261 = vdwg.mxu0
        %s1262 = scalar_lea.vmem [#allocation10], 32
        %v1263 = vld [vmem:[%s1262] sm:$0xff]
        %v1264 = vld [vmem:[%s1262 + $0x8] sm:$0xff]
        %v1265 = vld [vmem:[%s1262 + $0x10] sm:$0xff]
        %v1266 = vld [vmem:[%s1262 + $0x18] sm:$0xff]
        %s1267 = scalar_lea.vmem [#allocation12], 1
        %v1268 = vld [vmem:[%s1267] sm:$0x1]
        %v1270 = vperm.slane %v1268, 0
        %1272 = vmatpush.msra.mxu0 0.0
        %1273 = vmatpush.msra.mxu0 0.0
        %1274 = vmatpush.msra.mxu0 0.0
        %1275 = vmatpush.msra.mxu0 0.0
        %1276 = vmatpush.msra.mxu0 0.0
        %1277 = vmatpush.msra.mxu0 0.0
        %1278 = vmatpush.msra.mxu0 0.0
        %1279 = vmatpush.msra.mxu0 0.0
        %1280 = vmatpush.msra.mxu0 0.0
        %1281 = vmatpush.msra.mxu0 0.0
        %1282 = vmatpush.msra.mxu0 0.0
        %1283 = vmatpush.msra.mxu0 0.0
        %1284 = vmatpush.msra.mxu0 %v1266
        %1285 = vmatpush.msra.mxu0 %v1265
        %1286 = vmatpush.msra.mxu0 %v1264
        %1287 = vmatpush.msra.mxu0 %v1263
        %1288 = vmatmul.f32.gmra.mxu0 %v1010
        %v1289 = vpop.f32.mrf.mxu0
        %v1290 = vadd.f32 %v1270, %v1289
        %1291 = vmatmul.f32.gmra.mxu0 %v1013
        %v1292 = vpop.f32.mrf.mxu0
        %v1293 = vadd.f32 %v1270, %v1292
        %1294 = vdwg.mxu0
        %v1296 = vsel %vm1100, %v1224, 0
        %v1299 = vsel %vm1100, %v1227, 0
        %v1302 = vsel %vm1100, %v1257, 0
        %v1305 = vsel %vm1100, %v1260, 0
        %1307 = vmatpush.xpose.msra.mxu0 0.0
        %1308 = vmatpush.xpose.msra.mxu0 0.0
        %1309 = vmatpush.xpose.msra.mxu0 0.0
        %1310 = vmatpush.xpose.msra.mxu0 0.0
        %1311 = vmatpush.xpose.msra.mxu0 0.0
        %1312 = vmatpush.xpose.msra.mxu0 0.0
        %1313 = vmatpush.xpose.msra.mxu0 0.0
        %1314 = vmatpush.xpose.msra.mxu0 0.0
        %1315 = vmatpush.xpose.msra.mxu0 0.0
        %1316 = vmatpush.xpose.msra.mxu0 0.0
        %1317 = vmatpush.xpose.msra.mxu0 0.0
        %1318 = vmatpush.xpose.msra.mxu0 0.0
        %1319 = vmatpush.xpose.msra.mxu0 0.0
        %1320 = vmatpush.xpose.msra.mxu0 0.0
        %1321 = vmatpush.xpose.msra.mxu0 %v1305
        %1322 = vmatpush.xpose.msra.mxu0 %v1302
        %1323 = vmatmul.f32.gmra.mxu0 %v1296
        %v1324 = vpop.f32.mrf.mxu0
        %v1325 = vadd.f32 0.0, %v1324
        %1326 = vmatmul.f32.gmra.mxu0 %v1299
        %v1327 = vpop.f32.mrf.mxu0
        %v1328 = vadd.f32 0.0, %v1327
        %1329 = vdwg.mxu0
        %v1330 = vmul.f32 %v1325, 0.35355338
        %v1331 = vmul.f32 %v1328, 0.35355338
        %v1332 = vadd.f32 %v1330, %v1139
        %v1333 = vadd.f32 %v1331, %v1139
        %v1334 = vsel %vm1143, %v1332, -inf
        %1335 = vmax.xlane.f32.xlu0 %v1334
        %v1336 = vpop.xlane.xlu0 %1335
        %v1337 = vsel %vm1143, %v1333, -inf
        %1338 = vmax.xlane.f32.xlu0 %v1337
        %v1339 = vpop.xlane.xlu0 %1338
        %v1340 = vsub.f32 %v1332, %v1336
        %v1341 = vsub.f32 %v1333, %v1339
        %v1342 = vmul.f32 %v1340, 1.442695
        %v1343 = vpow.pop %v1342
        %v1344 = vmul.f32 %v1341, 1.442695
        %v1345 = vpow.pop %v1344
        %v1346 = vsel %vm1143, %v1343, 0.0
        %1347 = vadd.xlane.f32.xlu0 %v1346
        %v1348 = vpop.xlane.xlu0 %1347
        %v1349 = vsel %vm1143, %v1345, 0.0
        %1350 = vadd.xlane.f32.xlu0 %v1349
        %v1351 = vpop.xlane.xlu0 %1350
        %v1352 = vrcp.pop %v1348
        %v1353 = vrcp.pop %v1351
        %v1354 = vmul.f32 %v1343, %v1352
        %v1355 = vmul.f32 %v1345, %v1353
        %v1357 = vsel %vm1143, %v1354, 0
        %v1360 = vsel %vm1143, %v1355, 0
        %1362 = vmatpush.msra.mxu0 0.0
        %1363 = vmatpush.msra.mxu0 0.0
        %1364 = vmatpush.msra.mxu0 0.0
        %1365 = vmatpush.msra.mxu0 0.0
        %1366 = vmatpush.msra.mxu0 0.0
        %1367 = vmatpush.msra.mxu0 0.0
        %1368 = vmatpush.msra.mxu0 0.0
        %1369 = vmatpush.msra.mxu0 0.0
        %1370 = vmatpush.msra.mxu0 0.0
        %1371 = vmatpush.msra.mxu0 0.0
        %1372 = vmatpush.msra.mxu0 0.0
        %1373 = vmatpush.msra.mxu0 0.0
        %1374 = vmatpush.msra.mxu0 0.0
        %1375 = vmatpush.msra.mxu0 0.0
        %1376 = vmatpush.msra.mxu0 %v1293
        %1377 = vmatpush.msra.mxu0 %v1290
        %1378 = vmatmul.f32.gmra.mxu0 %v1357
        %v1379 = vpop.f32.mrf.mxu0
        %v1380 = vadd.f32 0.0, %v1379
        %1381 = vmatmul.f32.gmra.mxu0 %v1360
        %v1382 = vpop.f32.mrf.mxu0
        %v1383 = vadd.f32 0.0, %v1382
        %1384 = vdwg.mxu0
        %s1385 = scalar_lea.vmem [#allocation13], 8
        %v1386 = vld [vmem:[%s1385] sm:$0xff]
        %v1388 = vsel %vm1100, %v1380, 0
        %v1391 = vsel %vm1100, %v1383, 0
        %1393 = vmatpush.msra.mxu0 0.0
        %1394 = vmatpush.msra.mxu0 0.0
        %1395 = vmatpush.msra.mxu0 0.0
        %1396 = vmatpush.msra.mxu0 0.0
        %1397 = vmatpush.msra.mxu0 0.0
        %1398 = vmatpush.msra.mxu0 0.0
        %1399 = vmatpush.msra.mxu0 0.0
        %1400 = vmatpush.msra.mxu0 0.0
        %1401 = vmatpush.msra.mxu0 0.0
        %1402 = vmatpush.msra.mxu0 0.0
        %1403 = vmatpush.msra.mxu0 0.0
        %1404 = vmatpush.msra.mxu0 0.0
        %1405 = vmatpush.msra.mxu0 0.0
        %1406 = vmatpush.msra.mxu0 0.0
        %1407 = vmatpush.msra.mxu0 0.0
        %1408 = vmatpush.msra.mxu0 %v1386
        %1409 = vmatmul.f32.gmra.mxu0 %v1388
        %v1410 = vpop.f32.mrf.mxu0
        %v1411 = vadd.f32 0.0, %v1410
        %1412 = vmatmul.f32.gmra.mxu0 %v1391
        %v1413 = vpop.f32.mrf.mxu0
        %v1414 = vadd.f32 0.0, %v1413
        %1415 = vdwg.mxu0
        %v1417 = vsel %vm1100, %v1190, 0
        %v1420 = vsel %vm1100, %v1193, 0
        %1422 = vmatpush.msra.mxu0 0.0
        %1423 = vmatpush.msra.mxu0 0.0
        %1424 = vmatpush.msra.mxu0 0.0
        %1425 = vmatpush.msra.mxu0 0.0
        %1426 = vmatpush.msra.mxu0 0.0
        %1427 = vmatpush.msra.mxu0 0.0
        %1428 = vmatpush.msra.mxu0 0.0
        %1429 = vmatpush.msra.mxu0 0.0
        %1430 = vmatpush.msra.mxu0 0.0
        %1431 = vmatpush.msra.mxu0 0.0
        %1432 = vmatpush.msra.mxu0 0.0
        %1433 = vmatpush.msra.mxu0 0.0
        %1434 = vmatpush.msra.mxu0 0.0
        %1435 = vmatpush.msra.mxu0 0.0
        %1436 = vmatpush.msra.mxu0 0.0
        %1437 = vmatpush.msra.mxu0 %v1195
        %1438 = vmatmul.f32.gmra.mxu0 %v1417
        %v1439 = vpop.f32.mrf.mxu0
        %v1440 = vadd.f32 %v1411, %v1439
        %1441 = vmatmul.f32.gmra.mxu0 %v1420
        %v1442 = vpop.f32.mrf.mxu0
        %v1443 = vadd.f32 %v1414, %v1442
        %1444 = vdwg.mxu0
        %s1445 = scalar_lea.vmem [#allocation4], 64
        %v1446 = vld [vmem:[%s1445] sm:$0xff]
        %v1447 = vld [vmem:[%s1445 + $0x8] sm:$0xff]
        %v1448 = vld [vmem:[%s1445 + $0x10] sm:$0xff]
        %v1449 = vld [vmem:[%s1445 + $0x18] sm:$0xff]
        %s1450 = scalar_lea.vmem [#allocation6], 2
        %v1451 = vld [vmem:[%s1450] sm:$0x1]
        %v1453 = vperm.slane %v1451, 0
        %1455 = vmatpush.msra.mxu0 0.0
        %1456 = vmatpush.msra.mxu0 0.0
        %1457 = vmatpush.msra.mxu0 0.0
        %1458 = vmatpush.msra.mxu0 0.0
        %1459 = vmatpush.msra.mxu0 0.0
        %1460 = vmatpush.msra.mxu0 0.0
        %1461 = vmatpush.msra.mxu0 0.0
        %1462 = vmatpush.msra.mxu0 0.0
        %1463 = vmatpush.msra.mxu0 0.0
        %1464 = vmatpush.msra.mxu0 0.0
        %1465 = vmatpush.msra.mxu0 0.0
        %1466 = vmatpush.msra.mxu0 0.0
        %1467 = vmatpush.msra.mxu0 %v1449
        %1468 = vmatpush.msra.mxu0 %v1448
        %1469 = vmatpush.msra.mxu0 %v1447
        %1470 = vmatpush.msra.mxu0 %v1446
        %1471 = vmatmul.f32.gmra.mxu0 %v1010
        %v1472 = vpop.f32.mrf.mxu0
        %v1473 = vadd.f32 %v1453, %v1472
        %1474 = vmatmul.f32.gmra.mxu0 %v1013
        %v1475 = vpop.f32.mrf.mxu0
        %v1476 = vadd.f32 %v1453, %v1475
        %1477 = vdwg.mxu0
        %s1478 = scalar_lea.vmem [#allocation7], 64
        %v1479 = vld [vmem:[%s1478] sm:$0xff]
        %v1480 = vld [vmem:[%s1478 + $0x8] sm:$0xff]
        %v1481 = vld [vmem:[%s1478 + $0x10] sm:$0xff]
        %v1482 = vld [vmem:[%s1478 + $0x18] sm:$0xff]
        %s1483 = scalar_lea.vmem [#allocation9], 2
        %v1484 = vld [vmem:[%s1483] sm:$0x1]
        %v1486 = vperm.slane %v1484, 0
        %1488 = vmatpush.msra.mxu0 0.0
        %1489 = vmatpush.msra.mxu0 0.0
        %1490 = vmatpush.msra.mxu0 0.0
        %1491 = vmatpush.msra.mxu0 0.0
        %1492 = vmatpush.msra.mxu0 0.0
        %1493 = vmatpush.msra.mxu0 0.0
        %1494 = vmatpush.msra.mxu0 0.0
        %1495 = vmatpush.msra.mxu0 0.0
        %1496 = vmatpush.msra.mxu0 0.0
        %1497 = vmatpush.msra.mxu0 0.0
        %1498 = vmatpush.msra.mxu0 0.0
        %1499 = vmatpush.msra.mxu0 0.0
        %1500 = vmatpush.msra.mxu0 %v1482
        %1501 = vmatpush.msra.mxu0 %v1481
        %1502 = vmatpush.msra.mxu0 %v1480
        %1503 = vmatpush.msra.mxu0 %v1479
        %1504 = vmatmul.f32.gmra.mxu0 %v1010
        %v1505 = vpop.f32.mrf.mxu0
        %v1506 = vadd.f32 %v1486, %v1505
        %1507 = vmatmul.f32.gmra.mxu0 %v1013
        %v1508 = vpop.f32.mrf.mxu0
        %v1509 = vadd.f32 %v1486, %v1508
        %1510 = vdwg.mxu0
        %s1511 = scalar_lea.vmem [#allocation10], 64
        %v1512 = vld [vmem:[%s1511] sm:$0xff]
        %v1513 = vld [vmem:[%s1511 + $0x8] sm:$0xff]
        %v1514 = vld [vmem:[%s1511 + $0x10] sm:$0xff]
        %v1515 = vld [vmem:[%s1511 + $0x18] sm:$0xff]
        %s1516 = scalar_lea.vmem [#allocation12], 2
        %v1517 = vld [vmem:[%s1516] sm:$0x1]
        %v1519 = vperm.slane %v1517, 0
        %1521 = vmatpush.msra.mxu0 0.0
        %1522 = vmatpush.msra.mxu0 0.0
        %1523 = vmatpush.msra.mxu0 0.0
        %1524 = vmatpush.msra.mxu0 0.0
        %1525 = vmatpush.msra.mxu0 0.0
        %1526 = vmatpush.msra.mxu0 0.0
        %1527 = vmatpush.msra.mxu0 0.0
        %1528 = vmatpush.msra.mxu0 0.0
        %1529 = vmatpush.msra.mxu0 0.0
        %1530 = vmatpush.msra.mxu0 0.0
        %1531 = vmatpush.msra.mxu0 0.0
        %1532 = vmatpush.msra.mxu0 0.0
        %1533 = vmatpush.msra.mxu0 %v1515
        %1534 = vmatpush.msra.mxu0 %v1514
        %1535 = vmatpush.msra.mxu0 %v1513
        %1536 = vmatpush.msra.mxu0 %v1512
        %1537 = vmatmul.f32.gmra.mxu0 %v1010
        %v1538 = vpop.f32.mrf.mxu0
        %v1539 = vadd.f32 %v1519, %v1538
        %1540 = vmatmul.f32.gmra.mxu0 %v1013
        %v1541 = vpop.f32.mrf.mxu0
        %v1542 = vadd.f32 %v1519, %v1541
        %1543 = vdwg.mxu0
        %v1545 = vsel %vm1100, %v1473, 0
        %v1548 = vsel %vm1100, %v1476, 0
        %v1551 = vsel %vm1100, %v1506, 0
        %v1554 = vsel %vm1100, %v1509, 0
        %1556 = vmatpush.xpose.msra.mxu0 0.0
        %1557 = vmatpush.xpose.msra.mxu0 0.0
        %1558 = vmatpush.xpose.msra.mxu0 0.0
        %1559 = vmatpush.xpose.msra.mxu0 0.0
        %1560 = vmatpush.xpose.msra.mxu0 0.0
        %1561 = vmatpush.xpose.msra.mxu0 0.0
        %1562 = vmatpush.xpose.msra.mxu0 0.0
        %1563 = vmatpush.xpose.msra.mxu0 0.0
        %1564 = vmatpush.xpose.msra.mxu0 0.0
        %1565 = vmatpush.xpose.msra.mxu0 0.0
        %1566 = vmatpush.xpose.msra.mxu0 0.0
        %1567 = vmatpush.xpose.msra.mxu0 0.0
        %1568 = vmatpush.xpose.msra.mxu0 0.0
        %1569 = vmatpush.xpose.msra.mxu0 0.0
        %1570 = vmatpush.xpose.msra.mxu0 %v1554
        %1571 = vmatpush.xpose.msra.mxu0 %v1551
        %1572 = vmatmul.f32.gmra.mxu0 %v1545
        %v1573 = vpop.f32.mrf.mxu0
        %v1574 = vadd.f32 0.0, %v1573
        %1575 = vmatmul.f32.gmra.mxu0 %v1548
        %v1576 = vpop.f32.mrf.mxu0
        %v1577 = vadd.f32 0.0, %v1576
        %1578 = vdwg.mxu0
        %v1579 = vmul.f32 %v1574, 0.35355338
        %v1580 = vmul.f32 %v1577, 0.35355338
        %v1581 = vadd.f32 %v1579, %v1139
        %v1582 = vadd.f32 %v1580, %v1139
        %v1583 = vsel %vm1143, %v1581, -inf
        %1584 = vmax.xlane.f32.xlu0 %v1583
        %v1585 = vpop.xlane.xlu0 %1584
        %v1586 = vsel %vm1143, %v1582, -inf
        %1587 = vmax.xlane.f32.xlu0 %v1586
        %v1588 = vpop.xlane.xlu0 %1587
        %v1589 = vsub.f32 %v1581, %v1585
        %v1590 = vsub.f32 %v1582, %v1588
        %v1591 = vmul.f32 %v1589, 1.442695
        %v1592 = vpow.pop %v1591
        %v1593 = vmul.f32 %v1590, 1.442695
        %v1594 = vpow.pop %v1593
        %v1595 = vsel %vm1143, %v1592, 0.0
        %1596 = vadd.xlane.f32.xlu0 %v1595
        %v1597 = vpop.xlane.xlu0 %1596
        %v1598 = vsel %vm1143, %v1594, 0.0
        %1599 = vadd.xlane.f32.xlu0 %v1598
        %v1600 = vpop.xlane.xlu0 %1599
        %v1601 = vrcp.pop %v1597
        %v1602 = vrcp.pop %v1600
        %v1603 = vmul.f32 %v1592, %v1601
        %v1604 = vmul.f32 %v1594, %v1602
        %v1606 = vsel %vm1143, %v1603, 0
        %v1609 = vsel %vm1143, %v1604, 0
        %1611 = vmatpush.msra.mxu0 0.0
        %1612 = vmatpush.msra.mxu0 0.0
        %1613 = vmatpush.msra.mxu0 0.0
        %1614 = vmatpush.msra.mxu0 0.0
        %1615 = vmatpush.msra.mxu0 0.0
        %1616 = vmatpush.msra.mxu0 0.0
        %1617 = vmatpush.msra.mxu0 0.0
        %1618 = vmatpush.msra.mxu0 0.0
        %1619 = vmatpush.msra.mxu0 0.0
        %1620 = vmatpush.msra.mxu0 0.0
        %1621 = vmatpush.msra.mxu0 0.0
        %1622 = vmatpush.msra.mxu0 0.0
        %1623 = vmatpush.msra.mxu0 0.0
        %1624 = vmatpush.msra.mxu0 0.0
        %1625 = vmatpush.msra.mxu0 %v1542
        %1626 = vmatpush.msra.mxu0 %v1539
        %1627 = vmatmul.f32.gmra.mxu0 %v1606
        %v1628 = vpop.f32.mrf.mxu0
        %v1629 = vadd.f32 0.0, %v1628
        %1630 = vmatmul.f32.gmra.mxu0 %v1609
        %v1631 = vpop.f32.mrf.mxu0
        %v1632 = vadd.f32 0.0, %v1631
        %1633 = vdwg.mxu0
        %s1634 = scalar_lea.vmem [#allocation13], 16
        %v1635 = vld [vmem:[%s1634] sm:$0xff]
        %v1637 = vsel %vm1100, %v1629, 0
        %v1640 = vsel %vm1100, %v1632, 0
        %1642 = vmatpush.msra.mxu0 0.0
        %1643 = vmatpush.msra.mxu0 0.0
        %1644 = vmatpush.msra.mxu0 0.0
        %1645 = vmatpush.msra.mxu0 0.0
        %1646 = vmatpush.msra.mxu0 0.0
        %1647 = vmatpush.msra.mxu0 0.0
        %1648 = vmatpush.msra.mxu0 0.0
        %1649 = vmatpush.msra.mxu0 0.0
        %1650 = vmatpush.msra.mxu0 0.0
        %1651 = vmatpush.msra.mxu0 0.0
        %1652 = vmatpush.msra.mxu0 0.0
        %1653 = vmatpush.msra.mxu0 0.0
        %1654 = vmatpush.msra.mxu0 0.0
        %1655 = vmatpush.msra.mxu0 0.0
        %1656 = vmatpush.msra.mxu0 0.0
        %1657 = vmatpush.msra.mxu0 %v1635
        %1658 = vmatmul.f32.gmra.mxu0 %v1637
        %v1659 = vpop.f32.mrf.mxu0
        %v1660 = vadd.f32 0.0, %v1659
        %1661 = vmatmul.f32.gmra.mxu0 %v1640
        %v1662 = vpop.f32.mrf.mxu0
        %v1663 = vadd.f32 0.0, %v1662
        %1664 = vdwg.mxu0
        %v1665 = vadd.f32 %v1440, %v1660
        %v1666 = vadd.f32 %v1443, %v1663
        %s1667 = scalar_lea.vmem [#allocation4], 96
        %v1668 = vld [vmem:[%s1667] sm:$0xff]
        %v1669 = vld [vmem:[%s1667 + $0x8] sm:$0xff]
        %v1670 = vld [vmem:[%s1667 + $0x10] sm:$0xff]
        %v1671 = vld [vmem:[%s1667 + $0x18] sm:$0xff]
        %s1672 = scalar_lea.vmem [#allocation6], 3
        %v1673 = vld [vmem:[%s1672] sm:$0x1]
        %v1675 = vperm.slane %v1673, 0
        %1677 = vmatpush.msra.mxu0 0.0
        %1678 = vmatpush.msra.mxu0 0.0
        %1679 = vmatpush.msra.mxu0 0.0
        %1680 = vmatpush.msra.mxu0 0.0
        %1681 = vmatpush.msra.mxu0 0.0
        %1682 = vmatpush.msra.mxu0 0.0
        %1683 = vmatpush.msra.mxu0 0.0
        %1684 = vmatpush.msra.mxu0 0.0
        %1685 = vmatpush.msra.mxu0 0.0
        %1686 = vmatpush.msra.mxu0 0.0
        %1687 = vmatpush.msra.mxu0 0.0
        %1688 = vmatpush.msra.mxu0 0.0
        %1689 = vmatpush.msra.mxu0 %v1671
        %1690 = vmatpush.msra.mxu0 %v1670
        %1691 = vmatpush.msra.mxu0 %v1669
        %1692 = vmatpush.msra.mxu0 %v1668
        %1693 = vmatmul.f32.gmra.mxu0 %v1010
        %v1694 = vpop.f32.mrf.mxu0
        %v1695 = vadd.f32 %v1675, %v1694
        %1696 = vmatmul.f32.gmra.mxu0 %v1013
        %v1697 = vpop.f32.mrf.mxu0
        %v1698 = vadd.f32 %v1675, %v1697
        %1699 = vdwg.mxu0
        %s1700 = scalar_lea.vmem [#allocation7], 96
        %v1701 = vld [vmem:[%s1700] sm:$0xff]
        %v1702 = vld [vmem:[%s1700 + $0x8] sm:$0xff]
        %v1703 = vld [vmem:[%s1700 + $0x10] sm:$0xff]
        %v1704 = vld [vmem:[%s1700 + $0x18] sm:$0xff]
        %s1705 = scalar_lea.vmem [#allocation9], 3
        %v1706 = vld [vmem:[%s1705] sm:$0x1]
        %v1708 = vperm.slane %v1706, 0
        %1710 = vmatpush.msra.mxu0 0.0
        %1711 = vmatpush.msra.mxu0 0.0
        %1712 = vmatpush.msra.mxu0 0.0
        %1713 = vmatpush.msra.mxu0 0.0
        %1714 = vmatpush.msra.mxu0 0.0
        %1715 = vmatpush.msra.mxu0 0.0
        %1716 = vmatpush.msra.mxu0 0.0
        %1717 = vmatpush.msra.mxu0 0.0
        %1718 = vmatpush.msra.mxu0 0.0
        %1719 = vmatpush.msra.mxu0 0.0
        %1720 = vmatpush.msra.mxu0 0.0
        %1721 = vmatpush.msra.mxu0 0.0
        %1722 = vmatpush.msra.mxu0 %v1704
        %1723 = vmatpush.msra.mxu0 %v1703
        %1724 = vmatpush.msra.mxu0 %v1702
        %1725 = vmatpush.msra.mxu0 %v1701
        %1726 = vmatmul.f32.gmra.mxu0 %v1010
        %v1727 = vpop.f32.mrf.mxu0
        %v1728 = vadd.f32 %v1708, %v1727
        %1729 = vmatmul.f32.gmra.mxu0 %v1013
        %v1730 = vpop.f32.mrf.mxu0
        %v1731 = vadd.f32 %v1708, %v1730
        %1732 = vdwg.mxu0
        %s1733 = scalar_lea.vmem [#allocation10], 96
        %v1734 = vld [vmem:[%s1733] sm:$0xff]
        %v1735 = vld [vmem:[%s1733 + $0x8] sm:$0xff]
        %v1736 = vld [vmem:[%s1733 + $0x10] sm:$0xff]
        %v1737 = vld [vmem:[%s1733 + $0x18] sm:$0xff]
        %s1738 = scalar_lea.vmem [#allocation12], 3
        %v1739 = vld [vmem:[%s1738] sm:$0x1]
        %v1741 = vperm.slane %v1739, 0
        %1743 = vmatpush.msra.mxu0 0.0
        %1744 = vmatpush.msra.mxu0 0.0
        %1745 = vmatpush.msra.mxu0 0.0
        %1746 = vmatpush.msra.mxu0 0.0
        %1747 = vmatpush.msra.mxu0 0.0
        %1748 = vmatpush.msra.mxu0 0.0
        %1749 = vmatpush.msra.mxu0 0.0
        %1750 = vmatpush.msra.mxu0 0.0
        %1751 = vmatpush.msra.mxu0 0.0
        %1752 = vmatpush.msra.mxu0 0.0
        %1753 = vmatpush.msra.mxu0 0.0
        %1754 = vmatpush.msra.mxu0 0.0
        %1755 = vmatpush.msra.mxu0 %v1737
        %1756 = vmatpush.msra.mxu0 %v1736
        %1757 = vmatpush.msra.mxu0 %v1735
        %1758 = vmatpush.msra.mxu0 %v1734
        %1759 = vmatmul.f32.gmra.mxu0 %v1010
        %v1760 = vpop.f32.mrf.mxu0
        %v1761 = vadd.f32 %v1741, %v1760
        %1762 = vmatmul.f32.gmra.mxu0 %v1013
        %v1763 = vpop.f32.mrf.mxu0
        %v1764 = vadd.f32 %v1741, %v1763
        %1765 = vdwg.mxu0
        %v1767 = vsel %vm1100, %v1695, 0
        %v1770 = vsel %vm1100, %v1698, 0
        %v1773 = vsel %vm1100, %v1728, 0
        %v1776 = vsel %vm1100, %v1731, 0
        %1778 = vmatpush.xpose.msra.mxu0 0.0
        %1779 = vmatpush.xpose.msra.mxu0 0.0
        %1780 = vmatpush.xpose.msra.mxu0 0.0
        %1781 = vmatpush.xpose.msra.mxu0 0.0
        %1782 = vmatpush.xpose.msra.mxu0 0.0
        %1783 = vmatpush.xpose.msra.mxu0 0.0
        %1784 = vmatpush.xpose.msra.mxu0 0.0
        %1785 = vmatpush.xpose.msra.mxu0 0.0
        %1786 = vmatpush.xpose.msra.mxu0 0.0
        %1787 = vmatpush.xpose.msra.mxu0 0.0
        %1788 = vmatpush.xpose.msra.mxu0 0.0
        %1789 = vmatpush.xpose.msra.mxu0 0.0
        %1790 = vmatpush.xpose.msra.mxu0 0.0
        %1791 = vmatpush.xpose.msra.mxu0 0.0
        %1792 = vmatpush.xpose.msra.mxu0 %v1776
        %1793 = vmatpush.xpose.msra.mxu0 %v1773
        %1794 = vmatmul.f32.gmra.mxu0 %v1767
        %v1795 = vpop.f32.mrf.mxu0
        %v1796 = vadd.f32 0.0, %v1795
        %1797 = vmatmul.f32.gmra.mxu0 %v1770
        %v1798 = vpop.f32.mrf.mxu0
        %v1799 = vadd.f32 0.0, %v1798
        %1800 = vdwg.mxu0
        %v1801 = vmul.f32 %v1796, 0.35355338
        %v1802 = vmul.f32 %v1799, 0.35355338
        %v1803 = vadd.f32 %v1801, %v1139
        %v1804 = vadd.f32 %v1802, %v1139
        %v1805 = vsel %vm1143, %v1803, -inf
        %1806 = vmax.xlane.f32.xlu0 %v1805
        %v1807 = vpop.xlane.xlu0 %1806
        %v1808 = vsel %vm1143, %v1804, -inf
        %1809 = vmax.xlane.f32.xlu0 %v1808
        %v1810 = vpop.xlane.xlu0 %1809
        %v1811 = vsub.f32 %v1803, %v1807
        %v1812 = vsub.f32 %v1804, %v1810
        %v1813 = vmul.f32 %v1811, 1.442695
        %v1814 = vpow.pop %v1813
        %v1815 = vmul.f32 %v1812, 1.442695
        %v1816 = vpow.pop %v1815
        %v1817 = vsel %vm1143, %v1814, 0.0
        %1818 = vadd.xlane.f32.xlu0 %v1817
        %v1819 = vpop.xlane.xlu0 %1818
        %v1820 = vsel %vm1143, %v1816, 0.0
        %1821 = vadd.xlane.f32.xlu0 %v1820
        %v1822 = vpop.xlane.xlu0 %1821
        %v1823 = vrcp.pop %v1819
        %v1824 = vrcp.pop %v1822
        %v1825 = vmul.f32 %v1814, %v1823
        %v1826 = vmul.f32 %v1816, %v1824
        %v1828 = vsel %vm1143, %v1825, 0
        %v1831 = vsel %vm1143, %v1826, 0
        %1833 = vmatpush.msra.mxu0 0.0
        %1834 = vmatpush.msra.mxu0 0.0
        %1835 = vmatpush.msra.mxu0 0.0
        %1836 = vmatpush.msra.mxu0 0.0
        %1837 = vmatpush.msra.mxu0 0.0
        %1838 = vmatpush.msra.mxu0 0.0
        %1839 = vmatpush.msra.mxu0 0.0
        %1840 = vmatpush.msra.mxu0 0.0
        %1841 = vmatpush.msra.mxu0 0.0
        %1842 = vmatpush.msra.mxu0 0.0
        %1843 = vmatpush.msra.mxu0 0.0
        %1844 = vmatpush.msra.mxu0 0.0
        %1845 = vmatpush.msra.mxu0 0.0
        %1846 = vmatpush.msra.mxu0 0.0
        %1847 = vmatpush.msra.mxu0 %v1764
        %1848 = vmatpush.msra.mxu0 %v1761
        %1849 = vmatmul.f32.gmra.mxu0 %v1828
        %v1850 = vpop.f32.mrf.mxu0
        %v1851 = vadd.f32 0.0, %v1850
        %1852 = vmatmul.f32.gmra.mxu0 %v1831
        %v1853 = vpop.f32.mrf.mxu0
        %v1854 = vadd.f32 0.0, %v1853
        %1855 = vdwg.mxu0
        %s1856 = scalar_lea.vmem [#allocation13], 24
        %v1857 = vld [vmem:[%s1856] sm:$0xff]
        %v1859 = vsel %vm1100, %v1851, 0
        %v1862 = vsel %vm1100, %v1854, 0
        %1864 = vmatpush.msra.mxu0 0.0
        %1865 = vmatpush.msra.mxu0 0.0
        %1866 = vmatpush.msra.mxu0 0.0
        %1867 = vmatpush.msra.mxu0 0.0
        %1868 = vmatpush.msra.mxu0 0.0
        %1869 = vmatpush.msra.mxu0 0.0
        %1870 = vmatpush.msra.mxu0 0.0
        %1871 = vmatpush.msra.mxu0 0.0
        %1872 = vmatpush.msra.mxu0 0.0
        %1873 = vmatpush.msra.mxu0 0.0
        %1874 = vmatpush.msra.mxu0 0.0
        %1875 = vmatpush.msra.mxu0 0.0
        %1876 = vmatpush.msra.mxu0 0.0
        %1877 = vmatpush.msra.mxu0 0.0
        %1878 = vmatpush.msra.mxu0 0.0
        %1879 = vmatpush.msra.mxu0 %v1857
        %1880 = vmatmul.f32.gmra.mxu0 %v1859
        %v1881 = vpop.f32.mrf.mxu0
        %v1882 = vadd.f32 0.0, %v1881
        %1883 = vmatmul.f32.gmra.mxu0 %v1862
        %v1884 = vpop.f32.mrf.mxu0
        %v1885 = vadd.f32 0.0, %v1884
        %1886 = vdwg.mxu0
        %v1887 = vadd.f32 %v1665, %v1882
        %v1888 = vadd.f32 %v1666, %v1885
        %v1889 = vadd.f32 %v997, %v1887
        %v1890 = vadd.f32 %v998, %v1888
        %v1891 = vld [vmem:[#allocation15] sm:$0x1]
        %v1893 = vperm.slane %v1891, 0
        %v1895 = vadd.f32 %v1889, %v1893
        %v1896 = vadd.f32 %v1890, %v1893
        %v1897 = vld [vmem:[%s11] sm:$0x1]
        %v1898 = vld [vmem:[%s12] sm:$0x1]
        %v1899 = vsel %vm1008, %v1895, 0.0
        %1900 = vadd.xlane.f32.xlu0 %v1899
        %v1901 = vpop.xlane.xlu0 %1900
        %v1902 = vsel %vm1008, %v1896, 0.0
        %1903 = vadd.xlane.f32.xlu0 %v1902
        %v1904 = vpop.xlane.xlu0 %1903
        %v1905 = vrcp.pop 32.0
        %v1906 = vmul.f32 32.0, %v1905
        %v1907 = vsub.f32 1.0, %v1906
        %v1908 = vmul.f32 %v1905, %v1907
        %v1909 = vadd.f32 %v1905, %v1908
        %vm1910 = vweird.f32 %v1905
        %v1911 = vsel %vm1910, %v1905, %v1909
        %v1912 = vmul.f32 %v1901, %v1911
        %v1913 = vmul.f32 %v1904, %v1911
        %v1914 = vsub.f32 %v1895, %v1912
        %v1915 = vsub.f32 %v1896, %v1913
        %v1916 = vmul.f32 %v1914, %v1914
        %v1917 = vmul.f32 %v1915, %v1915
        %v1918 = vsel %vm1008, %v1916, 0.0
        %1919 = vadd.xlane.f32.xlu0 %v1918
        %v1920 = vpop.xlane.xlu0 %1919
        %v1921 = vsel %vm1008, %v1917, 0.0
        %1922 = vadd.xlane.f32.xlu0 %v1921
        %v1923 = vpop.xlane.xlu0 %1922
        %v1924 = vmul.f32 %v1920, %v1911
        %v1925 = vmul.f32 %v1923, %v1911
        %v1926 = vadd.f32 %v1924, 1e-05
        %v1927 = vadd.f32 %v1925, 1e-05
        %v1928 = vrsqrt.pop %v1926
        %v1929 = vmul.f32 %v1928, %v1926
        %v1930 = vmul.f32 %v1929, %v1928
        %v1931 = vmul.f32 0.5, %v1930
        %v1932 = vsub.f32 1.5, %v1931
        %v1933 = vmul.f32 %v1928, %v1932
        %vm1934 = vweird.f32 %v1926
        %vm1935 = vweird.f32 %v1928
        %vm1936 = vmor %vm1934, %vm1935
        %v1937 = vsel %vm1936, %v1928, %v1933
        %v1938 = vrsqrt.pop %v1927
        %v1939 = vmul.f32 %v1938, %v1927
        %v1940 = vmul.f32 %v1939, %v1938
        %v1941 = vmul.f32 0.5, %v1940
        %v1942 = vsub.f32 1.5, %v1941
        %v1943 = vmul.f32 %v1938, %v1942
        %vm1944 = vweird.f32 %v1927
        %vm1945 = vweird.f32 %v1938
        %vm1946 = vmor %vm1944, %vm1945
        %v1947 = vsel %vm1946, %v1938, %v1943
        %v1948 = vmul.f32 %v1914, %v1937
        %v1949 = vmul.f32 %v1915, %v1947
        %v1951 = vperm.slane %v1897, 0
        %v1953 = vmul.f32 %v1948, %v1951
        %v1954 = vmul.f32 %v1949, %v1951
        %v1956 = vperm.slane %v1898, 0
        %v1958 = vadd.f32 %v1953, %v1956
        %v1959 = vadd.f32 %v1954, %v1956
        %v1960 = vld [vmem:[#allocation16] sm:$0xff]
        %v1961 = vld [vmem:[#allocation16 + $0x8] sm:$0xff]
        %v1962 = vld [vmem:[#allocation16 + $0x10] sm:$0xff]
        %v1963 = vld [vmem:[#allocation16 + $0x18] sm:$0xff]
        %v1964 = vld [vmem:[#allocation18] sm:$0x1]
        %v1966 = vperm.slane %v1964, 0
        %v1969 = vsel %vm1008, %v1958, 0
        %v1972 = vsel %vm1008, %v1959, 0
        %1974 = vmatpush.msra.mxu0 0.0
        %1975 = vmatpush.msra.mxu0 0.0
        %1976 = vmatpush.msra.mxu0 0.0
        %1977 = vmatpush.msra.mxu0 0.0
        %1978 = vmatpush.msra.mxu0 0.0
        %1979 = vmatpush.msra.mxu0 0.0
        %1980 = vmatpush.msra.mxu0 0.0
        %1981 = vmatpush.msra.mxu0 0.0
        %1982 = vmatpush.msra.mxu0 0.0
        %1983 = vmatpush.msra.mxu0 0.0
        %1984 = vmatpush.msra.mxu0 0.0
        %1985 = vmatpush.msra.mxu0 0.0
        %1986 = vmatpush.msra.mxu0 %v1963
        %1987 = vmatpush.msra.mxu0 %v1962
        %1988 = vmatpush.msra.mxu0 %v1961
        %1989 = vmatpush.msra.mxu0 %v1960
        %1990 = vmatmul.f32.gmra.mxu0 %v1969
        %v1991 = vpop.f32.mrf.mxu0
        %v1992 = vadd.f32 %v1966, %v1991
        %1993 = vmatmul.f32.gmra.mxu0 %v1972
        %v1994 = vpop.f32.mrf.mxu0
        %v1995 = vadd.f32 %v1966, %v1994
        %1996 = vdwg.mxu0
        %v1997 = vmax.f32 %v1992, 0.0
        %v1998 = vmax.f32 %v1995, 0.0
        %v1999 = vld [vmem:[#allocation19] sm:$0xff]
        %v2000 = vld [vmem:[#allocation19 + $0x8] sm:$0xff]
        %v2001 = vld [vmem:[#allocation19 + $0x10] sm:$0xff]
        %v2002 = vld [vmem:[#allocation19 + $0x18] sm:$0xff]
        %v2003 = vld [vmem:[#allocation19 + $0x20] sm:$0xff]
        %v2004 = vld [vmem:[#allocation19 + $0x28] sm:$0xff]
        %v2005 = vld [vmem:[#allocation19 + $0x30] sm:$0xff]
        %v2006 = vld [vmem:[#allocation19 + $0x38] sm:$0xff]
        %v2007 = vld [vmem:[#allocation21] sm:$0x1]
        %v2009 = vperm.slane %v2007, 0
        %vm2011 = vcmask 523264
        %v2013 = vsel %vm2011, %v1997, 0
        %v2016 = vsel %vm2011, %v1998, 0
        %2018 = vmatpush.msra.mxu0 0.0
        %2019 = vmatpush.msra.mxu0 0.0
        %2020 = vmatpush.msra.mxu0 0.0
        %2021 = vmatpush.msra.mxu0 0.0
        %2022 = vmatpush.msra.mxu0 0.0
        %2023 = vmatpush.msra.mxu0 0.0
        %2024 = vmatpush.msra.mxu0 0.0
        %2025 = vmatpush.msra.mxu0 0.0
        %2026 = vmatpush.msra.mxu0 %v2006
        %2027 = vmatpush.msra.mxu0 %v2005
        %2028 = vmatpush.msra.mxu0 %v2004
        %2029 = vmatpush.msra.mxu0 %v2003
        %2030 = vmatpush.msra.mxu0 %v2002
        %2031 = vmatpush.msra.mxu0 %v2001
        %2032 = vmatpush.msra.mxu0 %v2000
        %2033 = vmatpush.msra.mxu0 %v1999
        %2034 = vmatmul.f32.gmra.mxu0 %v2013
        %v2035 = vpop.f32.mrf.mxu0
        %v2036 = vadd.f32 %v2009, %v2035
        %2037 = vmatmul.f32.gmra.mxu0 %v2016
        %v2038 = vpop.f32.mrf.mxu0
        %v2039 = vadd.f32 %v2009, %v2038
        %2040 = vdwg.mxu0
        %v2041 = vadd.f32 %v1958, %v2036
        %v2042 = vadd.f32 %v1959, %v2039
        %v2043 = vld [vmem:[%s17] sm:$0x1]
        %v2044 = vld [vmem:[%s18] sm:$0x1]
        %v2045 = vsel %vm1008, %v2041, 0.0
        %2046 = vadd.xlane.f32.xlu0 %v2045
        %v2047 = vpop.xlane.xlu0 %2046
        %v2048 = vsel %vm1008, %v2042, 0.0
        %2049 = vadd.xlane.f32.xlu0 %v2048
        %v2050 = vpop.xlane.xlu0 %2049
        %v2051 = vmul.f32 %v2047, %v1911
        %v2052 = vmul.f32 %v2050, %v1911
        %v2053 = vsub.f32 %v2041, %v2051
        %v2054 = vsub.f32 %v2042, %v2052
        %v2055 = vmul.f32 %v2053, %v2053
        %v2056 = vmul.f32 %v2054, %v2054
        %v2057 = vsel %vm1008, %v2055, 0.0
        %2058 = vadd.xlane.f32.xlu0 %v2057
        %v2059 = vpop.xlane.xlu0 %2058
        %v2060 = vsel %vm1008, %v2056, 0.0
        %2061 = vadd.xlane.f32.xlu0 %v2060
        %v2062 = vpop.xlane.xlu0 %2061
        %v2063 = vmul.f32 %v2059, %v1911
        %v2064 = vmul.f32 %v2062, %v1911
        %v2065 = vadd.f32 %v2063, 1e-05
        %v2066 = vadd.f32 %v2064, 1e-05
        %v2067 = vrsqrt.pop %v2065
        %v2068 = vmul.f32 %v2067, %v2065
        %v2069 = vmul.f32 %v2068, %v2067
        %v2070 = vmul.f32 0.5, %v2069
        %v2071 = vsub.f32 1.5, %v2070
        %v2072 = vmul.f32 %v2067, %v2071
        %vm2073 = vweird.f32 %v2065
        %vm2074 = vweird.f32 %v2067
        %vm2075 = vmor %vm2073, %vm2074
        %v2076 = vsel %vm2075, %v2067, %v2072
        %v2077 = vrsqrt.pop %v2066
        %v2078 = vmul.f32 %v2077, %v2066
        %v2079 = vmul.f32 %v2078, %v2077
        %v2080 = vmul.f32 0.5, %v2079
        %v2081 = vsub.f32 1.5, %v2080
        %v2082 = vmul.f32 %v2077, %v2081
        %vm2083 = vweird.f32 %v2066
        %vm2084 = vweird.f32 %v2077
        %vm2085 = vmor %vm2083, %vm2084
        %v2086 = vsel %vm2085, %v2077, %v2082
        %v2087 = vmul.f32 %v2053, %v2076
        %v2088 = vmul.f32 %v2054, %v2086
        %v2090 = vperm.slane %v2043, 0
        %v2092 = vmul.f32 %v2087, %v2090
        %v2093 = vmul.f32 %v2088, %v2090
        %v2095 = vperm.slane %v2044, 0
        %v2097 = vadd.f32 %v2092, %v2095
        %v2098 = vadd.f32 %v2093, %v2095
        %s2099 = scalar_lea.vmem [#allocation4], 128
        %v2100 = vld [vmem:[%s2099] sm:$0xff]
        %v2101 = vld [vmem:[%s2099 + $0x8] sm:$0xff]
        %v2102 = vld [vmem:[%s2099 + $0x10] sm:$0xff]
        %v2103 = vld [vmem:[%s2099 + $0x18] sm:$0xff]
        %s2104 = scalar_lea.vmem [#allocation6], 4
        %v2105 = vld [vmem:[%s2104] sm:$0x1]
        %v2107 = vperm.slane %v2105, 0
        %v2110 = vsel %vm1008, %v2097, 0
        %v2113 = vsel %vm1008, %v2098, 0
        %2115 = vmatpush.msra.mxu0 0.0
        %2116 = vmatpush.msra.mxu0 0.0
        %2117 = vmatpush.msra.mxu0 0.0
        %2118 = vmatpush.msra.mxu0 0.0
        %2119 = vmatpush.msra.mxu0 0.0
        %2120 = vmatpush.msra.mxu0 0.0
        %2121 = vmatpush.msra.mxu0 0.0
        %2122 = vmatpush.msra.mxu0 0.0
        %2123 = vmatpush.msra.mxu0 0.0
        %2124 = vmatpush.msra.mxu0 0.0
        %2125 = vmatpush.msra.mxu0 0.0
        %2126 = vmatpush.msra.mxu0 0.0
        %2127 = vmatpush.msra.mxu0 %v2103
        %2128 = vmatpush.msra.mxu0 %v2102
        %2129 = vmatpush.msra.mxu0 %v2101
        %2130 = vmatpush.msra.mxu0 %v2100
        %2131 = vmatmul.f32.gmra.mxu0 %v2110
        %v2132 = vpop.f32.mrf.mxu0
        %v2133 = vadd.f32 %v2107, %v2132
        %2134 = vmatmul.f32.gmra.mxu0 %v2113
        %v2135 = vpop.f32.mrf.mxu0
        %v2136 = vadd.f32 %v2107, %v2135
        %2137 = vdwg.mxu0
        %s2138 = scalar_lea.vmem [#allocation7], 128
        %v2139 = vld [vmem:[%s2138] sm:$0xff]
        %v2140 = vld [vmem:[%s2138 + $0x8] sm:$0xff]
        %v2141 = vld [vmem:[%s2138 + $0x10] sm:$0xff]
        %v2142 = vld [vmem:[%s2138 + $0x18] sm:$0xff]
        %s2143 = scalar_lea.vmem [#allocation9], 4
        %v2144 = vld [vmem:[%s2143] sm:$0x1]
        %v2146 = vperm.slane %v2144, 0
        %2148 = vmatpush.msra.mxu0 0.0
        %2149 = vmatpush.msra.mxu0 0.0
        %2150 = vmatpush.msra.mxu0 0.0
        %2151 = vmatpush.msra.mxu0 0.0
        %2152 = vmatpush.msra.mxu0 0.0
        %2153 = vmatpush.msra.mxu0 0.0
        %2154 = vmatpush.msra.mxu0 0.0
        %2155 = vmatpush.msra.mxu0 0.0
        %2156 = vmatpush.msra.mxu0 0.0
        %2157 = vmatpush.msra.mxu0 0.0
        %2158 = vmatpush.msra.mxu0 0.0
        %2159 = vmatpush.msra.mxu0 0.0
        %2160 = vmatpush.msra.mxu0 %v2142
        %2161 = vmatpush.msra.mxu0 %v2141
        %2162 = vmatpush.msra.mxu0 %v2140
        %2163 = vmatpush.msra.mxu0 %v2139
        %2164 = vmatmul.f32.gmra.mxu0 %v2110
        %v2165 = vpop.f32.mrf.mxu0
        %v2166 = vadd.f32 %v2146, %v2165
        %2167 = vmatmul.f32.gmra.mxu0 %v2113
        %v2168 = vpop.f32.mrf.mxu0
        %v2169 = vadd.f32 %v2146, %v2168
        %2170 = vdwg.mxu0
        %s2171 = scalar_lea.vmem [#allocation10], 128
        %v2172 = vld [vmem:[%s2171] sm:$0xff]
        %v2173 = vld [vmem:[%s2171 + $0x8] sm:$0xff]
        %v2174 = vld [vmem:[%s2171 + $0x10] sm:$0xff]
        %v2175 = vld [vmem:[%s2171 + $0x18] sm:$0xff]
        %s2176 = scalar_lea.vmem [#allocation12], 4
        %v2177 = vld [vmem:[%s2176] sm:$0x1]
        %v2179 = vperm.slane %v2177, 0
        %2181 = vmatpush.msra.mxu0 0.0
        %2182 = vmatpush.msra.mxu0 0.0
        %2183 = vmatpush.msra.mxu0 0.0
        %2184 = vmatpush.msra.mxu0 0.0
        %2185 = vmatpush.msra.mxu0 0.0
        %2186 = vmatpush.msra.mxu0 0.0
        %2187 = vmatpush.msra.mxu0 0.0
        %2188 = vmatpush.msra.mxu0 0.0
        %2189 = vmatpush.msra.mxu0 0.0
        %2190 = vmatpush.msra.mxu0 0.0
        %2191 = vmatpush.msra.mxu0 0.0
        %2192 = vmatpush.msra.mxu0 0.0
        %2193 = vmatpush.msra.mxu0 %v2175
        %2194 = vmatpush.msra.mxu0 %v2174
        %2195 = vmatpush.msra.mxu0 %v2173
        %2196 = vmatpush.msra.mxu0 %v2172
        %2197 = vmatmul.f32.gmra.mxu0 %v2110
        %v2198 = vpop.f32.mrf.mxu0
        %v2199 = vadd.f32 %v2179, %v2198
        %2200 = vmatmul.f32.gmra.mxu0 %v2113
        %v2201 = vpop.f32.mrf.mxu0
        %v2202 = vadd.f32 %v2179, %v2201
        %2203 = vdwg.mxu0
        %v2205 = vsel %vm1100, %v2133, 0
        %v2208 = vsel %vm1100, %v2136, 0
        %v2211 = vsel %vm1100, %v2166, 0
        %v2214 = vsel %vm1100, %v2169, 0
        %2216 = vmatpush.xpose.msra.mxu0 0.0
        %2217 = vmatpush.xpose.msra.mxu0 0.0
        %2218 = vmatpush.xpose.msra.mxu0 0.0
        %2219 = vmatpush.xpose.msra.mxu0 0.0
        %2220 = vmatpush.xpose.msra.mxu0 0.0
        %2221 = vmatpush.xpose.msra.mxu0 0.0
        %2222 = vmatpush.xpose.msra.mxu0 0.0
        %2223 = vmatpush.xpose.msra.mxu0 0.0
        %2224 = vmatpush.xpose.msra.mxu0 0.0
        %2225 = vmatpush.xpose.msra.mxu0 0.0
        %2226 = vmatpush.xpose.msra.mxu0 0.0
        %2227 = vmatpush.xpose.msra.mxu0 0.0
        %2228 = vmatpush.xpose.msra.mxu0 0.0
        %2229 = vmatpush.xpose.msra.mxu0 0.0
        %2230 = vmatpush.xpose.msra.mxu0 %v2214
        %2231 = vmatpush.xpose.msra.mxu0 %v2211
        %2232 = vmatmul.f32.gmra.mxu0 %v2205
        %v2233 = vpop.f32.mrf.mxu0
        %v2234 = vadd.f32 0.0, %v2233
        %2235 = vmatmul.f32.gmra.mxu0 %v2208
        %v2236 = vpop.f32.mrf.mxu0
        %v2237 = vadd.f32 0.0, %v2236
        %2238 = vdwg.mxu0
        %v2239 = vmul.f32 %v2234, 0.35355338
        %v2240 = vmul.f32 %v2237, 0.35355338
        %v2241 = vadd.f32 %v2239, %v1139
        %v2242 = vadd.f32 %v2240, %v1139
        %v2243 = vsel %vm1143, %v2241, -inf
        %2244 = vmax.xlane.f32.xlu0 %v2243
        %v2245 = vpop.xlane.xlu0 %2244
        %v2246 = vsel %vm1143, %v2242, -inf
        %2247 = vmax.xlane.f32.xlu0 %v2246
        %v2248 = vpop.xlane.xlu0 %2247
        %v2249 = vsub.f32 %v2241, %v2245
        %v2250 = vsub.f32 %v2242, %v2248
        %v2251 = vmul.f32 %v2249, 1.442695
        %v2252 = vpow.pop %v2251
        %v2253 = vmul.f32 %v2250, 1.442695
        %v2254 = vpow.pop %v2253
        %v2255 = vsel %vm1143, %v2252, 0.0
        %2256 = vadd.xlane.f32.xlu0 %v2255
        %v2257 = vpop.xlane.xlu0 %2256
        %v2258 = vsel %vm1143, %v2254, 0.0
        %2259 = vadd.xlane.f32.xlu0 %v2258
        %v2260 = vpop.xlane.xlu0 %2259
        %v2261 = vrcp.pop %v2257
        %v2262 = vrcp.pop %v2260
        %v2263 = vmul.f32 %v2252, %v2261
        %v2264 = vmul.f32 %v2254, %v2262
        %v2266 = vsel %vm1143, %v2263, 0
        %v2269 = vsel %vm1143, %v2264, 0
        %2271 = vmatpush.msra.mxu0 0.0
        %2272 = vmatpush.msra.mxu0 0.0
        %2273 = vmatpush.msra.mxu0 0.0
        %2274 = vmatpush.msra.mxu0 0.0
        %2275 = vmatpush.msra.mxu0 0.0
        %2276 = vmatpush.msra.mxu0 0.0
        %2277 = vmatpush.msra.mxu0 0.0
        %2278 = vmatpush.msra.mxu0 0.0
        %2279 = vmatpush.msra.mxu0 0.0
        %2280 = vmatpush.msra.mxu0 0.0
        %2281 = vmatpush.msra.mxu0 0.0
        %2282 = vmatpush.msra.mxu0 0.0
        %2283 = vmatpush.msra.mxu0 0.0
        %2284 = vmatpush.msra.mxu0 0.0
        %2285 = vmatpush.msra.mxu0 %v2202
        %2286 = vmatpush.msra.mxu0 %v2199
        %2287 = vmatmul.f32.gmra.mxu0 %v2266
        %v2288 = vpop.f32.mrf.mxu0
        %v2289 = vadd.f32 0.0, %v2288
        %2290 = vmatmul.f32.gmra.mxu0 %v2269
        %v2291 = vpop.f32.mrf.mxu0
        %v2292 = vadd.f32 0.0, %v2291
        %2293 = vdwg.mxu0
        %s2294 = scalar_lea.vmem [#allocation13], 32
        %v2295 = vld [vmem:[%s2294] sm:$0xff]
        %s2296 = scalar_lea.vmem [#allocation4], 160
        %v2297 = vld [vmem:[%s2296] sm:$0xff]
        %v2298 = vld [vmem:[%s2296 + $0x8] sm:$0xff]
        %v2299 = vld [vmem:[%s2296 + $0x10] sm:$0xff]
        %v2300 = vld [vmem:[%s2296 + $0x18] sm:$0xff]
        %s2301 = scalar_lea.vmem [#allocation6], 5
        %v2302 = vld [vmem:[%s2301] sm:$0x1]
        %v2304 = vperm.slane %v2302, 0
        %2306 = vmatpush.msra.mxu0 0.0
        %2307 = vmatpush.msra.mxu0 0.0
        %2308 = vmatpush.msra.mxu0 0.0
        %2309 = vmatpush.msra.mxu0 0.0
        %2310 = vmatpush.msra.mxu0 0.0
        %2311 = vmatpush.msra.mxu0 0.0
        %2312 = vmatpush.msra.mxu0 0.0
        %2313 = vmatpush.msra.mxu0 0.0
        %2314 = vmatpush.msra.mxu0 0.0
        %2315 = vmatpush.msra.mxu0 0.0
        %2316 = vmatpush.msra.mxu0 0.0
        %2317 = vmatpush.msra.mxu0 0.0
        %2318 = vmatpush.msra.mxu0 %v2300
        %2319 = vmatpush.msra.mxu0 %v2299
        %2320 = vmatpush.msra.mxu0 %v2298
        %2321 = vmatpush.msra.mxu0 %v2297
        %2322 = vmatmul.f32.gmra.mxu0 %v2110
        %v2323 = vpop.f32.mrf.mxu0
        %v2324 = vadd.f32 %v2304, %v2323
        %2325 = vmatmul.f32.gmra.mxu0 %v2113
        %v2326 = vpop.f32.mrf.mxu0
        %v2327 = vadd.f32 %v2304, %v2326
        %2328 = vdwg.mxu0
        %s2329 = scalar_lea.vmem [#allocation7], 160
        %v2330 = vld [vmem:[%s2329] sm:$0xff]
        %v2331 = vld [vmem:[%s2329 + $0x8] sm:$0xff]
        %v2332 = vld [vmem:[%s2329 + $0x10] sm:$0xff]
        %v2333 = vld [vmem:[%s2329 + $0x18] sm:$0xff]
        %s2334 = scalar_lea.vmem [#allocation9], 5
        %v2335 = vld [vmem:[%s2334] sm:$0x1]
        %v2337 = vperm.slane %v2335, 0
        %2339 = vmatpush.msra.mxu0 0.0
        %2340 = vmatpush.msra.mxu0 0.0
        %2341 = vmatpush.msra.mxu0 0.0
        %2342 = vmatpush.msra.mxu0 0.0
        %2343 = vmatpush.msra.mxu0 0.0
        %2344 = vmatpush.msra.mxu0 0.0
        %2345 = vmatpush.msra.mxu0 0.0
        %2346 = vmatpush.msra.mxu0 0.0
        %2347 = vmatpush.msra.mxu0 0.0
        %2348 = vmatpush.msra.mxu0 0.0
        %2349 = vmatpush.msra.mxu0 0.0
        %2350 = vmatpush.msra.mxu0 0.0
        %2351 = vmatpush.msra.mxu0 %v2333
        %2352 = vmatpush.msra.mxu0 %v2332
        %2353 = vmatpush.msra.mxu0 %v2331
        %2354 = vmatpush.msra.mxu0 %v2330
        %2355 = vmatmul.f32.gmra.mxu0 %v2110
        %v2356 = vpop.f32.mrf.mxu0
        %v2357 = vadd.f32 %v2337, %v2356
        %2358 = vmatmul.f32.gmra.mxu0 %v2113
        %v2359 = vpop.f32.mrf.mxu0
        %v2360 = vadd.f32 %v2337, %v2359
        %2361 = vdwg.mxu0
        %s2362 = scalar_lea.vmem [#allocation10], 160
        %v2363 = vld [vmem:[%s2362] sm:$0xff]
        %v2364 = vld [vmem:[%s2362 + $0x8] sm:$0xff]
        %v2365 = vld [vmem:[%s2362 + $0x10] sm:$0xff]
        %v2366 = vld [vmem:[%s2362 + $0x18] sm:$0xff]
        %s2367 = scalar_lea.vmem [#allocation12], 5
        %v2368 = vld [vmem:[%s2367] sm:$0x1]
        %v2370 = vperm.slane %v2368, 0
        %2372 = vmatpush.msra.mxu0 0.0
        %2373 = vmatpush.msra.mxu0 0.0
        %2374 = vmatpush.msra.mxu0 0.0
        %2375 = vmatpush.msra.mxu0 0.0
        %2376 = vmatpush.msra.mxu0 0.0
        %2377 = vmatpush.msra.mxu0 0.0
        %2378 = vmatpush.msra.mxu0 0.0
        %2379 = vmatpush.msra.mxu0 0.0
        %2380 = vmatpush.msra.mxu0 0.0
        %2381 = vmatpush.msra.mxu0 0.0
        %2382 = vmatpush.msra.mxu0 0.0
        %2383 = vmatpush.msra.mxu0 0.0
        %2384 = vmatpush.msra.mxu0 %v2366
        %2385 = vmatpush.msra.mxu0 %v2365
        %2386 = vmatpush.msra.mxu0 %v2364
        %2387 = vmatpush.msra.mxu0 %v2363
        %2388 = vmatmul.f32.gmra.mxu0 %v2110
        %v2389 = vpop.f32.mrf.mxu0
        %v2390 = vadd.f32 %v2370, %v2389
        %2391 = vmatmul.f32.gmra.mxu0 %v2113
        %v2392 = vpop.f32.mrf.mxu0
        %v2393 = vadd.f32 %v2370, %v2392
        %2394 = vdwg.mxu0
        %v2396 = vsel %vm1100, %v2324, 0
        %v2399 = vsel %vm1100, %v2327, 0
        %v2402 = vsel %vm1100, %v2357, 0
        %v2405 = vsel %vm1100, %v2360, 0
        %2407 = vmatpush.xpose.msra.mxu0 0.0
        %2408 = vmatpush.xpose.msra.mxu0 0.0
        %2409 = vmatpush.xpose.msra.mxu0 0.0
        %2410 = vmatpush.xpose.msra.mxu0 0.0
        %2411 = vmatpush.xpose.msra.mxu0 0.0
        %2412 = vmatpush.xpose.msra.mxu0 0.0
        %2413 = vmatpush.xpose.msra.mxu0 0.0
        %2414 = vmatpush.xpose.msra.mxu0 0.0
        %2415 = vmatpush.xpose.msra.mxu0 0.0
        %2416 = vmatpush.xpose.msra.mxu0 0.0
        %2417 = vmatpush.xpose.msra.mxu0 0.0
        %2418 = vmatpush.xpose.msra.mxu0 0.0
        %2419 = vmatpush.xpose.msra.mxu0 0.0
        %2420 = vmatpush.xpose.msra.mxu0 0.0
        %2421 = vmatpush.xpose.msra.mxu0 %v2405
        %2422 = vmatpush.xpose.msra.mxu0 %v2402
        %2423 = vmatmul.f32.gmra.mxu0 %v2396
        %v2424 = vpop.f32.mrf.mxu0
        %v2425 = vadd.f32 0.0, %v2424
        %2426 = vmatmul.f32.gmra.mxu0 %v2399
        %v2427 = vpop.f32.mrf.mxu0
        %v2428 = vadd.f32 0.0, %v2427
        %2429 = vdwg.mxu0
        %v2430 = vmul.f32 %v2425, 0.35355338
        %v2431 = vmul.f32 %v2428, 0.35355338
        %v2432 = vadd.f32 %v2430, %v1139
        %v2433 = vadd.f32 %v2431, %v1139
        %v2434 = vsel %vm1143, %v2432, -inf
        %2435 = vmax.xlane.f32.xlu0 %v2434
        %v2436 = vpop.xlane.xlu0 %2435
        %v2437 = vsel %vm1143, %v2433, -inf
        %2438 = vmax.xlane.f32.xlu0 %v2437
        %v2439 = vpop.xlane.xlu0 %2438
        %v2440 = vsub.f32 %v2432, %v2436
        %v2441 = vsub.f32 %v2433, %v2439
        %v2442 = vmul.f32 %v2440, 1.442695
        %v2443 = vpow.pop %v2442
        %v2444 = vmul.f32 %v2441, 1.442695
        %v2445 = vpow.pop %v2444
        %v2446 = vsel %vm1143, %v2443, 0.0
        %2447 = vadd.xlane.f32.xlu0 %v2446
        %v2448 = vpop.xlane.xlu0 %2447
        %v2449 = vsel %vm1143, %v2445, 0.0
        %2450 = vadd.xlane.f32.xlu0 %v2449
        %v2451 = vpop.xlane.xlu0 %2450
        %v2452 = vrcp.pop %v2448
        %v2453 = vrcp.pop %v2451
        %v2454 = vmul.f32 %v2443, %v2452
        %v2455 = vmul.f32 %v2445, %v2453
        %v2457 = vsel %vm1143, %v2454, 0
        %v2460 = vsel %vm1143, %v2455, 0
        %2462 = vmatpush.msra.mxu0 0.0
        %2463 = vmatpush.msra.mxu0 0.0
        %2464 = vmatpush.msra.mxu0 0.0
        %2465 = vmatpush.msra.mxu0 0.0
        %2466 = vmatpush.msra.mxu0 0.0
        %2467 = vmatpush.msra.mxu0 0.0
        %2468 = vmatpush.msra.mxu0 0.0
        %2469 = vmatpush.msra.mxu0 0.0
        %2470 = vmatpush.msra.mxu0 0.0
        %2471 = vmatpush.msra.mxu0 0.0
        %2472 = vmatpush.msra.mxu0 0.0
        %2473 = vmatpush.msra.mxu0 0.0
        %2474 = vmatpush.msra.mxu0 0.0
        %2475 = vmatpush.msra.mxu0 0.0
        %2476 = vmatpush.msra.mxu0 %v2393
        %2477 = vmatpush.msra.mxu0 %v2390
        %2478 = vmatmul.f32.gmra.mxu0 %v2457
        %v2479 = vpop.f32.mrf.mxu0
        %v2480 = vadd.f32 0.0, %v2479
        %2481 = vmatmul.f32.gmra.mxu0 %v2460
        %v2482 = vpop.f32.mrf.mxu0
        %v2483 = vadd.f32 0.0, %v2482
        %2484 = vdwg.mxu0
        %s2485 = scalar_lea.vmem [#allocation13], 40
        %v2486 = vld [vmem:[%s2485] sm:$0xff]
        %v2488 = vsel %vm1100, %v2480, 0
        %v2491 = vsel %vm1100, %v2483, 0
        %2493 = vmatpush.msra.mxu0 0.0
        %2494 = vmatpush.msra.mxu0 0.0
        %2495 = vmatpush.msra.mxu0 0.0
        %2496 = vmatpush.msra.mxu0 0.0
        %2497 = vmatpush.msra.mxu0 0.0
        %2498 = vmatpush.msra.mxu0 0.0
        %2499 = vmatpush.msra.mxu0 0.0
        %2500 = vmatpush.msra.mxu0 0.0
        %2501 = vmatpush.msra.mxu0 0.0
        %2502 = vmatpush.msra.mxu0 0.0
        %2503 = vmatpush.msra.mxu0 0.0
        %2504 = vmatpush.msra.mxu0 0.0
        %2505 = vmatpush.msra.mxu0 0.0
        %2506 = vmatpush.msra.mxu0 0.0
        %2507 = vmatpush.msra.mxu0 0.0
        %2508 = vmatpush.msra.mxu0 %v2486
        %2509 = vmatmul.f32.gmra.mxu0 %v2488
        %v2510 = vpop.f32.mrf.mxu0
        %v2511 = vadd.f32 0.0, %v2510
        %2512 = vmatmul.f32.gmra.mxu0 %v2491
        %v2513 = vpop.f32.mrf.mxu0
        %v2514 = vadd.f32 0.0, %v2513
        %2515 = vdwg.mxu0
        %v2517 = vsel %vm1100, %v2289, 0
        %v2520 = vsel %vm1100, %v2292, 0
        %2522 = vmatpush.msra.mxu0 0.0
        %2523 = vmatpush.msra.mxu0 0.0
        %2524 = vmatpush.msra.mxu0 0.0
        %2525 = vmatpush.msra.mxu0 0.0
        %2526 = vmatpush.msra.mxu0 0.0
        %2527 = vmatpush.msra.mxu0 0.0
        %2528 = vmatpush.msra.mxu0 0.0
        %2529 = vmatpush.msra.mxu0 0.0
        %2530 = vmatpush.msra.mxu0 0.0
        %2531 = vmatpush.msra.mxu0 0.0
        %2532 = vmatpush.msra.mxu0 0.0
        %2533 = vmatpush.msra.mxu0 0.0
        %2534 = vmatpush.msra.mxu0 0.0
        %2535 = vmatpush.msra.mxu0 0.0
        %2536 = vmatpush.msra.mxu0 0.0
        %2537 = vmatpush.msra.mxu0 %v2295
        %2538 = vmatmul.f32.gmra.mxu0 %v2517
        %v2539 = vpop.f32.mrf.mxu0
        %v2540 = vadd.f32 %v2511, %v2539
        %2541 = vmatmul.f32.gmra.mxu0 %v2520
        %v2542 = vpop.f32.mrf.mxu0
        %v2543 = vadd.f32 %v2514, %v2542
        %2544 = vdwg.mxu0
        %s2545 = scalar_lea.vmem [#allocation4], 192
        %v2546 = vld [vmem:[%s2545] sm:$0xff]
        %v2547 = vld [vmem:[%s2545 + $0x8] sm:$0xff]
        %v2548 = vld [vmem:[%s2545 + $0x10] sm:$0xff]
        %v2549 = vld [vmem:[%s2545 + $0x18] sm:$0xff]
        %s2550 = scalar_lea.vmem [#allocation6], 6
        %v2551 = vld [vmem:[%s2550] sm:$0x1]
        %v2553 = vperm.slane %v2551, 0
        %2555 = vmatpush.msra.mxu0 0.0
        %2556 = vmatpush.msra.mxu0 0.0
        %2557 = vmatpush.msra.mxu0 0.0
        %2558 = vmatpush.msra.mxu0 0.0
        %2559 = vmatpush.msra.mxu0 0.0
        %2560 = vmatpush.msra.mxu0 0.0
        %2561 = vmatpush.msra.mxu0 0.0
        %2562 = vmatpush.msra.mxu0 0.0
        %2563 = vmatpush.msra.mxu0 0.0
        %2564 = vmatpush.msra.mxu0 0.0
        %2565 = vmatpush.msra.mxu0 0.0
        %2566 = vmatpush.msra.mxu0 0.0
        %2567 = vmatpush.msra.mxu0 %v2549
        %2568 = vmatpush.msra.mxu0 %v2548
        %2569 = vmatpush.msra.mxu0 %v2547
        %2570 = vmatpush.msra.mxu0 %v2546
        %2571 = vmatmul.f32.gmra.mxu0 %v2110
        %v2572 = vpop.f32.mrf.mxu0
        %v2573 = vadd.f32 %v2553, %v2572
        %2574 = vmatmul.f32.gmra.mxu0 %v2113
        %v2575 = vpop.f32.mrf.mxu0
        %v2576 = vadd.f32 %v2553, %v2575
        %2577 = vdwg.mxu0
        %s2578 = scalar_lea.vmem [#allocation7], 192
        %v2579 = vld [vmem:[%s2578] sm:$0xff]
        %v2580 = vld [vmem:[%s2578 + $0x8] sm:$0xff]
        %v2581 = vld [vmem:[%s2578 + $0x10] sm:$0xff]
        %v2582 = vld [vmem:[%s2578 + $0x18] sm:$0xff]
        %s2583 = scalar_lea.vmem [#allocation9], 6
        %v2584 = vld [vmem:[%s2583] sm:$0x1]
        %v2586 = vperm.slane %v2584, 0
        %2588 = vmatpush.msra.mxu0 0.0
        %2589 = vmatpush.msra.mxu0 0.0
        %2590 = vmatpush.msra.mxu0 0.0
        %2591 = vmatpush.msra.mxu0 0.0
        %2592 = vmatpush.msra.mxu0 0.0
        %2593 = vmatpush.msra.mxu0 0.0
        %2594 = vmatpush.msra.mxu0 0.0
        %2595 = vmatpush.msra.mxu0 0.0
        %2596 = vmatpush.msra.mxu0 0.0
        %2597 = vmatpush.msra.mxu0 0.0
        %2598 = vmatpush.msra.mxu0 0.0
        %2599 = vmatpush.msra.mxu0 0.0
        %2600 = vmatpush.msra.mxu0 %v2582
        %2601 = vmatpush.msra.mxu0 %v2581
        %2602 = vmatpush.msra.mxu0 %v2580
        %2603 = vmatpush.msra.mxu0 %v2579
        %2604 = vmatmul.f32.gmra.mxu0 %v2110
        %v2605 = vpop.f32.mrf.mxu0
        %v2606 = vadd.f32 %v2586, %v2605
        %2607 = vmatmul.f32.gmra.mxu0 %v2113
        %v2608 = vpop.f32.mrf.mxu0
        %v2609 = vadd.f32 %v2586, %v2608
        %2610 = vdwg.mxu0
        %s2611 = scalar_lea.vmem [#allocation10], 192
        %v2612 = vld [vmem:[%s2611] sm:$0xff]
        %v2613 = vld [vmem:[%s2611 + $0x8] sm:$0xff]
        %v2614 = vld [vmem:[%s2611 + $0x10] sm:$0xff]
        %v2615 = vld [vmem:[%s2611 + $0x18] sm:$0xff]
        %s2616 = scalar_lea.vmem [#allocation12], 6
        %v2617 = vld [vmem:[%s2616] sm:$0x1]
        %v2619 = vperm.slane %v2617, 0
        %2621 = vmatpush.msra.mxu0 0.0
        %2622 = vmatpush.msra.mxu0 0.0
        %2623 = vmatpush.msra.mxu0 0.0
        %2624 = vmatpush.msra.mxu0 0.0
        %2625 = vmatpush.msra.mxu0 0.0
        %2626 = vmatpush.msra.mxu0 0.0
        %2627 = vmatpush.msra.mxu0 0.0
        %2628 = vmatpush.msra.mxu0 0.0
        %2629 = vmatpush.msra.mxu0 0.0
        %2630 = vmatpush.msra.mxu0 0.0
        %2631 = vmatpush.msra.mxu0 0.0
        %2632 = vmatpush.msra.mxu0 0.0
        %2633 = vmatpush.msra.mxu0 %v2615
        %2634 = vmatpush.msra.mxu0 %v2614
        %2635 = vmatpush.msra.mxu0 %v2613
        %2636 = vmatpush.msra.mxu0 %v2612
        %2637 = vmatmul.f32.gmra.mxu0 %v2110
        %v2638 = vpop.f32.mrf.mxu0
        %v2639 = vadd.f32 %v2619, %v2638
        %2640 = vmatmul.f32.gmra.mxu0 %v2113
        %v2641 = vpop.f32.mrf.mxu0
        %v2642 = vadd.f32 %v2619, %v2641
        %2643 = vdwg.mxu0
        %v2645 = vsel %vm1100, %v2573, 0
        %v2648 = vsel %vm1100, %v2576, 0
        %v2651 = vsel %vm1100, %v2606, 0
        %v2654 = vsel %vm1100, %v2609, 0
        %2656 = vmatpush.xpose.msra.mxu0 0.0
        %2657 = vmatpush.xpose.msra.mxu0 0.0
        %2658 = vmatpush.xpose.msra.mxu0 0.0
        %2659 = vmatpush.xpose.msra.mxu0 0.0
        %2660 = vmatpush.xpose.msra.mxu0 0.0
        %2661 = vmatpush.xpose.msra.mxu0 0.0
        %2662 = vmatpush.xpose.msra.mxu0 0.0
        %2663 = vmatpush.xpose.msra.mxu0 0.0
        %2664 = vmatpush.xpose.msra.mxu0 0.0
        %2665 = vmatpush.xpose.msra.mxu0 0.0
        %2666 = vmatpush.xpose.msra.mxu0 0.0
        %2667 = vmatpush.xpose.msra.mxu0 0.0
        %2668 = vmatpush.xpose.msra.mxu0 0.0
        %2669 = vmatpush.xpose.msra.mxu0 0.0
        %2670 = vmatpush.xpose.msra.mxu0 %v2654
        %2671 = vmatpush.xpose.msra.mxu0 %v2651
        %2672 = vmatmul.f32.gmra.mxu0 %v2645
        %v2673 = vpop.f32.mrf.mxu0
        %v2674 = vadd.f32 0.0, %v2673
        %2675 = vmatmul.f32.gmra.mxu0 %v2648
        %v2676 = vpop.f32.mrf.mxu0
        %v2677 = vadd.f32 0.0, %v2676
        %2678 = vdwg.mxu0
        %v2679 = vmul.f32 %v2674, 0.35355338
        %v2680 = vmul.f32 %v2677, 0.35355338
        %v2681 = vadd.f32 %v2679, %v1139
        %v2682 = vadd.f32 %v2680, %v1139
        %v2683 = vsel %vm1143, %v2681, -inf
        %2684 = vmax.xlane.f32.xlu0 %v2683
        %v2685 = vpop.xlane.xlu0 %2684
        %v2686 = vsel %vm1143, %v2682, -inf
        %2687 = vmax.xlane.f32.xlu0 %v2686
        %v2688 = vpop.xlane.xlu0 %2687
        %v2689 = vsub.f32 %v2681, %v2685
        %v2690 = vsub.f32 %v2682, %v2688
        %v2691 = vmul.f32 %v2689, 1.442695
        %v2692 = vpow.pop %v2691
        %v2693 = vmul.f32 %v2690, 1.442695
        %v2694 = vpow.pop %v2693
        %v2695 = vsel %vm1143, %v2692, 0.0
        %2696 = vadd.xlane.f32.xlu0 %v2695
        %v2697 = vpop.xlane.xlu0 %2696
        %v2698 = vsel %vm1143, %v2694, 0.0
        %2699 = vadd.xlane.f32.xlu0 %v2698
        %v2700 = vpop.xlane.xlu0 %2699
        %v2701 = vrcp.pop %v2697
        %v2702 = vrcp.pop %v2700
        %v2703 = vmul.f32 %v2692, %v2701
        %v2704 = vmul.f32 %v2694, %v2702
        %v2706 = vsel %vm1143, %v2703, 0
        %v2709 = vsel %vm1143, %v2704, 0
        %2711 = vmatpush.msra.mxu0 0.0
        %2712 = vmatpush.msra.mxu0 0.0
        %2713 = vmatpush.msra.mxu0 0.0
        %2714 = vmatpush.msra.mxu0 0.0
        %2715 = vmatpush.msra.mxu0 0.0
        %2716 = vmatpush.msra.mxu0 0.0
        %2717 = vmatpush.msra.mxu0 0.0
        %2718 = vmatpush.msra.mxu0 0.0
        %2719 = vmatpush.msra.mxu0 0.0
        %2720 = vmatpush.msra.mxu0 0.0
        %2721 = vmatpush.msra.mxu0 0.0
        %2722 = vmatpush.msra.mxu0 0.0
        %2723 = vmatpush.msra.mxu0 0.0
        %2724 = vmatpush.msra.mxu0 0.0
        %2725 = vmatpush.msra.mxu0 %v2642
        %2726 = vmatpush.msra.mxu0 %v2639
        %2727 = vmatmul.f32.gmra.mxu0 %v2706
        %v2728 = vpop.f32.mrf.mxu0
        %v2729 = vadd.f32 0.0, %v2728
        %2730 = vmatmul.f32.gmra.mxu0 %v2709
        %v2731 = vpop.f32.mrf.mxu0
        %v2732 = vadd.f32 0.0, %v2731
        %2733 = vdwg.mxu0
        %s2734 = scalar_lea.vmem [#allocation13], 48
        %v2735 = vld [vmem:[%s2734] sm:$0xff]
        %v2737 = vsel %vm1100, %v2729, 0
        %v2740 = vsel %vm1100, %v2732, 0
        %2742 = vmatpush.msra.mxu0 0.0
        %2743 = vmatpush.msra.mxu0 0.0
        %2744 = vmatpush.msra.mxu0 0.0
        %2745 = vmatpush.msra.mxu0 0.0
        %2746 = vmatpush.msra.mxu0 0.0
        %2747 = vmatpush.msra.mxu0 0.0
        %2748 = vmatpush.msra.mxu0 0.0
        %2749 = vmatpush.msra.mxu0 0.0
        %2750 = vmatpush.msra.mxu0 0.0
        %2751 = vmatpush.msra.mxu0 0.0
        %2752 = vmatpush.msra.mxu0 0.0
        %2753 = vmatpush.msra.mxu0 0.0
        %2754 = vmatpush.msra.mxu0 0.0
        %2755 = vmatpush.msra.mxu0 0.0
        %2756 = vmatpush.msra.mxu0 0.0
        %2757 = vmatpush.msra.mxu0 %v2735
        %2758 = vmatmul.f32.gmra.mxu0 %v2737
        %v2759 = vpop.f32.mrf.mxu0
        %v2760 = vadd.f32 0.0, %v2759
        %2761 = vmatmul.f32.gmra.mxu0 %v2740
        %v2762 = vpop.f32.mrf.mxu0
        %v2763 = vadd.f32 0.0, %v2762
        %2764 = vdwg.mxu0
        %v2765 = vadd.f32 %v2540, %v2760
        %v2766 = vadd.f32 %v2543, %v2763
        %s2767 = scalar_lea.vmem [#allocation4], 224
        %v2768 = vld [vmem:[%s2767] sm:$0xff]
        %v2769 = vld [vmem:[%s2767 + $0x8] sm:$0xff]
        %v2770 = vld [vmem:[%s2767 + $0x10] sm:$0xff]
        %v2771 = vld [vmem:[%s2767 + $0x18] sm:$0xff]
        %s2772 = scalar_lea.vmem [#allocation6], 7
        %v2773 = vld [vmem:[%s2772] sm:$0x1]
        %v2775 = vperm.slane %v2773, 0
        %2777 = vmatpush.msra.mxu0 0.0
        %2778 = vmatpush.msra.mxu0 0.0
        %2779 = vmatpush.msra.mxu0 0.0
        %2780 = vmatpush.msra.mxu0 0.0
        %2781 = vmatpush.msra.mxu0 0.0
        %2782 = vmatpush.msra.mxu0 0.0
        %2783 = vmatpush.msra.mxu0 0.0
        %2784 = vmatpush.msra.mxu0 0.0
        %2785 = vmatpush.msra.mxu0 0.0
        %2786 = vmatpush.msra.mxu0 0.0
        %2787 = vmatpush.msra.mxu0 0.0
        %2788 = vmatpush.msra.mxu0 0.0
        %2789 = vmatpush.msra.mxu0 %v2771
        %2790 = vmatpush.msra.mxu0 %v2770
        %2791 = vmatpush.msra.mxu0 %v2769
        %2792 = vmatpush.msra.mxu0 %v2768
        %2793 = vmatmul.f32.gmra.mxu0 %v2110
        %v2794 = vpop.f32.mrf.mxu0
        %v2795 = vadd.f32 %v2775, %v2794
        %2796 = vmatmul.f32.gmra.mxu0 %v2113
        %v2797 = vpop.f32.mrf.mxu0
        %v2798 = vadd.f32 %v2775, %v2797
        %2799 = vdwg.mxu0
        %s2800 = scalar_lea.vmem [#allocation7], 224
        %v2801 = vld [vmem:[%s2800] sm:$0xff]
        %v2802 = vld [vmem:[%s2800 + $0x8] sm:$0xff]
        %v2803 = vld [vmem:[%s2800 + $0x10] sm:$0xff]
        %v2804 = vld [vmem:[%s2800 + $0x18] sm:$0xff]
        %s2805 = scalar_lea.vmem [#allocation9], 7
        %v2806 = vld [vmem:[%s2805] sm:$0x1]
        %v2808 = vperm.slane %v2806, 0
        %2810 = vmatpush.msra.mxu0 0.0
        %2811 = vmatpush.msra.mxu0 0.0
        %2812 = vmatpush.msra.mxu0 0.0
        %2813 = vmatpush.msra.mxu0 0.0
        %2814 = vmatpush.msra.mxu0 0.0
        %2815 = vmatpush.msra.mxu0 0.0
        %2816 = vmatpush.msra.mxu0 0.0
        %2817 = vmatpush.msra.mxu0 0.0
        %2818 = vmatpush.msra.mxu0 0.0
        %2819 = vmatpush.msra.mxu0 0.0
        %2820 = vmatpush.msra.mxu0 0.0
        %2821 = vmatpush.msra.mxu0 0.0
        %2822 = vmatpush.msra.mxu0 %v2804
        %2823 = vmatpush.msra.mxu0 %v2803
        %2824 = vmatpush.msra.mxu0 %v2802
        %2825 = vmatpush.msra.mxu0 %v2801
        %2826 = vmatmul.f32.gmra.mxu0 %v2110
        %v2827 = vpop.f32.mrf.mxu0
        %v2828 = vadd.f32 %v2808, %v2827
        %2829 = vmatmul.f32.gmra.mxu0 %v2113
        %v2830 = vpop.f32.mrf.mxu0
        %v2831 = vadd.f32 %v2808, %v2830
        %2832 = vdwg.mxu0
        %s2833 = scalar_lea.vmem [#allocation10], 224
        %v2834 = vld [vmem:[%s2833] sm:$0xff]
        %v2835 = vld [vmem:[%s2833 + $0x8] sm:$0xff]
        %v2836 = vld [vmem:[%s2833 + $0x10] sm:$0xff]
        %v2837 = vld [vmem:[%s2833 + $0x18] sm:$0xff]
        %s2838 = scalar_lea.vmem [#allocation12], 7
        %v2839 = vld [vmem:[%s2838] sm:$0x1]
        %v2841 = vperm.slane %v2839, 0
        %2843 = vmatpush.msra.mxu0 0.0
        %2844 = vmatpush.msra.mxu0 0.0
        %2845 = vmatpush.msra.mxu0 0.0
        %2846 = vmatpush.msra.mxu0 0.0
        %2847 = vmatpush.msra.mxu0 0.0
        %2848 = vmatpush.msra.mxu0 0.0
        %2849 = vmatpush.msra.mxu0 0.0
        %2850 = vmatpush.msra.mxu0 0.0
        %2851 = vmatpush.msra.mxu0 0.0
        %2852 = vmatpush.msra.mxu0 0.0
        %2853 = vmatpush.msra.mxu0 0.0
        %2854 = vmatpush.msra.mxu0 0.0
        %2855 = vmatpush.msra.mxu0 %v2837
        %2856 = vmatpush.msra.mxu0 %v2836
        %2857 = vmatpush.msra.mxu0 %v2835
        %2858 = vmatpush.msra.mxu0 %v2834
        %2859 = vmatmul.f32.gmra.mxu0 %v2110
        %v2860 = vpop.f32.mrf.mxu0
        %v2861 = vadd.f32 %v2841, %v2860
        %2862 = vmatmul.f32.gmra.mxu0 %v2113
        %v2863 = vpop.f32.mrf.mxu0
        %v2864 = vadd.f32 %v2841, %v2863
        %2865 = vdwg.mxu0
        %v2867 = vsel %vm1100, %v2795, 0
        %v2870 = vsel %vm1100, %v2798, 0
        %v2873 = vsel %vm1100, %v2828, 0
        %v2876 = vsel %vm1100, %v2831, 0
        %2878 = vmatpush.xpose.msra.mxu0 0.0
        %2879 = vmatpush.xpose.msra.mxu0 0.0
        %2880 = vmatpush.xpose.msra.mxu0 0.0
        %2881 = vmatpush.xpose.msra.mxu0 0.0
        %2882 = vmatpush.xpose.msra.mxu0 0.0
        %2883 = vmatpush.xpose.msra.mxu0 0.0
        %2884 = vmatpush.xpose.msra.mxu0 0.0
        %2885 = vmatpush.xpose.msra.mxu0 0.0
        %2886 = vmatpush.xpose.msra.mxu0 0.0
        %2887 = vmatpush.xpose.msra.mxu0 0.0
        %2888 = vmatpush.xpose.msra.mxu0 0.0
        %2889 = vmatpush.xpose.msra.mxu0 0.0
        %2890 = vmatpush.xpose.msra.mxu0 0.0
        %2891 = vmatpush.xpose.msra.mxu0 0.0
        %2892 = vmatpush.xpose.msra.mxu0 %v2876
        %2893 = vmatpush.xpose.msra.mxu0 %v2873
        %2894 = vmatmul.f32.gmra.mxu0 %v2867
        %v2895 = vpop.f32.mrf.mxu0
        %v2896 = vadd.f32 0.0, %v2895
        %2897 = vmatmul.f32.gmra.mxu0 %v2870
        %v2898 = vpop.f32.mrf.mxu0
        %v2899 = vadd.f32 0.0, %v2898
        %2900 = vdwg.mxu0
        %v2901 = vmul.f32 %v2896, 0.35355338
        %v2902 = vmul.f32 %v2899, 0.35355338
        %v2903 = vadd.f32 %v2901, %v1139
        %v2904 = vadd.f32 %v2902, %v1139
        %v2905 = vsel %vm1143, %v2903, -inf
        %2906 = vmax.xlane.f32.xlu0 %v2905
        %v2907 = vpop.xlane.xlu0 %2906
        %v2908 = vsel %vm1143, %v2904, -inf
        %2909 = vmax.xlane.f32.xlu0 %v2908
        %v2910 = vpop.xlane.xlu0 %2909
        %v2911 = vsub.f32 %v2903, %v2907
        %v2912 = vsub.f32 %v2904, %v2910
        %v2913 = vmul.f32 %v2911, 1.442695
        %v2914 = vpow.pop %v2913
        %v2915 = vmul.f32 %v2912, 1.442695
        %v2916 = vpow.pop %v2915
        %v2917 = vsel %vm1143, %v2914, 0.0
        %2918 = vadd.xlane.f32.xlu0 %v2917
        %v2919 = vpop.xlane.xlu0 %2918
        %v2920 = vsel %vm1143, %v2916, 0.0
        %2921 = vadd.xlane.f32.xlu0 %v2920
        %v2922 = vpop.xlane.xlu0 %2921
        %v2923 = vrcp.pop %v2919
        %v2924 = vrcp.pop %v2922
        %v2925 = vmul.f32 %v2914, %v2923
        %v2926 = vmul.f32 %v2916, %v2924
        %v2928 = vsel %vm1143, %v2925, 0
        %v2931 = vsel %vm1143, %v2926, 0
        %2933 = vmatpush.msra.mxu0 0.0
        %2934 = vmatpush.msra.mxu0 0.0
        %2935 = vmatpush.msra.mxu0 0.0
        %2936 = vmatpush.msra.mxu0 0.0
        %2937 = vmatpush.msra.mxu0 0.0
        %2938 = vmatpush.msra.mxu0 0.0
        %2939 = vmatpush.msra.mxu0 0.0
        %2940 = vmatpush.msra.mxu0 0.0
        %2941 = vmatpush.msra.mxu0 0.0
        %2942 = vmatpush.msra.mxu0 0.0
        %2943 = vmatpush.msra.mxu0 0.0
        %2944 = vmatpush.msra.mxu0 0.0
        %2945 = vmatpush.msra.mxu0 0.0
        %2946 = vmatpush.msra.mxu0 0.0
        %2947 = vmatpush.msra.mxu0 %v2864
        %2948 = vmatpush.msra.mxu0 %v2861
        %2949 = vmatmul.f32.gmra.mxu0 %v2928
        %v2950 = vpop.f32.mrf.mxu0
        %v2951 = vadd.f32 0.0, %v2950
        %2952 = vmatmul.f32.gmra.mxu0 %v2931
        %v2953 = vpop.f32.mrf.mxu0
        %v2954 = vadd.f32 0.0, %v2953
        %2955 = vdwg.mxu0
        %s2956 = scalar_lea.vmem [#allocation13], 56
        %v2957 = vld [vmem:[%s2956] sm:$0xff]
        %v2959 = vsel %vm1100, %v2951, 0
        %v2962 = vsel %vm1100, %v2954, 0
        %2964 = vmatpush.msra.mxu0 0.0
        %2965 = vmatpush.msra.mxu0 0.0
        %2966 = vmatpush.msra.mxu0 0.0
        %2967 = vmatpush.msra.mxu0 0.0
        %2968 = vmatpush.msra.mxu0 0.0
        %2969 = vmatpush.msra.mxu0 0.0
        %2970 = vmatpush.msra.mxu0 0.0
        %2971 = vmatpush.msra.mxu0 0.0
        %2972 = vmatpush.msra.mxu0 0.0
        %2973 = vmatpush.msra.mxu0 0.0
        %2974 = vmatpush.msra.mxu0 0.0
        %2975 = vmatpush.msra.mxu0 0.0
        %2976 = vmatpush.msra.mxu0 0.0
        %2977 = vmatpush.msra.mxu0 0.0
        %2978 = vmatpush.msra.mxu0 0.0
        %2979 = vmatpush.msra.mxu0 %v2957
        %2980 = vmatmul.f32.gmra.mxu0 %v2959
        %v2981 = vpop.f32.mrf.mxu0
        %v2982 = vadd.f32 0.0, %v2981
        %2983 = vmatmul.f32.gmra.mxu0 %v2962
        %v2984 = vpop.f32.mrf.mxu0
        %v2985 = vadd.f32 0.0, %v2984
        %2986 = vdwg.mxu0
        %v2987 = vadd.f32 %v2765, %v2982
        %v2988 = vadd.f32 %v2766, %v2985
        %v2989 = vadd.f32 %v2097, %v2987
        %v2990 = vadd.f32 %v2098, %v2988
        %s2991 = scalar_lea.vmem [#allocation15], 1
        %v2992 = vld [vmem:[%s2991] sm:$0x1]
        %v2994 = vperm.slane %v2992, 0
        %v2996 = vadd.f32 %v2989, %v2994
        %v2997 = vadd.f32 %v2990, %v2994
        %s2998 = scalar_lea.vmem %s11, 1
        %v2999 = vld [vmem:[%s2998] sm:$0x1]
        %s3000 = scalar_lea.vmem %s12, 1
        %v3001 = vld [vmem:[%s3000] sm:$0x1]
        %v3002 = vsel %vm1008, %v2996, 0.0
        %3003 = vadd.xlane.f32.xlu0 %v3002
        %v3004 = vpop.xlane.xlu0 %3003
        %v3005 = vsel %vm1008, %v2997, 0.0
        %3006 = vadd.xlane.f32.xlu0 %v3005
        %v3007 = vpop.xlane.xlu0 %3006
        %v3008 = vmul.f32 %v3004, %v1911
        %v3009 = vmul.f32 %v3007, %v1911
        %v3010 = vsub.f32 %v2996, %v3008
        %v3011 = vsub.f32 %v2997, %v3009
        %v3012 = vmul.f32 %v3010, %v3010
        %v3013 = vmul.f32 %v3011, %v3011
        %v3014 = vsel %vm1008, %v3012, 0.0
        %3015 = vadd.xlane.f32.xlu0 %v3014
        %v3016 = vpop.xlane.xlu0 %3015
        %v3017 = vsel %vm1008, %v3013, 0.0
        %3018 = vadd.xlane.f32.xlu0 %v3017
        %v3019 = vpop.xlane.xlu0 %3018
        %v3020 = vmul.f32 %v3016, %v1911
        %v3021 = vmul.f32 %v3019, %v1911
        %v3022 = vadd.f32 %v3020, 1e-05
        %v3023 = vadd.f32 %v3021, 1e-05
        %v3024 = vrsqrt.pop %v3022
        %v3025 = vmul.f32 %v3024, %v3022
        %v3026 = vmul.f32 %v3025, %v3024
        %v3027 = vmul.f32 0.5, %v3026
        %v3028 = vsub.f32 1.5, %v3027
        %v3029 = vmul.f32 %v3024, %v3028
        %vm3030 = vweird.f32 %v3022
        %vm3031 = vweird.f32 %v3024
        %vm3032 = vmor %vm3030, %vm3031
        %v3033 = vsel %vm3032, %v3024, %v3029
        %v3034 = vrsqrt.pop %v3023
        %v3035 = vmul.f32 %v3034, %v3023
        %v3036 = vmul.f32 %v3035, %v3034
        %v3037 = vmul.f32 0.5, %v3036
        %v3038 = vsub.f32 1.5, %v3037
        %v3039 = vmul.f32 %v3034, %v3038
        %vm3040 = vweird.f32 %v3023
        %vm3041 = vweird.f32 %v3034
        %vm3042 = vmor %vm3040, %vm3041
        %v3043 = vsel %vm3042, %v3034, %v3039
        %v3044 = vmul.f32 %v3010, %v3033
        %v3045 = vmul.f32 %v3011, %v3043
        %v3047 = vperm.slane %v2999, 0
        %v3049 = vmul.f32 %v3044, %v3047
        %v3050 = vmul.f32 %v3045, %v3047
        %v3052 = vperm.slane %v3001, 0
        %v3054 = vadd.f32 %v3049, %v3052
        %v3055 = vadd.f32 %v3050, %v3052
        %s3056 = scalar_lea.vmem [#allocation16], 32
        %v3057 = vld [vmem:[%s3056] sm:$0xff]
        %v3058 = vld [vmem:[%s3056 + $0x8] sm:$0xff]
        %v3059 = vld [vmem:[%s3056 + $0x10] sm:$0xff]
        %v3060 = vld [vmem:[%s3056 + $0x18] sm:$0xff]
        %s3061 = scalar_lea.vmem [#allocation18], 1
        %v3062 = vld [vmem:[%s3061] sm:$0x1]
        %v3064 = vperm.slane %v3062, 0
        %v3067 = vsel %vm1008, %v3054, 0
        %v3070 = vsel %vm1008, %v3055, 0
        %3072 = vmatpush.msra.mxu0 0.0
        %3073 = vmatpush.msra.mxu0 0.0
        %3074 = vmatpush.msra.mxu0 0.0
        %3075 = vmatpush.msra.mxu0 0.0
        %3076 = vmatpush.msra.mxu0 0.0
        %3077 = vmatpush.msra.mxu0 0.0
        %3078 = vmatpush.msra.mxu0 0.0
        %3079 = vmatpush.msra.mxu0 0.0
        %3080 = vmatpush.msra.mxu0 0.0
        %3081 = vmatpush.msra.mxu0 0.0
        %3082 = vmatpush.msra.mxu0 0.0
        %3083 = vmatpush.msra.mxu0 0.0
        %3084 = vmatpush.msra.mxu0 %v3060
        %3085 = vmatpush.msra.mxu0 %v3059
        %3086 = vmatpush.msra.mxu0 %v3058
        %3087 = vmatpush.msra.mxu0 %v3057
        %3088 = vmatmul.f32.gmra.mxu0 %v3067
        %v3089 = vpop.f32.mrf.mxu0
        %v3090 = vadd.f32 %v3064, %v3089
        %3091 = vmatmul.f32.gmra.mxu0 %v3070
        %v3092 = vpop.f32.mrf.mxu0
        %v3093 = vadd.f32 %v3064, %v3092
        %3094 = vdwg.mxu0
        %v3095 = vmax.f32 %v3090, 0.0
        %v3096 = vmax.f32 %v3093, 0.0
        %s3097 = scalar_lea.vmem [#allocation19], 64
        %v3098 = vld [vmem:[%s3097] sm:$0xff]
        %v3099 = vld [vmem:[%s3097 + $0x8] sm:$0xff]
        %v3100 = vld [vmem:[%s3097 + $0x10] sm:$0xff]
        %v3101 = vld [vmem:[%s3097 + $0x18] sm:$0xff]
        %v3102 = vld [vmem:[%s3097 + $0x20] sm:$0xff]
        %v3103 = vld [vmem:[%s3097 + $0x28] sm:$0xff]
        %v3104 = vld [vmem:[%s3097 + $0x30] sm:$0xff]
        %v3105 = vld [vmem:[%s3097 + $0x38] sm:$0xff]
        %s3106 = scalar_lea.vmem [#allocation21], 1
        %v3107 = vld [vmem:[%s3106] sm:$0x1]
        %v3109 = vperm.slane %v3107, 0
        %v3112 = vsel %vm2011, %v3095, 0
        %v3115 = vsel %vm2011, %v3096, 0
        %3117 = vmatpush.msra.mxu0 0.0
        %3118 = vmatpush.msra.mxu0 0.0
        %3119 = vmatpush.msra.mxu0 0.0
        %3120 = vmatpush.msra.mxu0 0.0
        %3121 = vmatpush.msra.mxu0 0.0
        %3122 = vmatpush.msra.mxu0 0.0
        %3123 = vmatpush.msra.mxu0 0.0
        %3124 = vmatpush.msra.mxu0 0.0
        %3125 = vmatpush.msra.mxu0 %v3105
        %3126 = vmatpush.msra.mxu0 %v3104
        %3127 = vmatpush.msra.mxu0 %v3103
        %3128 = vmatpush.msra.mxu0 %v3102
        %3129 = vmatpush.msra.mxu0 %v3101
        %3130 = vmatpush.msra.mxu0 %v3100
        %3131 = vmatpush.msra.mxu0 %v3099
        %3132 = vmatpush.msra.mxu0 %v3098
        %3133 = vmatmul.f32.gmra.mxu0 %v3112
        %v3134 = vpop.f32.mrf.mxu0
        %v3135 = vadd.f32 %v3109, %v3134
        %3136 = vmatmul.f32.gmra.mxu0 %v3115
        %v3137 = vpop.f32.mrf.mxu0
        %v3138 = vadd.f32 %v3109, %v3137
        %3139 = vdwg.mxu0
        %v3140 = vadd.f32 %v3054, %v3135
        %v3141 = vadd.f32 %v3055, %v3138
        %s3142 = scalar_lea.vmem %s17, 1
        %v3143 = vld [vmem:[%s3142] sm:$0x1]
        %s3144 = scalar_lea.vmem %s18, 1
        %v3145 = vld [vmem:[%s3144] sm:$0x1]
        %v3146 = vsel %vm1008, %v3140, 0.0
        %3147 = vadd.xlane.f32.xlu0 %v3146
        %v3148 = vpop.xlane.xlu0 %3147
        %v3149 = vsel %vm1008, %v3141, 0.0
        %3150 = vadd.xlane.f32.xlu0 %v3149
        %v3151 = vpop.xlane.xlu0 %3150
        %v3152 = vmul.f32 %v3148, %v1911
        %v3153 = vmul.f32 %v3151, %v1911
        %v3154 = vsub.f32 %v3140, %v3152
        %v3155 = vsub.f32 %v3141, %v3153
        %v3156 = vmul.f32 %v3154, %v3154
        %v3157 = vmul.f32 %v3155, %v3155
        %v3158 = vsel %vm1008, %v3156, 0.0
        %3159 = vadd.xlane.f32.xlu0 %v3158
        %v3160 = vpop.xlane.xlu0 %3159
        %v3161 = vsel %vm1008, %v3157, 0.0
        %3162 = vadd.xlane.f32.xlu0 %v3161
        %v3163 = vpop.xlane.xlu0 %3162
        %v3164 = vmul.f32 %v3160, %v1911
        %v3165 = vmul.f32 %v3163, %v1911
        %v3166 = vadd.f32 %v3164, 1e-05
        %v3167 = vadd.f32 %v3165, 1e-05
        %v3168 = vrsqrt.pop %v3166
        %v3169 = vmul.f32 %v3168, %v3166
        %v3170 = vmul.f32 %v3169, %v3168
        %v3171 = vmul.f32 0.5, %v3170
        %v3172 = vsub.f32 1.5, %v3171
        %v3173 = vmul.f32 %v3168, %v3172
        %vm3174 = vweird.f32 %v3166
        %vm3175 = vweird.f32 %v3168
        %vm3176 = vmor %vm3174, %vm3175
        %v3177 = vsel %vm3176, %v3168, %v3173
        %v3178 = vrsqrt.pop %v3167
        %v3179 = vmul.f32 %v3178, %v3167
        %v3180 = vmul.f32 %v3179, %v3178
        %v3181 = vmul.f32 0.5, %v3180
        %v3182 = vsub.f32 1.5, %v3181
        %v3183 = vmul.f32 %v3178, %v3182
        %vm3184 = vweird.f32 %v3167
        %vm3185 = vweird.f32 %v3178
        %vm3186 = vmor %vm3184, %vm3185
        %v3187 = vsel %vm3186, %v3178, %v3183
        %v3188 = vmul.f32 %v3154, %v3177
        %v3189 = vmul.f32 %v3155, %v3187
        %v3191 = vperm.slane %v3143, 0
        %v3193 = vmul.f32 %v3188, %v3191
        %v3194 = vmul.f32 %v3189, %v3191
        %v3196 = vperm.slane %v3145, 0
        %v3198 = vadd.f32 %v3193, %v3196
        %v3199 = vadd.f32 %v3194, %v3196
        %v3200 = vld [vmem:[%s19] sm:$0x1]
        %v3201 = vld [vmem:[%s20] sm:$0x1]
        %v3202 = vsel %vm1008, %v3198, 0.0
        %3203 = vadd.xlane.f32.xlu0 %v3202
        %v3204 = vpop.xlane.xlu0 %3203
        %v3205 = vsel %vm1008, %v3199, 0.0
        %3206 = vadd.xlane.f32.xlu0 %v3205
        %v3207 = vpop.xlane.xlu0 %3206
        %v3208 = vmul.f32 %v3204, %v1911
        %v3209 = vmul.f32 %v3207, %v1911
        %v3210 = vsub.f32 %v3198, %v3208
        %v3211 = vsub.f32 %v3199, %v3209
        %v3212 = vmul.f32 %v3210, %v3210
        %v3213 = vmul.f32 %v3211, %v3211
        %v3214 = vsel %vm1008, %v3212, 0.0
        %3215 = vadd.xlane.f32.xlu0 %v3214
        %v3216 = vpop.xlane.xlu0 %3215
        %v3217 = vsel %vm1008, %v3213, 0.0
        %3218 = vadd.xlane.f32.xlu0 %v3217
        %v3219 = vpop.xlane.xlu0 %3218
        %v3220 = vmul.f32 %v3216, %v1911
        %v3221 = vmul.f32 %v3219, %v1911
        %v3222 = vadd.f32 %v3220, 1e-05
        %v3223 = vadd.f32 %v3221, 1e-05
        %v3224 = vrsqrt.pop %v3222
        %v3225 = vmul.f32 %v3224, %v3222
        %v3226 = vmul.f32 %v3225, %v3224
        %v3227 = vmul.f32 0.5, %v3226
        %v3228 = vsub.f32 1.5, %v3227
        %v3229 = vmul.f32 %v3224, %v3228
        %vm3230 = vweird.f32 %v3222
        %vm3231 = vweird.f32 %v3224
        %vm3232 = vmor %vm3230, %vm3231
        %v3233 = vsel %vm3232, %v3224, %v3229
        %v3234 = vrsqrt.pop %v3223
        %v3235 = vmul.f32 %v3234, %v3223
        %v3236 = vmul.f32 %v3235, %v3234
        %v3237 = vmul.f32 0.5, %v3236
        %v3238 = vsub.f32 1.5, %v3237
        %v3239 = vmul.f32 %v3234, %v3238
        %vm3240 = vweird.f32 %v3223
        %vm3241 = vweird.f32 %v3234
        %vm3242 = vmor %vm3240, %vm3241
        %v3243 = vsel %vm3242, %v3234, %v3239
        %v3244 = vmul.f32 %v3210, %v3233
        %v3245 = vmul.f32 %v3211, %v3243
        %v3247 = vperm.slane %v3200, 0
        %v3249 = vmul.f32 %v3244, %v3247
        %v3250 = vmul.f32 %v3245, %v3247
        %v3252 = vperm.slane %v3201, 0
        %v3254 = vadd.f32 %v3249, %v3252
        %v3255 = vadd.f32 %v3250, %v3252
        %v3256 = vld [vmem:[#allocation22] sm:$0xff]
        %v3257 = vld [vmem:[#allocation22 + $0x8] sm:$0xff]
        %v3258 = vld [vmem:[#allocation22 + $0x10] sm:$0xff]
        %v3259 = vld [vmem:[#allocation22 + $0x18] sm:$0xff]
        %v3260 = vld [vmem:[#allocation24] sm:$0x1]
        %v3262 = vperm.slane %v3260, 0
        %v3265 = vsel %vm1008, %v3254, 0
        %v3268 = vsel %vm1008, %v3255, 0
        %3270 = vmatpush.msra.mxu0 0.0
        %3271 = vmatpush.msra.mxu0 0.0
        %3272 = vmatpush.msra.mxu0 0.0
        %3273 = vmatpush.msra.mxu0 0.0
        %3274 = vmatpush.msra.mxu0 0.0
        %3275 = vmatpush.msra.mxu0 0.0
        %3276 = vmatpush.msra.mxu0 0.0
        %3277 = vmatpush.msra.mxu0 0.0
        %3278 = vmatpush.msra.mxu0 0.0
        %3279 = vmatpush.msra.mxu0 0.0
        %3280 = vmatpush.msra.mxu0 0.0
        %3281 = vmatpush.msra.mxu0 0.0
        %3282 = vmatpush.msra.mxu0 %v3259
        %3283 = vmatpush.msra.mxu0 %v3258
        %3284 = vmatpush.msra.mxu0 %v3257
        %3285 = vmatpush.msra.mxu0 %v3256
        %3286 = vmatmul.f32.gmra.mxu0 %v3265
        %v3287 = vpop.f32.mrf.mxu0
        %v3288 = vadd.f32 %v3262, %v3287
        %3289 = vmatmul.f32.gmra.mxu0 %v3268
        %v3290 = vpop.f32.mrf.mxu0
        %v3291 = vadd.f32 %v3262, %v3290
        %3292 = vdwg.mxu0
        %vm3293 = vcmask 39936
        %v3294 = vsel %vm3293, %v3288, -inf
        %3295 = vmax.xlane.f32.xlu0 %v3294
        %v3296 = vpop.xlane.xlu0 %3295
        %v3297 = vsel %vm3293, %v3291, -inf
        %3298 = vmax.xlane.f32.xlu0 %v3297
        %v3299 = vpop.xlane.xlu0 %3298
        %v3300 = vsub.f32 %v3288, %v3296
        %v3301 = vsub.f32 %v3291, %v3299
        %v3302 = vmul.f32 %v3300, 1.442695
        %v3303 = vpow.pop %v3302
        %v3304 = vmul.f32 %v3301, 1.442695
        %v3305 = vpow.pop %v3304
        %v3306 = vsel %vm3293, %v3303, 0.0
        %3307 = vadd.xlane.f32.xlu0 %v3306
        %v3308 = vpop.xlane.xlu0 %3307
        %v3309 = vsel %vm3293, %v3305, 0.0
        %3310 = vadd.xlane.f32.xlu0 %v3309
        %v3311 = vpop.xlane.xlu0 %3310
        %v3312 = vlog2.pop %v3308
        %v3313 = vmul.f32 %v3312, 0.6931472
        %v3314 = vlog2.pop %v3311
        %v3315 = vmul.f32 %v3314, 0.6931472
        %v3316 = vsub.f32 %v3300, %v3313
        %v3317 = vsub.f32 %v3301, %v3315
        %3318 = vst.msk [vmem:[%s988] sm:$0xff] %vm3293, %v3316
        %3319 = vst.msk [vmem:[%s988 + $0x8] sm:$0xff] %vm3293, %v3317
        %p3320 = scmp.lt.s32.totalorder %s44, 1
        %s3321 = scalar_select %p3320, %s44, 1
        %s3322 = smul.addr %s3321, 2
        %s3323 = smul.addr %s3322, 8
        %s3324 = scalar_lea.vmem %s23, %s3323
        // Predicated region
        $region173: #{agcn_transformer_forward.3} parent=111 // pred_check
          %p3325 = pneg %p560
        $region174: #{agcn_transformer_forward.3} parent=111 // pred_check_branch
          %3327 = sbr.rel (%p3325) target = $region176
        $region175: #{agcn_transformer_forward.3} parent=111 // pred_region
          _
        $region176: #{agcn_transformer_forward.3} parent=111 // pred_fallthru
          _
      $region112: #{agcn_transformer_forward.3} parent=5 // pred_fallthru
        _
      %p3328 = scmp.le.s32.totalorder 2, %s39
      // Predicated region
      $region177: #{agcn_transformer_forward.3} parent=5 // pred_check
        %p3329 = pneg %p3328
      $region178: #{agcn_transformer_forward.3} parent=5 // pred_check_branch
        %3331 = sbr.rel (%p3329) target = $region180
      $region179: #{agcn_transformer_forward.3} parent=5 // pred_region
        %s3332 = ssub.s32 %s39, 2
        // Predicated region
        $region181: #{agcn_transformer_forward.3} parent=179 // pred_check
          %p3333 = pneg %p566
        $region182: #{agcn_transformer_forward.3} parent=179 // pred_check_branch
          %3335 = sbr.rel (%p3333) target = $region184
        $region183: #{agcn_transformer_forward.3} parent=179 // pred_region
          %p3336 = scmp.lt.s32.totalorder %s45, 1
          %s3337 = scalar_select %p3336, %s45, 1
          %s3338 = smul.addr %s3337, 2
          %s3339 = smul.addr %s3338, 8
          %s3340 = scalar_lea.vmem %s23, %s3339
        $region184: #{agcn_transformer_forward.3} parent=179 // pred_fallthru
          _
      $region180: #{agcn_transformer_forward.3} parent=5 // pred_fallthru
        _
    $region6: #{agcn_transformer_forward.3} parent=1 // loop_footer
      %s43 = sadd.s32 1, %s39
    $region7: #{agcn_transformer_forward.3} parent=1 // loop_footer_branch
      %38 = sbr.rel target = $region3
    $region8: #{agcn_transformer_forward.3} parent=1 // loop_exit
      _
    %3341 = vsyncpa [#allocation3], 1
    %s3342 = scalar_lea.sflag [#allocation3], 1
    %3343 = vsyncpa %s3342, 1
    %3344 = vsyncpa [#allocation5], 1
    %3345 = vsyncpa [#allocation8], 1
    %3346 = vsyncpa [#allocation11], 1
    %3347 = vsyncpa [#allocation14], 1
    %3348 = vsyncpa [#allocation17], 1
    %3349 = vsyncpa [#allocation20], 1
    %3350 = vsyncpa [#allocation23], 1

// kernel: agcn_transformer_forward.2
$region0: #{agcn_transformer_forward.2}
  #allocation0 [shape = 'u32[]', space=smem, size = 0x4, offset = 0x4, fixed_abs, tag = 'smem constant byte address 0x4 - core index']
  #allocation1 [shape = 'u32[72,128]{1,0:T(1,128)}', space=vmem, size = 0x9000, scoped, tag = 'internal scratch']
  %s0 = inlined_call_operand.vmem [shape: f32[2,17,32], index: 0, kind: input, shape index: {}]
  %s1 = inlined_call_operand.vmem [shape: f32[17,32], index: 1, kind: input, shape index: {}]
  %s2 = inlined_call_operand.vmem [shape: f32[17,32], index: 2, kind: input, shape index: {}]
  %s3 = inlined_call_operand.hbm [shape: f32[3,17,17], index: 3, kind: input, shape index: {}, may-alias: {3,12}]
  %s4 = inlined_call_operand.hbm [shape: f32[3,32,64], index: 4, kind: input, shape index: {}]
  %s5 = inlined_call_operand.hbm [shape: f32[3,1,64], index: 5, kind: input, shape index: {}]
  %s6 = inlined_call_operand.hbm [shape: f32[3,32,64], index: 6, kind: input, shape index: {}]
  %s7 = inlined_call_operand.hbm [shape: f32[3,1,64], index: 7, kind: input, shape index: {}]
  %s8 = inlined_call_operand.hbm [shape: f32[3,32,256], index: 8, kind: input, shape index: {}]
  %s9 = inlined_call_operand.hbm [shape: f32[1,256], index: 9, kind: input, shape index: {}]
  %s10 = inlined_call_operand.hbm [shape: f32[32,256], index: 10, kind: input, shape index: {}]
  %s11 = inlined_call_operand.hbm [shape: f32[1,256], index: 11, kind: input, shape index: {}]
  %s12 = inlined_call_operand.hbm [shape: f32[3,17,17], index: 12, kind: input, shape index: {}, may-alias: {3,12}]
  %s13 = inlined_call_operand.hbm [shape: f32[3,256,128], index: 13, kind: input, shape index: {}]
  %s14 = inlined_call_operand.hbm [shape: f32[3,1,128], index: 14, kind: input, shape index: {}]
  %s15 = inlined_call_operand.hbm [shape: f32[3,256,128], index: 15, kind: input, shape index: {}]
  %s16 = inlined_call_operand.hbm [shape: f32[3,1,128], index: 16, kind: input, shape index: {}]
  %s17 = inlined_call_operand.hbm [shape: f32[3,256,512], index: 17, kind: input, shape index: {}]
  %s18 = inlined_call_operand.hbm [shape: f32[1,512], index: 18, kind: input, shape index: {}]
  %s19 = inlined_call_operand.hbm [shape: f32[256,512], index: 19, kind: input, shape index: {}]
  %s20 = inlined_call_operand.hbm [shape: f32[1,512], index: 20, kind: input, shape index: {}]
  %s21 = inlined_call_operand.vmem [shape: f32[2,1,512], index: 21, kind: output, shape index: {}]
  %s22 = sld [smem:[#allocation0]]
  $region189: #{agcn_transformer_forward.2} parent=0
    _
  %s24 = ssub.s32 1, %s22
  %s25 = scalar_select 0, %s24, %s22
  $region1: #{agcn_transformer_forward.2} parent=0
    #allocation2 [shape = 'u8[36864]{0}', space=vmem, size = 0x9000, scoped, tag = 'input window, operand 3, single buffered']
    #allocation3 [shape = 's32[2]{0}', space=sflag, size = 0x8, scoped, tag = 'scoped memory for agcn_transformer_forward.2']
    #allocation4 [shape = 'u8[49152]{0}', space=vmem, size = 0xc000, scoped, tag = 'input window, operand 4, single buffered']
    #allocation5 [shape = 's32[1]{0}', space=sflag, size = 0x4, scoped, tag = 'scoped memory for agcn_transformer_forward.2']
    #allocation6 [shape = 'u8[1536]{0}', space=vmem, size = 0x800, scoped, tag = 'input window, operand 5, single buffered']
    #allocation7 [shape = 'u8[49152]{0}', space=vmem, size = 0xc000, scoped, tag = 'input window, operand 6, single buffered']
    #allocation8 [shape = 's32[1]{0}', space=sflag, size = 0x4, scoped, tag = 'scoped memory for agcn_transformer_forward.2']
    #allocation9 [shape = 'u8[1536]{0}', space=vmem, size = 0x800, scoped, tag = 'input window, operand 7, single buffered']
    #allocation10 [shape = 'u8[98304]{0}', space=vmem, size = 0x18000, scoped, tag = 'input window, operand 8, single buffered']
    #allocation11 [shape = 's32[1]{0}', space=sflag, size = 0x4, scoped, tag = 'scoped memory for agcn_transformer_forward.2']
    #allocation12 [shape = 'u8[1024]{0}', space=vmem, size = 0x400, scoped, tag = 'input window, operand 9, single buffered']
    #allocation13 [shape = 'u8[32768]{0}', space=vmem, size = 0x8000, scoped, tag = 'input window, operand 10, single buffered']
    #allocation14 [shape = 's32[1]{0}', space=sflag, size = 0x4, scoped, tag = 'scoped memory for agcn_transformer_forward.2']
    #allocation15 [shape = 'u8[1024]{0}', space=vmem, size = 0x400, scoped, tag = 'input window, operand 11, single buffered']
    #allocation16 [shape = 'u8[36864]{0}', space=vmem, size = 0x9000, scoped, tag = 'input window, operand 12, single buffered']
    #allocation17 [shape = 's32[1]{0}', space=sflag, size = 0x4, scoped, tag = 'scoped memory for agcn_transformer_forward.2']
    #allocation18 [shape = 'u8[393216]{0}', space=vmem, size = 0x60000, scoped, tag = 'input window, operand 13, single buffered']
    #allocation19 [shape = 'u8[1536]{0}', space=vmem, size = 0x800, scoped, tag = 'input window, operand 14, single buffered']
    #allocation20 [shape = 's32[1]{0}', space=sflag, size = 0x4, scoped, tag = 'scoped memory for agcn_transformer_forward.2']
    #allocation21 [shape = 'u8[393216]{0}', space=vmem, size = 0x60000, scoped, tag = 'input window, operand 15, single buffered']
    #allocation22 [shape = 'u8[1536]{0}', space=vmem, size = 0x800, scoped, tag = 'input window, operand 16, single buffered']
    #allocation23 [shape = 's32[1]{0}', space=sflag, size = 0x4, scoped, tag = 'scoped memory for agcn_transformer_forward.2']
    #allocation24 [shape = 'u8[1572864]{0}', space=vmem, size = 0x180000, scoped, tag = 'input window, operand 17, single buffered']
    #allocation25 [shape = 'u8[2048]{0}', space=vmem, size = 0x800, scoped, tag = 'input window, operand 18, single buffered']
    #allocation26 [shape = 's32[1]{0}', space=sflag, size = 0x4, scoped, tag = 'scoped memory for agcn_transformer_forward.2']
    #allocation27 [shape = 'u8[524288]{0}', space=vmem, size = 0x80000, scoped, tag = 'input window, operand 19, single buffered']
    #allocation28 [shape = 'u8[2048]{0}', space=vmem, size = 0x800, scoped, tag = 'input window, operand 20, single buffered']
    #allocation29 [shape = 's32[1]{0}', space=sflag, size = 0x4, scoped, tag = 'scoped memory for agcn_transformer_forward.2']
    %26 = vsyncpa [#allocation3], 0
    %27 = vsyncpa [#allocation5], 0
    %28 = vsyncpa [#allocation8], 0
    %29 = vsyncpa [#allocation11], 0
    %30 = vsyncpa [#allocation14], 0
    %31 = vsyncpa [#allocation17], 0
    %32 = vsyncpa [#allocation20], 0
    %33 = vsyncpa [#allocation23], 0
    %34 = vsyncpa [#allocation26], 0
    %35 = vsyncpa [#allocation29], 0
    loop: start=0, step=1, limit=4
    $region2: #{agcn_transformer_forward.2} parent=1 // loop_pre_header
      _
    $region3: #{agcn_transformer_forward.2} parent=1 // loop_header
      %s37 = sphi 0, %s41
      %p38 = scmp.ge.s32.totalorder %s37, 4
      %s47 = sphi 0, %s49
      %s50 = sphi 0, %s47
      %s51 = sphi 0, %s50
      %s67 = sphi 0, %s51
      %s71 = sphi 0, %s71
      %s73 = sphi 0, %s71
      %s74 = sphi 0, %s73
      %s88 = sphi 0, %s74
      %s92 = sphi 0, %s92
      %s94 = sphi 0, %s92
      %s95 = sphi 0, %s94
      %s109 = sphi 0, %s95
      %s113 = sphi 0, %s113
      %s115 = sphi 0, %s113
      %s116 = sphi 0, %s115
      %s130 = sphi 0, %s116
      %s134 = sphi 0, %s134
      %s136 = sphi 0, %s134
      %s137 = sphi 0, %s136
      %s151 = sphi 0, %s137
      %s155 = sphi 0, %s155
      %s157 = sphi 0, %s155
      %s158 = sphi 0, %s157
      %s172 = sphi 0, %s158
      %s176 = sphi 0, %s176
      %s178 = sphi 0, %s176
      %s179 = sphi 0, %s178
      %s193 = sphi 0, %s179
      %s197 = sphi 0, %s197
      %s199 = sphi 0, %s197
      %s200 = sphi 0, %s199
      %s214 = sphi 0, %s200
      %s218 = sphi 0, %s218
      %s220 = sphi 0, %s218
      %s221 = sphi 0, %s220
      %s235 = sphi 0, %s221
      %s239 = sphi 0, %s239
      %s241 = sphi 0, %s239
      %s242 = sphi 0, %s241
      %s256 = sphi 0, %s242
      %s260 = sphi 0, %s260
      %s262 = sphi 0, %s260
      %s263 = sphi 0, %s262
      %s277 = sphi 0, %s263
      %s281 = sphi 0, %s281
      %s283 = sphi 0, %s281
      %s284 = sphi 0, %s283
      %s298 = sphi 0, %s284
      %s302 = sphi 0, %s302
      %s304 = sphi 0, %s302
      %s305 = sphi 0, %s304
      %s319 = sphi 0, %s305
      %s323 = sphi 0, %s323
      %s325 = sphi 0, %s323
      %s326 = sphi 0, %s325
      %s340 = sphi 0, %s326
      %s344 = sphi 0, %s344
      %s346 = sphi 0, %s344
      %s347 = sphi 0, %s346
      %s361 = sphi 0, %s347
      %s365 = sphi 0, %s365
      %s367 = sphi 0, %s365
      %s368 = sphi 0, %s367
      %s382 = sphi 0, %s368
      %s386 = sphi 0, %s386
      %s388 = sphi 0, %s386
      %s389 = sphi 0, %s388
      %s403 = sphi 0, %s389
      %s407 = sphi 0, %s407
      %s409 = sphi 0, %s407
      %s410 = sphi 0, %s409
      %s424 = sphi 0, %s410
      %s428 = sphi 0, %s428
      %s430 = sphi 0, %s428
      %s431 = sphi 0, %s430
      %s445 = sphi 0, %s431
      %s449 = sphi 0, %s449
      %s451 = sphi 0, %s449
      %s452 = sphi 0, %s451
      %s466 = sphi 0, %s452
      %s470 = sphi 0, %s470
      %s472 = sphi 0, %s470
      %s473 = sphi 0, %s472
      %s487 = sphi 0, %s473
      %s493 = sphi 0, %s495
      %s496 = sphi 0, %s493
      %s497 = sphi 0, %s496
      %s513 = sphi 0, %s497
    $region4: #{agcn_transformer_forward.2} parent=1 // loop_header_branch
      %40 = sbr.rel (%p38) target = $region8
    $region5: #{agcn_transformer_forward.2} parent=1 // loop_body
      %s42 = ssub.s32 %s37, 1
      %s43 = ssub.s32 %s37, 2
      %s44 = sadd.s32 %s37, 1
      %s45 = ssub.s32 %s37, %s44
      %p46 = scmp.eq.s32.totalorder %s45, 0
      %s48 = sadd.s32 %s47, 1
      %s49 = scalar_select %p46, %s47, %s48
      %p52 = pneg %p46
      %p53 = scmp.eq.s32.totalorder %s37, 1
      %p54 = por %p52, %p53
      %p55 = scmp.ne.s32.totalorder %s47, %s50
      %p56 = scmp.eq.s32.totalorder %s37, 0
      %p57 = por %p55, %p56
      %p58 = scmp.ne.s32.totalorder %s47, %s50
      %p59 = scmp.eq.s32.totalorder %s42, 1
      %p60 = por %p58, %p59
      %p61 = scmp.ne.s32.totalorder %s50, %s51
      %p62 = scmp.eq.s32.totalorder %s42, 0
      %p63 = por %p61, %p62
      %p64 = scmp.ne.s32.totalorder %s50, %s51
      %p65 = scmp.eq.s32.totalorder %s43, 1
      %p66 = por %p64, %p65
      %p68 = scmp.ne.s32.totalorder %s51, %s67
      %p69 = scmp.eq.s32.totalorder %s43, 0
      %p70 = por %p68, %p69
      %s72 = sadd.s32 %s71, 1
      %p75 = scmp.eq.s32.totalorder %s37, 1
      %p76 = scmp.ne.s32.totalorder %s71, %s73
      %p77 = scmp.eq.s32.totalorder %s37, 0
      %p78 = por %p76, %p77
      %p79 = scmp.ne.s32.totalorder %s71, %s73
      %p80 = scmp.eq.s32.totalorder %s42, 1
      %p81 = por %p79, %p80
      %p82 = scmp.ne.s32.totalorder %s73, %s74
      %p83 = scmp.eq.s32.totalorder %s42, 0
      %p84 = por %p82, %p83
      %p85 = scmp.ne.s32.totalorder %s73, %s74
      %p86 = scmp.eq.s32.totalorder %s43, 1
      %p87 = por %p85, %p86
      %p89 = scmp.ne.s32.totalorder %s74, %s88
      %p90 = scmp.eq.s32.totalorder %s43, 0
      %p91 = por %p89, %p90
      %s93 = sadd.s32 %s92, 1
      %p96 = scmp.eq.s32.totalorder %s37, 1
      %p97 = scmp.ne.s32.totalorder %s92, %s94
      %p98 = scmp.eq.s32.totalorder %s37, 0
      %p99 = por %p97, %p98
      %p100 = scmp.ne.s32.totalorder %s92, %s94
      %p101 = scmp.eq.s32.totalorder %s42, 1
      %p102 = por %p100, %p101
      %p103 = scmp.ne.s32.totalorder %s94, %s95
      %p104 = scmp.eq.s32.totalorder %s42, 0
      %p105 = por %p103, %p104
      %p106 = scmp.ne.s32.totalorder %s94, %s95
      %p107 = scmp.eq.s32.totalorder %s43, 1
      %p108 = por %p106, %p107
      %p110 = scmp.ne.s32.totalorder %s95, %s109
      %p111 = scmp.eq.s32.totalorder %s43, 0
      %p112 = por %p110, %p111
      %s114 = sadd.s32 %s113, 1
      %p117 = scmp.eq.s32.totalorder %s37, 1
      %p118 = scmp.ne.s32.totalorder %s113, %s115
      %p119 = scmp.eq.s32.totalorder %s37, 0
      %p120 = por %p118, %p119
      %p121 = scmp.ne.s32.totalorder %s113, %s115
      %p122 = scmp.eq.s32.totalorder %s42, 1
      %p123 = por %p121, %p122
      %p124 = scmp.ne.s32.totalorder %s115, %s116
      %p125 = scmp.eq.s32.totalorder %s42, 0
      %p126 = por %p124, %p125
      %p127 = scmp.ne.s32.totalorder %s115, %s116
      %p128 = scmp.eq.s32.totalorder %s43, 1
      %p129 = por %p127, %p128
      %p131 = scmp.ne.s32.totalorder %s116, %s130
      %p132 = scmp.eq.s32.totalorder %s43, 0
      %p133 = por %p131, %p132
      %s135 = sadd.s32 %s134, 1
      %p138 = scmp.eq.s32.totalorder %s37, 1
      %p139 = scmp.ne.s32.totalorder %s134, %s136
      %p140 = scmp.eq.s32.totalorder %s37, 0
      %p141 = por %p139, %p140
      %p142 = scmp.ne.s32.totalorder %s134, %s136
      %p143 = scmp.eq.s32.totalorder %s42, 1
      %p144 = por %p142, %p143
      %p145 = scmp.ne.s32.totalorder %s136, %s137
      %p146 = scmp.eq.s32.totalorder %s42, 0
      %p147 = por %p145, %p146
      %p148 = scmp.ne.s32.totalorder %s136, %s137
      %p149 = scmp.eq.s32.totalorder %s43, 1
      %p150 = por %p148, %p149
      %p152 = scmp.ne.s32.totalorder %s137, %s151
      %p153 = scmp.eq.s32.totalorder %s43, 0
      %p154 = por %p152, %p153
      %s156 = sadd.s32 %s155, 1
      %p159 = scmp.eq.s32.totalorder %s37, 1
      %p160 = scmp.ne.s32.totalorder %s155, %s157
      %p161 = scmp.eq.s32.totalorder %s37, 0
      %p162 = por %p160, %p161
      %p163 = scmp.ne.s32.totalorder %s155, %s157
      %p164 = scmp.eq.s32.totalorder %s42, 1
      %p165 = por %p163, %p164
      %p166 = scmp.ne.s32.totalorder %s157, %s158
      %p167 = scmp.eq.s32.totalorder %s42, 0
      %p168 = por %p166, %p167
      %p169 = scmp.ne.s32.totalorder %s157, %s158
      %p170 = scmp.eq.s32.totalorder %s43, 1
      %p171 = por %p169, %p170
      %p173 = scmp.ne.s32.totalorder %s158, %s172
      %p174 = scmp.eq.s32.totalorder %s43, 0
      %p175 = por %p173, %p174
      %s177 = sadd.s32 %s176, 1
      %p180 = scmp.eq.s32.totalorder %s37, 1
      %p181 = scmp.ne.s32.totalorder %s176, %s178
      %p182 = scmp.eq.s32.totalorder %s37, 0
      %p183 = por %p181, %p182
      %p184 = scmp.ne.s32.totalorder %s176, %s178
      %p185 = scmp.eq.s32.totalorder %s42, 1
      %p186 = por %p184, %p185
      %p187 = scmp.ne.s32.totalorder %s178, %s179
      %p188 = scmp.eq.s32.totalorder %s42, 0
      %p189 = por %p187, %p188
      %p190 = scmp.ne.s32.totalorder %s178, %s179
      %p191 = scmp.eq.s32.totalorder %s43, 1
      %p192 = por %p190, %p191
      %p194 = scmp.ne.s32.totalorder %s179, %s193
      %p195 = scmp.eq.s32.totalorder %s43, 0
      %p196 = por %p194, %p195
      %s198 = sadd.s32 %s197, 1
      %p201 = scmp.eq.s32.totalorder %s37, 1
      %p202 = scmp.ne.s32.totalorder %s197, %s199
      %p203 = scmp.eq.s32.totalorder %s37, 0
      %p204 = por %p202, %p203
      %p205 = scmp.ne.s32.totalorder %s197, %s199
      %p206 = scmp.eq.s32.totalorder %s42, 1
      %p207 = por %p205, %p206
      %p208 = scmp.ne.s32.totalorder %s199, %s200
      %p209 = scmp.eq.s32.totalorder %s42, 0
      %p210 = por %p208, %p209
      %p211 = scmp.ne.s32.totalorder %s199, %s200
      %p212 = scmp.eq.s32.totalorder %s43, 1
      %p213 = por %p211, %p212
      %p215 = scmp.ne.s32.totalorder %s200, %s214
      %p216 = scmp.eq.s32.totalorder %s43, 0
      %p217 = por %p215, %p216
      %s219 = sadd.s32 %s218, 1
      %p222 = scmp.eq.s32.totalorder %s37, 1
      %p223 = scmp.ne.s32.totalorder %s218, %s220
      %p224 = scmp.eq.s32.totalorder %s37, 0
      %p225 = por %p223, %p224
      %p226 = scmp.ne.s32.totalorder %s218, %s220
      %p227 = scmp.eq.s32.totalorder %s42, 1
      %p228 = por %p226, %p227
      %p229 = scmp.ne.s32.totalorder %s220, %s221
      %p230 = scmp.eq.s32.totalorder %s42, 0
      %p231 = por %p229, %p230
      %p232 = scmp.ne.s32.totalorder %s220, %s221
      %p233 = scmp.eq.s32.totalorder %s43, 1
      %p234 = por %p232, %p233
      %p236 = scmp.ne.s32.totalorder %s221, %s235
      %p237 = scmp.eq.s32.totalorder %s43, 0
      %p238 = por %p236, %p237
      %s240 = sadd.s32 %s239, 1
      %p243 = scmp.eq.s32.totalorder %s37, 1
      %p244 = scmp.ne.s32.totalorder %s239, %s241
      %p245 = scmp.eq.s32.totalorder %s37, 0
      %p246 = por %p244, %p245
      %p247 = scmp.ne.s32.totalorder %s239, %s241
      %p248 = scmp.eq.s32.totalorder %s42, 1
      %p249 = por %p247, %p248
      %p250 = scmp.ne.s32.totalorder %s241, %s242
      %p251 = scmp.eq.s32.totalorder %s42, 0
      %p252 = por %p250, %p251
      %p253 = scmp.ne.s32.totalorder %s241, %s242
      %p254 = scmp.eq.s32.totalorder %s43, 1
      %p255 = por %p253, %p254
      %p257 = scmp.ne.s32.totalorder %s242, %s256
      %p258 = scmp.eq.s32.totalorder %s43, 0
      %p259 = por %p257, %p258
      %s261 = sadd.s32 %s260, 1
      %p264 = scmp.eq.s32.totalorder %s37, 1
      %p265 = scmp.ne.s32.totalorder %s260, %s262
      %p266 = scmp.eq.s32.totalorder %s37, 0
      %p267 = por %p265, %p266
      %p268 = scmp.ne.s32.totalorder %s260, %s262
      %p269 = scmp.eq.s32.totalorder %s42, 1
      %p270 = por %p268, %p269
      %p271 = scmp.ne.s32.totalorder %s262, %s263
      %p272 = scmp.eq.s32.totalorder %s42, 0
      %p273 = por %p271, %p272
      %p274 = scmp.ne.s32.totalorder %s262, %s263
      %p275 = scmp.eq.s32.totalorder %s43, 1
      %p276 = por %p274, %p275
      %p278 = scmp.ne.s32.totalorder %s263, %s277
      %p279 = scmp.eq.s32.totalorder %s43, 0
      %p280 = por %p278, %p279
      %s282 = sadd.s32 %s281, 1
      %p285 = scmp.eq.s32.totalorder %s37, 1
      %p286 = scmp.ne.s32.totalorder %s281, %s283
      %p287 = scmp.eq.s32.totalorder %s37, 0
      %p288 = por %p286, %p287
      %p289 = scmp.ne.s32.totalorder %s281, %s283
      %p290 = scmp.eq.s32.totalorder %s42, 1
      %p291 = por %p289, %p290
      %p292 = scmp.ne.s32.totalorder %s283, %s284
      %p293 = scmp.eq.s32.totalorder %s42, 0
      %p294 = por %p292, %p293
      %p295 = scmp.ne.s32.totalorder %s283, %s284
      %p296 = scmp.eq.s32.totalorder %s43, 1
      %p297 = por %p295, %p296
      %p299 = scmp.ne.s32.totalorder %s284, %s298
      %p300 = scmp.eq.s32.totalorder %s43, 0
      %p301 = por %p299, %p300
      %s303 = sadd.s32 %s302, 1
      %p306 = scmp.eq.s32.totalorder %s37, 1
      %p307 = scmp.ne.s32.totalorder %s302, %s304
      %p308 = scmp.eq.s32.totalorder %s37, 0
      %p309 = por %p307, %p308
      %p310 = scmp.ne.s32.totalorder %s302, %s304
      %p311 = scmp.eq.s32.totalorder %s42, 1
      %p312 = por %p310, %p311
      %p313 = scmp.ne.s32.totalorder %s304, %s305
      %p314 = scmp.eq.s32.totalorder %s42, 0
      %p315 = por %p313, %p314
      %p316 = scmp.ne.s32.totalorder %s304, %s305
      %p317 = scmp.eq.s32.totalorder %s43, 1
      %p318 = por %p316, %p317
      %p320 = scmp.ne.s32.totalorder %s305, %s319
      %p321 = scmp.eq.s32.totalorder %s43, 0
      %p322 = por %p320, %p321
      %s324 = sadd.s32 %s323, 1
      %p327 = scmp.eq.s32.totalorder %s37, 1
      %p328 = scmp.ne.s32.totalorder %s323, %s325
      %p329 = scmp.eq.s32.totalorder %s37, 0
      %p330 = por %p328, %p329
      %p331 = scmp.ne.s32.totalorder %s323, %s325
      %p332 = scmp.eq.s32.totalorder %s42, 1
      %p333 = por %p331, %p332
      %p334 = scmp.ne.s32.totalorder %s325, %s326
      %p335 = scmp.eq.s32.totalorder %s42, 0
      %p336 = por %p334, %p335
      %p337 = scmp.ne.s32.totalorder %s325, %s326
      %p338 = scmp.eq.s32.totalorder %s43, 1
      %p339 = por %p337, %p338
      %p341 = scmp.ne.s32.totalorder %s326, %s340
      %p342 = scmp.eq.s32.totalorder %s43, 0
      %p343 = por %p341, %p342
      %s345 = sadd.s32 %s344, 1
      %p348 = scmp.eq.s32.totalorder %s37, 1
      %p349 = scmp.ne.s32.totalorder %s344, %s346
      %p350 = scmp.eq.s32.totalorder %s37, 0
      %p351 = por %p349, %p350
      %p352 = scmp.ne.s32.totalorder %s344, %s346
      %p353 = scmp.eq.s32.totalorder %s42, 1
      %p354 = por %p352, %p353
      %p355 = scmp.ne.s32.totalorder %s346, %s347
      %p356 = scmp.eq.s32.totalorder %s42, 0
      %p357 = por %p355, %p356
      %p358 = scmp.ne.s32.totalorder %s346, %s347
      %p359 = scmp.eq.s32.totalorder %s43, 1
      %p360 = por %p358, %p359
      %p362 = scmp.ne.s32.totalorder %s347, %s361
      %p363 = scmp.eq.s32.totalorder %s43, 0
      %p364 = por %p362, %p363
      %s366 = sadd.s32 %s365, 1
      %p369 = scmp.eq.s32.totalorder %s37, 1
      %p370 = scmp.ne.s32.totalorder %s365, %s367
      %p371 = scmp.eq.s32.totalorder %s37, 0
      %p372 = por %p370, %p371
      %p373 = scmp.ne.s32.totalorder %s365, %s367
      %p374 = scmp.eq.s32.totalorder %s42, 1
      %p375 = por %p373, %p374
      %p376 = scmp.ne.s32.totalorder %s367, %s368
      %p377 = scmp.eq.s32.totalorder %s42, 0
      %p378 = por %p376, %p377
      %p379 = scmp.ne.s32.totalorder %s367, %s368
      %p380 = scmp.eq.s32.totalorder %s43, 1
      %p381 = por %p379, %p380
      %p383 = scmp.ne.s32.totalorder %s368, %s382
      %p384 = scmp.eq.s32.totalorder %s43, 0
      %p385 = por %p383, %p384
      %s387 = sadd.s32 %s386, 1
      %p390 = scmp.eq.s32.totalorder %s37, 1
      %p391 = scmp.ne.s32.totalorder %s386, %s388
      %p392 = scmp.eq.s32.totalorder %s37, 0
      %p393 = por %p391, %p392
      %p394 = scmp.ne.s32.totalorder %s386, %s388
      %p395 = scmp.eq.s32.totalorder %s42, 1
      %p396 = por %p394, %p395
      %p397 = scmp.ne.s32.totalorder %s388, %s389
      %p398 = scmp.eq.s32.totalorder %s42, 0
      %p399 = por %p397, %p398
      %p400 = scmp.ne.s32.totalorder %s388, %s389
      %p401 = scmp.eq.s32.totalorder %s43, 1
      %p402 = por %p400, %p401
      %p404 = scmp.ne.s32.totalorder %s389, %s403
      %p405 = scmp.eq.s32.totalorder %s43, 0
      %p406 = por %p404, %p405
      %s408 = sadd.s32 %s407, 1
      %p411 = scmp.eq.s32.totalorder %s37, 1
      %p412 = scmp.ne.s32.totalorder %s407, %s409
      %p413 = scmp.eq.s32.totalorder %s37, 0
      %p414 = por %p412, %p413
      %p415 = scmp.ne.s32.totalorder %s407, %s409
      %p416 = scmp.eq.s32.totalorder %s42, 1
      %p417 = por %p415, %p416
      %p418 = scmp.ne.s32.totalorder %s409, %s410
      %p419 = scmp.eq.s32.totalorder %s42, 0
      %p420 = por %p418, %p419
      %p421 = scmp.ne.s32.totalorder %s409, %s410
      %p422 = scmp.eq.s32.totalorder %s43, 1
      %p423 = por %p421, %p422
      %p425 = scmp.ne.s32.totalorder %s410, %s424
      %p426 = scmp.eq.s32.totalorder %s43, 0
      %p427 = por %p425, %p426
      %s429 = sadd.s32 %s428, 1
      %p432 = scmp.eq.s32.totalorder %s37, 1
      %p433 = scmp.ne.s32.totalorder %s428, %s430
      %p434 = scmp.eq.s32.totalorder %s37, 0
      %p435 = por %p433, %p434
      %p436 = scmp.ne.s32.totalorder %s428, %s430
      %p437 = scmp.eq.s32.totalorder %s42, 1
      %p438 = por %p436, %p437
      %p439 = scmp.ne.s32.totalorder %s430, %s431
      %p440 = scmp.eq.s32.totalorder %s42, 0
      %p441 = por %p439, %p440
      %p442 = scmp.ne.s32.totalorder %s430, %s431
      %p443 = scmp.eq.s32.totalorder %s43, 1
      %p444 = por %p442, %p443
      %p446 = scmp.ne.s32.totalorder %s431, %s445
      %p447 = scmp.eq.s32.totalorder %s43, 0
      %p448 = por %p446, %p447
      %s450 = sadd.s32 %s449, 1
      %p453 = scmp.eq.s32.totalorder %s37, 1
      %p454 = scmp.ne.s32.totalorder %s449, %s451
      %p455 = scmp.eq.s32.totalorder %s37, 0
      %p456 = por %p454, %p455
      %p457 = scmp.ne.s32.totalorder %s449, %s451
      %p458 = scmp.eq.s32.totalorder %s42, 1
      %p459 = por %p457, %p458
      %p460 = scmp.ne.s32.totalorder %s451, %s452
      %p461 = scmp.eq.s32.totalorder %s42, 0
      %p462 = por %p460, %p461
      %p463 = scmp.ne.s32.totalorder %s451, %s452
      %p464 = scmp.eq.s32.totalorder %s43, 1
      %p465 = por %p463, %p464
      %p467 = scmp.ne.s32.totalorder %s452, %s466
      %p468 = scmp.eq.s32.totalorder %s43, 0
      %p469 = por %p467, %p468
      %s471 = sadd.s32 %s470, 1
      %p474 = scmp.eq.s32.totalorder %s37, 1
      %p475 = scmp.ne.s32.totalorder %s470, %s472
      %p476 = scmp.eq.s32.totalorder %s37, 0
      %p477 = por %p475, %p476
      %p478 = scmp.ne.s32.totalorder %s470, %s472
      %p479 = scmp.eq.s32.totalorder %s42, 1
      %p480 = por %p478, %p479
      %p481 = scmp.ne.s32.totalorder %s472, %s473
      %p482 = scmp.eq.s32.totalorder %s42, 0
      %p483 = por %p481, %p482
      %p484 = scmp.ne.s32.totalorder %s472, %s473
      %p485 = scmp.eq.s32.totalorder %s43, 1
      %p486 = por %p484, %p485
      %p488 = scmp.ne.s32.totalorder %s473, %s487
      %p489 = scmp.eq.s32.totalorder %s43, 0
      %p490 = por %p488, %p489
      %s491 = ssub.s32 %s37, %s44
      %p492 = scmp.eq.s32.totalorder %s491, 0
      %s494 = sadd.s32 %s493, 1
      %s495 = scalar_select %p492, %s493, %s494
      %p498 = pneg %p492
      %p499 = scmp.eq.s32.totalorder %s37, 1
      %p500 = por %p498, %p499
      %p501 = scmp.ne.s32.totalorder %s493, %s496
      %p502 = scmp.eq.s32.totalorder %s37, 0
      %p503 = por %p501, %p502
      %p504 = scmp.ne.s32.totalorder %s493, %s496
      %p505 = scmp.eq.s32.totalorder %s42, 1
      %p506 = por %p504, %p505
      %p507 = scmp.ne.s32.totalorder %s496, %s497
      %p508 = scmp.eq.s32.totalorder %s42, 0
      %p509 = por %p507, %p508
      %p510 = scmp.ne.s32.totalorder %s496, %s497
      %p511 = scmp.eq.s32.totalorder %s43, 1
      %p512 = por %p510, %p511
      %p514 = scmp.ne.s32.totalorder %s497, %s513
      %p515 = scmp.eq.s32.totalorder %s43, 0
      %p516 = por %p514, %p515
      %p517 = scmp.le.s32.totalorder 1, %s37
      %p518 = scmp.lt.s32.totalorder %s37, 3
      %p519 = pnand %p517, %p518
      %p520 = pneg %p519
      // Predicated region
      $region9: #{agcn_transformer_forward.2} parent=5 // pred_check
        _
      $region10: #{agcn_transformer_forward.2} parent=5 // pred_check_branch
        %522 = sbr.rel (%p519) target = $region12
      $region11: #{agcn_transformer_forward.2} parent=5 // pred_region
        %s523 = ssub.s32 %s37, 1
        // Predicated region
        $region13: #{agcn_transformer_forward.2} parent=11 // pred_check
          %p524 = pneg %p84
        $region14: #{agcn_transformer_forward.2} parent=11 // pred_check_branch
          %526 = sbr.rel (%p524) target = $region16
        $region15: #{agcn_transformer_forward.2} parent=11 // pred_region
          _
        $region16: #{agcn_transformer_forward.2} parent=11 // pred_fallthru
          _
        // Predicated region
        $region17: #{agcn_transformer_forward.2} parent=11 // pred_check
          %p527 = pneg %p105
        $region18: #{agcn_transformer_forward.2} parent=11 // pred_check_branch
          %529 = sbr.rel (%p527) target = $region20
        $region19: #{agcn_transformer_forward.2} parent=11 // pred_region
          _
        $region20: #{agcn_transformer_forward.2} parent=11 // pred_fallthru
          _
        // Predicated region
        $region21: #{agcn_transformer_forward.2} parent=11 // pred_check
          %p530 = pneg %p126
        $region22: #{agcn_transformer_forward.2} parent=11 // pred_check_branch
          %532 = sbr.rel (%p530) target = $region24
        $region23: #{agcn_transformer_forward.2} parent=11 // pred_region
          %534 = vsyncadd [#allocation3], 0
          %s535 = sshll.u32 %s3, 4
          %s536 = int_to_ptr.hbm [resolvable:$true] %s535
          %s537 = sshll.u32 [#allocation2], 4
          %s538 = int_to_ptr.vmem [resolvable:$true] %s537
          %543 = dma.hbm_to_vmem [thread:$0]  %s536, 1152, %s538, [#allocation3], 128, 128, 8
        $region24: #{agcn_transformer_forward.2} parent=11 // pred_fallthru
          _
        // Predicated region
        $region25: #{agcn_transformer_forward.2} parent=11 // pred_check
          %p544 = pneg %p147
        $region26: #{agcn_transformer_forward.2} parent=11 // pred_check_branch
          %546 = sbr.rel (%p544) target = $region28
        $region27: #{agcn_transformer_forward.2} parent=11 // pred_region
          %548 = vsyncadd [#allocation5], 0
          %s549 = sshll.u32 %s4, 4
          %s550 = int_to_ptr.hbm [resolvable:$true] %s549
          %s551 = sshll.u32 [#allocation4], 4
          %s552 = int_to_ptr.vmem [resolvable:$true] %s551
          %557 = dma.hbm_to_vmem [thread:$0]  %s550, 1536, %s552, [#allocation5], 128, 128, 8
        $region28: #{agcn_transformer_forward.2} parent=11 // pred_fallthru
          _
        // Predicated region
        $region29: #{agcn_transformer_forward.2} parent=11 // pred_check
          %p558 = pneg %p168
        $region30: #{agcn_transformer_forward.2} parent=11 // pred_check_branch
          %560 = sbr.rel (%p558) target = $region32
        $region31: #{agcn_transformer_forward.2} parent=11 // pred_region
          %562 = vsyncadd [#allocation5], 0
          %s563 = sshll.u32 %s5, 4
          %s564 = int_to_ptr.hbm [resolvable:$true] %s563
          %s565 = sshll.u32 [#allocation6], 4
          %s566 = int_to_ptr.vmem [resolvable:$true] %s565
          %571 = dma.hbm_to_vmem [thread:$0]  %s564, 48, %s566, [#allocation5], 16, 16, 1
        $region32: #{agcn_transformer_forward.2} parent=11 // pred_fallthru
          _
        // Predicated region
        $region33: #{agcn_transformer_forward.2} parent=11 // pred_check
          %p572 = pneg %p189
        $region34: #{agcn_transformer_forward.2} parent=11 // pred_check_branch
          %574 = sbr.rel (%p572) target = $region36
        $region35: #{agcn_transformer_forward.2} parent=11 // pred_region
          %576 = vsyncadd [#allocation8], 0
          %s577 = sshll.u32 %s6, 4
          %s578 = int_to_ptr.hbm [resolvable:$true] %s577
          %s579 = sshll.u32 [#allocation7], 4
          %s580 = int_to_ptr.vmem [resolvable:$true] %s579
          %585 = dma.hbm_to_vmem [thread:$0]  %s578, 1536, %s580, [#allocation8], 128, 128, 8
        $region36: #{agcn_transformer_forward.2} parent=11 // pred_fallthru
          _
        // Predicated region
        $region37: #{agcn_transformer_forward.2} parent=11 // pred_check
          %p586 = pneg %p210
        $region38: #{agcn_transformer_forward.2} parent=11 // pred_check_branch
          %588 = sbr.rel (%p586) target = $region40
        $region39: #{agcn_transformer_forward.2} parent=11 // pred_region
          %590 = vsyncadd [#allocation8], 0
          %s591 = sshll.u32 %s7, 4
          %s592 = int_to_ptr.hbm [resolvable:$true] %s591
          %s593 = sshll.u32 [#allocation9], 4
          %s594 = int_to_ptr.vmem [resolvable:$true] %s593
          %599 = dma.hbm_to_vmem [thread:$0]  %s592, 48, %s594, [#allocation8], 16, 16, 1
        $region40: #{agcn_transformer_forward.2} parent=11 // pred_fallthru
          _
        // Predicated region
        $region41: #{agcn_transformer_forward.2} parent=11 // pred_check
          %p600 = pneg %p231
        $region42: #{agcn_transformer_forward.2} parent=11 // pred_check_branch
          %602 = sbr.rel (%p600) target = $region44
        $region43: #{agcn_transformer_forward.2} parent=11 // pred_region
          %604 = vsyncadd [#allocation11], 0
          %s605 = sshll.u32 %s8, 4
          %s606 = int_to_ptr.hbm [resolvable:$true] %s605
          %s607 = sshll.u32 [#allocation10], 4
          %s608 = int_to_ptr.vmem [resolvable:$true] %s607
          %613 = dma.hbm_to_vmem [thread:$0]  %s606, 3072, %s608, [#allocation11], 256, 256, 16
        $region44: #{agcn_transformer_forward.2} parent=11 // pred_fallthru
          _
        // Predicated region
        $region45: #{agcn_transformer_forward.2} parent=11 // pred_check
          %p614 = pneg %p252
        $region46: #{agcn_transformer_forward.2} parent=11 // pred_check_branch
          %616 = sbr.rel (%p614) target = $region48
        $region47: #{agcn_transformer_forward.2} parent=11 // pred_region
          %618 = vsyncadd [#allocation11], 0
          %s620 = sshll.u32 %s9, 4
          %s621 = int_to_ptr.hbm [resolvable:$true] %s620
          %s622 = sshll.u32 [#allocation12], 4
          %s623 = int_to_ptr.vmem [resolvable:$true] %s622
          %625 = dma.hbm_to_vmem [thread:$0]  %s621, 32, %s623, [#allocation11]
        $region48: #{agcn_transformer_forward.2} parent=11 // pred_fallthru
          _
        // Predicated region
        $region49: #{agcn_transformer_forward.2} parent=11 // pred_check
          %p626 = pneg %p273
        $region50: #{agcn_transformer_forward.2} parent=11 // pred_check_branch
          %628 = sbr.rel (%p626) target = $region52
        $region51: #{agcn_transformer_forward.2} parent=11 // pred_region
          %630 = vsyncadd [#allocation14], 0
          %s631 = sshll.u32 %s10, 4
          %s632 = int_to_ptr.hbm [resolvable:$true] %s631
          %s633 = sshll.u32 [#allocation13], 4
          %s634 = int_to_ptr.vmem [resolvable:$true] %s633
          %639 = dma.hbm_to_vmem [thread:$0]  %s632, 1024, %s634, [#allocation14], 256, 256, 16
        $region52: #{agcn_transformer_forward.2} parent=11 // pred_fallthru
          _
        // Predicated region
        $region53: #{agcn_transformer_forward.2} parent=11 // pred_check
          %p640 = pneg %p294
        $region54: #{agcn_transformer_forward.2} parent=11 // pred_check_branch
          %642 = sbr.rel (%p640) target = $region56
        $region55: #{agcn_transformer_forward.2} parent=11 // pred_region
          %644 = vsyncadd [#allocation14], 0
          %s646 = sshll.u32 %s11, 4
          %s647 = int_to_ptr.hbm [resolvable:$true] %s646
          %s648 = sshll.u32 [#allocation15], 4
          %s649 = int_to_ptr.vmem [resolvable:$true] %s648
          %651 = dma.hbm_to_vmem [thread:$0]  %s647, 32, %s649, [#allocation14]
        $region56: #{agcn_transformer_forward.2} parent=11 // pred_fallthru
          _
        // Predicated region
        $region57: #{agcn_transformer_forward.2} parent=11 // pred_check
          %p652 = pneg %p315
        $region58: #{agcn_transformer_forward.2} parent=11 // pred_check_branch
          %654 = sbr.rel (%p652) target = $region60
        $region59: #{agcn_transformer_forward.2} parent=11 // pred_region
          %656 = vsyncadd [#allocation17], 0
          %s657 = sshll.u32 %s12, 4
          %s658 = int_to_ptr.hbm [resolvable:$true] %s657
          %s659 = sshll.u32 [#allocation16], 4
          %s660 = int_to_ptr.vmem [resolvable:$true] %s659
          %665 = dma.hbm_to_vmem [thread:$0]  %s658, 1152, %s660, [#allocation17], 128, 128, 8
        $region60: #{agcn_transformer_forward.2} parent=11 // pred_fallthru
          _
        // Predicated region
        $region61: #{agcn_transformer_forward.2} parent=11 // pred_check
          %p666 = pneg %p336
        $region62: #{agcn_transformer_forward.2} parent=11 // pred_check_branch
          %668 = sbr.rel (%p666) target = $region64
        $region63: #{agcn_transformer_forward.2} parent=11 // pred_region
          %670 = vsyncadd [#allocation17], 0
          %s671 = sshll.u32 %s13, 4
          %s672 = int_to_ptr.hbm [resolvable:$true] %s671
          %s673 = sshll.u32 [#allocation18], 4
          %s674 = int_to_ptr.vmem [resolvable:$true] %s673
          %679 = dma.hbm_to_vmem [thread:$0]  %s672, 12288, %s674, [#allocation17], 128, 128, 8
        $region64: #{agcn_transformer_forward.2} parent=11 // pred_fallthru
          _
        // Predicated region
        $region65: #{agcn_transformer_forward.2} parent=11 // pred_check
          %p680 = pneg %p357
        $region66: #{agcn_transformer_forward.2} parent=11 // pred_check_branch
          %682 = sbr.rel (%p680) target = $region68
        $region67: #{agcn_transformer_forward.2} parent=11 // pred_region
          %684 = vsyncadd [#allocation20], 0
          %s685 = sshll.u32 %s14, 4
          %s686 = int_to_ptr.hbm [resolvable:$true] %s685
          %s687 = sshll.u32 [#allocation19], 4
          %s688 = int_to_ptr.vmem [resolvable:$true] %s687
          %693 = dma.hbm_to_vmem [thread:$0]  %s686, 48, %s688, [#allocation20], 16, 16, 1
        $region68: #{agcn_transformer_forward.2} parent=11 // pred_fallthru
          _
        // Predicated region
        $region69: #{agcn_transformer_forward.2} parent=11 // pred_check
          %p694 = pneg %p378
        $region70: #{agcn_transformer_forward.2} parent=11 // pred_check_branch
          %696 = sbr.rel (%p694) target = $region72
        $region71: #{agcn_transformer_forward.2} parent=11 // pred_region
          %698 = vsyncadd [#allocation20], 0
          %s699 = sshll.u32 %s15, 4
          %s700 = int_to_ptr.hbm [resolvable:$true] %s699
          %s701 = sshll.u32 [#allocation21], 4
          %s702 = int_to_ptr.vmem [resolvable:$true] %s701
          %707 = dma.hbm_to_vmem [thread:$0]  %s700, 12288, %s702, [#allocation20], 128, 128, 8
        $region72: #{agcn_transformer_forward.2} parent=11 // pred_fallthru
          _
        // Predicated region
        $region73: #{agcn_transformer_forward.2} parent=11 // pred_check
          %p708 = pneg %p399
        $region74: #{agcn_transformer_forward.2} parent=11 // pred_check_branch
          %710 = sbr.rel (%p708) target = $region76
        $region75: #{agcn_transformer_forward.2} parent=11 // pred_region
          %712 = vsyncadd [#allocation23], 0
          %s713 = sshll.u32 %s16, 4
          %s714 = int_to_ptr.hbm [resolvable:$true] %s713
          %s715 = sshll.u32 [#allocation22], 4
          %s716 = int_to_ptr.vmem [resolvable:$true] %s715
          %721 = dma.hbm_to_vmem [thread:$0]  %s714, 48, %s716, [#allocation23], 16, 16, 1
        $region76: #{agcn_transformer_forward.2} parent=11 // pred_fallthru
          _
        // Predicated region
        $region77: #{agcn_transformer_forward.2} parent=11 // pred_check
          %p722 = pneg %p420
        $region78: #{agcn_transformer_forward.2} parent=11 // pred_check_branch
          %724 = sbr.rel (%p722) target = $region80
        $region79: #{agcn_transformer_forward.2} parent=11 // pred_region
          %726 = vsyncadd [#allocation23], 0
          %s727 = sshll.u32 %s17, 4
          %s728 = int_to_ptr.hbm [resolvable:$true] %s727
          %s729 = sshll.u32 [#allocation24], 4
          %s730 = int_to_ptr.vmem [resolvable:$true] %s729
          %735 = dma.hbm_to_vmem [thread:$0]  %s728, 49152, %s730, [#allocation23], 512, 512, 32
        $region80: #{agcn_transformer_forward.2} parent=11 // pred_fallthru
          _
        // Predicated region
        $region81: #{agcn_transformer_forward.2} parent=11 // pred_check
          %p736 = pneg %p441
        $region82: #{agcn_transformer_forward.2} parent=11 // pred_check_branch
          %738 = sbr.rel (%p736) target = $region84
        $region83: #{agcn_transformer_forward.2} parent=11 // pred_region
          %740 = vsyncadd [#allocation26], 0
          %s742 = sshll.u32 %s18, 4
          %s743 = int_to_ptr.hbm [resolvable:$true] %s742
          %s744 = sshll.u32 [#allocation25], 4
          %s745 = int_to_ptr.vmem [resolvable:$true] %s744
          %747 = dma.hbm_to_vmem [thread:$0]  %s743, 64, %s745, [#allocation26]
        $region84: #{agcn_transformer_forward.2} parent=11 // pred_fallthru
          _
        // Predicated region
        $region85: #{agcn_transformer_forward.2} parent=11 // pred_check
          %p748 = pneg %p462
        $region86: #{agcn_transformer_forward.2} parent=11 // pred_check_branch
          %750 = sbr.rel (%p748) target = $region88
        $region87: #{agcn_transformer_forward.2} parent=11 // pred_region
          %752 = vsyncadd [#allocation26], 0
          %s753 = sshll.u32 %s19, 4
          %s754 = int_to_ptr.hbm [resolvable:$true] %s753
          %s755 = sshll.u32 [#allocation27], 4
          %s756 = int_to_ptr.vmem [resolvable:$true] %s755
          %761 = dma.hbm_to_vmem [thread:$0]  %s754, 16384, %s756, [#allocation26], 512, 512, 32
        $region88: #{agcn_transformer_forward.2} parent=11 // pred_fallthru
          _
        // Predicated region
        $region89: #{agcn_transformer_forward.2} parent=11 // pred_check
          %p762 = pneg %p483
        $region90: #{agcn_transformer_forward.2} parent=11 // pred_check_branch
          %764 = sbr.rel (%p762) target = $region92
        $region91: #{agcn_transformer_forward.2} parent=11 // pred_region
          %766 = vsyncadd [#allocation29], 0
          %s768 = sshll.u32 %s20, 4
          %s769 = int_to_ptr.hbm [resolvable:$true] %s768
          %s770 = sshll.u32 [#allocation28], 4
          %s771 = int_to_ptr.vmem [resolvable:$true] %s770
          %773 = dma.hbm_to_vmem [thread:$0]  %s769, 64, %s771, [#allocation29]
        $region92: #{agcn_transformer_forward.2} parent=11 // pred_fallthru
          _
      $region12: #{agcn_transformer_forward.2} parent=5 // pred_fallthru
        _
      %p774 = scmp.lt.s32.totalorder %s37, 2
      // Predicated region
      $region93: #{agcn_transformer_forward.2} parent=5 // pred_check
        %p775 = pneg %p774
      $region94: #{agcn_transformer_forward.2} parent=5 // pred_check_branch
        %777 = sbr.rel (%p775) target = $region96
      $region95: #{agcn_transformer_forward.2} parent=5 // pred_region
        // Predicated region
        $region97: #{agcn_transformer_forward.2} parent=95 // pred_check
          %p778 = pneg %p57
        $region98: #{agcn_transformer_forward.2} parent=95 // pred_check_branch
          %780 = sbr.rel (%p778) target = $region100
        $region99: #{agcn_transformer_forward.2} parent=95 // pred_region
          %p781 = scmp.lt.s32.totalorder %s37, 1
          %s782 = scalar_select %p781, %s37, 1
          %s783 = smul.addr %s782, 3
          %s784 = smul.addr %s783, 8
          %s785 = scalar_lea.vmem %s0, %s784
        $region100: #{agcn_transformer_forward.2} parent=95 // pred_fallthru
          _
      $region96: #{agcn_transformer_forward.2} parent=5 // pred_fallthru
        _
      %p786 = scmp.le.s32.totalorder 1, %s37
      %p787 = scmp.lt.s32.totalorder %s37, 3
      %p788 = pnand %p786, %p787
      %p789 = pneg %p788
      // Predicated region
      $region101: #{agcn_transformer_forward.2} parent=5 // pred_check
        _
      $region102: #{agcn_transformer_forward.2} parent=5 // pred_check_branch
        %791 = sbr.rel (%p788) target = $region104
      $region103: #{agcn_transformer_forward.2} parent=5 // pred_region
        %s792 = ssub.s32 %s37, 1
        // Predicated region
        $region105: #{agcn_transformer_forward.2} parent=103 // pred_check
          %p793 = pneg %p126
        $region106: #{agcn_transformer_forward.2} parent=103 // pred_check_branch
          %795 = sbr.rel (%p793) target = $region108
        $region107: #{agcn_transformer_forward.2} parent=103 // pred_region
          %797 = dma.done [#allocation3], 1152
        $region108: #{agcn_transformer_forward.2} parent=103 // pred_fallthru
          _
        // Predicated region
        $region109: #{agcn_transformer_forward.2} parent=103 // pred_check
          %p798 = pneg %p147
        $region110: #{agcn_transformer_forward.2} parent=103 // pred_check_branch
          %800 = sbr.rel (%p798) target = $region112
        $region111: #{agcn_transformer_forward.2} parent=103 // pred_region
          %802 = dma.done [#allocation5], 1536
        $region112: #{agcn_transformer_forward.2} parent=103 // pred_fallthru
          _
        // Predicated region
        $region113: #{agcn_transformer_forward.2} parent=103 // pred_check
          %p803 = pneg %p168
        $region114: #{agcn_transformer_forward.2} parent=103 // pred_check_branch
          %805 = sbr.rel (%p803) target = $region116
        $region115: #{agcn_transformer_forward.2} parent=103 // pred_region
          %807 = dma.done [#allocation5], 48
        $region116: #{agcn_transformer_forward.2} parent=103 // pred_fallthru
          _
        // Predicated region
        $region117: #{agcn_transformer_forward.2} parent=103 // pred_check
          %p808 = pneg %p189
        $region118: #{agcn_transformer_forward.2} parent=103 // pred_check_branch
          %810 = sbr.rel (%p808) target = $region120
        $region119: #{agcn_transformer_forward.2} parent=103 // pred_region
          %812 = dma.done [#allocation8], 1536
        $region120: #{agcn_transformer_forward.2} parent=103 // pred_fallthru
          _
        // Predicated region
        $region121: #{agcn_transformer_forward.2} parent=103 // pred_check
          %p813 = pneg %p210
        $region122: #{agcn_transformer_forward.2} parent=103 // pred_check_branch
          %815 = sbr.rel (%p813) target = $region124
        $region123: #{agcn_transformer_forward.2} parent=103 // pred_region
          %817 = dma.done [#allocation8], 48
        $region124: #{agcn_transformer_forward.2} parent=103 // pred_fallthru
          _
        // Predicated region
        $region125: #{agcn_transformer_forward.2} parent=103 // pred_check
          %p818 = pneg %p231
        $region126: #{agcn_transformer_forward.2} parent=103 // pred_check_branch
          %820 = sbr.rel (%p818) target = $region128
        $region127: #{agcn_transformer_forward.2} parent=103 // pred_region
          %822 = dma.done [#allocation11], 3072
        $region128: #{agcn_transformer_forward.2} parent=103 // pred_fallthru
          _
        // Predicated region
        $region129: #{agcn_transformer_forward.2} parent=103 // pred_check
          %p823 = pneg %p252
        $region130: #{agcn_transformer_forward.2} parent=103 // pred_check_branch
          %825 = sbr.rel (%p823) target = $region132
        $region131: #{agcn_transformer_forward.2} parent=103 // pred_region
          %827 = dma.done [#allocation11], 32
        $region132: #{agcn_transformer_forward.2} parent=103 // pred_fallthru
          _
        // Predicated region
        $region133: #{agcn_transformer_forward.2} parent=103 // pred_check
          %p828 = pneg %p273
        $region134: #{agcn_transformer_forward.2} parent=103 // pred_check_branch
          %830 = sbr.rel (%p828) target = $region136
        $region135: #{agcn_transformer_forward.2} parent=103 // pred_region
          %832 = dma.done [#allocation14], 1024
        $region136: #{agcn_transformer_forward.2} parent=103 // pred_fallthru
          _
        // Predicated region
        $region137: #{agcn_transformer_forward.2} parent=103 // pred_check
          %p833 = pneg %p294
        $region138: #{agcn_transformer_forward.2} parent=103 // pred_check_branch
          %835 = sbr.rel (%p833) target = $region140
        $region139: #{agcn_transformer_forward.2} parent=103 // pred_region
          %837 = dma.done [#allocation14], 32
        $region140: #{agcn_transformer_forward.2} parent=103 // pred_fallthru
          _
        // Predicated region
        $region141: #{agcn_transformer_forward.2} parent=103 // pred_check
          %p838 = pneg %p315
        $region142: #{agcn_transformer_forward.2} parent=103 // pred_check_branch
          %840 = sbr.rel (%p838) target = $region144
        $region143: #{agcn_transformer_forward.2} parent=103 // pred_region
          %842 = dma.done [#allocation17], 1152
        $region144: #{agcn_transformer_forward.2} parent=103 // pred_fallthru
          _
        // Predicated region
        $region145: #{agcn_transformer_forward.2} parent=103 // pred_check
          %p843 = pneg %p336
        $region146: #{agcn_transformer_forward.2} parent=103 // pred_check_branch
          %845 = sbr.rel (%p843) target = $region148
        $region147: #{agcn_transformer_forward.2} parent=103 // pred_region
          %847 = dma.done [#allocation17], 12288
        $region148: #{agcn_transformer_forward.2} parent=103 // pred_fallthru
          _
        // Predicated region
        $region149: #{agcn_transformer_forward.2} parent=103 // pred_check
          %p848 = pneg %p357
        $region150: #{agcn_transformer_forward.2} parent=103 // pred_check_branch
          %850 = sbr.rel (%p848) target = $region152
        $region151: #{agcn_transformer_forward.2} parent=103 // pred_region
          %852 = dma.done [#allocation20], 48
        $region152: #{agcn_transformer_forward.2} parent=103 // pred_fallthru
          _
        // Predicated region
        $region153: #{agcn_transformer_forward.2} parent=103 // pred_check
          %p853 = pneg %p378
        $region154: #{agcn_transformer_forward.2} parent=103 // pred_check_branch
          %855 = sbr.rel (%p853) target = $region156
        $region155: #{agcn_transformer_forward.2} parent=103 // pred_region
          %857 = dma.done [#allocation20], 12288
        $region156: #{agcn_transformer_forward.2} parent=103 // pred_fallthru
          _
        // Predicated region
        $region157: #{agcn_transformer_forward.2} parent=103 // pred_check
          %p858 = pneg %p399
        $region158: #{agcn_transformer_forward.2} parent=103 // pred_check_branch
          %860 = sbr.rel (%p858) target = $region160
        $region159: #{agcn_transformer_forward.2} parent=103 // pred_region
          %862 = dma.done [#allocation23], 48
        $region160: #{agcn_transformer_forward.2} parent=103 // pred_fallthru
          _
        // Predicated region
        $region161: #{agcn_transformer_forward.2} parent=103 // pred_check
          %p863 = pneg %p420
        $region162: #{agcn_transformer_forward.2} parent=103 // pred_check_branch
          %865 = sbr.rel (%p863) target = $region164
        $region163: #{agcn_transformer_forward.2} parent=103 // pred_region
          %867 = dma.done [#allocation23], 49152
        $region164: #{agcn_transformer_forward.2} parent=103 // pred_fallthru
          _
        // Predicated region
        $region165: #{agcn_transformer_forward.2} parent=103 // pred_check
          %p868 = pneg %p441
        $region166: #{agcn_transformer_forward.2} parent=103 // pred_check_branch
          %870 = sbr.rel (%p868) target = $region168
        $region167: #{agcn_transformer_forward.2} parent=103 // pred_region
          %872 = dma.done [#allocation26], 64
        $region168: #{agcn_transformer_forward.2} parent=103 // pred_fallthru
          _
        // Predicated region
        $region169: #{agcn_transformer_forward.2} parent=103 // pred_check
          %p873 = pneg %p462
        $region170: #{agcn_transformer_forward.2} parent=103 // pred_check_branch
          %875 = sbr.rel (%p873) target = $region172
        $region171: #{agcn_transformer_forward.2} parent=103 // pred_region
          %877 = dma.done [#allocation26], 16384
        $region172: #{agcn_transformer_forward.2} parent=103 // pred_fallthru
          _
        // Predicated region
        $region173: #{agcn_transformer_forward.2} parent=103 // pred_check
          %p878 = pneg %p483
        $region174: #{agcn_transformer_forward.2} parent=103 // pred_check_branch
          %880 = sbr.rel (%p878) target = $region176
        $region175: #{agcn_transformer_forward.2} parent=103 // pred_region
          %882 = dma.done [#allocation29], 64
        $region176: #{agcn_transformer_forward.2} parent=103 // pred_fallthru
          _
        %p883 = scmp.lt.s32.totalorder %s42, 1
        %s884 = scalar_select %p883, %s42, 1
        %s885 = smul.addr %s884, 3
        %s886 = smul.addr %s885, 8
        %s887 = scalar_lea.vmem %s0, %s886
        %p888 = pneg %p63
        %p889 = pneg %p60
        %p890 = pneg %p84
        %p891 = pneg %p81
        %p892 = pneg %p105
        %p893 = pneg %p102
        %p894 = pneg %p126
        %p895 = pneg %p123
        %p896 = pneg %p147
        %p897 = pneg %p144
        %p898 = pneg %p168
        %p899 = pneg %p165
        %p900 = pneg %p189
        %p901 = pneg %p186
        %p902 = pneg %p210
        %p903 = pneg %p207
        %p904 = pneg %p231
        %p905 = pneg %p228
        %p906 = pneg %p252
        %p907 = pneg %p249
        %p908 = pneg %p273
        %p909 = pneg %p270
        %p910 = pneg %p294
        %p911 = pneg %p291
        %p912 = pneg %p315
        %p913 = pneg %p312
        %p914 = pneg %p336
        %p915 = pneg %p333
        %p916 = pneg %p357
        %p917 = pneg %p354
        %p918 = pneg %p378
        %p919 = pneg %p375
        %p920 = pneg %p399
        %p921 = pneg %p396
        %p922 = pneg %p420
        %p923 = pneg %p417
        %p924 = pneg %p441
        %p925 = pneg %p438
        %p926 = pneg %p462
        %p927 = pneg %p459
        %p928 = pneg %p483
        %p929 = pneg %p480
        %p930 = pneg %p509
        %p931 = pneg %p506
        %p932 = scmp.lt.s32.totalorder %s42, 1
        %s933 = scalar_select %p932, %s42, 1
        %s934 = smul.addr %s933, 4
        %s935 = scalar_lea.vmem %s21, %s934
        %p936 = scmp.lt.s32.totalorder %s42, 1
        %s937 = scalar_select %p936, %s42, 1
        %s938 = smul.addr %s937, 3
        %s939 = smul.addr %s938, 8
        %s940 = scalar_lea.vmem %s0, %s939
        %p941 = scmp.lt.s32.totalorder %s42, 1
        %s942 = scalar_select %p941, %s42, 1
        %s943 = smul.addr %s942, 4
        %s944 = scalar_lea.vmem %s21, %s943
        %v945 = vld [vmem:[%s940] sm:$0xff]
        %v946 = vld [vmem:[%s940 + $0x8] sm:$0xff]
        %v947 = vld [vmem:[%s940 + $0x10] sm:$0x1]
        %v948 = vld [vmem:[%s1] sm:$0xff]
        %v949 = vld [vmem:[%s1 + $0x8] sm:$0xff]
        %v950 = vld [vmem:[%s1 + $0x10] sm:$0x1]
        %v951 = vmul.f32 %v945, %v948
        %v952 = vmul.f32 %v946, %v949
        %v953 = vmul.f32 %v947, %v950
        %v954 = vld [vmem:[%s2] sm:$0xff]
        %v955 = vld [vmem:[%s2 + $0x8] sm:$0xff]
        %v956 = vld [vmem:[%s2 + $0x10] sm:$0x1]
        %v957 = vadd.f32 %v951, %v954
        %v958 = vadd.f32 %v952, %v955
        %v959 = vadd.f32 %v953, %v956
        %v960 = vld [vmem:[#allocation4] sm:$0xff]
        %v961 = vld [vmem:[#allocation4 + $0x8] sm:$0xff]
        %v962 = vld [vmem:[#allocation4 + $0x10] sm:$0xff]
        %v963 = vld [vmem:[#allocation4 + $0x18] sm:$0xff]
        %v964 = vld [vmem:[#allocation6] sm:$0x1]
        %v966 = vperm.slane %v964, 0
        %vm968 = vcmask 261120
        %v970 = vsel %vm968, %v957, 0
        %v973 = vsel %vm968, %v958, 0
        %v976 = vsel %vm968, %v959, 0
        %978 = vmatpush.msra.mxu0 0.0
        %979 = vmatpush.msra.mxu0 0.0
        %980 = vmatpush.msra.mxu0 0.0
        %981 = vmatpush.msra.mxu0 0.0
        %982 = vmatpush.msra.mxu0 0.0
        %983 = vmatpush.msra.mxu0 0.0
        %984 = vmatpush.msra.mxu0 0.0
        %985 = vmatpush.msra.mxu0 0.0
        %986 = vmatpush.msra.mxu0 0.0
        %987 = vmatpush.msra.mxu0 0.0
        %988 = vmatpush.msra.mxu0 0.0
        %989 = vmatpush.msra.mxu0 0.0
        %990 = vmatpush.msra.mxu0 %v963
        %991 = vmatpush.msra.mxu0 %v962
        %992 = vmatpush.msra.mxu0 %v961
        %993 = vmatpush.msra.mxu0 %v960
        %994 = vmatmul.f32.gmra.mxu0 %v970
        %v995 = vpop.f32.mrf.mxu0
        %v996 = vadd.f32 %v966, %v995
        %997 = vmatmul.f32.gmra.mxu0 %v973
        %v998 = vpop.f32.mrf.mxu0
        %v999 = vadd.f32 %v966, %v998
        %1000 = vmatmul.f32.gmra.mxu0 %v976
        %v1001 = vpop.f32.mrf.mxu0
        %v1002 = vadd.f32 %v966, %v1001
        %1003 = vdwg.mxu0
        %v1004 = vld [vmem:[#allocation7] sm:$0xff]
        %v1005 = vld [vmem:[#allocation7 + $0x8] sm:$0xff]
        %v1006 = vld [vmem:[#allocation7 + $0x10] sm:$0xff]
        %v1007 = vld [vmem:[#allocation7 + $0x18] sm:$0xff]
        %v1008 = vld [vmem:[#allocation9] sm:$0x1]
        %v1010 = vperm.slane %v1008, 0
        %1012 = vmatpush.msra.mxu0 0.0
        %1013 = vmatpush.msra.mxu0 0.0
        %1014 = vmatpush.msra.mxu0 0.0
        %1015 = vmatpush.msra.mxu0 0.0
        %1016 = vmatpush.msra.mxu0 0.0
        %1017 = vmatpush.msra.mxu0 0.0
        %1018 = vmatpush.msra.mxu0 0.0
        %1019 = vmatpush.msra.mxu0 0.0
        %1020 = vmatpush.msra.mxu0 0.0
        %1021 = vmatpush.msra.mxu0 0.0
        %1022 = vmatpush.msra.mxu0 0.0
        %1023 = vmatpush.msra.mxu0 0.0
        %1024 = vmatpush.msra.mxu0 %v1007
        %1025 = vmatpush.msra.mxu0 %v1006
        %1026 = vmatpush.msra.mxu0 %v1005
        %1027 = vmatpush.msra.mxu0 %v1004
        %1028 = vmatmul.f32.gmra.mxu0 %v970
        %v1029 = vpop.f32.mrf.mxu0
        %v1030 = vadd.f32 %v1010, %v1029
        %1031 = vmatmul.f32.gmra.mxu0 %v973
        %v1032 = vpop.f32.mrf.mxu0
        %v1033 = vadd.f32 %v1010, %v1032
        %1034 = vmatmul.f32.gmra.mxu0 %v976
        %v1035 = vpop.f32.mrf.mxu0
        %v1036 = vadd.f32 %v1010, %v1035
        %1037 = vdwg.mxu0
        %vm1038 = vcmask 523264
        %v1040 = vsel %vm1038, %v1030, 0
        %v1043 = vsel %vm1038, %v1033, 0
        %v1046 = vsel %vm1038, %v1036, 0
        %v1049 = vsel %vm1038, %v996, 0
        %v1052 = vsel %vm1038, %v999, 0
        %v1055 = vsel %vm1038, %v1002, 0
        %1057 = vmatpush.xpose.msra.mxu0 0.0
        %1058 = vmatpush.xpose.msra.mxu0 0.0
        %1059 = vmatpush.xpose.msra.mxu0 0.0
        %1060 = vmatpush.xpose.msra.mxu0 0.0
        %1061 = vmatpush.xpose.msra.mxu0 0.0
        %1062 = vmatpush.xpose.msra.mxu0 0.0
        %1063 = vmatpush.xpose.msra.mxu0 0.0
        %1064 = vmatpush.xpose.msra.mxu0 0.0
        %1065 = vmatpush.xpose.msra.mxu0 0.0
        %1066 = vmatpush.xpose.msra.mxu0 0.0
        %1067 = vmatpush.xpose.msra.mxu0 0.0
        %1068 = vmatpush.xpose.msra.mxu0 0.0
        %1069 = vmatpush.xpose.msra.mxu0 0.0
        %1070 = vmatpush.xpose.msra.mxu0 %v1055
        %1071 = vmatpush.xpose.msra.mxu0 %v1052
        %1072 = vmatpush.xpose.msra.mxu0 %v1049
        %1073 = vmatmul.f32.gmra.mxu0 %v1040
        %v1074 = vpop.f32.mrf.mxu0
        %v1075 = vadd.f32 0.0, %v1074
        %1076 = vmatmul.f32.gmra.mxu0 %v1043
        %v1077 = vpop.f32.mrf.mxu0
        %v1078 = vadd.f32 0.0, %v1077
        %1079 = vmatmul.f32.gmra.mxu0 %v1046
        %v1080 = vpop.f32.mrf.mxu0
        %v1081 = vadd.f32 0.0, %v1080
        %1082 = vdwg.mxu0
        %v1083 = vmul.f32 %v1075, 0.015625
        %v1084 = vmul.f32 %v1078, 0.015625
        %v1085 = vmul.f32 %v1081, 0.015625
        %vm1086 = vcmask 138240
        %v1087 = vsel %vm1086, %v1083, -inf
        %1088 = vmax.xlane.f32.xlu0 %v1087
        %v1089 = vpop.xlane.xlu0 %1088
        %v1090 = vsel %vm1086, %v1084, -inf
        %1091 = vmax.xlane.f32.xlu0 %v1090
        %v1092 = vpop.xlane.xlu0 %1091
        %vm1093 = vcmask 131072
        %v1094 = vsel %vm1093, %v1085, -inf
        %1095 = vmax.xlane.f32.xlu0 %v1094
        %v1096 = vpop.xlane.xlu0 %1095
        %v1097 = vsub.f32 %v1083, %v1089
        %v1098 = vsub.f32 %v1084, %v1092
        %v1099 = vsub.f32 %v1085, %v1096
        %v1100 = vmul.f32 %v1097, 1.442695
        %v1101 = vpow.pop %v1100
        %v1102 = vmul.f32 %v1098, 1.442695
        %v1103 = vpow.pop %v1102
        %v1104 = vmul.f32 %v1099, 1.442695
        %v1105 = vpow.pop %v1104
        %v1106 = vsel %vm1086, %v1101, 0.0
        %1107 = vadd.xlane.f32.xlu0 %v1106
        %v1108 = vpop.xlane.xlu0 %1107
        %v1109 = vsel %vm1086, %v1103, 0.0
        %1110 = vadd.xlane.f32.xlu0 %v1109
        %v1111 = vpop.xlane.xlu0 %1110
        %v1112 = vsel %vm1093, %v1105, 0.0
        %1113 = vadd.xlane.f32.xlu0 %v1112
        %v1114 = vpop.xlane.xlu0 %1113
        %v1115 = vrcp.pop %v1108
        %v1116 = vrcp.pop %v1111
        %v1117 = vrcp.pop %v1114
        %v1118 = vmul.f32 %v1101, %v1115
        %v1119 = vmul.f32 %v1103, %v1116
        %v1120 = vmul.f32 %v1105, %v1117
        %v1121 = vld [vmem:[#allocation2] sm:$0xff]
        %v1122 = vld [vmem:[#allocation2 + $0x8] sm:$0xff]
        %v1123 = vld [vmem:[#allocation2 + $0x10] sm:$0x1]
        %v1124 = vadd.f32 %v1118, %v1121
        %v1125 = vadd.f32 %v1119, %v1122
        %v1126 = vadd.f32 %v1120, %v1123
        %v1128 = vsel %vm1086, %v1124, 0
        %v1131 = vsel %vm1086, %v1125, 0
        %v1134 = vsel %vm1086, %v1126, 0
        %vm1136 = vcmask 1040384
        %v1137 = vsel %vm1136, %v959, 0
        %1139 = vmatpush.msra.mxu0 0.0
        %1140 = vmatpush.msra.mxu0 0.0
        %1141 = vmatpush.msra.mxu0 0.0
        %1142 = vmatpush.msra.mxu0 0.0
        %1143 = vmatpush.msra.mxu0 0.0
        %1144 = vmatpush.msra.mxu0 0.0
        %1145 = vmatpush.msra.mxu0 0.0
        %1146 = vmatpush.msra.mxu0 0.0
        %1147 = vmatpush.msra.mxu0 0.0
        %1148 = vmatpush.msra.mxu0 0.0
        %1149 = vmatpush.msra.mxu0 0.0
        %1150 = vmatpush.msra.mxu0 0.0
        %1151 = vmatpush.msra.mxu0 0.0
        %1152 = vmatpush.msra.mxu0 %v1137
        %1153 = vmatpush.msra.mxu0 %v958
        %1154 = vmatpush.msra.mxu0 %v957
        %1155 = vmatmul.f32.gmra.mxu0 %v1128
        %v1156 = vpop.f32.mrf.mxu0
        %v1157 = vadd.f32 0.0, %v1156
        %1158 = vmatmul.f32.gmra.mxu0 %v1131
        %v1159 = vpop.f32.mrf.mxu0
        %v1160 = vadd.f32 0.0, %v1159
        %1161 = vmatmul.f32.gmra.mxu0 %v1134
        %v1162 = vpop.f32.mrf.mxu0
        %v1163 = vadd.f32 0.0, %v1162
        %1164 = vdwg.mxu0
        %v1165 = vld [vmem:[#allocation10] sm:$0xff]
        %v1166 = vld [vmem:[#allocation10 + $0x8] sm:$0xff]
        %v1167 = vld [vmem:[#allocation10 + $0x10] sm:$0xff]
        %v1168 = vld [vmem:[#allocation10 + $0x18] sm:$0xff]
        %v1169 = vld [vmem:[#allocation10 + $0x20] sm:$0xff]
        %v1170 = vld [vmem:[#allocation10 + $0x28] sm:$0xff]
        %v1171 = vld [vmem:[#allocation10 + $0x30] sm:$0xff]
        %v1172 = vld [vmem:[#allocation10 + $0x38] sm:$0xff]
        %s1173 = scalar_lea.vmem [#allocation4], 32
        %v1174 = vld [vmem:[%s1173] sm:$0xff]
        %v1175 = vld [vmem:[%s1173 + $0x8] sm:$0xff]
        %v1176 = vld [vmem:[%s1173 + $0x10] sm:$0xff]
        %v1177 = vld [vmem:[%s1173 + $0x18] sm:$0xff]
        %s1178 = scalar_lea.vmem [#allocation6], 1
        %v1179 = vld [vmem:[%s1178] sm:$0x1]
        %v1181 = vperm.slane %v1179, 0
        %1183 = vmatpush.msra.mxu0 0.0
        %1184 = vmatpush.msra.mxu0 0.0
        %1185 = vmatpush.msra.mxu0 0.0
        %1186 = vmatpush.msra.mxu0 0.0
        %1187 = vmatpush.msra.mxu0 0.0
        %1188 = vmatpush.msra.mxu0 0.0
        %1189 = vmatpush.msra.mxu0 0.0
        %1190 = vmatpush.msra.mxu0 0.0
        %1191 = vmatpush.msra.mxu0 0.0
        %1192 = vmatpush.msra.mxu0 0.0
        %1193 = vmatpush.msra.mxu0 0.0
        %1194 = vmatpush.msra.mxu0 0.0
        %1195 = vmatpush.msra.mxu0 %v1177
        %1196 = vmatpush.msra.mxu0 %v1176
        %1197 = vmatpush.msra.mxu0 %v1175
        %1198 = vmatpush.msra.mxu0 %v1174
        %1199 = vmatmul.f32.gmra.mxu0 %v970
        %v1200 = vpop.f32.mrf.mxu0
        %v1201 = vadd.f32 %v1181, %v1200
        %1202 = vmatmul.f32.gmra.mxu0 %v973
        %v1203 = vpop.f32.mrf.mxu0
        %v1204 = vadd.f32 %v1181, %v1203
        %1205 = vmatmul.f32.gmra.mxu0 %v976
        %v1206 = vpop.f32.mrf.mxu0
        %v1207 = vadd.f32 %v1181, %v1206
        %1208 = vdwg.mxu0
        %s1209 = scalar_lea.vmem [#allocation7], 32
        %v1210 = vld [vmem:[%s1209] sm:$0xff]
        %v1211 = vld [vmem:[%s1209 + $0x8] sm:$0xff]
        %v1212 = vld [vmem:[%s1209 + $0x10] sm:$0xff]
        %v1213 = vld [vmem:[%s1209 + $0x18] sm:$0xff]
        %s1214 = scalar_lea.vmem [#allocation9], 1
        %v1215 = vld [vmem:[%s1214] sm:$0x1]
        %v1217 = vperm.slane %v1215, 0
        %1219 = vmatpush.msra.mxu0 0.0
        %1220 = vmatpush.msra.mxu0 0.0
        %1221 = vmatpush.msra.mxu0 0.0
        %1222 = vmatpush.msra.mxu0 0.0
        %1223 = vmatpush.msra.mxu0 0.0
        %1224 = vmatpush.msra.mxu0 0.0
        %1225 = vmatpush.msra.mxu0 0.0
        %1226 = vmatpush.msra.mxu0 0.0
        %1227 = vmatpush.msra.mxu0 0.0
        %1228 = vmatpush.msra.mxu0 0.0
        %1229 = vmatpush.msra.mxu0 0.0
        %1230 = vmatpush.msra.mxu0 0.0
        %1231 = vmatpush.msra.mxu0 %v1213
        %1232 = vmatpush.msra.mxu0 %v1212
        %1233 = vmatpush.msra.mxu0 %v1211
        %1234 = vmatpush.msra.mxu0 %v1210
        %1235 = vmatmul.f32.gmra.mxu0 %v970
        %v1236 = vpop.f32.mrf.mxu0
        %v1237 = vadd.f32 %v1217, %v1236
        %1238 = vmatmul.f32.gmra.mxu0 %v973
        %v1239 = vpop.f32.mrf.mxu0
        %v1240 = vadd.f32 %v1217, %v1239
        %1241 = vmatmul.f32.gmra.mxu0 %v976
        %v1242 = vpop.f32.mrf.mxu0
        %v1243 = vadd.f32 %v1217, %v1242
        %1244 = vdwg.mxu0
        %v1246 = vsel %vm1038, %v1237, 0
        %v1249 = vsel %vm1038, %v1240, 0
        %v1252 = vsel %vm1038, %v1243, 0
        %v1255 = vsel %vm1038, %v1201, 0
        %v1258 = vsel %vm1038, %v1204, 0
        %v1261 = vsel %vm1038, %v1207, 0
        %1263 = vmatpush.xpose.msra.mxu0 0.0
        %1264 = vmatpush.xpose.msra.mxu0 0.0
        %1265 = vmatpush.xpose.msra.mxu0 0.0
        %1266 = vmatpush.xpose.msra.mxu0 0.0
        %1267 = vmatpush.xpose.msra.mxu0 0.0
        %1268 = vmatpush.xpose.msra.mxu0 0.0
        %1269 = vmatpush.xpose.msra.mxu0 0.0
        %1270 = vmatpush.xpose.msra.mxu0 0.0
        %1271 = vmatpush.xpose.msra.mxu0 0.0
        %1272 = vmatpush.xpose.msra.mxu0 0.0
        %1273 = vmatpush.xpose.msra.mxu0 0.0
        %1274 = vmatpush.xpose.msra.mxu0 0.0
        %1275 = vmatpush.xpose.msra.mxu0 0.0
        %1276 = vmatpush.xpose.msra.mxu0 %v1261
        %1277 = vmatpush.xpose.msra.mxu0 %v1258
        %1278 = vmatpush.xpose.msra.mxu0 %v1255
        %1279 = vmatmul.f32.gmra.mxu0 %v1246
        %v1280 = vpop.f32.mrf.mxu0
        %v1281 = vadd.f32 0.0, %v1280
        %1282 = vmatmul.f32.gmra.mxu0 %v1249
        %v1283 = vpop.f32.mrf.mxu0
        %v1284 = vadd.f32 0.0, %v1283
        %1285 = vmatmul.f32.gmra.mxu0 %v1252
        %v1286 = vpop.f32.mrf.mxu0
        %v1287 = vadd.f32 0.0, %v1286
        %1288 = vdwg.mxu0
        %v1289 = vmul.f32 %v1281, 0.015625
        %v1290 = vmul.f32 %v1284, 0.015625
        %v1291 = vmul.f32 %v1287, 0.015625
        %v1292 = vsel %vm1086, %v1289, -inf
        %1293 = vmax.xlane.f32.xlu0 %v1292
        %v1294 = vpop.xlane.xlu0 %1293
        %v1295 = vsel %vm1086, %v1290, -inf
        %1296 = vmax.xlane.f32.xlu0 %v1295
        %v1297 = vpop.xlane.xlu0 %1296
        %v1298 = vsel %vm1093, %v1291, -inf
        %1299 = vmax.xlane.f32.xlu0 %v1298
        %v1300 = vpop.xlane.xlu0 %1299
        %v1301 = vsub.f32 %v1289, %v1294
        %v1302 = vsub.f32 %v1290, %v1297
        %v1303 = vsub.f32 %v1291, %v1300
        %v1304 = vmul.f32 %v1301, 1.442695
        %v1305 = vpow.pop %v1304
        %v1306 = vmul.f32 %v1302, 1.442695
        %v1307 = vpow.pop %v1306
        %v1308 = vmul.f32 %v1303, 1.442695
        %v1309 = vpow.pop %v1308
        %v1310 = vsel %vm1086, %v1305, 0.0
        %1311 = vadd.xlane.f32.xlu0 %v1310
        %v1312 = vpop.xlane.xlu0 %1311
        %v1313 = vsel %vm1086, %v1307, 0.0
        %1314 = vadd.xlane.f32.xlu0 %v1313
        %v1315 = vpop.xlane.xlu0 %1314
        %v1316 = vsel %vm1093, %v1309, 0.0
        %1317 = vadd.xlane.f32.xlu0 %v1316
        %v1318 = vpop.xlane.xlu0 %1317
        %v1319 = vrcp.pop %v1312
        %v1320 = vrcp.pop %v1315
        %v1321 = vrcp.pop %v1318
        %v1322 = vmul.f32 %v1305, %v1319
        %v1323 = vmul.f32 %v1307, %v1320
        %v1324 = vmul.f32 %v1309, %v1321
        %s1325 = scalar_lea.vmem [#allocation2], 24
        %v1326 = vld [vmem:[%s1325] sm:$0xff]
        %v1327 = vld [vmem:[%s1325 + $0x8] sm:$0xff]
        %v1328 = vld [vmem:[%s1325 + $0x10] sm:$0x1]
        %v1329 = vadd.f32 %v1322, %v1326
        %v1330 = vadd.f32 %v1323, %v1327
        %v1331 = vadd.f32 %v1324, %v1328
        %v1333 = vsel %vm1086, %v1329, 0
        %v1336 = vsel %vm1086, %v1330, 0
        %v1339 = vsel %vm1086, %v1331, 0
        %1341 = vmatpush.msra.mxu0 0.0
        %1342 = vmatpush.msra.mxu0 0.0
        %1343 = vmatpush.msra.mxu0 0.0
        %1344 = vmatpush.msra.mxu0 0.0
        %1345 = vmatpush.msra.mxu0 0.0
        %1346 = vmatpush.msra.mxu0 0.0
        %1347 = vmatpush.msra.mxu0 0.0
        %1348 = vmatpush.msra.mxu0 0.0
        %1349 = vmatpush.msra.mxu0 0.0
        %1350 = vmatpush.msra.mxu0 0.0
        %1351 = vmatpush.msra.mxu0 0.0
        %1352 = vmatpush.msra.mxu0 0.0
        %1353 = vmatpush.msra.mxu0 0.0
        %1354 = vmatpush.msra.mxu0 %v1137
        %1355 = vmatpush.msra.mxu0 %v958
        %1356 = vmatpush.msra.mxu0 %v957
        %1357 = vmatmul.f32.gmra.mxu0 %v1333
        %v1358 = vpop.f32.mrf.mxu0
        %v1359 = vadd.f32 0.0, %v1358
        %1360 = vmatmul.f32.gmra.mxu0 %v1336
        %v1361 = vpop.f32.mrf.mxu0
        %v1362 = vadd.f32 0.0, %v1361
        %1363 = vmatmul.f32.gmra.mxu0 %v1339
        %v1364 = vpop.f32.mrf.mxu0
        %v1365 = vadd.f32 0.0, %v1364
        %1366 = vdwg.mxu0
        %s1367 = scalar_lea.vmem [#allocation10], 64
        %v1368 = vld [vmem:[%s1367] sm:$0xff]
        %v1369 = vld [vmem:[%s1367 + $0x8] sm:$0xff]
        %v1370 = vld [vmem:[%s1367 + $0x10] sm:$0xff]
        %v1371 = vld [vmem:[%s1367 + $0x18] sm:$0xff]
        %v1372 = vld [vmem:[%s1367 + $0x20] sm:$0xff]
        %v1373 = vld [vmem:[%s1367 + $0x28] sm:$0xff]
        %v1374 = vld [vmem:[%s1367 + $0x30] sm:$0xff]
        %v1375 = vld [vmem:[%s1367 + $0x38] sm:$0xff]
        %v1377 = vsel %vm968, %v1359, 0
        %v1380 = vsel %vm968, %v1362, 0
        %v1383 = vsel %vm968, %v1365, 0
        %1385 = vmatpush.msra.mxu0 0.0
        %1386 = vmatpush.msra.mxu0 0.0
        %1387 = vmatpush.msra.mxu0 0.0
        %1388 = vmatpush.msra.mxu0 0.0
        %1389 = vmatpush.msra.mxu0 0.0
        %1390 = vmatpush.msra.mxu0 0.0
        %1391 = vmatpush.msra.mxu0 0.0
        %1392 = vmatpush.msra.mxu0 0.0
        %1393 = vmatpush.msra.mxu0 0.0
        %1394 = vmatpush.msra.mxu0 0.0
        %1395 = vmatpush.msra.mxu0 0.0
        %1396 = vmatpush.msra.mxu0 0.0
        %1397 = vmatpush.msra.mxu0 %v1374
        %1398 = vmatpush.msra.mxu0 %v1372
        %1399 = vmatpush.msra.mxu0 %v1370
        %1400 = vmatpush.msra.mxu0 %v1368
        %1401 = vmatmul.f32.gmra.mxu0 %v1377
        %v1402 = vpop.f32.mrf.mxu0
        %v1403 = vadd.f32 0.0, %v1402
        %1404 = vmatmul.f32.gmra.mxu0 %v1380
        %v1405 = vpop.f32.mrf.mxu0
        %v1406 = vadd.f32 0.0, %v1405
        %1407 = vmatmul.f32.gmra.mxu0 %v1383
        %v1408 = vpop.f32.mrf.mxu0
        %v1409 = vadd.f32 0.0, %v1408
        %1410 = vdwg.mxu0
        %1411 = vmatpush.msra.mxu0 0.0
        %1412 = vmatpush.msra.mxu0 0.0
        %1413 = vmatpush.msra.mxu0 0.0
        %1414 = vmatpush.msra.mxu0 0.0
        %1415 = vmatpush.msra.mxu0 0.0
        %1416 = vmatpush.msra.mxu0 0.0
        %1417 = vmatpush.msra.mxu0 0.0
        %1418 = vmatpush.msra.mxu0 0.0
        %1419 = vmatpush.msra.mxu0 0.0
        %1420 = vmatpush.msra.mxu0 0.0
        %1421 = vmatpush.msra.mxu0 0.0
        %1422 = vmatpush.msra.mxu0 0.0
        %1423 = vmatpush.msra.mxu0 %v1375
        %1424 = vmatpush.msra.mxu0 %v1373
        %1425 = vmatpush.msra.mxu0 %v1371
        %1426 = vmatpush.msra.mxu0 %v1369
        %1427 = vmatmul.f32.gmra.mxu0 %v1377
        %v1428 = vpop.f32.mrf.mxu0
        %v1429 = vadd.f32 0.0, %v1428
        %1430 = vmatmul.f32.gmra.mxu0 %v1380
        %v1431 = vpop.f32.mrf.mxu0
        %v1432 = vadd.f32 0.0, %v1431
        %1433 = vmatmul.f32.gmra.mxu0 %v1383
        %v1434 = vpop.f32.mrf.mxu0
        %v1435 = vadd.f32 0.0, %v1434
        %1436 = vdwg.mxu0
        %v1438 = vsel %vm968, %v1157, 0
        %v1441 = vsel %vm968, %v1160, 0
        %v1444 = vsel %vm968, %v1163, 0
        %1446 = vmatpush.msra.mxu0 0.0
        %1447 = vmatpush.msra.mxu0 0.0
        %1448 = vmatpush.msra.mxu0 0.0
        %1449 = vmatpush.msra.mxu0 0.0
        %1450 = vmatpush.msra.mxu0 0.0
        %1451 = vmatpush.msra.mxu0 0.0
        %1452 = vmatpush.msra.mxu0 0.0
        %1453 = vmatpush.msra.mxu0 0.0
        %1454 = vmatpush.msra.mxu0 0.0
        %1455 = vmatpush.msra.mxu0 0.0
        %1456 = vmatpush.msra.mxu0 0.0
        %1457 = vmatpush.msra.mxu0 0.0
        %1458 = vmatpush.msra.mxu0 %v1171
        %1459 = vmatpush.msra.mxu0 %v1169
        %1460 = vmatpush.msra.mxu0 %v1167
        %1461 = vmatpush.msra.mxu0 %v1165
        %1462 = vmatmul.f32.gmra.mxu0 %v1438
        %v1463 = vpop.f32.mrf.mxu0
        %v1464 = vadd.f32 %v1403, %v1463
        %1465 = vmatmul.f32.gmra.mxu0 %v1441
        %v1466 = vpop.f32.mrf.mxu0
        %v1467 = vadd.f32 %v1406, %v1466
        %1468 = vmatmul.f32.gmra.mxu0 %v1444
        %v1469 = vpop.f32.mrf.mxu0
        %v1470 = vadd.f32 %v1409, %v1469
        %1471 = vdwg.mxu0
        %1472 = vmatpush.msra.mxu0 0.0
        %1473 = vmatpush.msra.mxu0 0.0
        %1474 = vmatpush.msra.mxu0 0.0
        %1475 = vmatpush.msra.mxu0 0.0
        %1476 = vmatpush.msra.mxu0 0.0
        %1477 = vmatpush.msra.mxu0 0.0
        %1478 = vmatpush.msra.mxu0 0.0
        %1479 = vmatpush.msra.mxu0 0.0
        %1480 = vmatpush.msra.mxu0 0.0
        %1481 = vmatpush.msra.mxu0 0.0
        %1482 = vmatpush.msra.mxu0 0.0
        %1483 = vmatpush.msra.mxu0 0.0
        %1484 = vmatpush.msra.mxu0 %v1172
        %1485 = vmatpush.msra.mxu0 %v1170
        %1486 = vmatpush.msra.mxu0 %v1168
        %1487 = vmatpush.msra.mxu0 %v1166
        %1488 = vmatmul.f32.gmra.mxu0 %v1438
        %v1489 = vpop.f32.mrf.mxu0
        %v1490 = vadd.f32 %v1429, %v1489
        %1491 = vmatmul.f32.gmra.mxu0 %v1441
        %v1492 = vpop.f32.mrf.mxu0
        %v1493 = vadd.f32 %v1432, %v1492
        %1494 = vmatmul.f32.gmra.mxu0 %v1444
        %v1495 = vpop.f32.mrf.mxu0
        %v1496 = vadd.f32 %v1435, %v1495
        %1497 = vdwg.mxu0
        %s1498 = scalar_lea.vmem [#allocation4], 64
        %v1499 = vld [vmem:[%s1498] sm:$0xff]
        %v1500 = vld [vmem:[%s1498 + $0x8] sm:$0xff]
        %v1501 = vld [vmem:[%s1498 + $0x10] sm:$0xff]
        %v1502 = vld [vmem:[%s1498 + $0x18] sm:$0xff]
        %s1503 = scalar_lea.vmem [#allocation6], 2
        %v1504 = vld [vmem:[%s1503] sm:$0x1]
        %v1506 = vperm.slane %v1504, 0
        %1508 = vmatpush.msra.mxu0 0.0
        %1509 = vmatpush.msra.mxu0 0.0
        %1510 = vmatpush.msra.mxu0 0.0
        %1511 = vmatpush.msra.mxu0 0.0
        %1512 = vmatpush.msra.mxu0 0.0
        %1513 = vmatpush.msra.mxu0 0.0
        %1514 = vmatpush.msra.mxu0 0.0
        %1515 = vmatpush.msra.mxu0 0.0
        %1516 = vmatpush.msra.mxu0 0.0
        %1517 = vmatpush.msra.mxu0 0.0
        %1518 = vmatpush.msra.mxu0 0.0
        %1519 = vmatpush.msra.mxu0 0.0
        %1520 = vmatpush.msra.mxu0 %v1502
        %1521 = vmatpush.msra.mxu0 %v1501
        %1522 = vmatpush.msra.mxu0 %v1500
        %1523 = vmatpush.msra.mxu0 %v1499
        %1524 = vmatmul.f32.gmra.mxu0 %v970
        %v1525 = vpop.f32.mrf.mxu0
        %v1526 = vadd.f32 %v1506, %v1525
        %1527 = vmatmul.f32.gmra.mxu0 %v973
        %v1528 = vpop.f32.mrf.mxu0
        %v1529 = vadd.f32 %v1506, %v1528
        %1530 = vmatmul.f32.gmra.mxu0 %v976
        %v1531 = vpop.f32.mrf.mxu0
        %v1532 = vadd.f32 %v1506, %v1531
        %1533 = vdwg.mxu0
        %s1534 = scalar_lea.vmem [#allocation7], 64
        %v1535 = vld [vmem:[%s1534] sm:$0xff]
        %v1536 = vld [vmem:[%s1534 + $0x8] sm:$0xff]
        %v1537 = vld [vmem:[%s1534 + $0x10] sm:$0xff]
        %v1538 = vld [vmem:[%s1534 + $0x18] sm:$0xff]
        %s1539 = scalar_lea.vmem [#allocation9], 2
        %v1540 = vld [vmem:[%s1539] sm:$0x1]
        %v1542 = vperm.slane %v1540, 0
        %1544 = vmatpush.msra.mxu0 0.0
        %1545 = vmatpush.msra.mxu0 0.0
        %1546 = vmatpush.msra.mxu0 0.0
        %1547 = vmatpush.msra.mxu0 0.0
        %1548 = vmatpush.msra.mxu0 0.0
        %1549 = vmatpush.msra.mxu0 0.0
        %1550 = vmatpush.msra.mxu0 0.0
        %1551 = vmatpush.msra.mxu0 0.0
        %1552 = vmatpush.msra.mxu0 0.0
        %1553 = vmatpush.msra.mxu0 0.0
        %1554 = vmatpush.msra.mxu0 0.0
        %1555 = vmatpush.msra.mxu0 0.0
        %1556 = vmatpush.msra.mxu0 %v1538
        %1557 = vmatpush.msra.mxu0 %v1537
        %1558 = vmatpush.msra.mxu0 %v1536
        %1559 = vmatpush.msra.mxu0 %v1535
        %1560 = vmatmul.f32.gmra.mxu0 %v970
        %v1561 = vpop.f32.mrf.mxu0
        %v1562 = vadd.f32 %v1542, %v1561
        %1563 = vmatmul.f32.gmra.mxu0 %v973
        %v1564 = vpop.f32.mrf.mxu0
        %v1565 = vadd.f32 %v1542, %v1564
        %1566 = vmatmul.f32.gmra.mxu0 %v976
        %v1567 = vpop.f32.mrf.mxu0
        %v1568 = vadd.f32 %v1542, %v1567
        %1569 = vdwg.mxu0
        %v1571 = vsel %vm1038, %v1562, 0
        %v1574 = vsel %vm1038, %v1565, 0
        %v1577 = vsel %vm1038, %v1568, 0
        %v1580 = vsel %vm1038, %v1526, 0
        %v1583 = vsel %vm1038, %v1529, 0
        %v1586 = vsel %vm1038, %v1532, 0
        %1588 = vmatpush.xpose.msra.mxu0 0.0
        %1589 = vmatpush.xpose.msra.mxu0 0.0
        %1590 = vmatpush.xpose.msra.mxu0 0.0
        %1591 = vmatpush.xpose.msra.mxu0 0.0
        %1592 = vmatpush.xpose.msra.mxu0 0.0
        %1593 = vmatpush.xpose.msra.mxu0 0.0
        %1594 = vmatpush.xpose.msra.mxu0 0.0
        %1595 = vmatpush.xpose.msra.mxu0 0.0
        %1596 = vmatpush.xpose.msra.mxu0 0.0
        %1597 = vmatpush.xpose.msra.mxu0 0.0
        %1598 = vmatpush.xpose.msra.mxu0 0.0
        %1599 = vmatpush.xpose.msra.mxu0 0.0
        %1600 = vmatpush.xpose.msra.mxu0 0.0
        %1601 = vmatpush.xpose.msra.mxu0 %v1586
        %1602 = vmatpush.xpose.msra.mxu0 %v1583
        %1603 = vmatpush.xpose.msra.mxu0 %v1580
        %1604 = vmatmul.f32.gmra.mxu0 %v1571
        %v1605 = vpop.f32.mrf.mxu0
        %v1606 = vadd.f32 0.0, %v1605
        %1607 = vmatmul.f32.gmra.mxu0 %v1574
        %v1608 = vpop.f32.mrf.mxu0
        %v1609 = vadd.f32 0.0, %v1608
        %1610 = vmatmul.f32.gmra.mxu0 %v1577
        %v1611 = vpop.f32.mrf.mxu0
        %v1612 = vadd.f32 0.0, %v1611
        %1613 = vdwg.mxu0
        %v1614 = vmul.f32 %v1606, 0.015625
        %v1615 = vmul.f32 %v1609, 0.015625
        %v1616 = vmul.f32 %v1612, 0.015625
        %v1617 = vsel %vm1086, %v1614, -inf
        %1618 = vmax.xlane.f32.xlu0 %v1617
        %v1619 = vpop.xlane.xlu0 %1618
        %v1620 = vsel %vm1086, %v1615, -inf
        %1621 = vmax.xlane.f32.xlu0 %v1620
        %v1622 = vpop.xlane.xlu0 %1621
        %v1623 = vsel %vm1093, %v1616, -inf
        %1624 = vmax.xlane.f32.xlu0 %v1623
        %v1625 = vpop.xlane.xlu0 %1624
        %v1626 = vsub.f32 %v1614, %v1619
        %v1627 = vsub.f32 %v1615, %v1622
        %v1628 = vsub.f32 %v1616, %v1625
        %v1629 = vmul.f32 %v1626, 1.442695
        %v1630 = vpow.pop %v1629
        %v1631 = vmul.f32 %v1627, 1.442695
        %v1632 = vpow.pop %v1631
        %v1633 = vmul.f32 %v1628, 1.442695
        %v1634 = vpow.pop %v1633
        %v1635 = vsel %vm1086, %v1630, 0.0
        %1636 = vadd.xlane.f32.xlu0 %v1635
        %v1637 = vpop.xlane.xlu0 %1636
        %v1638 = vsel %vm1086, %v1632, 0.0
        %1639 = vadd.xlane.f32.xlu0 %v1638
        %v1640 = vpop.xlane.xlu0 %1639
        %v1641 = vsel %vm1093, %v1634, 0.0
        %1642 = vadd.xlane.f32.xlu0 %v1641
        %v1643 = vpop.xlane.xlu0 %1642
        %v1644 = vrcp.pop %v1637
        %v1645 = vrcp.pop %v1640
        %v1646 = vrcp.pop %v1643
        %v1647 = vmul.f32 %v1630, %v1644
        %v1648 = vmul.f32 %v1632, %v1645
        %v1649 = vmul.f32 %v1634, %v1646
        %s1650 = scalar_lea.vmem [#allocation2], 48
        %v1651 = vld [vmem:[%s1650] sm:$0xff]
        %v1652 = vld [vmem:[%s1650 + $0x8] sm:$0xff]
        %v1653 = vld [vmem:[%s1650 + $0x10] sm:$0x1]
        %v1654 = vadd.f32 %v1647, %v1651
        %v1655 = vadd.f32 %v1648, %v1652
        %v1656 = vadd.f32 %v1649, %v1653
        %v1658 = vsel %vm1086, %v1654, 0
        %v1661 = vsel %vm1086, %v1655, 0
        %v1664 = vsel %vm1086, %v1656, 0
        %1666 = vmatpush.msra.mxu0 0.0
        %1667 = vmatpush.msra.mxu0 0.0
        %1668 = vmatpush.msra.mxu0 0.0
        %1669 = vmatpush.msra.mxu0 0.0
        %1670 = vmatpush.msra.mxu0 0.0
        %1671 = vmatpush.msra.mxu0 0.0
        %1672 = vmatpush.msra.mxu0 0.0
        %1673 = vmatpush.msra.mxu0 0.0
        %1674 = vmatpush.msra.mxu0 0.0
        %1675 = vmatpush.msra.mxu0 0.0
        %1676 = vmatpush.msra.mxu0 0.0
        %1677 = vmatpush.msra.mxu0 0.0
        %1678 = vmatpush.msra.mxu0 0.0
        %1679 = vmatpush.msra.mxu0 %v1137
        %1680 = vmatpush.msra.mxu0 %v958
        %1681 = vmatpush.msra.mxu0 %v957
        %1682 = vmatmul.f32.gmra.mxu0 %v1658
        %v1683 = vpop.f32.mrf.mxu0
        %v1684 = vadd.f32 0.0, %v1683
        %1685 = vmatmul.f32.gmra.mxu0 %v1661
        %v1686 = vpop.f32.mrf.mxu0
        %v1687 = vadd.f32 0.0, %v1686
        %1688 = vmatmul.f32.gmra.mxu0 %v1664
        %v1689 = vpop.f32.mrf.mxu0
        %v1690 = vadd.f32 0.0, %v1689
        %1691 = vdwg.mxu0
        %s1692 = scalar_lea.vmem [#allocation10], 128
        %v1693 = vld [vmem:[%s1692] sm:$0xff]
        %v1694 = vld [vmem:[%s1692 + $0x8] sm:$0xff]
        %v1695 = vld [vmem:[%s1692 + $0x10] sm:$0xff]
        %v1696 = vld [vmem:[%s1692 + $0x18] sm:$0xff]
        %v1697 = vld [vmem:[%s1692 + $0x20] sm:$0xff]
        %v1698 = vld [vmem:[%s1692 + $0x28] sm:$0xff]
        %v1699 = vld [vmem:[%s1692 + $0x30] sm:$0xff]
        %v1700 = vld [vmem:[%s1692 + $0x38] sm:$0xff]
        %v1702 = vsel %vm968, %v1684, 0
        %v1705 = vsel %vm968, %v1687, 0
        %v1708 = vsel %vm968, %v1690, 0
        %1710 = vmatpush.msra.mxu0 0.0
        %1711 = vmatpush.msra.mxu0 0.0
        %1712 = vmatpush.msra.mxu0 0.0
        %1713 = vmatpush.msra.mxu0 0.0
        %1714 = vmatpush.msra.mxu0 0.0
        %1715 = vmatpush.msra.mxu0 0.0
        %1716 = vmatpush.msra.mxu0 0.0
        %1717 = vmatpush.msra.mxu0 0.0
        %1718 = vmatpush.msra.mxu0 0.0
        %1719 = vmatpush.msra.mxu0 0.0
        %1720 = vmatpush.msra.mxu0 0.0
        %1721 = vmatpush.msra.mxu0 0.0
        %1722 = vmatpush.msra.mxu0 %v1699
        %1723 = vmatpush.msra.mxu0 %v1697
        %1724 = vmatpush.msra.mxu0 %v1695
        %1725 = vmatpush.msra.mxu0 %v1693
        %1726 = vmatmul.f32.gmra.mxu0 %v1702
        %v1727 = vpop.f32.mrf.mxu0
        %v1728 = vadd.f32 0.0, %v1727
        %1729 = vmatmul.f32.gmra.mxu0 %v1705
        %v1730 = vpop.f32.mrf.mxu0
        %v1731 = vadd.f32 0.0, %v1730
        %1732 = vmatmul.f32.gmra.mxu0 %v1708
        %v1733 = vpop.f32.mrf.mxu0
        %v1734 = vadd.f32 0.0, %v1733
        %1735 = vdwg.mxu0
        %1736 = vmatpush.msra.mxu0 0.0
        %1737 = vmatpush.msra.mxu0 0.0
        %1738 = vmatpush.msra.mxu0 0.0
        %1739 = vmatpush.msra.mxu0 0.0
        %1740 = vmatpush.msra.mxu0 0.0
        %1741 = vmatpush.msra.mxu0 0.0
        %1742 = vmatpush.msra.mxu0 0.0
        %1743 = vmatpush.msra.mxu0 0.0
        %1744 = vmatpush.msra.mxu0 0.0
        %1745 = vmatpush.msra.mxu0 0.0
        %1746 = vmatpush.msra.mxu0 0.0
        %1747 = vmatpush.msra.mxu0 0.0
        %1748 = vmatpush.msra.mxu0 %v1700
        %1749 = vmatpush.msra.mxu0 %v1698
        %1750 = vmatpush.msra.mxu0 %v1696
        %1751 = vmatpush.msra.mxu0 %v1694
        %1752 = vmatmul.f32.gmra.mxu0 %v1702
        %v1753 = vpop.f32.mrf.mxu0
        %v1754 = vadd.f32 0.0, %v1753
        %1755 = vmatmul.f32.gmra.mxu0 %v1705
        %v1756 = vpop.f32.mrf.mxu0
        %v1757 = vadd.f32 0.0, %v1756
        %1758 = vmatmul.f32.gmra.mxu0 %v1708
        %v1759 = vpop.f32.mrf.mxu0
        %v1760 = vadd.f32 0.0, %v1759
        %1761 = vdwg.mxu0
        %v1762 = vadd.f32 %v1464, %v1728
        %v1763 = vadd.f32 %v1490, %v1754
        %v1764 = vadd.f32 %v1467, %v1731
        %v1765 = vadd.f32 %v1493, %v1757
        %v1766 = vadd.f32 %v1470, %v1734
        %v1767 = vadd.f32 %v1496, %v1760
        %v1768 = vld [vmem:[#allocation12] sm:$0x3]
        %v1770 = vperm.slane %v1768, 0
        %v1771 = vperm.slane %v1768, 1
        %v1774 = vadd.f32 %v1762, %v1770
        %v1775 = vadd.f32 %v1763, %v1771
        %v1776 = vadd.f32 %v1764, %v1770
        %v1777 = vadd.f32 %v1765, %v1771
        %v1778 = vadd.f32 %v1766, %v1770
        %v1779 = vadd.f32 %v1767, %v1771
        %v1780 = vld [vmem:[#allocation13] sm:$0xff]
        %v1781 = vld [vmem:[#allocation13 + $0x8] sm:$0xff]
        %v1782 = vld [vmem:[#allocation13 + $0x10] sm:$0xff]
        %v1783 = vld [vmem:[#allocation13 + $0x18] sm:$0xff]
        %v1784 = vld [vmem:[#allocation13 + $0x20] sm:$0xff]
        %v1785 = vld [vmem:[#allocation13 + $0x28] sm:$0xff]
        %v1786 = vld [vmem:[#allocation13 + $0x30] sm:$0xff]
        %v1787 = vld [vmem:[#allocation13 + $0x38] sm:$0xff]
        %v1788 = vld [vmem:[#allocation15] sm:$0x3]
        %v1790 = vperm.slane %v1788, 0
        %v1791 = vperm.slane %v1788, 1
        %1794 = vmatpush.msra.mxu0 0.0
        %1795 = vmatpush.msra.mxu0 0.0
        %1796 = vmatpush.msra.mxu0 0.0
        %1797 = vmatpush.msra.mxu0 0.0
        %1798 = vmatpush.msra.mxu0 0.0
        %1799 = vmatpush.msra.mxu0 0.0
        %1800 = vmatpush.msra.mxu0 0.0
        %1801 = vmatpush.msra.mxu0 0.0
        %1802 = vmatpush.msra.mxu0 0.0
        %1803 = vmatpush.msra.mxu0 0.0
        %1804 = vmatpush.msra.mxu0 0.0
        %1805 = vmatpush.msra.mxu0 0.0
        %1806 = vmatpush.msra.mxu0 %v1786
        %1807 = vmatpush.msra.mxu0 %v1784
        %1808 = vmatpush.msra.mxu0 %v1782
        %1809 = vmatpush.msra.mxu0 %v1780
        %1810 = vmatmul.f32.gmra.mxu0 %v970
        %v1811 = vpop.f32.mrf.mxu0
        %v1812 = vadd.f32 %v1790, %v1811
        %1813 = vmatmul.f32.gmra.mxu0 %v973
        %v1814 = vpop.f32.mrf.mxu0
        %v1815 = vadd.f32 %v1790, %v1814
        %1816 = vmatmul.f32.gmra.mxu0 %v976
        %v1817 = vpop.f32.mrf.mxu0
        %v1818 = vadd.f32 %v1790, %v1817
        %1819 = vdwg.mxu0
        %1820 = vmatpush.msra.mxu0 0.0
        %1821 = vmatpush.msra.mxu0 0.0
        %1822 = vmatpush.msra.mxu0 0.0
        %1823 = vmatpush.msra.mxu0 0.0
        %1824 = vmatpush.msra.mxu0 0.0
        %1825 = vmatpush.msra.mxu0 0.0
        %1826 = vmatpush.msra.mxu0 0.0
        %1827 = vmatpush.msra.mxu0 0.0
        %1828 = vmatpush.msra.mxu0 0.0
        %1829 = vmatpush.msra.mxu0 0.0
        %1830 = vmatpush.msra.mxu0 0.0
        %1831 = vmatpush.msra.mxu0 0.0
        %1832 = vmatpush.msra.mxu0 %v1787
        %1833 = vmatpush.msra.mxu0 %v1785
        %1834 = vmatpush.msra.mxu0 %v1783
        %1835 = vmatpush.msra.mxu0 %v1781
        %1836 = vmatmul.f32.gmra.mxu0 %v970
        %v1837 = vpop.f32.mrf.mxu0
        %v1838 = vadd.f32 %v1791, %v1837
        %1839 = vmatmul.f32.gmra.mxu0 %v973
        %v1840 = vpop.f32.mrf.mxu0
        %v1841 = vadd.f32 %v1791, %v1840
        %1842 = vmatmul.f32.gmra.mxu0 %v976
        %v1843 = vpop.f32.mrf.mxu0
        %v1844 = vadd.f32 %v1791, %v1843
        %1845 = vdwg.mxu0
        %v1846 = vadd.f32 %v1774, %v1812
        %v1847 = vadd.f32 %v1775, %v1838
        %v1848 = vadd.f32 %v1776, %v1815
        %v1849 = vadd.f32 %v1777, %v1841
        %v1850 = vadd.f32 %v1778, %v1818
        %v1851 = vadd.f32 %v1779, %v1844
        %v1852 = vmax.f32 %v1846, 0.0
        %v1853 = vmax.f32 %v1847, 0.0
        %v1854 = vmax.f32 %v1848, 0.0
        %v1855 = vmax.f32 %v1849, 0.0
        %v1856 = vmax.f32 %v1850, 0.0
        %v1857 = vmax.f32 %v1851, 0.0
        %v1858 = vld [vmem:[#allocation18] sm:$0xff]
        %v1859 = vld [vmem:[#allocation18 + $0x8] sm:$0xff]
        %v1860 = vld [vmem:[#allocation18 + $0x10] sm:$0xff]
        %v1861 = vld [vmem:[#allocation18 + $0x18] sm:$0xff]
        %v1862 = vld [vmem:[#allocation18 + $0x20] sm:$0xff]
        %v1863 = vld [vmem:[#allocation18 + $0x28] sm:$0xff]
        %v1864 = vld [vmem:[#allocation18 + $0x30] sm:$0xff]
        %v1865 = vld [vmem:[#allocation18 + $0x38] sm:$0xff]
        %v1866 = vld [vmem:[#allocation18 + $0x40] sm:$0xff]
        %v1867 = vld [vmem:[#allocation18 + $0x48] sm:$0xff]
        %v1868 = vld [vmem:[#allocation18 + $0x50] sm:$0xff]
        %v1869 = vld [vmem:[#allocation18 + $0x58] sm:$0xff]
        %v1870 = vld [vmem:[#allocation18 + $0x60] sm:$0xff]
        %v1871 = vld [vmem:[#allocation18 + $0x68] sm:$0xff]
        %v1872 = vld [vmem:[#allocation18 + $0x70] sm:$0xff]
        %v1873 = vld [vmem:[#allocation18 + $0x78] sm:$0xff]
        %v1874 = vld [vmem:[#allocation18 + $0x80] sm:$0xff]
        %v1875 = vld [vmem:[#allocation18 + $0x88] sm:$0xff]
        %v1876 = vld [vmem:[#allocation18 + $0x90] sm:$0xff]
        %v1877 = vld [vmem:[#allocation18 + $0x98] sm:$0xff]
        %v1878 = vld [vmem:[#allocation18 + $0xa0] sm:$0xff]
        %v1879 = vld [vmem:[#allocation18 + $0xa8] sm:$0xff]
        %v1880 = vld [vmem:[#allocation18 + $0xb0] sm:$0xff]
        %v1881 = vld [vmem:[#allocation18 + $0xb8] sm:$0xff]
        %v1882 = vld [vmem:[#allocation18 + $0xc0] sm:$0xff]
        %v1883 = vld [vmem:[#allocation18 + $0xc8] sm:$0xff]
        %v1884 = vld [vmem:[#allocation18 + $0xd0] sm:$0xff]
        %v1885 = vld [vmem:[#allocation18 + $0xd8] sm:$0xff]
        %v1886 = vld [vmem:[#allocation18 + $0xe0] sm:$0xff]
        %v1887 = vld [vmem:[#allocation18 + $0xe8] sm:$0xff]
        %v1888 = vld [vmem:[#allocation18 + $0xf0] sm:$0xff]
        %v1889 = vld [vmem:[#allocation18 + $0xf8] sm:$0xff]
        %v1890 = vld [vmem:[#allocation19] sm:$0x1]
        %v1892 = vperm.slane %v1890, 0
        %1894 = vmatpush.msra.mxu0 %v1873
        %1895 = vmatpush.msra.mxu0 %v1872
        %1896 = vmatpush.msra.mxu0 %v1871
        %1897 = vmatpush.msra.mxu0 %v1870
        %1898 = vmatpush.msra.mxu0 %v1869
        %1899 = vmatpush.msra.mxu0 %v1868
        %1900 = vmatpush.msra.mxu0 %v1867
        %1901 = vmatpush.msra.mxu0 %v1866
        %1902 = vmatpush.msra.mxu0 %v1865
        %1903 = vmatpush.msra.mxu0 %v1864
        %1904 = vmatpush.msra.mxu0 %v1863
        %1905 = vmatpush.msra.mxu0 %v1862
        %1906 = vmatpush.msra.mxu0 %v1861
        %1907 = vmatpush.msra.mxu0 %v1860
        %1908 = vmatpush.msra.mxu0 %v1859
        %1909 = vmatpush.msra.mxu0 %v1858
        %1910 = vmatmul.f32.gmra.mxu0 %v1852
        %v1911 = vpop.f32.mrf.mxu0
        %v1912 = vadd.f32 %v1892, %v1911
        %1913 = vmatmul.f32.gmra.mxu0 %v1854
        %v1914 = vpop.f32.mrf.mxu0
        %v1915 = vadd.f32 %v1892, %v1914
        %1916 = vmatmul.f32.gmra.mxu0 %v1856
        %v1917 = vpop.f32.mrf.mxu0
        %v1918 = vadd.f32 %v1892, %v1917
        %1919 = vdwg.mxu0
        %1920 = vmatpush.msra.mxu0 %v1889
        %1921 = vmatpush.msra.mxu0 %v1888
        %1922 = vmatpush.msra.mxu0 %v1887
        %1923 = vmatpush.msra.mxu0 %v1886
        %1924 = vmatpush.msra.mxu0 %v1885
        %1925 = vmatpush.msra.mxu0 %v1884
        %1926 = vmatpush.msra.mxu0 %v1883
        %1927 = vmatpush.msra.mxu0 %v1882
        %1928 = vmatpush.msra.mxu0 %v1881
        %1929 = vmatpush.msra.mxu0 %v1880
        %1930 = vmatpush.msra.mxu0 %v1879
        %1931 = vmatpush.msra.mxu0 %v1878
        %1932 = vmatpush.msra.mxu0 %v1877
        %1933 = vmatpush.msra.mxu0 %v1876
        %1934 = vmatpush.msra.mxu0 %v1875
        %1935 = vmatpush.msra.mxu0 %v1874
        %1936 = vmatmul.f32.gmra.mxu0 %v1853
        %v1937 = vpop.f32.mrf.mxu0
        %v1938 = vadd.f32 %v1912, %v1937
        %1939 = vmatmul.f32.gmra.mxu0 %v1855
        %v1940 = vpop.f32.mrf.mxu0
        %v1941 = vadd.f32 %v1915, %v1940
        %1942 = vmatmul.f32.gmra.mxu0 %v1857
        %v1943 = vpop.f32.mrf.mxu0
        %v1944 = vadd.f32 %v1918, %v1943
        %1945 = vdwg.mxu0
        %v1946 = vld [vmem:[#allocation21] sm:$0xff]
        %v1947 = vld [vmem:[#allocation21 + $0x8] sm:$0xff]
        %v1948 = vld [vmem:[#allocation21 + $0x10] sm:$0xff]
        %v1949 = vld [vmem:[#allocation21 + $0x18] sm:$0xff]
        %v1950 = vld [vmem:[#allocation21 + $0x20] sm:$0xff]
        %v1951 = vld [vmem:[#allocation21 + $0x28] sm:$0xff]
        %v1952 = vld [vmem:[#allocation21 + $0x30] sm:$0xff]
        %v1953 = vld [vmem:[#allocation21 + $0x38] sm:$0xff]
        %v1954 = vld [vmem:[#allocation21 + $0x40] sm:$0xff]
        %v1955 = vld [vmem:[#allocation21 + $0x48] sm:$0xff]
        %v1956 = vld [vmem:[#allocation21 + $0x50] sm:$0xff]
        %v1957 = vld [vmem:[#allocation21 + $0x58] sm:$0xff]
        %v1958 = vld [vmem:[#allocation21 + $0x60] sm:$0xff]
        %v1959 = vld [vmem:[#allocation21 + $0x68] sm:$0xff]
        %v1960 = vld [vmem:[#allocation21 + $0x70] sm:$0xff]
        %v1961 = vld [vmem:[#allocation21 + $0x78] sm:$0xff]
        %v1962 = vld [vmem:[#allocation21 + $0x80] sm:$0xff]
        %v1963 = vld [vmem:[#allocation21 + $0x88] sm:$0xff]
        %v1964 = vld [vmem:[#allocation21 + $0x90] sm:$0xff]
        %v1965 = vld [vmem:[#allocation21 + $0x98] sm:$0xff]
        %v1966 = vld [vmem:[#allocation21 + $0xa0] sm:$0xff]
        %v1967 = vld [vmem:[#allocation21 + $0xa8] sm:$0xff]
        %v1968 = vld [vmem:[#allocation21 + $0xb0] sm:$0xff]
        %v1969 = vld [vmem:[#allocation21 + $0xb8] sm:$0xff]
        %v1970 = vld [vmem:[#allocation21 + $0xc0] sm:$0xff]
        %v1971 = vld [vmem:[#allocation21 + $0xc8] sm:$0xff]
        %v1972 = vld [vmem:[#allocation21 + $0xd0] sm:$0xff]
        %v1973 = vld [vmem:[#allocation21 + $0xd8] sm:$0xff]
        %v1974 = vld [vmem:[#allocation21 + $0xe0] sm:$0xff]
        %v1975 = vld [vmem:[#allocation21 + $0xe8] sm:$0xff]
        %v1976 = vld [vmem:[#allocation21 + $0xf0] sm:$0xff]
        %v1977 = vld [vmem:[#allocation21 + $0xf8] sm:$0xff]
        %v1978 = vld [vmem:[#allocation22] sm:$0x1]
        %v1980 = vperm.slane %v1978, 0
        %1982 = vmatpush.msra.mxu0 %v1961
        %1983 = vmatpush.msra.mxu0 %v1960
        %1984 = vmatpush.msra.mxu0 %v1959
        %1985 = vmatpush.msra.mxu0 %v1958
        %1986 = vmatpush.msra.mxu0 %v1957
        %1987 = vmatpush.msra.mxu0 %v1956
        %1988 = vmatpush.msra.mxu0 %v1955
        %1989 = vmatpush.msra.mxu0 %v1954
        %1990 = vmatpush.msra.mxu0 %v1953
        %1991 = vmatpush.msra.mxu0 %v1952
        %1992 = vmatpush.msra.mxu0 %v1951
        %1993 = vmatpush.msra.mxu0 %v1950
        %1994 = vmatpush.msra.mxu0 %v1949
        %1995 = vmatpush.msra.mxu0 %v1948
        %1996 = vmatpush.msra.mxu0 %v1947
        %1997 = vmatpush.msra.mxu0 %v1946
        %1998 = vmatmul.f32.gmra.mxu0 %v1852
        %v1999 = vpop.f32.mrf.mxu0
        %v2000 = vadd.f32 %v1980, %v1999
        %2001 = vmatmul.f32.gmra.mxu0 %v1854
        %v2002 = vpop.f32.mrf.mxu0
        %v2003 = vadd.f32 %v1980, %v2002
        %2004 = vmatmul.f32.gmra.mxu0 %v1856
        %v2005 = vpop.f32.mrf.mxu0
        %v2006 = vadd.f32 %v1980, %v2005
        %2007 = vdwg.mxu0
        %2008 = vmatpush.msra.mxu0 %v1977
        %2009 = vmatpush.msra.mxu0 %v1976
        %2010 = vmatpush.msra.mxu0 %v1975
        %2011 = vmatpush.msra.mxu0 %v1974
        %2012 = vmatpush.msra.mxu0 %v1973
        %2013 = vmatpush.msra.mxu0 %v1972
        %2014 = vmatpush.msra.mxu0 %v1971
        %2015 = vmatpush.msra.mxu0 %v1970
        %2016 = vmatpush.msra.mxu0 %v1969
        %2017 = vmatpush.msra.mxu0 %v1968
        %2018 = vmatpush.msra.mxu0 %v1967
        %2019 = vmatpush.msra.mxu0 %v1966
        %2020 = vmatpush.msra.mxu0 %v1965
        %2021 = vmatpush.msra.mxu0 %v1964
        %2022 = vmatpush.msra.mxu0 %v1963
        %2023 = vmatpush.msra.mxu0 %v1962
        %2024 = vmatmul.f32.gmra.mxu0 %v1853
        %v2025 = vpop.f32.mrf.mxu0
        %v2026 = vadd.f32 %v2000, %v2025
        %2027 = vmatmul.f32.gmra.mxu0 %v1855
        %v2028 = vpop.f32.mrf.mxu0
        %v2029 = vadd.f32 %v2003, %v2028
        %2030 = vmatmul.f32.gmra.mxu0 %v1857
        %v2031 = vpop.f32.mrf.mxu0
        %v2032 = vadd.f32 %v2006, %v2031
        %2033 = vdwg.mxu0
        %2034 = vmatpush.xpose.msra.mxu0 0.0
        %2035 = vmatpush.xpose.msra.mxu0 0.0
        %2036 = vmatpush.xpose.msra.mxu0 0.0
        %2037 = vmatpush.xpose.msra.mxu0 0.0
        %2038 = vmatpush.xpose.msra.mxu0 0.0
        %2039 = vmatpush.xpose.msra.mxu0 0.0
        %2040 = vmatpush.xpose.msra.mxu0 0.0
        %2041 = vmatpush.xpose.msra.mxu0 0.0
        %2042 = vmatpush.xpose.msra.mxu0 0.0
        %2043 = vmatpush.xpose.msra.mxu0 0.0
        %2044 = vmatpush.xpose.msra.mxu0 0.0
        %2045 = vmatpush.xpose.msra.mxu0 0.0
        %2046 = vmatpush.xpose.msra.mxu0 0.0
        %2047 = vmatpush.xpose.msra.mxu0 %v1944
        %2048 = vmatpush.xpose.msra.mxu0 %v1941
        %2049 = vmatpush.xpose.msra.mxu0 %v1938
        %2050 = vmatmul.f32.gmra.mxu0 %v2026
        %v2051 = vpop.f32.mrf.mxu0
        %v2052 = vadd.f32 0.0, %v2051
        %2053 = vmatmul.f32.gmra.mxu0 %v2029
        %v2054 = vpop.f32.mrf.mxu0
        %v2055 = vadd.f32 0.0, %v2054
        %2056 = vmatmul.f32.gmra.mxu0 %v2032
        %v2057 = vpop.f32.mrf.mxu0
        %v2058 = vadd.f32 0.0, %v2057
        %2059 = vdwg.mxu0
        %v2060 = vmul.f32 %v2052, 0.0078125
        %v2061 = vmul.f32 %v2055, 0.0078125
        %v2062 = vmul.f32 %v2058, 0.0078125
        %v2063 = vsel %vm1086, %v2060, -inf
        %2064 = vmax.xlane.f32.xlu0 %v2063
        %v2065 = vpop.xlane.xlu0 %2064
        %v2066 = vsel %vm1086, %v2061, -inf
        %2067 = vmax.xlane.f32.xlu0 %v2066
        %v2068 = vpop.xlane.xlu0 %2067
        %v2069 = vsel %vm1093, %v2062, -inf
        %2070 = vmax.xlane.f32.xlu0 %v2069
        %v2071 = vpop.xlane.xlu0 %2070
        %v2072 = vsub.f32 %v2060, %v2065
        %v2073 = vsub.f32 %v2061, %v2068
        %v2074 = vsub.f32 %v2062, %v2071
        %v2075 = vmul.f32 %v2072, 1.442695
        %v2076 = vpow.pop %v2075
        %v2077 = vmul.f32 %v2073, 1.442695
        %v2078 = vpow.pop %v2077
        %v2079 = vmul.f32 %v2074, 1.442695
        %v2080 = vpow.pop %v2079
        %v2081 = vsel %vm1086, %v2076, 0.0
        %2082 = vadd.xlane.f32.xlu0 %v2081
        %v2083 = vpop.xlane.xlu0 %2082
        %v2084 = vsel %vm1086, %v2078, 0.0
        %2085 = vadd.xlane.f32.xlu0 %v2084
        %v2086 = vpop.xlane.xlu0 %2085
        %v2087 = vsel %vm1093, %v2080, 0.0
        %2088 = vadd.xlane.f32.xlu0 %v2087
        %v2089 = vpop.xlane.xlu0 %2088
        %v2090 = vrcp.pop %v2083
        %v2091 = vrcp.pop %v2086
        %v2092 = vrcp.pop %v2089
        %v2093 = vmul.f32 %v2076, %v2090
        %v2094 = vmul.f32 %v2078, %v2091
        %v2095 = vmul.f32 %v2080, %v2092
        %v2096 = vld [vmem:[#allocation16] sm:$0xff]
        %v2097 = vld [vmem:[#allocation16 + $0x8] sm:$0xff]
        %v2098 = vld [vmem:[#allocation16 + $0x10] sm:$0x1]
        %v2099 = vadd.f32 %v2093, %v2096
        %v2100 = vadd.f32 %v2094, %v2097
        %v2101 = vadd.f32 %v2095, %v2098
        %v2103 = vsel %vm1086, %v2099, 0
        %v2106 = vsel %vm1086, %v2100, 0
        %v2109 = vsel %vm1086, %v2101, 0
        %v2112 = vsel %vm1136, %v1856, 0
        %v2115 = vsel %vm1136, %v1857, 0
        %2117 = vmatpush.msra.mxu0 0.0
        %2118 = vmatpush.msra.mxu0 0.0
        %2119 = vmatpush.msra.mxu0 0.0
        %2120 = vmatpush.msra.mxu0 0.0
        %2121 = vmatpush.msra.mxu0 0.0
        %2122 = vmatpush.msra.mxu0 0.0
        %2123 = vmatpush.msra.mxu0 0.0
        %2124 = vmatpush.msra.mxu0 0.0
        %2125 = vmatpush.msra.mxu0 0.0
        %2126 = vmatpush.msra.mxu0 0.0
        %2127 = vmatpush.msra.mxu0 0.0
        %2128 = vmatpush.msra.mxu0 0.0
        %2129 = vmatpush.msra.mxu0 0.0
        %2130 = vmatpush.msra.mxu0 %v2112
        %2131 = vmatpush.msra.mxu0 %v1854
        %2132 = vmatpush.msra.mxu0 %v1852
        %2133 = vmatmul.f32.gmra.mxu0 %v2103
        %v2134 = vpop.f32.mrf.mxu0
        %v2135 = vadd.f32 0.0, %v2134
        %2136 = vmatmul.f32.gmra.mxu0 %v2106
        %v2137 = vpop.f32.mrf.mxu0
        %v2138 = vadd.f32 0.0, %v2137
        %2139 = vmatmul.f32.gmra.mxu0 %v2109
        %v2140 = vpop.f32.mrf.mxu0
        %v2141 = vadd.f32 0.0, %v2140
        %2142 = vdwg.mxu0
        %2143 = vmatpush.msra.mxu0 0.0
        %2144 = vmatpush.msra.mxu0 0.0
        %2145 = vmatpush.msra.mxu0 0.0
        %2146 = vmatpush.msra.mxu0 0.0
        %2147 = vmatpush.msra.mxu0 0.0
        %2148 = vmatpush.msra.mxu0 0.0
        %2149 = vmatpush.msra.mxu0 0.0
        %2150 = vmatpush.msra.mxu0 0.0
        %2151 = vmatpush.msra.mxu0 0.0
        %2152 = vmatpush.msra.mxu0 0.0
        %2153 = vmatpush.msra.mxu0 0.0
        %2154 = vmatpush.msra.mxu0 0.0
        %2155 = vmatpush.msra.mxu0 0.0
        %2156 = vmatpush.msra.mxu0 %v2115
        %2157 = vmatpush.msra.mxu0 %v1855
        %2158 = vmatpush.msra.mxu0 %v1853
        %2159 = vmatmul.f32.gmra.mxu0 %v2103
        %v2160 = vpop.f32.mrf.mxu0
        %v2161 = vadd.f32 0.0, %v2160
        %2162 = vmatmul.f32.gmra.mxu0 %v2106
        %v2163 = vpop.f32.mrf.mxu0
        %v2164 = vadd.f32 0.0, %v2163
        %2165 = vmatmul.f32.gmra.mxu0 %v2109
        %v2166 = vpop.f32.mrf.mxu0
        %v2167 = vadd.f32 0.0, %v2166
        %2168 = vdwg.mxu0
        %v2169 = vld [vmem:[#allocation24] sm:$0xff]
        %v2170 = vld [vmem:[#allocation24 + $0x8] sm:$0xff]
        %v2171 = vld [vmem:[#allocation24 + $0x10] sm:$0xff]
        %v2172 = vld [vmem:[#allocation24 + $0x18] sm:$0xff]
        %v2173 = vld [vmem:[#allocation24 + $0x20] sm:$0xff]
        %v2174 = vld [vmem:[#allocation24 + $0x28] sm:$0xff]
        %v2175 = vld [vmem:[#allocation24 + $0x30] sm:$0xff]
        %v2176 = vld [vmem:[#allocation24 + $0x38] sm:$0xff]
        %v2177 = vld [vmem:[#allocation24 + $0x40] sm:$0xff]
        %v2178 = vld [vmem:[#allocation24 + $0x48] sm:$0xff]
        %v2179 = vld [vmem:[#allocation24 + $0x50] sm:$0xff]
        %v2180 = vld [vmem:[#allocation24 + $0x58] sm:$0xff]
        %v2181 = vld [vmem:[#allocation24 + $0x60] sm:$0xff]
        %v2182 = vld [vmem:[#allocation24 + $0x68] sm:$0xff]
        %v2183 = vld [vmem:[#allocation24 + $0x70] sm:$0xff]
        %v2184 = vld [vmem:[#allocation24 + $0x78] sm:$0xff]
        %v2185 = vld [vmem:[#allocation24 + $0x80] sm:$0xff]
        %v2186 = vld [vmem:[#allocation24 + $0x88] sm:$0xff]
        %v2187 = vld [vmem:[#allocation24 + $0x90] sm:$0xff]
        %v2188 = vld [vmem:[#allocation24 + $0x98] sm:$0xff]
        %v2189 = vld [vmem:[#allocation24 + $0xa0] sm:$0xff]
        %v2190 = vld [vmem:[#allocation24 + $0xa8] sm:$0xff]
        %v2191 = vld [vmem:[#allocation24 + $0xb0] sm:$0xff]
        %v2192 = vld [vmem:[#allocation24 + $0xb8] sm:$0xff]
        %v2193 = vld [vmem:[#allocation24 + $0xc0] sm:$0xff]
        %v2194 = vld [vmem:[#allocation24 + $0xc8] sm:$0xff]
        %v2195 = vld [vmem:[#allocation24 + $0xd0] sm:$0xff]
        %v2196 = vld [vmem:[#allocation24 + $0xd8] sm:$0xff]
        %v2197 = vld [vmem:[#allocation24 + $0xe0] sm:$0xff]
        %v2198 = vld [vmem:[#allocation24 + $0xe8] sm:$0xff]
        %v2199 = vld [vmem:[#allocation24 + $0xf0] sm:$0xff]
        %v2200 = vld [vmem:[#allocation24 + $0xf8] sm:$0xff]
        %v2201 = vld [vmem:[#allocation24 + $0x100] sm:$0xff]
        %v2202 = vld [vmem:[#allocation24 + $0x108] sm:$0xff]
        %v2203 = vld [vmem:[#allocation24 + $0x110] sm:$0xff]
        %v2204 = vld [vmem:[#allocation24 + $0x118] sm:$0xff]
        %v2205 = vld [vmem:[#allocation24 + $0x120] sm:$0xff]
        %v2206 = vld [vmem:[#allocation24 + $0x128] sm:$0xff]
        %v2207 = vld [vmem:[#allocation24 + $0x130] sm:$0xff]
        %v2208 = vld [vmem:[#allocation24 + $0x138] sm:$0xff]
        %v2209 = vld [vmem:[#allocation24 + $0x140] sm:$0xff]
        %v2210 = vld [vmem:[#allocation24 + $0x148] sm:$0xff]
        %v2211 = vld [vmem:[#allocation24 + $0x150] sm:$0xff]
        %v2212 = vld [vmem:[#allocation24 + $0x158] sm:$0xff]
        %v2213 = vld [vmem:[#allocation24 + $0x160] sm:$0xff]
        %v2214 = vld [vmem:[#allocation24 + $0x168] sm:$0xff]
        %v2215 = vld [vmem:[#allocation24 + $0x170] sm:$0xff]
        %v2216 = vld [vmem:[#allocation24 + $0x178] sm:$0xff]
        %v2217 = vld [vmem:[#allocation24 + $0x180] sm:$0xff]
        %v2218 = vld [vmem:[#allocation24 + $0x188] sm:$0xff]
        %v2219 = vld [vmem:[#allocation24 + $0x190] sm:$0xff]
        %v2220 = vld [vmem:[#allocation24 + $0x198] sm:$0xff]
        %v2221 = vld [vmem:[#allocation24 + $0x1a0] sm:$0xff]
        %v2222 = vld [vmem:[#allocation24 + $0x1a8] sm:$0xff]
        %v2223 = vld [vmem:[#allocation24 + $0x1b0] sm:$0xff]
        %v2224 = vld [vmem:[#allocation24 + $0x1b8] sm:$0xff]
        %v2225 = vld [vmem:[#allocation24 + $0x1c0] sm:$0xff]
        %v2226 = vld [vmem:[#allocation24 + $0x1c8] sm:$0xff]
        %v2227 = vld [vmem:[#allocation24 + $0x1d0] sm:$0xff]
        %v2228 = vld [vmem:[#allocation24 + $0x1d8] sm:$0xff]
        %v2229 = vld [vmem:[#allocation24 + $0x1e0] sm:$0xff]
        %v2230 = vld [vmem:[#allocation24 + $0x1e8] sm:$0xff]
        %v2231 = vld [vmem:[#allocation24 + $0x1f0] sm:$0xff]
        %v2232 = vld [vmem:[#allocation24 + $0x1f8] sm:$0xff]
        %v2233 = vld [vmem:[#allocation24 + $0x200] sm:$0xff]
        %v2234 = vld [vmem:[#allocation24 + $0x208] sm:$0xff]
        %v2235 = vld [vmem:[#allocation24 + $0x210] sm:$0xff]
        %v2236 = vld [vmem:[#allocation24 + $0x218] sm:$0xff]
        %v2237 = vld [vmem:[#allocation24 + $0x220] sm:$0xff]
        %v2238 = vld [vmem:[#allocation24 + $0x228] sm:$0xff]
        %v2239 = vld [vmem:[#allocation24 + $0x230] sm:$0xff]
        %v2240 = vld [vmem:[#allocation24 + $0x238] sm:$0xff]
        %v2241 = vld [vmem:[#allocation24 + $0x240] sm:$0xff]
        %v2242 = vld [vmem:[#allocation24 + $0x248] sm:$0xff]
        %v2243 = vld [vmem:[#allocation24 + $0x250] sm:$0xff]
        %v2244 = vld [vmem:[#allocation24 + $0x258] sm:$0xff]
        %v2245 = vld [vmem:[#allocation24 + $0x260] sm:$0xff]
        %v2246 = vld [vmem:[#allocation24 + $0x268] sm:$0xff]
        %v2247 = vld [vmem:[#allocation24 + $0x270] sm:$0xff]
        %v2248 = vld [vmem:[#allocation24 + $0x278] sm:$0xff]
        %v2249 = vld [vmem:[#allocation24 + $0x280] sm:$0xff]
        %v2250 = vld [vmem:[#allocation24 + $0x288] sm:$0xff]
        %v2251 = vld [vmem:[#allocation24 + $0x290] sm:$0xff]
        %v2252 = vld [vmem:[#allocation24 + $0x298] sm:$0xff]
        %v2253 = vld [vmem:[#allocation24 + $0x2a0] sm:$0xff]
        %v2254 = vld [vmem:[#allocation24 + $0x2a8] sm:$0xff]
        %v2255 = vld [vmem:[#allocation24 + $0x2b0] sm:$0xff]
        %v2256 = vld [vmem:[#allocation24 + $0x2b8] sm:$0xff]
        %v2257 = vld [vmem:[#allocation24 + $0x2c0] sm:$0xff]
        %v2258 = vld [vmem:[#allocation24 + $0x2c8] sm:$0xff]
        %v2259 = vld [vmem:[#allocation24 + $0x2d0] sm:$0xff]
        %v2260 = vld [vmem:[#allocation24 + $0x2d8] sm:$0xff]
        %v2261 = vld [vmem:[#allocation24 + $0x2e0] sm:$0xff]
        %v2262 = vld [vmem:[#allocation24 + $0x2e8] sm:$0xff]
        %v2263 = vld [vmem:[#allocation24 + $0x2f0] sm:$0xff]
        %v2264 = vld [vmem:[#allocation24 + $0x2f8] sm:$0xff]
        %v2265 = vld [vmem:[#allocation24 + $0x300] sm:$0xff]
        %v2266 = vld [vmem:[#allocation24 + $0x308] sm:$0xff]
        %v2267 = vld [vmem:[#allocation24 + $0x310] sm:$0xff]
        %v2268 = vld [vmem:[#allocation24 + $0x318] sm:$0xff]
        %v2269 = vld [vmem:[#allocation24 + $0x320] sm:$0xff]
        %v2270 = vld [vmem:[#allocation24 + $0x328] sm:$0xff]
        %v2271 = vld [vmem:[#allocation24 + $0x330] sm:$0xff]
        %v2272 = vld [vmem:[#allocation24 + $0x338] sm:$0xff]
        %v2273 = vld [vmem:[#allocation24 + $0x340] sm:$0xff]
        %v2274 = vld [vmem:[#allocation24 + $0x348] sm:$0xff]
        %v2275 = vld [vmem:[#allocation24 + $0x350] sm:$0xff]
        %v2276 = vld [vmem:[#allocation24 + $0x358] sm:$0xff]
        %v2277 = vld [vmem:[#allocation24 + $0x360] sm:$0xff]
        %v2278 = vld [vmem:[#allocation24 + $0x368] sm:$0xff]
        %v2279 = vld [vmem:[#allocation24 + $0x370] sm:$0xff]
        %v2280 = vld [vmem:[#allocation24 + $0x378] sm:$0xff]
        %v2281 = vld [vmem:[#allocation24 + $0x380] sm:$0xff]
        %v2282 = vld [vmem:[#allocation24 + $0x388] sm:$0xff]
        %v2283 = vld [vmem:[#allocation24 + $0x390] sm:$0xff]
        %v2284 = vld [vmem:[#allocation24 + $0x398] sm:$0xff]
        %v2285 = vld [vmem:[#allocation24 + $0x3a0] sm:$0xff]
        %v2286 = vld [vmem:[#allocation24 + $0x3a8] sm:$0xff]
        %v2287 = vld [vmem:[#allocation24 + $0x3b0] sm:$0xff]
        %v2288 = vld [vmem:[#allocation24 + $0x3b8] sm:$0xff]
        %v2289 = vld [vmem:[#allocation24 + $0x3c0] sm:$0xff]
        %v2290 = vld [vmem:[#allocation24 + $0x3c8] sm:$0xff]
        %v2291 = vld [vmem:[#allocation24 + $0x3d0] sm:$0xff]
        %v2292 = vld [vmem:[#allocation24 + $0x3d8] sm:$0xff]
        %v2293 = vld [vmem:[#allocation24 + $0x3e0] sm:$0xff]
        %v2294 = vld [vmem:[#allocation24 + $0x3e8] sm:$0xff]
        %v2295 = vld [vmem:[#allocation24 + $0x3f0] sm:$0xff]
        %v2296 = vld [vmem:[#allocation24 + $0x3f8] sm:$0xff]
        %s2297 = scalar_lea.vmem [#allocation18], 256
        %v2298 = vld [vmem:[%s2297] sm:$0xff]
        %v2299 = vld [vmem:[%s2297 + $0x8] sm:$0xff]
        %v2300 = vld [vmem:[%s2297 + $0x10] sm:$0xff]
        %v2301 = vld [vmem:[%s2297 + $0x18] sm:$0xff]
        %v2302 = vld [vmem:[%s2297 + $0x20] sm:$0xff]
        %v2303 = vld [vmem:[%s2297 + $0x28] sm:$0xff]
        %v2304 = vld [vmem:[%s2297 + $0x30] sm:$0xff]
        %v2305 = vld [vmem:[%s2297 + $0x38] sm:$0xff]
        %v2306 = vld [vmem:[%s2297 + $0x40] sm:$0xff]
        %v2307 = vld [vmem:[%s2297 + $0x48] sm:$0xff]
        %v2308 = vld [vmem:[%s2297 + $0x50] sm:$0xff]
        %v2309 = vld [vmem:[%s2297 + $0x58] sm:$0xff]
        %v2310 = vld [vmem:[%s2297 + $0x60] sm:$0xff]
        %v2311 = vld [vmem:[%s2297 + $0x68] sm:$0xff]
        %v2312 = vld [vmem:[%s2297 + $0x70] sm:$0xff]
        %v2313 = vld [vmem:[%s2297 + $0x78] sm:$0xff]
        %v2314 = vld [vmem:[%s2297 + $0x80] sm:$0xff]
        %v2315 = vld [vmem:[%s2297 + $0x88] sm:$0xff]
        %v2316 = vld [vmem:[%s2297 + $0x90] sm:$0xff]
        %v2317 = vld [vmem:[%s2297 + $0x98] sm:$0xff]
        %v2318 = vld [vmem:[%s2297 + $0xa0] sm:$0xff]
        %v2319 = vld [vmem:[%s2297 + $0xa8] sm:$0xff]
        %v2320 = vld [vmem:[%s2297 + $0xb0] sm:$0xff]
        %v2321 = vld [vmem:[%s2297 + $0xb8] sm:$0xff]
        %v2322 = vld [vmem:[%s2297 + $0xc0] sm:$0xff]
        %v2323 = vld [vmem:[%s2297 + $0xc8] sm:$0xff]
        %v2324 = vld [vmem:[%s2297 + $0xd0] sm:$0xff]
        %v2325 = vld [vmem:[%s2297 + $0xd8] sm:$0xff]
        %v2326 = vld [vmem:[%s2297 + $0xe0] sm:$0xff]
        %v2327 = vld [vmem:[%s2297 + $0xe8] sm:$0xff]
        %v2328 = vld [vmem:[%s2297 + $0xf0] sm:$0xff]
        %v2329 = vld [vmem:[%s2297 + $0xf8] sm:$0xff]
        %s2330 = scalar_lea.vmem [#allocation19], 1
        %v2331 = vld [vmem:[%s2330] sm:$0x1]
        %v2333 = vperm.slane %v2331, 0
        %2335 = vmatpush.msra.mxu0 %v2313
        %2336 = vmatpush.msra.mxu0 %v2312
        %2337 = vmatpush.msra.mxu0 %v2311
        %2338 = vmatpush.msra.mxu0 %v2310
        %2339 = vmatpush.msra.mxu0 %v2309
        %2340 = vmatpush.msra.mxu0 %v2308
        %2341 = vmatpush.msra.mxu0 %v2307
        %2342 = vmatpush.msra.mxu0 %v2306
        %2343 = vmatpush.msra.mxu0 %v2305
        %2344 = vmatpush.msra.mxu0 %v2304
        %2345 = vmatpush.msra.mxu0 %v2303
        %2346 = vmatpush.msra.mxu0 %v2302
        %2347 = vmatpush.msra.mxu0 %v2301
        %2348 = vmatpush.msra.mxu0 %v2300
        %2349 = vmatpush.msra.mxu0 %v2299
        %2350 = vmatpush.msra.mxu0 %v2298
        %2351 = vmatmul.f32.gmra.mxu0 %v1852
        %v2352 = vpop.f32.mrf.mxu0
        %v2353 = vadd.f32 %v2333, %v2352
        %2354 = vmatmul.f32.gmra.mxu0 %v1854
        %v2355 = vpop.f32.mrf.mxu0
        %v2356 = vadd.f32 %v2333, %v2355
        %2357 = vmatmul.f32.gmra.mxu0 %v1856
        %v2358 = vpop.f32.mrf.mxu0
        %v2359 = vadd.f32 %v2333, %v2358
        %2360 = vdwg.mxu0
        %2361 = vmatpush.msra.mxu0 %v2329
        %2362 = vmatpush.msra.mxu0 %v2328
        %2363 = vmatpush.msra.mxu0 %v2327
        %2364 = vmatpush.msra.mxu0 %v2326
        %2365 = vmatpush.msra.mxu0 %v2325
        %2366 = vmatpush.msra.mxu0 %v2324
        %2367 = vmatpush.msra.mxu0 %v2323
        %2368 = vmatpush.msra.mxu0 %v2322
        %2369 = vmatpush.msra.mxu0 %v2321
        %2370 = vmatpush.msra.mxu0 %v2320
        %2371 = vmatpush.msra.mxu0 %v2319
        %2372 = vmatpush.msra.mxu0 %v2318
        %2373 = vmatpush.msra.mxu0 %v2317
        %2374 = vmatpush.msra.mxu0 %v2316
        %2375 = vmatpush.msra.mxu0 %v2315
        %2376 = vmatpush.msra.mxu0 %v2314
        %2377 = vmatmul.f32.gmra.mxu0 %v1853
        %v2378 = vpop.f32.mrf.mxu0
        %v2379 = vadd.f32 %v2353, %v2378
        %2380 = vmatmul.f32.gmra.mxu0 %v1855
        %v2381 = vpop.f32.mrf.mxu0
        %v2382 = vadd.f32 %v2356, %v2381
        %2383 = vmatmul.f32.gmra.mxu0 %v1857
        %v2384 = vpop.f32.mrf.mxu0
        %v2385 = vadd.f32 %v2359, %v2384
        %2386 = vdwg.mxu0
        %s2387 = scalar_lea.vmem [#allocation21], 256
        %v2388 = vld [vmem:[%s2387] sm:$0xff]
        %v2389 = vld [vmem:[%s2387 + $0x8] sm:$0xff]
        %v2390 = vld [vmem:[%s2387 + $0x10] sm:$0xff]
        %v2391 = vld [vmem:[%s2387 + $0x18] sm:$0xff]
        %v2392 = vld [vmem:[%s2387 + $0x20] sm:$0xff]
        %v2393 = vld [vmem:[%s2387 + $0x28] sm:$0xff]
        %v2394 = vld [vmem:[%s2387 + $0x30] sm:$0xff]
        %v2395 = vld [vmem:[%s2387 + $0x38] sm:$0xff]
        %v2396 = vld [vmem:[%s2387 + $0x40] sm:$0xff]
        %v2397 = vld [vmem:[%s2387 + $0x48] sm:$0xff]
        %v2398 = vld [vmem:[%s2387 + $0x50] sm:$0xff]
        %v2399 = vld [vmem:[%s2387 + $0x58] sm:$0xff]
        %v2400 = vld [vmem:[%s2387 + $0x60] sm:$0xff]
        %v2401 = vld [vmem:[%s2387 + $0x68] sm:$0xff]
        %v2402 = vld [vmem:[%s2387 + $0x70] sm:$0xff]
        %v2403 = vld [vmem:[%s2387 + $0x78] sm:$0xff]
        %v2404 = vld [vmem:[%s2387 + $0x80] sm:$0xff]
        %v2405 = vld [vmem:[%s2387 + $0x88] sm:$0xff]
        %v2406 = vld [vmem:[%s2387 + $0x90] sm:$0xff]
        %v2407 = vld [vmem:[%s2387 + $0x98] sm:$0xff]
        %v2408 = vld [vmem:[%s2387 + $0xa0] sm:$0xff]
        %v2409 = vld [vmem:[%s2387 + $0xa8] sm:$0xff]
        %v2410 = vld [vmem:[%s2387 + $0xb0] sm:$0xff]
        %v2411 = vld [vmem:[%s2387 + $0xb8] sm:$0xff]
        %v2412 = vld [vmem:[%s2387 + $0xc0] sm:$0xff]
        %v2413 = vld [vmem:[%s2387 + $0xc8] sm:$0xff]
        %v2414 = vld [vmem:[%s2387 + $0xd0] sm:$0xff]
        %v2415 = vld [vmem:[%s2387 + $0xd8] sm:$0xff]
        %v2416 = vld [vmem:[%s2387 + $0xe0] sm:$0xff]
        %v2417 = vld [vmem:[%s2387 + $0xe8] sm:$0xff]
        %v2418 = vld [vmem:[%s2387 + $0xf0] sm:$0xff]
        %v2419 = vld [vmem:[%s2387 + $0xf8] sm:$0xff]
        %s2420 = scalar_lea.vmem [#allocation22], 1
        %v2421 = vld [vmem:[%s2420] sm:$0x1]
        %v2423 = vperm.slane %v2421, 0
        %2425 = vmatpush.msra.mxu0 %v2403
        %2426 = vmatpush.msra.mxu0 %v2402
        %2427 = vmatpush.msra.mxu0 %v2401
        %2428 = vmatpush.msra.mxu0 %v2400
        %2429 = vmatpush.msra.mxu0 %v2399
        %2430 = vmatpush.msra.mxu0 %v2398
        %2431 = vmatpush.msra.mxu0 %v2397
        %2432 = vmatpush.msra.mxu0 %v2396
        %2433 = vmatpush.msra.mxu0 %v2395
        %2434 = vmatpush.msra.mxu0 %v2394
        %2435 = vmatpush.msra.mxu0 %v2393
        %2436 = vmatpush.msra.mxu0 %v2392
        %2437 = vmatpush.msra.mxu0 %v2391
        %2438 = vmatpush.msra.mxu0 %v2390
        %2439 = vmatpush.msra.mxu0 %v2389
        %2440 = vmatpush.msra.mxu0 %v2388
        %2441 = vmatmul.f32.gmra.mxu0 %v1852
        %v2442 = vpop.f32.mrf.mxu0
        %v2443 = vadd.f32 %v2423, %v2442
        %2444 = vmatmul.f32.gmra.mxu0 %v1854
        %v2445 = vpop.f32.mrf.mxu0
        %v2446 = vadd.f32 %v2423, %v2445
        %2447 = vmatmul.f32.gmra.mxu0 %v1856
        %v2448 = vpop.f32.mrf.mxu0
        %v2449 = vadd.f32 %v2423, %v2448
        %2450 = vdwg.mxu0
        %2451 = vmatpush.msra.mxu0 %v2419
        %2452 = vmatpush.msra.mxu0 %v2418
        %2453 = vmatpush.msra.mxu0 %v2417
        %2454 = vmatpush.msra.mxu0 %v2416
        %2455 = vmatpush.msra.mxu0 %v2415
        %2456 = vmatpush.msra.mxu0 %v2414
        %2457 = vmatpush.msra.mxu0 %v2413
        %2458 = vmatpush.msra.mxu0 %v2412
        %2459 = vmatpush.msra.mxu0 %v2411
        %2460 = vmatpush.msra.mxu0 %v2410
        %2461 = vmatpush.msra.mxu0 %v2409
        %2462 = vmatpush.msra.mxu0 %v2408
        %2463 = vmatpush.msra.mxu0 %v2407
        %2464 = vmatpush.msra.mxu0 %v2406
        %2465 = vmatpush.msra.mxu0 %v2405
        %2466 = vmatpush.msra.mxu0 %v2404
        %2467 = vmatmul.f32.gmra.mxu0 %v1853
        %v2468 = vpop.f32.mrf.mxu0
        %v2469 = vadd.f32 %v2443, %v2468
        %2470 = vmatmul.f32.gmra.mxu0 %v1855
        %v2471 = vpop.f32.mrf.mxu0
        %v2472 = vadd.f32 %v2446, %v2471
        %2473 = vmatmul.f32.gmra.mxu0 %v1857
        %v2474 = vpop.f32.mrf.mxu0
        %v2475 = vadd.f32 %v2449, %v2474
        %2476 = vdwg.mxu0
        %2477 = vmatpush.xpose.msra.mxu0 0.0
        %2478 = vmatpush.xpose.msra.mxu0 0.0
        %2479 = vmatpush.xpose.msra.mxu0 0.0
        %2480 = vmatpush.xpose.msra.mxu0 0.0
        %2481 = vmatpush.xpose.msra.mxu0 0.0
        %2482 = vmatpush.xpose.msra.mxu0 0.0
        %2483 = vmatpush.xpose.msra.mxu0 0.0
        %2484 = vmatpush.xpose.msra.mxu0 0.0
        %2485 = vmatpush.xpose.msra.mxu0 0.0
        %2486 = vmatpush.xpose.msra.mxu0 0.0
        %2487 = vmatpush.xpose.msra.mxu0 0.0
        %2488 = vmatpush.xpose.msra.mxu0 0.0
        %2489 = vmatpush.xpose.msra.mxu0 0.0
        %2490 = vmatpush.xpose.msra.mxu0 %v2385
        %2491 = vmatpush.xpose.msra.mxu0 %v2382
        %2492 = vmatpush.xpose.msra.mxu0 %v2379
        %2493 = vmatmul.f32.gmra.mxu0 %v2469
        %v2494 = vpop.f32.mrf.mxu0
        %v2495 = vadd.f32 0.0, %v2494
        %2496 = vmatmul.f32.gmra.mxu0 %v2472
        %v2497 = vpop.f32.mrf.mxu0
        %v2498 = vadd.f32 0.0, %v2497
        %2499 = vmatmul.f32.gmra.mxu0 %v2475
        %v2500 = vpop.f32.mrf.mxu0
        %v2501 = vadd.f32 0.0, %v2500
        %2502 = vdwg.mxu0
        %v2503 = vmul.f32 %v2495, 0.0078125
        %v2504 = vmul.f32 %v2498, 0.0078125
        %v2505 = vmul.f32 %v2501, 0.0078125
        %v2506 = vsel %vm1086, %v2503, -inf
        %2507 = vmax.xlane.f32.xlu0 %v2506
        %v2508 = vpop.xlane.xlu0 %2507
        %v2509 = vsel %vm1086, %v2504, -inf
        %2510 = vmax.xlane.f32.xlu0 %v2509
        %v2511 = vpop.xlane.xlu0 %2510
        %v2512 = vsel %vm1093, %v2505, -inf
        %2513 = vmax.xlane.f32.xlu0 %v2512
        %v2514 = vpop.xlane.xlu0 %2513
        %v2515 = vsub.f32 %v2503, %v2508
        %v2516 = vsub.f32 %v2504, %v2511
        %v2517 = vsub.f32 %v2505, %v2514
        %v2518 = vmul.f32 %v2515, 1.442695
        %v2519 = vpow.pop %v2518
        %v2520 = vmul.f32 %v2516, 1.442695
        %v2521 = vpow.pop %v2520
        %v2522 = vmul.f32 %v2517, 1.442695
        %v2523 = vpow.pop %v2522
        %v2524 = vsel %vm1086, %v2519, 0.0
        %2525 = vadd.xlane.f32.xlu0 %v2524
        %v2526 = vpop.xlane.xlu0 %2525
        %v2527 = vsel %vm1086, %v2521, 0.0
        %2528 = vadd.xlane.f32.xlu0 %v2527
        %v2529 = vpop.xlane.xlu0 %2528
        %v2530 = vsel %vm1093, %v2523, 0.0
        %2531 = vadd.xlane.f32.xlu0 %v2530
        %v2532 = vpop.xlane.xlu0 %2531
        %v2533 = vrcp.pop %v2526
        %v2534 = vrcp.pop %v2529
        %v2535 = vrcp.pop %v2532
        %v2536 = vmul.f32 %v2519, %v2533
        %v2537 = vmul.f32 %v2521, %v2534
        %v2538 = vmul.f32 %v2523, %v2535
        %s2539 = scalar_lea.vmem [#allocation16], 24
        %v2540 = vld [vmem:[%s2539] sm:$0xff]
        %v2541 = vld [vmem:[%s2539 + $0x8] sm:$0xff]
        %v2542 = vld [vmem:[%s2539 + $0x10] sm:$0x1]
        %v2543 = vadd.f32 %v2536, %v2540
        %v2544 = vadd.f32 %v2537, %v2541
        %v2545 = vadd.f32 %v2538, %v2542
        %v2547 = vsel %vm1086, %v2543, 0
        %v2550 = vsel %vm1086, %v2544, 0
        %v2553 = vsel %vm1086, %v2545, 0
        %2555 = vmatpush.msra.mxu0 0.0
        %2556 = vmatpush.msra.mxu0 0.0
        %2557 = vmatpush.msra.mxu0 0.0
        %2558 = vmatpush.msra.mxu0 0.0
        %2559 = vmatpush.msra.mxu0 0.0
        %2560 = vmatpush.msra.mxu0 0.0
        %2561 = vmatpush.msra.mxu0 0.0
        %2562 = vmatpush.msra.mxu0 0.0
        %2563 = vmatpush.msra.mxu0 0.0
        %2564 = vmatpush.msra.mxu0 0.0
        %2565 = vmatpush.msra.mxu0 0.0
        %2566 = vmatpush.msra.mxu0 0.0
        %2567 = vmatpush.msra.mxu0 0.0
        %2568 = vmatpush.msra.mxu0 %v2112
        %2569 = vmatpush.msra.mxu0 %v1854
        %2570 = vmatpush.msra.mxu0 %v1852
        %2571 = vmatmul.f32.gmra.mxu0 %v2547
        %v2572 = vpop.f32.mrf.mxu0
        %v2573 = vadd.f32 0.0, %v2572
        %2574 = vmatmul.f32.gmra.mxu0 %v2550
        %v2575 = vpop.f32.mrf.mxu0
        %v2576 = vadd.f32 0.0, %v2575
        %2577 = vmatmul.f32.gmra.mxu0 %v2553
        %v2578 = vpop.f32.mrf.mxu0
        %v2579 = vadd.f32 0.0, %v2578
        %2580 = vdwg.mxu0
        %2581 = vmatpush.msra.mxu0 0.0
        %2582 = vmatpush.msra.mxu0 0.0
        %2583 = vmatpush.msra.mxu0 0.0
        %2584 = vmatpush.msra.mxu0 0.0
        %2585 = vmatpush.msra.mxu0 0.0
        %2586 = vmatpush.msra.mxu0 0.0
        %2587 = vmatpush.msra.mxu0 0.0
        %2588 = vmatpush.msra.mxu0 0.0
        %2589 = vmatpush.msra.mxu0 0.0
        %2590 = vmatpush.msra.mxu0 0.0
        %2591 = vmatpush.msra.mxu0 0.0
        %2592 = vmatpush.msra.mxu0 0.0
        %2593 = vmatpush.msra.mxu0 0.0
        %2594 = vmatpush.msra.mxu0 %v2115
        %2595 = vmatpush.msra.mxu0 %v1855
        %2596 = vmatpush.msra.mxu0 %v1853
        %2597 = vmatmul.f32.gmra.mxu0 %v2547
        %v2598 = vpop.f32.mrf.mxu0
        %v2599 = vadd.f32 0.0, %v2598
        %2600 = vmatmul.f32.gmra.mxu0 %v2550
        %v2601 = vpop.f32.mrf.mxu0
        %v2602 = vadd.f32 0.0, %v2601
        %2603 = vmatmul.f32.gmra.mxu0 %v2553
        %v2604 = vpop.f32.mrf.mxu0
        %v2605 = vadd.f32 0.0, %v2604
        %2606 = vdwg.mxu0
        %s2607 = scalar_lea.vmem [#allocation24], 1024
        %v2608 = vld [vmem:[%s2607] sm:$0xff]
        %v2609 = vld [vmem:[%s2607 + $0x8] sm:$0xff]
        %v2610 = vld [vmem:[%s2607 + $0x10] sm:$0xff]
        %v2611 = vld [vmem:[%s2607 + $0x18] sm:$0xff]
        %v2612 = vld [vmem:[%s2607 + $0x20] sm:$0xff]
        %v2613 = vld [vmem:[%s2607 + $0x28] sm:$0xff]
        %v2614 = vld [vmem:[%s2607 + $0x30] sm:$0xff]
        %v2615 = vld [vmem:[%s2607 + $0x38] sm:$0xff]
        %v2616 = vld [vmem:[%s2607 + $0x40] sm:$0xff]
        %v2617 = vld [vmem:[%s2607 + $0x48] sm:$0xff]
        %v2618 = vld [vmem:[%s2607 + $0x50] sm:$0xff]
        %v2619 = vld [vmem:[%s2607 + $0x58] sm:$0xff]
        %v2620 = vld [vmem:[%s2607 + $0x60] sm:$0xff]
        %v2621 = vld [vmem:[%s2607 + $0x68] sm:$0xff]
        %v2622 = vld [vmem:[%s2607 + $0x70] sm:$0xff]
        %v2623 = vld [vmem:[%s2607 + $0x78] sm:$0xff]
        %v2624 = vld [vmem:[%s2607 + $0x80] sm:$0xff]
        %v2625 = vld [vmem:[%s2607 + $0x88] sm:$0xff]
        %v2626 = vld [vmem:[%s2607 + $0x90] sm:$0xff]
        %v2627 = vld [vmem:[%s2607 + $0x98] sm:$0xff]
        %v2628 = vld [vmem:[%s2607 + $0xa0] sm:$0xff]
        %v2629 = vld [vmem:[%s2607 + $0xa8] sm:$0xff]
        %v2630 = vld [vmem:[%s2607 + $0xb0] sm:$0xff]
        %v2631 = vld [vmem:[%s2607 + $0xb8] sm:$0xff]
        %v2632 = vld [vmem:[%s2607 + $0xc0] sm:$0xff]
        %v2633 = vld [vmem:[%s2607 + $0xc8] sm:$0xff]
        %v2634 = vld [vmem:[%s2607 + $0xd0] sm:$0xff]
        %v2635 = vld [vmem:[%s2607 + $0xd8] sm:$0xff]
        %v2636 = vld [vmem:[%s2607 + $0xe0] sm:$0xff]
        %v2637 = vld [vmem:[%s2607 + $0xe8] sm:$0xff]
        %v2638 = vld [vmem:[%s2607 + $0xf0] sm:$0xff]
        %v2639 = vld [vmem:[%s2607 + $0xf8] sm:$0xff]
        %v2640 = vld [vmem:[%s2607 + $0x100] sm:$0xff]
        %v2641 = vld [vmem:[%s2607 + $0x108] sm:$0xff]
        %v2642 = vld [vmem:[%s2607 + $0x110] sm:$0xff]
        %v2643 = vld [vmem:[%s2607 + $0x118] sm:$0xff]
        %v2644 = vld [vmem:[%s2607 + $0x120] sm:$0xff]
        %v2645 = vld [vmem:[%s2607 + $0x128] sm:$0xff]
        %v2646 = vld [vmem:[%s2607 + $0x130] sm:$0xff]
        %v2647 = vld [vmem:[%s2607 + $0x138] sm:$0xff]
        %v2648 = vld [vmem:[%s2607 + $0x140] sm:$0xff]
        %v2649 = vld [vmem:[%s2607 + $0x148] sm:$0xff]
        %v2650 = vld [vmem:[%s2607 + $0x150] sm:$0xff]
        %v2651 = vld [vmem:[%s2607 + $0x158] sm:$0xff]
        %v2652 = vld [vmem:[%s2607 + $0x160] sm:$0xff]
        %v2653 = vld [vmem:[%s2607 + $0x168] sm:$0xff]
        %v2654 = vld [vmem:[%s2607 + $0x170] sm:$0xff]
        %v2655 = vld [vmem:[%s2607 + $0x178] sm:$0xff]
        %v2656 = vld [vmem:[%s2607 + $0x180] sm:$0xff]
        %v2657 = vld [vmem:[%s2607 + $0x188] sm:$0xff]
        %v2658 = vld [vmem:[%s2607 + $0x190] sm:$0xff]
        %v2659 = vld [vmem:[%s2607 + $0x198] sm:$0xff]
        %v2660 = vld [vmem:[%s2607 + $0x1a0] sm:$0xff]
        %v2661 = vld [vmem:[%s2607 + $0x1a8] sm:$0xff]
        %v2662 = vld [vmem:[%s2607 + $0x1b0] sm:$0xff]
        %v2663 = vld [vmem:[%s2607 + $0x1b8] sm:$0xff]
        %v2664 = vld [vmem:[%s2607 + $0x1c0] sm:$0xff]
        %v2665 = vld [vmem:[%s2607 + $0x1c8] sm:$0xff]
        %v2666 = vld [vmem:[%s2607 + $0x1d0] sm:$0xff]
        %v2667 = vld [vmem:[%s2607 + $0x1d8] sm:$0xff]
        %v2668 = vld [vmem:[%s2607 + $0x1e0] sm:$0xff]
        %v2669 = vld [vmem:[%s2607 + $0x1e8] sm:$0xff]
        %v2670 = vld [vmem:[%s2607 + $0x1f0] sm:$0xff]
        %v2671 = vld [vmem:[%s2607 + $0x1f8] sm:$0xff]
        %v2672 = vld [vmem:[%s2607 + $0x200] sm:$0xff]
        %v2673 = vld [vmem:[%s2607 + $0x208] sm:$0xff]
        %v2674 = vld [vmem:[%s2607 + $0x210] sm:$0xff]
        %v2675 = vld [vmem:[%s2607 + $0x218] sm:$0xff]
        %v2676 = vld [vmem:[%s2607 + $0x220] sm:$0xff]
        %v2677 = vld [vmem:[%s2607 + $0x228] sm:$0xff]
        %v2678 = vld [vmem:[%s2607 + $0x230] sm:$0xff]
        %v2679 = vld [vmem:[%s2607 + $0x238] sm:$0xff]
        %v2680 = vld [vmem:[%s2607 + $0x240] sm:$0xff]
        %v2681 = vld [vmem:[%s2607 + $0x248] sm:$0xff]
        %v2682 = vld [vmem:[%s2607 + $0x250] sm:$0xff]
        %v2683 = vld [vmem:[%s2607 + $0x258] sm:$0xff]
        %v2684 = vld [vmem:[%s2607 + $0x260] sm:$0xff]
        %v2685 = vld [vmem:[%s2607 + $0x268] sm:$0xff]
        %v2686 = vld [vmem:[%s2607 + $0x270] sm:$0xff]
        %v2687 = vld [vmem:[%s2607 + $0x278] sm:$0xff]
        %v2688 = vld [vmem:[%s2607 + $0x280] sm:$0xff]
        %v2689 = vld [vmem:[%s2607 + $0x288] sm:$0xff]
        %v2690 = vld [vmem:[%s2607 + $0x290] sm:$0xff]
        %v2691 = vld [vmem:[%s2607 + $0x298] sm:$0xff]
        %v2692 = vld [vmem:[%s2607 + $0x2a0] sm:$0xff]
        %v2693 = vld [vmem:[%s2607 + $0x2a8] sm:$0xff]
        %v2694 = vld [vmem:[%s2607 + $0x2b0] sm:$0xff]
        %v2695 = vld [vmem:[%s2607 + $0x2b8] sm:$0xff]
        %v2696 = vld [vmem:[%s2607 + $0x2c0] sm:$0xff]
        %v2697 = vld [vmem:[%s2607 + $0x2c8] sm:$0xff]
        %v2698 = vld [vmem:[%s2607 + $0x2d0] sm:$0xff]
        %v2699 = vld [vmem:[%s2607 + $0x2d8] sm:$0xff]
        %v2700 = vld [vmem:[%s2607 + $0x2e0] sm:$0xff]
        %v2701 = vld [vmem:[%s2607 + $0x2e8] sm:$0xff]
        %v2702 = vld [vmem:[%s2607 + $0x2f0] sm:$0xff]
        %v2703 = vld [vmem:[%s2607 + $0x2f8] sm:$0xff]
        %v2704 = vld [vmem:[%s2607 + $0x300] sm:$0xff]
        %v2705 = vld [vmem:[%s2607 + $0x308] sm:$0xff]
        %v2706 = vld [vmem:[%s2607 + $0x310] sm:$0xff]
        %v2707 = vld [vmem:[%s2607 + $0x318] sm:$0xff]
        %v2708 = vld [vmem:[%s2607 + $0x320] sm:$0xff]
        %v2709 = vld [vmem:[%s2607 + $0x328] sm:$0xff]
        %v2710 = vld [vmem:[%s2607 + $0x330] sm:$0xff]
        %v2711 = vld [vmem:[%s2607 + $0x338] sm:$0xff]
        %v2712 = vld [vmem:[%s2607 + $0x340] sm:$0xff]
        %v2713 = vld [vmem:[%s2607 + $0x348] sm:$0xff]
        %v2714 = vld [vmem:[%s2607 + $0x350] sm:$0xff]
        %v2715 = vld [vmem:[%s2607 + $0x358] sm:$0xff]
        %v2716 = vld [vmem:[%s2607 + $0x360] sm:$0xff]
        %v2717 = vld [vmem:[%s2607 + $0x368] sm:$0xff]
        %v2718 = vld [vmem:[%s2607 + $0x370] sm:$0xff]
        %v2719 = vld [vmem:[%s2607 + $0x378] sm:$0xff]
        %v2720 = vld [vmem:[%s2607 + $0x380] sm:$0xff]
        %v2721 = vld [vmem:[%s2607 + $0x388] sm:$0xff]
        %v2722 = vld [vmem:[%s2607 + $0x390] sm:$0xff]
        %v2723 = vld [vmem:[%s2607 + $0x398] sm:$0xff]
        %v2724 = vld [vmem:[%s2607 + $0x3a0] sm:$0xff]
        %v2725 = vld [vmem:[%s2607 + $0x3a8] sm:$0xff]
        %v2726 = vld [vmem:[%s2607 + $0x3b0] sm:$0xff]
        %v2727 = vld [vmem:[%s2607 + $0x3b8] sm:$0xff]
        %v2728 = vld [vmem:[%s2607 + $0x3c0] sm:$0xff]
        %v2729 = vld [vmem:[%s2607 + $0x3c8] sm:$0xff]
        %v2730 = vld [vmem:[%s2607 + $0x3d0] sm:$0xff]
        %v2731 = vld [vmem:[%s2607 + $0x3d8] sm:$0xff]
        %v2732 = vld [vmem:[%s2607 + $0x3e0] sm:$0xff]
        %v2733 = vld [vmem:[%s2607 + $0x3e8] sm:$0xff]
        %v2734 = vld [vmem:[%s2607 + $0x3f0] sm:$0xff]
        %v2735 = vld [vmem:[%s2607 + $0x3f8] sm:$0xff]
        %2736 = vmatpush.msra.mxu0 %v2668
        %2737 = vmatpush.msra.mxu0 %v2664
        %2738 = vmatpush.msra.mxu0 %v2660
        %2739 = vmatpush.msra.mxu0 %v2656
        %2740 = vmatpush.msra.mxu0 %v2652
        %2741 = vmatpush.msra.mxu0 %v2648
        %2742 = vmatpush.msra.mxu0 %v2644
        %2743 = vmatpush.msra.mxu0 %v2640
        %2744 = vmatpush.msra.mxu0 %v2636
        %2745 = vmatpush.msra.mxu0 %v2632
        %2746 = vmatpush.msra.mxu0 %v2628
        %2747 = vmatpush.msra.mxu0 %v2624
        %2748 = vmatpush.msra.mxu0 %v2620
        %2749 = vmatpush.msra.mxu0 %v2616
        %2750 = vmatpush.msra.mxu0 %v2612
        %2751 = vmatpush.msra.mxu0 %v2608
        %2752 = vmatmul.f32.gmra.mxu0 %v2573
        %v2753 = vpop.f32.mrf.mxu0
        %v2754 = vadd.f32 0.0, %v2753
        %2755 = vmatmul.f32.gmra.mxu0 %v2576
        %v2756 = vpop.f32.mrf.mxu0
        %v2757 = vadd.f32 0.0, %v2756
        %2758 = vmatmul.f32.gmra.mxu0 %v2579
        %v2759 = vpop.f32.mrf.mxu0
        %v2760 = vadd.f32 0.0, %v2759
        %2761 = vdwg.mxu0
        %2762 = vmatpush.msra.mxu0 %v2732
        %2763 = vmatpush.msra.mxu0 %v2728
        %2764 = vmatpush.msra.mxu0 %v2724
        %2765 = vmatpush.msra.mxu0 %v2720
        %2766 = vmatpush.msra.mxu0 %v2716
        %2767 = vmatpush.msra.mxu0 %v2712
        %2768 = vmatpush.msra.mxu0 %v2708
        %2769 = vmatpush.msra.mxu0 %v2704
        %2770 = vmatpush.msra.mxu0 %v2700
        %2771 = vmatpush.msra.mxu0 %v2696
        %2772 = vmatpush.msra.mxu0 %v2692
        %2773 = vmatpush.msra.mxu0 %v2688
        %2774 = vmatpush.msra.mxu0 %v2684
        %2775 = vmatpush.msra.mxu0 %v2680
        %2776 = vmatpush.msra.mxu0 %v2676
        %2777 = vmatpush.msra.mxu0 %v2672
        %2778 = vmatmul.f32.gmra.mxu0 %v2599
        %v2779 = vpop.f32.mrf.mxu0
        %v2780 = vadd.f32 %v2754, %v2779
        %2781 = vmatmul.f32.gmra.mxu0 %v2602
        %v2782 = vpop.f32.mrf.mxu0
        %v2783 = vadd.f32 %v2757, %v2782
        %2784 = vmatmul.f32.gmra.mxu0 %v2605
        %v2785 = vpop.f32.mrf.mxu0
        %v2786 = vadd.f32 %v2760, %v2785
        %2787 = vdwg.mxu0
        %2788 = vmatpush.msra.mxu0 %v2669
        %2789 = vmatpush.msra.mxu0 %v2665
        %2790 = vmatpush.msra.mxu0 %v2661
        %2791 = vmatpush.msra.mxu0 %v2657
        %2792 = vmatpush.msra.mxu0 %v2653
        %2793 = vmatpush.msra.mxu0 %v2649
        %2794 = vmatpush.msra.mxu0 %v2645
        %2795 = vmatpush.msra.mxu0 %v2641
        %2796 = vmatpush.msra.mxu0 %v2637
        %2797 = vmatpush.msra.mxu0 %v2633
        %2798 = vmatpush.msra.mxu0 %v2629
        %2799 = vmatpush.msra.mxu0 %v2625
        %2800 = vmatpush.msra.mxu0 %v2621
        %2801 = vmatpush.msra.mxu0 %v2617
        %2802 = vmatpush.msra.mxu0 %v2613
        %2803 = vmatpush.msra.mxu0 %v2609
        %2804 = vmatmul.f32.gmra.mxu0 %v2573
        %v2805 = vpop.f32.mrf.mxu0
        %v2806 = vadd.f32 0.0, %v2805
        %2807 = vmatmul.f32.gmra.mxu0 %v2576
        %v2808 = vpop.f32.mrf.mxu0
        %v2809 = vadd.f32 0.0, %v2808
        %2810 = vmatmul.f32.gmra.mxu0 %v2579
        %v2811 = vpop.f32.mrf.mxu0
        %v2812 = vadd.f32 0.0, %v2811
        %2813 = vdwg.mxu0
        %2814 = vmatpush.msra.mxu0 %v2733
        %2815 = vmatpush.msra.mxu0 %v2729
        %2816 = vmatpush.msra.mxu0 %v2725
        %2817 = vmatpush.msra.mxu0 %v2721
        %2818 = vmatpush.msra.mxu0 %v2717
        %2819 = vmatpush.msra.mxu0 %v2713
        %2820 = vmatpush.msra.mxu0 %v2709
        %2821 = vmatpush.msra.mxu0 %v2705
        %2822 = vmatpush.msra.mxu0 %v2701
        %2823 = vmatpush.msra.mxu0 %v2697
        %2824 = vmatpush.msra.mxu0 %v2693
        %2825 = vmatpush.msra.mxu0 %v2689
        %2826 = vmatpush.msra.mxu0 %v2685
        %2827 = vmatpush.msra.mxu0 %v2681
        %2828 = vmatpush.msra.mxu0 %v2677
        %2829 = vmatpush.msra.mxu0 %v2673
        %2830 = vmatmul.f32.gmra.mxu0 %v2599
        %v2831 = vpop.f32.mrf.mxu0
        %v2832 = vadd.f32 %v2806, %v2831
        %2833 = vmatmul.f32.gmra.mxu0 %v2602
        %v2834 = vpop.f32.mrf.mxu0
        %v2835 = vadd.f32 %v2809, %v2834
        %2836 = vmatmul.f32.gmra.mxu0 %v2605
        %v2837 = vpop.f32.mrf.mxu0
        %v2838 = vadd.f32 %v2812, %v2837
        %2839 = vdwg.mxu0
        %2840 = vmatpush.msra.mxu0 %v2670
        %2841 = vmatpush.msra.mxu0 %v2666
        %2842 = vmatpush.msra.mxu0 %v2662
        %2843 = vmatpush.msra.mxu0 %v2658
        %2844 = vmatpush.msra.mxu0 %v2654
        %2845 = vmatpush.msra.mxu0 %v2650
        %2846 = vmatpush.msra.mxu0 %v2646
        %2847 = vmatpush.msra.mxu0 %v2642
        %2848 = vmatpush.msra.mxu0 %v2638
        %2849 = vmatpush.msra.mxu0 %v2634
        %2850 = vmatpush.msra.mxu0 %v2630
        %2851 = vmatpush.msra.mxu0 %v2626
        %2852 = vmatpush.msra.mxu0 %v2622
        %2853 = vmatpush.msra.mxu0 %v2618
        %2854 = vmatpush.msra.mxu0 %v2614
        %2855 = vmatpush.msra.mxu0 %v2610
        %2856 = vmatmul.f32.gmra.mxu0 %v2573
        %v2857 = vpop.f32.mrf.mxu0
        %v2858 = vadd.f32 0.0, %v2857
        %2859 = vmatmul.f32.gmra.mxu0 %v2576
        %v2860 = vpop.f32.mrf.mxu0
        %v2861 = vadd.f32 0.0, %v2860
        %2862 = vmatmul.f32.gmra.mxu0 %v2579
        %v2863 = vpop.f32.mrf.mxu0
        %v2864 = vadd.f32 0.0, %v2863
        %2865 = vdwg.mxu0
        %2866 = vmatpush.msra.mxu0 %v2734
        %2867 = vmatpush.msra.mxu0 %v2730
        %2868 = vmatpush.msra.mxu0 %v2726
        %2869 = vmatpush.msra.mxu0 %v2722
        %2870 = vmatpush.msra.mxu0 %v2718
        %2871 = vmatpush.msra.mxu0 %v2714
        %2872 = vmatpush.msra.mxu0 %v2710
        %2873 = vmatpush.msra.mxu0 %v2706
        %2874 = vmatpush.msra.mxu0 %v2702
        %2875 = vmatpush.msra.mxu0 %v2698
        %2876 = vmatpush.msra.mxu0 %v2694
        %2877 = vmatpush.msra.mxu0 %v2690
        %2878 = vmatpush.msra.mxu0 %v2686
        %2879 = vmatpush.msra.mxu0 %v2682
        %2880 = vmatpush.msra.mxu0 %v2678
        %2881 = vmatpush.msra.mxu0 %v2674
        %2882 = vmatmul.f32.gmra.mxu0 %v2599
        %v2883 = vpop.f32.mrf.mxu0
        %v2884 = vadd.f32 %v2858, %v2883
        %2885 = vmatmul.f32.gmra.mxu0 %v2602
        %v2886 = vpop.f32.mrf.mxu0
        %v2887 = vadd.f32 %v2861, %v2886
        %2888 = vmatmul.f32.gmra.mxu0 %v2605
        %v2889 = vpop.f32.mrf.mxu0
        %v2890 = vadd.f32 %v2864, %v2889
        %2891 = vdwg.mxu0
        %2892 = vmatpush.msra.mxu0 %v2671
        %2893 = vmatpush.msra.mxu0 %v2667
        %2894 = vmatpush.msra.mxu0 %v2663
        %2895 = vmatpush.msra.mxu0 %v2659
        %2896 = vmatpush.msra.mxu0 %v2655
        %2897 = vmatpush.msra.mxu0 %v2651
        %2898 = vmatpush.msra.mxu0 %v2647
        %2899 = vmatpush.msra.mxu0 %v2643
        %2900 = vmatpush.msra.mxu0 %v2639
        %2901 = vmatpush.msra.mxu0 %v2635
        %2902 = vmatpush.msra.mxu0 %v2631
        %2903 = vmatpush.msra.mxu0 %v2627
        %2904 = vmatpush.msra.mxu0 %v2623
        %2905 = vmatpush.msra.mxu0 %v2619
        %2906 = vmatpush.msra.mxu0 %v2615
        %2907 = vmatpush.msra.mxu0 %v2611
        %2908 = vmatmul.f32.gmra.mxu0 %v2573
        %v2909 = vpop.f32.mrf.mxu0
        %v2910 = vadd.f32 0.0, %v2909
        %2911 = vmatmul.f32.gmra.mxu0 %v2576
        %v2912 = vpop.f32.mrf.mxu0
        %v2913 = vadd.f32 0.0, %v2912
        %2914 = vmatmul.f32.gmra.mxu0 %v2579
        %v2915 = vpop.f32.mrf.mxu0
        %v2916 = vadd.f32 0.0, %v2915
        %2917 = vdwg.mxu0
        %2918 = vmatpush.msra.mxu0 %v2735
        %2919 = vmatpush.msra.mxu0 %v2731
        %2920 = vmatpush.msra.mxu0 %v2727
        %2921 = vmatpush.msra.mxu0 %v2723
        %2922 = vmatpush.msra.mxu0 %v2719
        %2923 = vmatpush.msra.mxu0 %v2715
        %2924 = vmatpush.msra.mxu0 %v2711
        %2925 = vmatpush.msra.mxu0 %v2707
        %2926 = vmatpush.msra.mxu0 %v2703
        %2927 = vmatpush.msra.mxu0 %v2699
        %2928 = vmatpush.msra.mxu0 %v2695
        %2929 = vmatpush.msra.mxu0 %v2691
        %2930 = vmatpush.msra.mxu0 %v2687
        %2931 = vmatpush.msra.mxu0 %v2683
        %2932 = vmatpush.msra.mxu0 %v2679
        %2933 = vmatpush.msra.mxu0 %v2675
        %2934 = vmatmul.f32.gmra.mxu0 %v2599
        %v2935 = vpop.f32.mrf.mxu0
        %v2936 = vadd.f32 %v2910, %v2935
        %2937 = vmatmul.f32.gmra.mxu0 %v2602
        %v2938 = vpop.f32.mrf.mxu0
        %v2939 = vadd.f32 %v2913, %v2938
        %2940 = vmatmul.f32.gmra.mxu0 %v2605
        %v2941 = vpop.f32.mrf.mxu0
        %v2942 = vadd.f32 %v2916, %v2941
        %2943 = vdwg.mxu0
        %2944 = vmatpush.msra.mxu0 %v2229
        %2945 = vmatpush.msra.mxu0 %v2225
        %2946 = vmatpush.msra.mxu0 %v2221
        %2947 = vmatpush.msra.mxu0 %v2217
        %2948 = vmatpush.msra.mxu0 %v2213
        %2949 = vmatpush.msra.mxu0 %v2209
        %2950 = vmatpush.msra.mxu0 %v2205
        %2951 = vmatpush.msra.mxu0 %v2201
        %2952 = vmatpush.msra.mxu0 %v2197
        %2953 = vmatpush.msra.mxu0 %v2193
        %2954 = vmatpush.msra.mxu0 %v2189
        %2955 = vmatpush.msra.mxu0 %v2185
        %2956 = vmatpush.msra.mxu0 %v2181
        %2957 = vmatpush.msra.mxu0 %v2177
        %2958 = vmatpush.msra.mxu0 %v2173
        %2959 = vmatpush.msra.mxu0 %v2169
        %2960 = vmatmul.f32.gmra.mxu0 %v2135
        %v2961 = vpop.f32.mrf.mxu0
        %v2962 = vadd.f32 %v2780, %v2961
        %2963 = vmatmul.f32.gmra.mxu0 %v2138
        %v2964 = vpop.f32.mrf.mxu0
        %v2965 = vadd.f32 %v2783, %v2964
        %2966 = vmatmul.f32.gmra.mxu0 %v2141
        %v2967 = vpop.f32.mrf.mxu0
        %v2968 = vadd.f32 %v2786, %v2967
        %2969 = vdwg.mxu0
        %2970 = vmatpush.msra.mxu0 %v2293
        %2971 = vmatpush.msra.mxu0 %v2289
        %2972 = vmatpush.msra.mxu0 %v2285
        %2973 = vmatpush.msra.mxu0 %v2281
        %2974 = vmatpush.msra.mxu0 %v2277
        %2975 = vmatpush.msra.mxu0 %v2273
        %2976 = vmatpush.msra.mxu0 %v2269
        %2977 = vmatpush.msra.mxu0 %v2265
        %2978 = vmatpush.msra.mxu0 %v2261
        %2979 = vmatpush.msra.mxu0 %v2257
        %2980 = vmatpush.msra.mxu0 %v2253
        %2981 = vmatpush.msra.mxu0 %v2249
        %2982 = vmatpush.msra.mxu0 %v2245
        %2983 = vmatpush.msra.mxu0 %v2241
        %2984 = vmatpush.msra.mxu0 %v2237
        %2985 = vmatpush.msra.mxu0 %v2233
        %2986 = vmatmul.f32.gmra.mxu0 %v2161
        %v2987 = vpop.f32.mrf.mxu0
        %v2988 = vadd.f32 %v2962, %v2987
        %2989 = vmatmul.f32.gmra.mxu0 %v2164
        %v2990 = vpop.f32.mrf.mxu0
        %v2991 = vadd.f32 %v2965, %v2990
        %2992 = vmatmul.f32.gmra.mxu0 %v2167
        %v2993 = vpop.f32.mrf.mxu0
        %v2994 = vadd.f32 %v2968, %v2993
        %2995 = vdwg.mxu0
        %2996 = vmatpush.msra.mxu0 %v2230
        %2997 = vmatpush.msra.mxu0 %v2226
        %2998 = vmatpush.msra.mxu0 %v2222
        %2999 = vmatpush.msra.mxu0 %v2218
        %3000 = vmatpush.msra.mxu0 %v2214
        %3001 = vmatpush.msra.mxu0 %v2210
        %3002 = vmatpush.msra.mxu0 %v2206
        %3003 = vmatpush.msra.mxu0 %v2202
        %3004 = vmatpush.msra.mxu0 %v2198
        %3005 = vmatpush.msra.mxu0 %v2194
        %3006 = vmatpush.msra.mxu0 %v2190
        %3007 = vmatpush.msra.mxu0 %v2186
        %3008 = vmatpush.msra.mxu0 %v2182
        %3009 = vmatpush.msra.mxu0 %v2178
        %3010 = vmatpush.msra.mxu0 %v2174
        %3011 = vmatpush.msra.mxu0 %v2170
        %3012 = vmatmul.f32.gmra.mxu0 %v2135
        %v3013 = vpop.f32.mrf.mxu0
        %v3014 = vadd.f32 %v2832, %v3013
        %3015 = vmatmul.f32.gmra.mxu0 %v2138
        %v3016 = vpop.f32.mrf.mxu0
        %v3017 = vadd.f32 %v2835, %v3016
        %3018 = vmatmul.f32.gmra.mxu0 %v2141
        %v3019 = vpop.f32.mrf.mxu0
        %v3020 = vadd.f32 %v2838, %v3019
        %3021 = vdwg.mxu0
        %3022 = vmatpush.msra.mxu0 %v2294
        %3023 = vmatpush.msra.mxu0 %v2290
        %3024 = vmatpush.msra.mxu0 %v2286
        %3025 = vmatpush.msra.mxu0 %v2282
        %3026 = vmatpush.msra.mxu0 %v2278
        %3027 = vmatpush.msra.mxu0 %v2274
        %3028 = vmatpush.msra.mxu0 %v2270
        %3029 = vmatpush.msra.mxu0 %v2266
        %3030 = vmatpush.msra.mxu0 %v2262
        %3031 = vmatpush.msra.mxu0 %v2258
        %3032 = vmatpush.msra.mxu0 %v2254
        %3033 = vmatpush.msra.mxu0 %v2250
        %3034 = vmatpush.msra.mxu0 %v2246
        %3035 = vmatpush.msra.mxu0 %v2242
        %3036 = vmatpush.msra.mxu0 %v2238
        %3037 = vmatpush.msra.mxu0 %v2234
        %3038 = vmatmul.f32.gmra.mxu0 %v2161
        %v3039 = vpop.f32.mrf.mxu0
        %v3040 = vadd.f32 %v3014, %v3039
        %3041 = vmatmul.f32.gmra.mxu0 %v2164
        %v3042 = vpop.f32.mrf.mxu0
        %v3043 = vadd.f32 %v3017, %v3042
        %3044 = vmatmul.f32.gmra.mxu0 %v2167
        %v3045 = vpop.f32.mrf.mxu0
        %v3046 = vadd.f32 %v3020, %v3045
        %3047 = vdwg.mxu0
        %3048 = vmatpush.msra.mxu0 %v2231
        %3049 = vmatpush.msra.mxu0 %v2227
        %3050 = vmatpush.msra.mxu0 %v2223
        %3051 = vmatpush.msra.mxu0 %v2219
        %3052 = vmatpush.msra.mxu0 %v2215
        %3053 = vmatpush.msra.mxu0 %v2211
        %3054 = vmatpush.msra.mxu0 %v2207
        %3055 = vmatpush.msra.mxu0 %v2203
        %3056 = vmatpush.msra.mxu0 %v2199
        %3057 = vmatpush.msra.mxu0 %v2195
        %3058 = vmatpush.msra.mxu0 %v2191
        %3059 = vmatpush.msra.mxu0 %v2187
        %3060 = vmatpush.msra.mxu0 %v2183
        %3061 = vmatpush.msra.mxu0 %v2179
        %3062 = vmatpush.msra.mxu0 %v2175
        %3063 = vmatpush.msra.mxu0 %v2171
        %3064 = vmatmul.f32.gmra.mxu0 %v2135
        %v3065 = vpop.f32.mrf.mxu0
        %v3066 = vadd.f32 %v2884, %v3065
        %3067 = vmatmul.f32.gmra.mxu0 %v2138
        %v3068 = vpop.f32.mrf.mxu0
        %v3069 = vadd.f32 %v2887, %v3068
        %3070 = vmatmul.f32.gmra.mxu0 %v2141
        %v3071 = vpop.f32.mrf.mxu0
        %v3072 = vadd.f32 %v2890, %v3071
        %3073 = vdwg.mxu0
        %3074 = vmatpush.msra.mxu0 %v2295
        %3075 = vmatpush.msra.mxu0 %v2291
        %3076 = vmatpush.msra.mxu0 %v2287
        %3077 = vmatpush.msra.mxu0 %v2283
        %3078 = vmatpush.msra.mxu0 %v2279
        %3079 = vmatpush.msra.mxu0 %v2275
        %3080 = vmatpush.msra.mxu0 %v2271
        %3081 = vmatpush.msra.mxu0 %v2267
        %3082 = vmatpush.msra.mxu0 %v2263
        %3083 = vmatpush.msra.mxu0 %v2259
        %3084 = vmatpush.msra.mxu0 %v2255
        %3085 = vmatpush.msra.mxu0 %v2251
        %3086 = vmatpush.msra.mxu0 %v2247
        %3087 = vmatpush.msra.mxu0 %v2243
        %3088 = vmatpush.msra.mxu0 %v2239
        %3089 = vmatpush.msra.mxu0 %v2235
        %3090 = vmatmul.f32.gmra.mxu0 %v2161
        %v3091 = vpop.f32.mrf.mxu0
        %v3092 = vadd.f32 %v3066, %v3091
        %3093 = vmatmul.f32.gmra.mxu0 %v2164
        %v3094 = vpop.f32.mrf.mxu0
        %v3095 = vadd.f32 %v3069, %v3094
        %3096 = vmatmul.f32.gmra.mxu0 %v2167
        %v3097 = vpop.f32.mrf.mxu0
        %v3098 = vadd.f32 %v3072, %v3097
        %3099 = vdwg.mxu0
        %3100 = vmatpush.msra.mxu0 %v2232
        %3101 = vmatpush.msra.mxu0 %v2228
        %3102 = vmatpush.msra.mxu0 %v2224
        %3103 = vmatpush.msra.mxu0 %v2220
        %3104 = vmatpush.msra.mxu0 %v2216
        %3105 = vmatpush.msra.mxu0 %v2212
        %3106 = vmatpush.msra.mxu0 %v2208
        %3107 = vmatpush.msra.mxu0 %v2204
        %3108 = vmatpush.msra.mxu0 %v2200
        %3109 = vmatpush.msra.mxu0 %v2196
        %3110 = vmatpush.msra.mxu0 %v2192
        %3111 = vmatpush.msra.mxu0 %v2188
        %3112 = vmatpush.msra.mxu0 %v2184
        %3113 = vmatpush.msra.mxu0 %v2180
        %3114 = vmatpush.msra.mxu0 %v2176
        %3115 = vmatpush.msra.mxu0 %v2172
        %3116 = vmatmul.f32.gmra.mxu0 %v2135
        %v3117 = vpop.f32.mrf.mxu0
        %v3118 = vadd.f32 %v2936, %v3117
        %3119 = vmatmul.f32.gmra.mxu0 %v2138
        %v3120 = vpop.f32.mrf.mxu0
        %v3121 = vadd.f32 %v2939, %v3120
        %3122 = vmatmul.f32.gmra.mxu0 %v2141
        %v3123 = vpop.f32.mrf.mxu0
        %v3124 = vadd.f32 %v2942, %v3123
        %3125 = vdwg.mxu0
        %3126 = vmatpush.msra.mxu0 %v2296
        %3127 = vmatpush.msra.mxu0 %v2292
        %3128 = vmatpush.msra.mxu0 %v2288
        %3129 = vmatpush.msra.mxu0 %v2284
        %3130 = vmatpush.msra.mxu0 %v2280
        %3131 = vmatpush.msra.mxu0 %v2276
        %3132 = vmatpush.msra.mxu0 %v2272
        %3133 = vmatpush.msra.mxu0 %v2268
        %3134 = vmatpush.msra.mxu0 %v2264
        %3135 = vmatpush.msra.mxu0 %v2260
        %3136 = vmatpush.msra.mxu0 %v2256
        %3137 = vmatpush.msra.mxu0 %v2252
        %3138 = vmatpush.msra.mxu0 %v2248
        %3139 = vmatpush.msra.mxu0 %v2244
        %3140 = vmatpush.msra.mxu0 %v2240
        %3141 = vmatpush.msra.mxu0 %v2236
        %3142 = vmatmul.f32.gmra.mxu0 %v2161
        %v3143 = vpop.f32.mrf.mxu0
        %v3144 = vadd.f32 %v3118, %v3143
        %3145 = vmatmul.f32.gmra.mxu0 %v2164
        %v3146 = vpop.f32.mrf.mxu0
        %v3147 = vadd.f32 %v3121, %v3146
        %3148 = vmatmul.f32.gmra.mxu0 %v2167
        %v3149 = vpop.f32.mrf.mxu0
        %v3150 = vadd.f32 %v3124, %v3149
        %3151 = vdwg.mxu0
        %s3152 = scalar_lea.vmem [#allocation18], 512
        %v3153 = vld [vmem:[%s3152] sm:$0xff]
        %v3154 = vld [vmem:[%s3152 + $0x8] sm:$0xff]
        %v3155 = vld [vmem:[%s3152 + $0x10] sm:$0xff]
        %v3156 = vld [vmem:[%s3152 + $0x18] sm:$0xff]
        %v3157 = vld [vmem:[%s3152 + $0x20] sm:$0xff]
        %v3158 = vld [vmem:[%s3152 + $0x28] sm:$0xff]
        %v3159 = vld [vmem:[%s3152 + $0x30] sm:$0xff]
        %v3160 = vld [vmem:[%s3152 + $0x38] sm:$0xff]
        %v3161 = vld [vmem:[%s3152 + $0x40] sm:$0xff]
        %v3162 = vld [vmem:[%s3152 + $0x48] sm:$0xff]
        %v3163 = vld [vmem:[%s3152 + $0x50] sm:$0xff]
        %v3164 = vld [vmem:[%s3152 + $0x58] sm:$0xff]
        %v3165 = vld [vmem:[%s3152 + $0x60] sm:$0xff]
        %v3166 = vld [vmem:[%s3152 + $0x68] sm:$0xff]
        %v3167 = vld [vmem:[%s3152 + $0x70] sm:$0xff]
        %v3168 = vld [vmem:[%s3152 + $0x78] sm:$0xff]
        %v3169 = vld [vmem:[%s3152 + $0x80] sm:$0xff]
        %v3170 = vld [vmem:[%s3152 + $0x88] sm:$0xff]
        %v3171 = vld [vmem:[%s3152 + $0x90] sm:$0xff]
        %v3172 = vld [vmem:[%s3152 + $0x98] sm:$0xff]
        %v3173 = vld [vmem:[%s3152 + $0xa0] sm:$0xff]
        %v3174 = vld [vmem:[%s3152 + $0xa8] sm:$0xff]
        %v3175 = vld [vmem:[%s3152 + $0xb0] sm:$0xff]
        %v3176 = vld [vmem:[%s3152 + $0xb8] sm:$0xff]
        %v3177 = vld [vmem:[%s3152 + $0xc0] sm:$0xff]
        %v3178 = vld [vmem:[%s3152 + $0xc8] sm:$0xff]
        %v3179 = vld [vmem:[%s3152 + $0xd0] sm:$0xff]
        %v3180 = vld [vmem:[%s3152 + $0xd8] sm:$0xff]
        %v3181 = vld [vmem:[%s3152 + $0xe0] sm:$0xff]
        %v3182 = vld [vmem:[%s3152 + $0xe8] sm:$0xff]
        %v3183 = vld [vmem:[%s3152 + $0xf0] sm:$0xff]
        %v3184 = vld [vmem:[%s3152 + $0xf8] sm:$0xff]
        %s3185 = scalar_lea.vmem [#allocation19], 2
        %v3186 = vld [vmem:[%s3185] sm:$0x1]
        %v3188 = vperm.slane %v3186, 0
        %3190 = vmatpush.msra.mxu0 %v3168
        %3191 = vmatpush.msra.mxu0 %v3167
        %3192 = vmatpush.msra.mxu0 %v3166
        %3193 = vmatpush.msra.mxu0 %v3165
        %3194 = vmatpush.msra.mxu0 %v3164
        %3195 = vmatpush.msra.mxu0 %v3163
        %3196 = vmatpush.msra.mxu0 %v3162
        %3197 = vmatpush.msra.mxu0 %v3161
        %3198 = vmatpush.msra.mxu0 %v3160
        %3199 = vmatpush.msra.mxu0 %v3159
        %3200 = vmatpush.msra.mxu0 %v3158
        %3201 = vmatpush.msra.mxu0 %v3157
        %3202 = vmatpush.msra.mxu0 %v3156
        %3203 = vmatpush.msra.mxu0 %v3155
        %3204 = vmatpush.msra.mxu0 %v3154
        %3205 = vmatpush.msra.mxu0 %v3153
        %3206 = vmatmul.f32.gmra.mxu0 %v1852
        %v3207 = vpop.f32.mrf.mxu0
        %v3208 = vadd.f32 %v3188, %v3207
        %3209 = vmatmul.f32.gmra.mxu0 %v1854
        %v3210 = vpop.f32.mrf.mxu0
        %v3211 = vadd.f32 %v3188, %v3210
        %3212 = vmatmul.f32.gmra.mxu0 %v1856
        %v3213 = vpop.f32.mrf.mxu0
        %v3214 = vadd.f32 %v3188, %v3213
        %3215 = vdwg.mxu0
        %3216 = vmatpush.msra.mxu0 %v3184
        %3217 = vmatpush.msra.mxu0 %v3183
        %3218 = vmatpush.msra.mxu0 %v3182
        %3219 = vmatpush.msra.mxu0 %v3181
        %3220 = vmatpush.msra.mxu0 %v3180
        %3221 = vmatpush.msra.mxu0 %v3179
        %3222 = vmatpush.msra.mxu0 %v3178
        %3223 = vmatpush.msra.mxu0 %v3177
        %3224 = vmatpush.msra.mxu0 %v3176
        %3225 = vmatpush.msra.mxu0 %v3175
        %3226 = vmatpush.msra.mxu0 %v3174
        %3227 = vmatpush.msra.mxu0 %v3173
        %3228 = vmatpush.msra.mxu0 %v3172
        %3229 = vmatpush.msra.mxu0 %v3171
        %3230 = vmatpush.msra.mxu0 %v3170
        %3231 = vmatpush.msra.mxu0 %v3169
        %3232 = vmatmul.f32.gmra.mxu0 %v1853
        %v3233 = vpop.f32.mrf.mxu0
        %v3234 = vadd.f32 %v3208, %v3233
        %3235 = vmatmul.f32.gmra.mxu0 %v1855
        %v3236 = vpop.f32.mrf.mxu0
        %v3237 = vadd.f32 %v3211, %v3236
        %3238 = vmatmul.f32.gmra.mxu0 %v1857
        %v3239 = vpop.f32.mrf.mxu0
        %v3240 = vadd.f32 %v3214, %v3239
        %3241 = vdwg.mxu0
        %s3242 = scalar_lea.vmem [#allocation21], 512
        %v3243 = vld [vmem:[%s3242] sm:$0xff]
        %v3244 = vld [vmem:[%s3242 + $0x8] sm:$0xff]
        %v3245 = vld [vmem:[%s3242 + $0x10] sm:$0xff]
        %v3246 = vld [vmem:[%s3242 + $0x18] sm:$0xff]
        %v3247 = vld [vmem:[%s3242 + $0x20] sm:$0xff]
        %v3248 = vld [vmem:[%s3242 + $0x28] sm:$0xff]
        %v3249 = vld [vmem:[%s3242 + $0x30] sm:$0xff]
        %v3250 = vld [vmem:[%s3242 + $0x38] sm:$0xff]
        %v3251 = vld [vmem:[%s3242 + $0x40] sm:$0xff]
        %v3252 = vld [vmem:[%s3242 + $0x48] sm:$0xff]
        %v3253 = vld [vmem:[%s3242 + $0x50] sm:$0xff]
        %v3254 = vld [vmem:[%s3242 + $0x58] sm:$0xff]
        %v3255 = vld [vmem:[%s3242 + $0x60] sm:$0xff]
        %v3256 = vld [vmem:[%s3242 + $0x68] sm:$0xff]
        %v3257 = vld [vmem:[%s3242 + $0x70] sm:$0xff]
        %v3258 = vld [vmem:[%s3242 + $0x78] sm:$0xff]
        %v3259 = vld [vmem:[%s3242 + $0x80] sm:$0xff]
        %v3260 = vld [vmem:[%s3242 + $0x88] sm:$0xff]
        %v3261 = vld [vmem:[%s3242 + $0x90] sm:$0xff]
        %v3262 = vld [vmem:[%s3242 + $0x98] sm:$0xff]
        %v3263 = vld [vmem:[%s3242 + $0xa0] sm:$0xff]
        %v3264 = vld [vmem:[%s3242 + $0xa8] sm:$0xff]
        %v3265 = vld [vmem:[%s3242 + $0xb0] sm:$0xff]
        %v3266 = vld [vmem:[%s3242 + $0xb8] sm:$0xff]
        %v3267 = vld [vmem:[%s3242 + $0xc0] sm:$0xff]
        %v3268 = vld [vmem:[%s3242 + $0xc8] sm:$0xff]
        %v3269 = vld [vmem:[%s3242 + $0xd0] sm:$0xff]
        %v3270 = vld [vmem:[%s3242 + $0xd8] sm:$0xff]
        %v3271 = vld [vmem:[%s3242 + $0xe0] sm:$0xff]
        %v3272 = vld [vmem:[%s3242 + $0xe8] sm:$0xff]
        %v3273 = vld [vmem:[%s3242 + $0xf0] sm:$0xff]
        %v3274 = vld [vmem:[%s3242 + $0xf8] sm:$0xff]
        %s3275 = scalar_lea.vmem [#allocation22], 2
        %v3276 = vld [vmem:[%s3275] sm:$0x1]
        %v3278 = vperm.slane %v3276, 0
        %3280 = vmatpush.msra.mxu0 %v3258
        %3281 = vmatpush.msra.mxu0 %v3257
        %3282 = vmatpush.msra.mxu0 %v3256
        %3283 = vmatpush.msra.mxu0 %v3255
        %3284 = vmatpush.msra.mxu0 %v3254
        %3285 = vmatpush.msra.mxu0 %v3253
        %3286 = vmatpush.msra.mxu0 %v3252
        %3287 = vmatpush.msra.mxu0 %v3251
        %3288 = vmatpush.msra.mxu0 %v3250
        %3289 = vmatpush.msra.mxu0 %v3249
        %3290 = vmatpush.msra.mxu0 %v3248
        %3291 = vmatpush.msra.mxu0 %v3247
        %3292 = vmatpush.msra.mxu0 %v3246
        %3293 = vmatpush.msra.mxu0 %v3245
        %3294 = vmatpush.msra.mxu0 %v3244
        %3295 = vmatpush.msra.mxu0 %v3243
        %3296 = vmatmul.f32.gmra.mxu0 %v1852
        %v3297 = vpop.f32.mrf.mxu0
        %v3298 = vadd.f32 %v3278, %v3297
        %3299 = vmatmul.f32.gmra.mxu0 %v1854
        %v3300 = vpop.f32.mrf.mxu0
        %v3301 = vadd.f32 %v3278, %v3300
        %3302 = vmatmul.f32.gmra.mxu0 %v1856
        %v3303 = vpop.f32.mrf.mxu0
        %v3304 = vadd.f32 %v3278, %v3303
        %3305 = vdwg.mxu0
        %3306 = vmatpush.msra.mxu0 %v3274
        %3307 = vmatpush.msra.mxu0 %v3273
        %3308 = vmatpush.msra.mxu0 %v3272
        %3309 = vmatpush.msra.mxu0 %v3271
        %3310 = vmatpush.msra.mxu0 %v3270
        %3311 = vmatpush.msra.mxu0 %v3269
        %3312 = vmatpush.msra.mxu0 %v3268
        %3313 = vmatpush.msra.mxu0 %v3267
        %3314 = vmatpush.msra.mxu0 %v3266
        %3315 = vmatpush.msra.mxu0 %v3265
        %3316 = vmatpush.msra.mxu0 %v3264
        %3317 = vmatpush.msra.mxu0 %v3263
        %3318 = vmatpush.msra.mxu0 %v3262
        %3319 = vmatpush.msra.mxu0 %v3261
        %3320 = vmatpush.msra.mxu0 %v3260
        %3321 = vmatpush.msra.mxu0 %v3259
        %3322 = vmatmul.f32.gmra.mxu0 %v1853
        %v3323 = vpop.f32.mrf.mxu0
        %v3324 = vadd.f32 %v3298, %v3323
        %3325 = vmatmul.f32.gmra.mxu0 %v1855
        %v3326 = vpop.f32.mrf.mxu0
        %v3327 = vadd.f32 %v3301, %v3326
        %3328 = vmatmul.f32.gmra.mxu0 %v1857
        %v3329 = vpop.f32.mrf.mxu0
        %v3330 = vadd.f32 %v3304, %v3329
        %3331 = vdwg.mxu0
        %3332 = vmatpush.xpose.msra.mxu0 0.0
        %3333 = vmatpush.xpose.msra.mxu0 0.0
        %3334 = vmatpush.xpose.msra.mxu0 0.0
        %3335 = vmatpush.xpose.msra.mxu0 0.0
        %3336 = vmatpush.xpose.msra.mxu0 0.0
        %3337 = vmatpush.xpose.msra.mxu0 0.0
        %3338 = vmatpush.xpose.msra.mxu0 0.0
        %3339 = vmatpush.xpose.msra.mxu0 0.0
        %3340 = vmatpush.xpose.msra.mxu0 0.0
        %3341 = vmatpush.xpose.msra.mxu0 0.0
        %3342 = vmatpush.xpose.msra.mxu0 0.0
        %3343 = vmatpush.xpose.msra.mxu0 0.0
        %3344 = vmatpush.xpose.msra.mxu0 0.0
        %3345 = vmatpush.xpose.msra.mxu0 %v3240
        %3346 = vmatpush.xpose.msra.mxu0 %v3237
        %3347 = vmatpush.xpose.msra.mxu0 %v3234
        %3348 = vmatmul.f32.gmra.mxu0 %v3324
        %v3349 = vpop.f32.mrf.mxu0
        %v3350 = vadd.f32 0.0, %v3349
        %3351 = vmatmul.f32.gmra.mxu0 %v3327
        %v3352 = vpop.f32.mrf.mxu0
        %v3353 = vadd.f32 0.0, %v3352
        %3354 = vmatmul.f32.gmra.mxu0 %v3330
        %v3355 = vpop.f32.mrf.mxu0
        %v3356 = vadd.f32 0.0, %v3355
        %3357 = vdwg.mxu0
        %v3358 = vmul.f32 %v3350, 0.0078125
        %v3359 = vmul.f32 %v3353, 0.0078125
        %v3360 = vmul.f32 %v3356, 0.0078125
        %v3361 = vsel %vm1086, %v3358, -inf
        %3362 = vmax.xlane.f32.xlu0 %v3361
        %v3363 = vpop.xlane.xlu0 %3362
        %v3364 = vsel %vm1086, %v3359, -inf
        %3365 = vmax.xlane.f32.xlu0 %v3364
        %v3366 = vpop.xlane.xlu0 %3365
        %v3367 = vsel %vm1093, %v3360, -inf
        %3368 = vmax.xlane.f32.xlu0 %v3367
        %v3369 = vpop.xlane.xlu0 %3368
        %v3370 = vsub.f32 %v3358, %v3363
        %v3371 = vsub.f32 %v3359, %v3366
        %v3372 = vsub.f32 %v3360, %v3369
        %v3373 = vmul.f32 %v3370, 1.442695
        %v3374 = vpow.pop %v3373
        %v3375 = vmul.f32 %v3371, 1.442695
        %v3376 = vpow.pop %v3375
        %v3377 = vmul.f32 %v3372, 1.442695
        %v3378 = vpow.pop %v3377
        %v3379 = vsel %vm1086, %v3374, 0.0
        %3380 = vadd.xlane.f32.xlu0 %v3379
        %v3381 = vpop.xlane.xlu0 %3380
        %v3382 = vsel %vm1086, %v3376, 0.0
        %3383 = vadd.xlane.f32.xlu0 %v3382
        %v3384 = vpop.xlane.xlu0 %3383
        %v3385 = vsel %vm1093, %v3378, 0.0
        %3386 = vadd.xlane.f32.xlu0 %v3385
        %v3387 = vpop.xlane.xlu0 %3386
        %v3388 = vrcp.pop %v3381
        %v3389 = vrcp.pop %v3384
        %v3390 = vrcp.pop %v3387
        %v3391 = vmul.f32 %v3374, %v3388
        %v3392 = vmul.f32 %v3376, %v3389
        %v3393 = vmul.f32 %v3378, %v3390
        %s3394 = scalar_lea.vmem [#allocation16], 48
        %v3395 = vld [vmem:[%s3394] sm:$0xff]
        %v3396 = vld [vmem:[%s3394 + $0x8] sm:$0xff]
        %v3397 = vld [vmem:[%s3394 + $0x10] sm:$0x1]
        %v3398 = vadd.f32 %v3391, %v3395
        %v3399 = vadd.f32 %v3392, %v3396
        %v3400 = vadd.f32 %v3393, %v3397
        %v3402 = vsel %vm1086, %v3398, 0
        %v3405 = vsel %vm1086, %v3399, 0
        %v3408 = vsel %vm1086, %v3400, 0
        %3410 = vmatpush.msra.mxu0 0.0
        %3411 = vmatpush.msra.mxu0 0.0
        %3412 = vmatpush.msra.mxu0 0.0
        %3413 = vmatpush.msra.mxu0 0.0
        %3414 = vmatpush.msra.mxu0 0.0
        %3415 = vmatpush.msra.mxu0 0.0
        %3416 = vmatpush.msra.mxu0 0.0
        %3417 = vmatpush.msra.mxu0 0.0
        %3418 = vmatpush.msra.mxu0 0.0
        %3419 = vmatpush.msra.mxu0 0.0
        %3420 = vmatpush.msra.mxu0 0.0
        %3421 = vmatpush.msra.mxu0 0.0
        %3422 = vmatpush.msra.mxu0 0.0
        %3423 = vmatpush.msra.mxu0 %v2112
        %3424 = vmatpush.msra.mxu0 %v1854
        %3425 = vmatpush.msra.mxu0 %v1852
        %3426 = vmatmul.f32.gmra.mxu0 %v3402
        %v3427 = vpop.f32.mrf.mxu0
        %v3428 = vadd.f32 0.0, %v3427
        %3429 = vmatmul.f32.gmra.mxu0 %v3405
        %v3430 = vpop.f32.mrf.mxu0
        %v3431 = vadd.f32 0.0, %v3430
        %3432 = vmatmul.f32.gmra.mxu0 %v3408
        %v3433 = vpop.f32.mrf.mxu0
        %v3434 = vadd.f32 0.0, %v3433
        %3435 = vdwg.mxu0
        %3436 = vmatpush.msra.mxu0 0.0
        %3437 = vmatpush.msra.mxu0 0.0
        %3438 = vmatpush.msra.mxu0 0.0
        %3439 = vmatpush.msra.mxu0 0.0
        %3440 = vmatpush.msra.mxu0 0.0
        %3441 = vmatpush.msra.mxu0 0.0
        %3442 = vmatpush.msra.mxu0 0.0
        %3443 = vmatpush.msra.mxu0 0.0
        %3444 = vmatpush.msra.mxu0 0.0
        %3445 = vmatpush.msra.mxu0 0.0
        %3446 = vmatpush.msra.mxu0 0.0
        %3447 = vmatpush.msra.mxu0 0.0
        %3448 = vmatpush.msra.mxu0 0.0
        %3449 = vmatpush.msra.mxu0 %v2115
        %3450 = vmatpush.msra.mxu0 %v1855
        %3451 = vmatpush.msra.mxu0 %v1853
        %3452 = vmatmul.f32.gmra.mxu0 %v3402
        %v3453 = vpop.f32.mrf.mxu0
        %v3454 = vadd.f32 0.0, %v3453
        %3455 = vmatmul.f32.gmra.mxu0 %v3405
        %v3456 = vpop.f32.mrf.mxu0
        %v3457 = vadd.f32 0.0, %v3456
        %3458 = vmatmul.f32.gmra.mxu0 %v3408
        %v3459 = vpop.f32.mrf.mxu0
        %v3460 = vadd.f32 0.0, %v3459
        %3461 = vdwg.mxu0
        %s3462 = scalar_lea.vmem [#allocation24], 2048
        %v3463 = vld [vmem:[%s3462] sm:$0xff]
        %v3464 = vld [vmem:[%s3462 + $0x8] sm:$0xff]
        %v3465 = vld [vmem:[%s3462 + $0x10] sm:$0xff]
        %v3466 = vld [vmem:[%s3462 + $0x18] sm:$0xff]
        %v3467 = vld [vmem:[%s3462 + $0x20] sm:$0xff]
        %v3468 = vld [vmem:[%s3462 + $0x28] sm:$0xff]
        %v3469 = vld [vmem:[%s3462 + $0x30] sm:$0xff]
        %v3470 = vld [vmem:[%s3462 + $0x38] sm:$0xff]
        %v3471 = vld [vmem:[%s3462 + $0x40] sm:$0xff]
        %v3472 = vld [vmem:[%s3462 + $0x48] sm:$0xff]
        %v3473 = vld [vmem:[%s3462 + $0x50] sm:$0xff]
        %v3474 = vld [vmem:[%s3462 + $0x58] sm:$0xff]
        %v3475 = vld [vmem:[%s3462 + $0x60] sm:$0xff]
        %v3476 = vld [vmem:[%s3462 + $0x68] sm:$0xff]
        %v3477 = vld [vmem:[%s3462 + $0x70] sm:$0xff]
        %v3478 = vld [vmem:[%s3462 + $0x78] sm:$0xff]
        %v3479 = vld [vmem:[%s3462 + $0x80] sm:$0xff]
        %v3480 = vld [vmem:[%s3462 + $0x88] sm:$0xff]
        %v3481 = vld [vmem:[%s3462 + $0x90] sm:$0xff]
        %v3482 = vld [vmem:[%s3462 + $0x98] sm:$0xff]
        %v3483 = vld [vmem:[%s3462 + $0xa0] sm:$0xff]
        %v3484 = vld [vmem:[%s3462 + $0xa8] sm:$0xff]
        %v3485 = vld [vmem:[%s3462 + $0xb0] sm:$0xff]
        %v3486 = vld [vmem:[%s3462 + $0xb8] sm:$0xff]
        %v3487 = vld [vmem:[%s3462 + $0xc0] sm:$0xff]
        %v3488 = vld [vmem:[%s3462 + $0xc8] sm:$0xff]
        %v3489 = vld [vmem:[%s3462 + $0xd0] sm:$0xff]
        %v3490 = vld [vmem:[%s3462 + $0xd8] sm:$0xff]
        %v3491 = vld [vmem:[%s3462 + $0xe0] sm:$0xff]
        %v3492 = vld [vmem:[%s3462 + $0xe8] sm:$0xff]
        %v3493 = vld [vmem:[%s3462 + $0xf0] sm:$0xff]
        %v3494 = vld [vmem:[%s3462 + $0xf8] sm:$0xff]
        %v3495 = vld [vmem:[%s3462 + $0x100] sm:$0xff]
        %v3496 = vld [vmem:[%s3462 + $0x108] sm:$0xff]
        %v3497 = vld [vmem:[%s3462 + $0x110] sm:$0xff]
        %v3498 = vld [vmem:[%s3462 + $0x118] sm:$0xff]
        %v3499 = vld [vmem:[%s3462 + $0x120] sm:$0xff]
        %v3500 = vld [vmem:[%s3462 + $0x128] sm:$0xff]
        %v3501 = vld [vmem:[%s3462 + $0x130] sm:$0xff]
        %v3502 = vld [vmem:[%s3462 + $0x138] sm:$0xff]
        %v3503 = vld [vmem:[%s3462 + $0x140] sm:$0xff]
        %v3504 = vld [vmem:[%s3462 + $0x148] sm:$0xff]
        %v3505 = vld [vmem:[%s3462 + $0x150] sm:$0xff]
        %v3506 = vld [vmem:[%s3462 + $0x158] sm:$0xff]
        %v3507 = vld [vmem:[%s3462 + $0x160] sm:$0xff]
        %v3508 = vld [vmem:[%s3462 + $0x168] sm:$0xff]
        %v3509 = vld [vmem:[%s3462 + $0x170] sm:$0xff]
        %v3510 = vld [vmem:[%s3462 + $0x178] sm:$0xff]
        %v3511 = vld [vmem:[%s3462 + $0x180] sm:$0xff]
        %v3512 = vld [vmem:[%s3462 + $0x188] sm:$0xff]
        %v3513 = vld [vmem:[%s3462 + $0x190] sm:$0xff]
        %v3514 = vld [vmem:[%s3462 + $0x198] sm:$0xff]
        %v3515 = vld [vmem:[%s3462 + $0x1a0] sm:$0xff]
        %v3516 = vld [vmem:[%s3462 + $0x1a8] sm:$0xff]
        %v3517 = vld [vmem:[%s3462 + $0x1b0] sm:$0xff]
        %v3518 = vld [vmem:[%s3462 + $0x1b8] sm:$0xff]
        %v3519 = vld [vmem:[%s3462 + $0x1c0] sm:$0xff]
        %v3520 = vld [vmem:[%s3462 + $0x1c8] sm:$0xff]
        %v3521 = vld [vmem:[%s3462 + $0x1d0] sm:$0xff]
        %v3522 = vld [vmem:[%s3462 + $0x1d8] sm:$0xff]
        %v3523 = vld [vmem:[%s3462 + $0x1e0] sm:$0xff]
        %v3524 = vld [vmem:[%s3462 + $0x1e8] sm:$0xff]
        %v3525 = vld [vmem:[%s3462 + $0x1f0] sm:$0xff]
        %v3526 = vld [vmem:[%s3462 + $0x1f8] sm:$0xff]
        %v3527 = vld [vmem:[%s3462 + $0x200] sm:$0xff]
        %v3528 = vld [vmem:[%s3462 + $0x208] sm:$0xff]
        %v3529 = vld [vmem:[%s3462 + $0x210] sm:$0xff]
        %v3530 = vld [vmem:[%s3462 + $0x218] sm:$0xff]
        %v3531 = vld [vmem:[%s3462 + $0x220] sm:$0xff]
        %v3532 = vld [vmem:[%s3462 + $0x228] sm:$0xff]
        %v3533 = vld [vmem:[%s3462 + $0x230] sm:$0xff]
        %v3534 = vld [vmem:[%s3462 + $0x238] sm:$0xff]
        %v3535 = vld [vmem:[%s3462 + $0x240] sm:$0xff]
        %v3536 = vld [vmem:[%s3462 + $0x248] sm:$0xff]
        %v3537 = vld [vmem:[%s3462 + $0x250] sm:$0xff]
        %v3538 = vld [vmem:[%s3462 + $0x258] sm:$0xff]
        %v3539 = vld [vmem:[%s3462 + $0x260] sm:$0xff]
        %v3540 = vld [vmem:[%s3462 + $0x268] sm:$0xff]
        %v3541 = vld [vmem:[%s3462 + $0x270] sm:$0xff]
        %v3542 = vld [vmem:[%s3462 + $0x278] sm:$0xff]
        %v3543 = vld [vmem:[%s3462 + $0x280] sm:$0xff]
        %v3544 = vld [vmem:[%s3462 + $0x288] sm:$0xff]
        %v3545 = vld [vmem:[%s3462 + $0x290] sm:$0xff]
        %v3546 = vld [vmem:[%s3462 + $0x298] sm:$0xff]
        %v3547 = vld [vmem:[%s3462 + $0x2a0] sm:$0xff]
        %v3548 = vld [vmem:[%s3462 + $0x2a8] sm:$0xff]
        %v3549 = vld [vmem:[%s3462 + $0x2b0] sm:$0xff]
        %v3550 = vld [vmem:[%s3462 + $0x2b8] sm:$0xff]
        %v3551 = vld [vmem:[%s3462 + $0x2c0] sm:$0xff]
        %v3552 = vld [vmem:[%s3462 + $0x2c8] sm:$0xff]
        %v3553 = vld [vmem:[%s3462 + $0x2d0] sm:$0xff]
        %v3554 = vld [vmem:[%s3462 + $0x2d8] sm:$0xff]
        %v3555 = vld [vmem:[%s3462 + $0x2e0] sm:$0xff]
        %v3556 = vld [vmem:[%s3462 + $0x2e8] sm:$0xff]
        %v3557 = vld [vmem:[%s3462 + $0x2f0] sm:$0xff]
        %v3558 = vld [vmem:[%s3462 + $0x2f8] sm:$0xff]
        %v3559 = vld [vmem:[%s3462 + $0x300] sm:$0xff]
        %v3560 = vld [vmem:[%s3462 + $0x308] sm:$0xff]
        %v3561 = vld [vmem:[%s3462 + $0x310] sm:$0xff]
        %v3562 = vld [vmem:[%s3462 + $0x318] sm:$0xff]
        %v3563 = vld [vmem:[%s3462 + $0x320] sm:$0xff]
        %v3564 = vld [vmem:[%s3462 + $0x328] sm:$0xff]
        %v3565 = vld [vmem:[%s3462 + $0x330] sm:$0xff]
        %v3566 = vld [vmem:[%s3462 + $0x338] sm:$0xff]
        %v3567 = vld [vmem:[%s3462 + $0x340] sm:$0xff]
        %v3568 = vld [vmem:[%s3462 + $0x348] sm:$0xff]
        %v3569 = vld [vmem:[%s3462 + $0x350] sm:$0xff]
        %v3570 = vld [vmem:[%s3462 + $0x358] sm:$0xff]
        %v3571 = vld [vmem:[%s3462 + $0x360] sm:$0xff]
        %v3572 = vld [vmem:[%s3462 + $0x368] sm:$0xff]
        %v3573 = vld [vmem:[%s3462 + $0x370] sm:$0xff]
        %v3574 = vld [vmem:[%s3462 + $0x378] sm:$0xff]
        %v3575 = vld [vmem:[%s3462 + $0x380] sm:$0xff]
        %v3576 = vld [vmem:[%s3462 + $0x388] sm:$0xff]
        %v3577 = vld [vmem:[%s3462 + $0x390] sm:$0xff]
        %v3578 = vld [vmem:[%s3462 + $0x398] sm:$0xff]
        %v3579 = vld [vmem:[%s3462 + $0x3a0] sm:$0xff]
        %v3580 = vld [vmem:[%s3462 + $0x3a8] sm:$0xff]
        %v3581 = vld [vmem:[%s3462 + $0x3b0] sm:$0xff]
        %v3582 = vld [vmem:[%s3462 + $0x3b8] sm:$0xff]
        %v3583 = vld [vmem:[%s3462 + $0x3c0] sm:$0xff]
        %v3584 = vld [vmem:[%s3462 + $0x3c8] sm:$0xff]
        %v3585 = vld [vmem:[%s3462 + $0x3d0] sm:$0xff]
        %v3586 = vld [vmem:[%s3462 + $0x3d8] sm:$0xff]
        %v3587 = vld [vmem:[%s3462 + $0x3e0] sm:$0xff]
        %v3588 = vld [vmem:[%s3462 + $0x3e8] sm:$0xff]
        %v3589 = vld [vmem:[%s3462 + $0x3f0] sm:$0xff]
        %v3590 = vld [vmem:[%s3462 + $0x3f8] sm:$0xff]
        %3591 = vmatpush.msra.mxu0 %v3523
        %3592 = vmatpush.msra.mxu0 %v3519
        %3593 = vmatpush.msra.mxu0 %v3515
        %3594 = vmatpush.msra.mxu0 %v3511
        %3595 = vmatpush.msra.mxu0 %v3507
        %3596 = vmatpush.msra.mxu0 %v3503
        %3597 = vmatpush.msra.mxu0 %v3499
        %3598 = vmatpush.msra.mxu0 %v3495
        %3599 = vmatpush.msra.mxu0 %v3491
        %3600 = vmatpush.msra.mxu0 %v3487
        %3601 = vmatpush.msra.mxu0 %v3483
        %3602 = vmatpush.msra.mxu0 %v3479
        %3603 = vmatpush.msra.mxu0 %v3475
        %3604 = vmatpush.msra.mxu0 %v3471
        %3605 = vmatpush.msra.mxu0 %v3467
        %3606 = vmatpush.msra.mxu0 %v3463
        %3607 = vmatmul.f32.gmra.mxu0 %v3428
        %v3608 = vpop.f32.mrf.mxu0
        %v3609 = vadd.f32 0.0, %v3608
        %3610 = vmatmul.f32.gmra.mxu0 %v3431
        %v3611 = vpop.f32.mrf.mxu0
        %v3612 = vadd.f32 0.0, %v3611
        %3613 = vmatmul.f32.gmra.mxu0 %v3434
        %v3614 = vpop.f32.mrf.mxu0
        %v3615 = vadd.f32 0.0, %v3614
        %3616 = vdwg.mxu0
        %3617 = vmatpush.msra.mxu0 %v3587
        %3618 = vmatpush.msra.mxu0 %v3583
        %3619 = vmatpush.msra.mxu0 %v3579
        %3620 = vmatpush.msra.mxu0 %v3575
        %3621 = vmatpush.msra.mxu0 %v3571
        %3622 = vmatpush.msra.mxu0 %v3567
        %3623 = vmatpush.msra.mxu0 %v3563
        %3624 = vmatpush.msra.mxu0 %v3559
        %3625 = vmatpush.msra.mxu0 %v3555
        %3626 = vmatpush.msra.mxu0 %v3551
        %3627 = vmatpush.msra.mxu0 %v3547
        %3628 = vmatpush.msra.mxu0 %v3543
        %3629 = vmatpush.msra.mxu0 %v3539
        %3630 = vmatpush.msra.mxu0 %v3535
        %3631 = vmatpush.msra.mxu0 %v3531
        %3632 = vmatpush.msra.mxu0 %v3527
        %3633 = vmatmul.f32.gmra.mxu0 %v3454
        %v3634 = vpop.f32.mrf.mxu0
        %v3635 = vadd.f32 %v3609, %v3634
        %3636 = vmatmul.f32.gmra.mxu0 %v3457
        %v3637 = vpop.f32.mrf.mxu0
        %v3638 = vadd.f32 %v3612, %v3637
        %3639 = vmatmul.f32.gmra.mxu0 %v3460
        %v3640 = vpop.f32.mrf.mxu0
        %v3641 = vadd.f32 %v3615, %v3640
        %3642 = vdwg.mxu0
        %3643 = vmatpush.msra.mxu0 %v3524
        %3644 = vmatpush.msra.mxu0 %v3520
        %3645 = vmatpush.msra.mxu0 %v3516
        %3646 = vmatpush.msra.mxu0 %v3512
        %3647 = vmatpush.msra.mxu0 %v3508
        %3648 = vmatpush.msra.mxu0 %v3504
        %3649 = vmatpush.msra.mxu0 %v3500
        %3650 = vmatpush.msra.mxu0 %v3496
        %3651 = vmatpush.msra.mxu0 %v3492
        %3652 = vmatpush.msra.mxu0 %v3488
        %3653 = vmatpush.msra.mxu0 %v3484
        %3654 = vmatpush.msra.mxu0 %v3480
        %3655 = vmatpush.msra.mxu0 %v3476
        %3656 = vmatpush.msra.mxu0 %v3472
        %3657 = vmatpush.msra.mxu0 %v3468
        %3658 = vmatpush.msra.mxu0 %v3464
        %3659 = vmatmul.f32.gmra.mxu0 %v3428
        %v3660 = vpop.f32.mrf.mxu0
        %v3661 = vadd.f32 0.0, %v3660
        %3662 = vmatmul.f32.gmra.mxu0 %v3431
        %v3663 = vpop.f32.mrf.mxu0
        %v3664 = vadd.f32 0.0, %v3663
        %3665 = vmatmul.f32.gmra.mxu0 %v3434
        %v3666 = vpop.f32.mrf.mxu0
        %v3667 = vadd.f32 0.0, %v3666
        %3668 = vdwg.mxu0
        %3669 = vmatpush.msra.mxu0 %v3588
        %3670 = vmatpush.msra.mxu0 %v3584
        %3671 = vmatpush.msra.mxu0 %v3580
        %3672 = vmatpush.msra.mxu0 %v3576
        %3673 = vmatpush.msra.mxu0 %v3572
        %3674 = vmatpush.msra.mxu0 %v3568
        %3675 = vmatpush.msra.mxu0 %v3564
        %3676 = vmatpush.msra.mxu0 %v3560
        %3677 = vmatpush.msra.mxu0 %v3556
        %3678 = vmatpush.msra.mxu0 %v3552
        %3679 = vmatpush.msra.mxu0 %v3548
        %3680 = vmatpush.msra.mxu0 %v3544
        %3681 = vmatpush.msra.mxu0 %v3540
        %3682 = vmatpush.msra.mxu0 %v3536
        %3683 = vmatpush.msra.mxu0 %v3532
        %3684 = vmatpush.msra.mxu0 %v3528
        %3685 = vmatmul.f32.gmra.mxu0 %v3454
        %v3686 = vpop.f32.mrf.mxu0
        %v3687 = vadd.f32 %v3661, %v3686
        %3688 = vmatmul.f32.gmra.mxu0 %v3457
        %v3689 = vpop.f32.mrf.mxu0
        %v3690 = vadd.f32 %v3664, %v3689
        %3691 = vmatmul.f32.gmra.mxu0 %v3460
        %v3692 = vpop.f32.mrf.mxu0
        %v3693 = vadd.f32 %v3667, %v3692
        %3694 = vdwg.mxu0
        %3695 = vmatpush.msra.mxu0 %v3525
        %3696 = vmatpush.msra.mxu0 %v3521
        %3697 = vmatpush.msra.mxu0 %v3517
        %3698 = vmatpush.msra.mxu0 %v3513
        %3699 = vmatpush.msra.mxu0 %v3509
        %3700 = vmatpush.msra.mxu0 %v3505
        %3701 = vmatpush.msra.mxu0 %v3501
        %3702 = vmatpush.msra.mxu0 %v3497
        %3703 = vmatpush.msra.mxu0 %v3493
        %3704 = vmatpush.msra.mxu0 %v3489
        %3705 = vmatpush.msra.mxu0 %v3485
        %3706 = vmatpush.msra.mxu0 %v3481
        %3707 = vmatpush.msra.mxu0 %v3477
        %3708 = vmatpush.msra.mxu0 %v3473
        %3709 = vmatpush.msra.mxu0 %v3469
        %3710 = vmatpush.msra.mxu0 %v3465
        %3711 = vmatmul.f32.gmra.mxu0 %v3428
        %v3712 = vpop.f32.mrf.mxu0
        %v3713 = vadd.f32 0.0, %v3712
        %3714 = vmatmul.f32.gmra.mxu0 %v3431
        %v3715 = vpop.f32.mrf.mxu0
        %v3716 = vadd.f32 0.0, %v3715
        %3717 = vmatmul.f32.gmra.mxu0 %v3434
        %v3718 = vpop.f32.mrf.mxu0
        %v3719 = vadd.f32 0.0, %v3718
        %3720 = vdwg.mxu0
        %3721 = vmatpush.msra.mxu0 %v3589
        %3722 = vmatpush.msra.mxu0 %v3585
        %3723 = vmatpush.msra.mxu0 %v3581
        %3724 = vmatpush.msra.mxu0 %v3577
        %3725 = vmatpush.msra.mxu0 %v3573
        %3726 = vmatpush.msra.mxu0 %v3569
        %3727 = vmatpush.msra.mxu0 %v3565
        %3728 = vmatpush.msra.mxu0 %v3561
        %3729 = vmatpush.msra.mxu0 %v3557
        %3730 = vmatpush.msra.mxu0 %v3553
        %3731 = vmatpush.msra.mxu0 %v3549
        %3732 = vmatpush.msra.mxu0 %v3545
        %3733 = vmatpush.msra.mxu0 %v3541
        %3734 = vmatpush.msra.mxu0 %v3537
        %3735 = vmatpush.msra.mxu0 %v3533
        %3736 = vmatpush.msra.mxu0 %v3529
        %3737 = vmatmul.f32.gmra.mxu0 %v3454
        %v3738 = vpop.f32.mrf.mxu0
        %v3739 = vadd.f32 %v3713, %v3738
        %3740 = vmatmul.f32.gmra.mxu0 %v3457
        %v3741 = vpop.f32.mrf.mxu0
        %v3742 = vadd.f32 %v3716, %v3741
        %3743 = vmatmul.f32.gmra.mxu0 %v3460
        %v3744 = vpop.f32.mrf.mxu0
        %v3745 = vadd.f32 %v3719, %v3744
        %3746 = vdwg.mxu0
        %3747 = vmatpush.msra.mxu0 %v3526
        %3748 = vmatpush.msra.mxu0 %v3522
        %3749 = vmatpush.msra.mxu0 %v3518
        %3750 = vmatpush.msra.mxu0 %v3514
        %3751 = vmatpush.msra.mxu0 %v3510
        %3752 = vmatpush.msra.mxu0 %v3506
        %3753 = vmatpush.msra.mxu0 %v3502
        %3754 = vmatpush.msra.mxu0 %v3498
        %3755 = vmatpush.msra.mxu0 %v3494
        %3756 = vmatpush.msra.mxu0 %v3490
        %3757 = vmatpush.msra.mxu0 %v3486
        %3758 = vmatpush.msra.mxu0 %v3482
        %3759 = vmatpush.msra.mxu0 %v3478
        %3760 = vmatpush.msra.mxu0 %v3474
        %3761 = vmatpush.msra.mxu0 %v3470
        %3762 = vmatpush.msra.mxu0 %v3466
        %3763 = vmatmul.f32.gmra.mxu0 %v3428
        %v3764 = vpop.f32.mrf.mxu0
        %v3765 = vadd.f32 0.0, %v3764
        %3766 = vmatmul.f32.gmra.mxu0 %v3431
        %v3767 = vpop.f32.mrf.mxu0
        %v3768 = vadd.f32 0.0, %v3767
        %3769 = vmatmul.f32.gmra.mxu0 %v3434
        %v3770 = vpop.f32.mrf.mxu0
        %v3771 = vadd.f32 0.0, %v3770
        %3772 = vdwg.mxu0
        %3773 = vmatpush.msra.mxu0 %v3590
        %3774 = vmatpush.msra.mxu0 %v3586
        %3775 = vmatpush.msra.mxu0 %v3582
        %3776 = vmatpush.msra.mxu0 %v3578
        %3777 = vmatpush.msra.mxu0 %v3574
        %3778 = vmatpush.msra.mxu0 %v3570
        %3779 = vmatpush.msra.mxu0 %v3566
        %3780 = vmatpush.msra.mxu0 %v3562
        %3781 = vmatpush.msra.mxu0 %v3558
        %3782 = vmatpush.msra.mxu0 %v3554
        %3783 = vmatpush.msra.mxu0 %v3550
        %3784 = vmatpush.msra.mxu0 %v3546
        %3785 = vmatpush.msra.mxu0 %v3542
        %3786 = vmatpush.msra.mxu0 %v3538
        %3787 = vmatpush.msra.mxu0 %v3534
        %3788 = vmatpush.msra.mxu0 %v3530
        %3789 = vmatmul.f32.gmra.mxu0 %v3454
        %v3790 = vpop.f32.mrf.mxu0
        %v3791 = vadd.f32 %v3765, %v3790
        %3792 = vmatmul.f32.gmra.mxu0 %v3457
        %v3793 = vpop.f32.mrf.mxu0
        %v3794 = vadd.f32 %v3768, %v3793
        %3795 = vmatmul.f32.gmra.mxu0 %v3460
        %v3796 = vpop.f32.mrf.mxu0
        %v3797 = vadd.f32 %v3771, %v3796
        %3798 = vdwg.mxu0
        %v3799 = vadd.f32 %v2988, %v3635
        %v3800 = vadd.f32 %v3040, %v3687
        %v3801 = vadd.f32 %v3092, %v3739
        %v3802 = vadd.f32 %v3144, %v3791
        %v3803 = vadd.f32 %v2991, %v3638
        %v3804 = vadd.f32 %v3043, %v3690
        %v3805 = vadd.f32 %v3095, %v3742
        %v3806 = vadd.f32 %v3147, %v3794
        %v3807 = vadd.f32 %v2994, %v3641
        %v3808 = vadd.f32 %v3046, %v3693
        %v3809 = vadd.f32 %v3098, %v3745
        %v3810 = vadd.f32 %v3150, %v3797
        %v3811 = vld [vmem:[#allocation25] sm:$0xf]
        %v3813 = vperm.slane %v3811, 0
        %v3814 = vperm.slane %v3811, 1
        %v3815 = vperm.slane %v3811, 2
        %v3816 = vperm.slane %v3811, 3
        %v3821 = vadd.f32 %v3799, %v3813
        %v3822 = vadd.f32 %v3800, %v3814
        %v3823 = vadd.f32 %v3801, %v3815
        %v3824 = vadd.f32 %v3802, %v3816
        %v3825 = vadd.f32 %v3803, %v3813
        %v3826 = vadd.f32 %v3804, %v3814
        %v3827 = vadd.f32 %v3805, %v3815
        %v3828 = vadd.f32 %v3806, %v3816
        %v3829 = vadd.f32 %v3807, %v3813
        %v3830 = vadd.f32 %v3808, %v3814
        %v3831 = vadd.f32 %v3809, %v3815
        %v3832 = vadd.f32 %v3810, %v3816
        %v3833 = vld [vmem:[#allocation27] sm:$0xff]
        %v3834 = vld [vmem:[#allocation27 + $0x8] sm:$0xff]
        %v3835 = vld [vmem:[#allocation27 + $0x10] sm:$0xff]
        %v3836 = vld [vmem:[#allocation27 + $0x18] sm:$0xff]
        %v3837 = vld [vmem:[#allocation27 + $0x20] sm:$0xff]
        %v3838 = vld [vmem:[#allocation27 + $0x28] sm:$0xff]
        %v3839 = vld [vmem:[#allocation27 + $0x30] sm:$0xff]
        %v3840 = vld [vmem:[#allocation27 + $0x38] sm:$0xff]
        %v3841 = vld [vmem:[#allocation27 + $0x40] sm:$0xff]
        %v3842 = vld [vmem:[#allocation27 + $0x48] sm:$0xff]
        %v3843 = vld [vmem:[#allocation27 + $0x50] sm:$0xff]
        %v3844 = vld [vmem:[#allocation27 + $0x58] sm:$0xff]
        %v3845 = vld [vmem:[#allocation27 + $0x60] sm:$0xff]
        %v3846 = vld [vmem:[#allocation27 + $0x68] sm:$0xff]
        %v3847 = vld [vmem:[#allocation27 + $0x70] sm:$0xff]
        %v3848 = vld [vmem:[#allocation27 + $0x78] sm:$0xff]
        %v3849 = vld [vmem:[#allocation27 + $0x80] sm:$0xff]
        %v3850 = vld [vmem:[#allocation27 + $0x88] sm:$0xff]
        %v3851 = vld [vmem:[#allocation27 + $0x90] sm:$0xff]
        %v3852 = vld [vmem:[#allocation27 + $0x98] sm:$0xff]
        %v3853 = vld [vmem:[#allocation27 + $0xa0] sm:$0xff]
        %v3854 = vld [vmem:[#allocation27 + $0xa8] sm:$0xff]
        %v3855 = vld [vmem:[#allocation27 + $0xb0] sm:$0xff]
        %v3856 = vld [vmem:[#allocation27 + $0xb8] sm:$0xff]
        %v3857 = vld [vmem:[#allocation27 + $0xc0] sm:$0xff]
        %v3858 = vld [vmem:[#allocation27 + $0xc8] sm:$0xff]
        %v3859 = vld [vmem:[#allocation27 + $0xd0] sm:$0xff]
        %v3860 = vld [vmem:[#allocation27 + $0xd8] sm:$0xff]
        %v3861 = vld [vmem:[#allocation27 + $0xe0] sm:$0xff]
        %v3862 = vld [vmem:[#allocation27 + $0xe8] sm:$0xff]
        %v3863 = vld [vmem:[#allocation27 + $0xf0] sm:$0xff]
        %v3864 = vld [vmem:[#allocation27 + $0xf8] sm:$0xff]
        %v3865 = vld [vmem:[#allocation27 + $0x100] sm:$0xff]
        %v3866 = vld [vmem:[#allocation27 + $0x108] sm:$0xff]
        %v3867 = vld [vmem:[#allocation27 + $0x110] sm:$0xff]
        %v3868 = vld [vmem:[#allocation27 + $0x118] sm:$0xff]
        %v3869 = vld [vmem:[#allocation27 + $0x120] sm:$0xff]
        %v3870 = vld [vmem:[#allocation27 + $0x128] sm:$0xff]
        %v3871 = vld [vmem:[#allocation27 + $0x130] sm:$0xff]
        %v3872 = vld [vmem:[#allocation27 + $0x138] sm:$0xff]
        %v3873 = vld [vmem:[#allocation27 + $0x140] sm:$0xff]
        %v3874 = vld [vmem:[#allocation27 + $0x148] sm:$0xff]
        %v3875 = vld [vmem:[#allocation27 + $0x150] sm:$0xff]
        %v3876 = vld [vmem:[#allocation27 + $0x158] sm:$0xff]
        %v3877 = vld [vmem:[#allocation27 + $0x160] sm:$0xff]
        %v3878 = vld [vmem:[#allocation27 + $0x168] sm:$0xff]
        %v3879 = vld [vmem:[#allocation27 + $0x170] sm:$0xff]
        %v3880 = vld [vmem:[#allocation27 + $0x178] sm:$0xff]
        %v3881 = vld [vmem:[#allocation27 + $0x180] sm:$0xff]
        %v3882 = vld [vmem:[#allocation27 + $0x188] sm:$0xff]
        %v3883 = vld [vmem:[#allocation27 + $0x190] sm:$0xff]
        %v3884 = vld [vmem:[#allocation27 + $0x198] sm:$0xff]
        %v3885 = vld [vmem:[#allocation27 + $0x1a0] sm:$0xff]
        %v3886 = vld [vmem:[#allocation27 + $0x1a8] sm:$0xff]
        %v3887 = vld [vmem:[#allocation27 + $0x1b0] sm:$0xff]
        %v3888 = vld [vmem:[#allocation27 + $0x1b8] sm:$0xff]
        %v3889 = vld [vmem:[#allocation27 + $0x1c0] sm:$0xff]
        %v3890 = vld [vmem:[#allocation27 + $0x1c8] sm:$0xff]
        %v3891 = vld [vmem:[#allocation27 + $0x1d0] sm:$0xff]
        %v3892 = vld [vmem:[#allocation27 + $0x1d8] sm:$0xff]
        %v3893 = vld [vmem:[#allocation27 + $0x1e0] sm:$0xff]
        %v3894 = vld [vmem:[#allocation27 + $0x1e8] sm:$0xff]
        %v3895 = vld [vmem:[#allocation27 + $0x1f0] sm:$0xff]
        %v3896 = vld [vmem:[#allocation27 + $0x1f8] sm:$0xff]
        %v3897 = vld [vmem:[#allocation27 + $0x200] sm:$0xff]
        %v3898 = vld [vmem:[#allocation27 + $0x208] sm:$0xff]
        %v3899 = vld [vmem:[#allocation27 + $0x210] sm:$0xff]
        %v3900 = vld [vmem:[#allocation27 + $0x218] sm:$0xff]
        %v3901 = vld [vmem:[#allocation27 + $0x220] sm:$0xff]
        %v3902 = vld [vmem:[#allocation27 + $0x228] sm:$0xff]
        %v3903 = vld [vmem:[#allocation27 + $0x230] sm:$0xff]
        %v3904 = vld [vmem:[#allocation27 + $0x238] sm:$0xff]
        %v3905 = vld [vmem:[#allocation27 + $0x240] sm:$0xff]
        %v3906 = vld [vmem:[#allocation27 + $0x248] sm:$0xff]
        %v3907 = vld [vmem:[#allocation27 + $0x250] sm:$0xff]
        %v3908 = vld [vmem:[#allocation27 + $0x258] sm:$0xff]
        %v3909 = vld [vmem:[#allocation27 + $0x260] sm:$0xff]
        %v3910 = vld [vmem:[#allocation27 + $0x268] sm:$0xff]
        %v3911 = vld [vmem:[#allocation27 + $0x270] sm:$0xff]
        %v3912 = vld [vmem:[#allocation27 + $0x278] sm:$0xff]
        %v3913 = vld [vmem:[#allocation27 + $0x280] sm:$0xff]
        %v3914 = vld [vmem:[#allocation27 + $0x288] sm:$0xff]
        %v3915 = vld [vmem:[#allocation27 + $0x290] sm:$0xff]
        %v3916 = vld [vmem:[#allocation27 + $0x298] sm:$0xff]
        %v3917 = vld [vmem:[#allocation27 + $0x2a0] sm:$0xff]
        %v3918 = vld [vmem:[#allocation27 + $0x2a8] sm:$0xff]
        %v3919 = vld [vmem:[#allocation27 + $0x2b0] sm:$0xff]
        %v3920 = vld [vmem:[#allocation27 + $0x2b8] sm:$0xff]
        %v3921 = vld [vmem:[#allocation27 + $0x2c0] sm:$0xff]
        %v3922 = vld [vmem:[#allocation27 + $0x2c8] sm:$0xff]
        %v3923 = vld [vmem:[#allocation27 + $0x2d0] sm:$0xff]
        %v3924 = vld [vmem:[#allocation27 + $0x2d8] sm:$0xff]
        %v3925 = vld [vmem:[#allocation27 + $0x2e0] sm:$0xff]
        %v3926 = vld [vmem:[#allocation27 + $0x2e8] sm:$0xff]
        %v3927 = vld [vmem:[#allocation27 + $0x2f0] sm:$0xff]
        %v3928 = vld [vmem:[#allocation27 + $0x2f8] sm:$0xff]
        %v3929 = vld [vmem:[#allocation27 + $0x300] sm:$0xff]
        %v3930 = vld [vmem:[#allocation27 + $0x308] sm:$0xff]
        %v3931 = vld [vmem:[#allocation27 + $0x310] sm:$0xff]
        %v3932 = vld [vmem:[#allocation27 + $0x318] sm:$0xff]
        %v3933 = vld [vmem:[#allocation27 + $0x320] sm:$0xff]
        %v3934 = vld [vmem:[#allocation27 + $0x328] sm:$0xff]
        %v3935 = vld [vmem:[#allocation27 + $0x330] sm:$0xff]
        %v3936 = vld [vmem:[#allocation27 + $0x338] sm:$0xff]
        %v3937 = vld [vmem:[#allocation27 + $0x340] sm:$0xff]
        %v3938 = vld [vmem:[#allocation27 + $0x348] sm:$0xff]
        %v3939 = vld [vmem:[#allocation27 + $0x350] sm:$0xff]
        %v3940 = vld [vmem:[#allocation27 + $0x358] sm:$0xff]
        %v3941 = vld [vmem:[#allocation27 + $0x360] sm:$0xff]
        %v3942 = vld [vmem:[#allocation27 + $0x368] sm:$0xff]
        %v3943 = vld [vmem:[#allocation27 + $0x370] sm:$0xff]
        %v3944 = vld [vmem:[#allocation27 + $0x378] sm:$0xff]
        %v3945 = vld [vmem:[#allocation27 + $0x380] sm:$0xff]
        %v3946 = vld [vmem:[#allocation27 + $0x388] sm:$0xff]
        %v3947 = vld [vmem:[#allocation27 + $0x390] sm:$0xff]
        %v3948 = vld [vmem:[#allocation27 + $0x398] sm:$0xff]
        %v3949 = vld [vmem:[#allocation27 + $0x3a0] sm:$0xff]
        %v3950 = vld [vmem:[#allocation27 + $0x3a8] sm:$0xff]
        %v3951 = vld [vmem:[#allocation27 + $0x3b0] sm:$0xff]
        %v3952 = vld [vmem:[#allocation27 + $0x3b8] sm:$0xff]
        %v3953 = vld [vmem:[#allocation27 + $0x3c0] sm:$0xff]
        %v3954 = vld [vmem:[#allocation27 + $0x3c8] sm:$0xff]
        %v3955 = vld [vmem:[#allocation27 + $0x3d0] sm:$0xff]
        %v3956 = vld [vmem:[#allocation27 + $0x3d8] sm:$0xff]
        %v3957 = vld [vmem:[#allocation27 + $0x3e0] sm:$0xff]
        %v3958 = vld [vmem:[#allocation27 + $0x3e8] sm:$0xff]
        %v3959 = vld [vmem:[#allocation27 + $0x3f0] sm:$0xff]
        %v3960 = vld [vmem:[#allocation27 + $0x3f8] sm:$0xff]
        %v3961 = vld [vmem:[#allocation28] sm:$0xf]
        %v3963 = vperm.slane %v3961, 0
        %v3964 = vperm.slane %v3961, 1
        %v3965 = vperm.slane %v3961, 2
        %v3966 = vperm.slane %v3961, 3
        %3971 = vmatpush.msra.mxu0 %v3893
        %3972 = vmatpush.msra.mxu0 %v3889
        %3973 = vmatpush.msra.mxu0 %v3885
        %3974 = vmatpush.msra.mxu0 %v3881
        %3975 = vmatpush.msra.mxu0 %v3877
        %3976 = vmatpush.msra.mxu0 %v3873
        %3977 = vmatpush.msra.mxu0 %v3869
        %3978 = vmatpush.msra.mxu0 %v3865
        %3979 = vmatpush.msra.mxu0 %v3861
        %3980 = vmatpush.msra.mxu0 %v3857
        %3981 = vmatpush.msra.mxu0 %v3853
        %3982 = vmatpush.msra.mxu0 %v3849
        %3983 = vmatpush.msra.mxu0 %v3845
        %3984 = vmatpush.msra.mxu0 %v3841
        %3985 = vmatpush.msra.mxu0 %v3837
        %3986 = vmatpush.msra.mxu0 %v3833
        %3987 = vmatmul.f32.gmra.mxu0 %v1852
        %v3988 = vpop.f32.mrf.mxu0
        %v3989 = vadd.f32 %v3963, %v3988
        %3990 = vmatmul.f32.gmra.mxu0 %v1854
        %v3991 = vpop.f32.mrf.mxu0
        %v3992 = vadd.f32 %v3963, %v3991
        %3993 = vmatmul.f32.gmra.mxu0 %v1856
        %v3994 = vpop.f32.mrf.mxu0
        %v3995 = vadd.f32 %v3963, %v3994
        %3996 = vdwg.mxu0
        %3997 = vmatpush.msra.mxu0 %v3957
        %3998 = vmatpush.msra.mxu0 %v3953
        %3999 = vmatpush.msra.mxu0 %v3949
        %4000 = vmatpush.msra.mxu0 %v3945
        %4001 = vmatpush.msra.mxu0 %v3941
        %4002 = vmatpush.msra.mxu0 %v3937
        %4003 = vmatpush.msra.mxu0 %v3933
        %4004 = vmatpush.msra.mxu0 %v3929
        %4005 = vmatpush.msra.mxu0 %v3925
        %4006 = vmatpush.msra.mxu0 %v3921
        %4007 = vmatpush.msra.mxu0 %v3917
        %4008 = vmatpush.msra.mxu0 %v3913
        %4009 = vmatpush.msra.mxu0 %v3909
        %4010 = vmatpush.msra.mxu0 %v3905
        %4011 = vmatpush.msra.mxu0 %v3901
        %4012 = vmatpush.msra.mxu0 %v3897
        %4013 = vmatmul.f32.gmra.mxu0 %v1853
        %v4014 = vpop.f32.mrf.mxu0
        %v4015 = vadd.f32 %v3989, %v4014
        %4016 = vmatmul.f32.gmra.mxu0 %v1855
        %v4017 = vpop.f32.mrf.mxu0
        %v4018 = vadd.f32 %v3992, %v4017
        %4019 = vmatmul.f32.gmra.mxu0 %v1857
        %v4020 = vpop.f32.mrf.mxu0
        %v4021 = vadd.f32 %v3995, %v4020
        %4022 = vdwg.mxu0
        %4023 = vmatpush.msra.mxu0 %v3894
        %4024 = vmatpush.msra.mxu0 %v3890
        %4025 = vmatpush.msra.mxu0 %v3886
        %4026 = vmatpush.msra.mxu0 %v3882
        %4027 = vmatpush.msra.mxu0 %v3878
        %4028 = vmatpush.msra.mxu0 %v3874
        %4029 = vmatpush.msra.mxu0 %v3870
        %4030 = vmatpush.msra.mxu0 %v3866
        %4031 = vmatpush.msra.mxu0 %v3862
        %4032 = vmatpush.msra.mxu0 %v3858
        %4033 = vmatpush.msra.mxu0 %v3854
        %4034 = vmatpush.msra.mxu0 %v3850
        %4035 = vmatpush.msra.mxu0 %v3846
        %4036 = vmatpush.msra.mxu0 %v3842
        %4037 = vmatpush.msra.mxu0 %v3838
        %4038 = vmatpush.msra.mxu0 %v3834
        %4039 = vmatmul.f32.gmra.mxu0 %v1852
        %v4040 = vpop.f32.mrf.mxu0
        %v4041 = vadd.f32 %v3964, %v4040
        %4042 = vmatmul.f32.gmra.mxu0 %v1854
        %v4043 = vpop.f32.mrf.mxu0
        %v4044 = vadd.f32 %v3964, %v4043
        %4045 = vmatmul.f32.gmra.mxu0 %v1856
        %v4046 = vpop.f32.mrf.mxu0
        %v4047 = vadd.f32 %v3964, %v4046
        %4048 = vdwg.mxu0
        %4049 = vmatpush.msra.mxu0 %v3958
        %4050 = vmatpush.msra.mxu0 %v3954
        %4051 = vmatpush.msra.mxu0 %v3950
        %4052 = vmatpush.msra.mxu0 %v3946
        %4053 = vmatpush.msra.mxu0 %v3942
        %4054 = vmatpush.msra.mxu0 %v3938
        %4055 = vmatpush.msra.mxu0 %v3934
        %4056 = vmatpush.msra.mxu0 %v3930
        %4057 = vmatpush.msra.mxu0 %v3926
        %4058 = vmatpush.msra.mxu0 %v3922
        %4059 = vmatpush.msra.mxu0 %v3918
        %4060 = vmatpush.msra.mxu0 %v3914
        %4061 = vmatpush.msra.mxu0 %v3910
        %4062 = vmatpush.msra.mxu0 %v3906
        %4063 = vmatpush.msra.mxu0 %v3902
        %4064 = vmatpush.msra.mxu0 %v3898
        %4065 = vmatmul.f32.gmra.mxu0 %v1853
        %v4066 = vpop.f32.mrf.mxu0
        %v4067 = vadd.f32 %v4041, %v4066
        %4068 = vmatmul.f32.gmra.mxu0 %v1855
        %v4069 = vpop.f32.mrf.mxu0
        %v4070 = vadd.f32 %v4044, %v4069
        %4071 = vmatmul.f32.gmra.mxu0 %v1857
        %v4072 = vpop.f32.mrf.mxu0
        %v4073 = vadd.f32 %v4047, %v4072
        %4074 = vdwg.mxu0
        %4075 = vmatpush.msra.mxu0 %v3895
        %4076 = vmatpush.msra.mxu0 %v3891
        %4077 = vmatpush.msra.mxu0 %v3887
        %4078 = vmatpush.msra.mxu0 %v3883
        %4079 = vmatpush.msra.mxu0 %v3879
        %4080 = vmatpush.msra.mxu0 %v3875
        %4081 = vmatpush.msra.mxu0 %v3871
        %4082 = vmatpush.msra.mxu0 %v3867
        %4083 = vmatpush.msra.mxu0 %v3863
        %4084 = vmatpush.msra.mxu0 %v3859
        %4085 = vmatpush.msra.mxu0 %v3855
        %4086 = vmatpush.msra.mxu0 %v3851
        %4087 = vmatpush.msra.mxu0 %v3847
        %4088 = vmatpush.msra.mxu0 %v3843
        %4089 = vmatpush.msra.mxu0 %v3839
        %4090 = vmatpush.msra.mxu0 %v3835
        %4091 = vmatmul.f32.gmra.mxu0 %v1852
        %v4092 = vpop.f32.mrf.mxu0
        %v4093 = vadd.f32 %v3965, %v4092
        %4094 = vmatmul.f32.gmra.mxu0 %v1854
        %v4095 = vpop.f32.mrf.mxu0
        %v4096 = vadd.f32 %v3965, %v4095
        %4097 = vmatmul.f32.gmra.mxu0 %v1856
        %v4098 = vpop.f32.mrf.mxu0
        %v4099 = vadd.f32 %v3965, %v4098
        %4100 = vdwg.mxu0
        %4101 = vmatpush.msra.mxu0 %v3959
        %4102 = vmatpush.msra.mxu0 %v3955
        %4103 = vmatpush.msra.mxu0 %v3951
        %4104 = vmatpush.msra.mxu0 %v3947
        %4105 = vmatpush.msra.mxu0 %v3943
        %4106 = vmatpush.msra.mxu0 %v3939
        %4107 = vmatpush.msra.mxu0 %v3935
        %4108 = vmatpush.msra.mxu0 %v3931
        %4109 = vmatpush.msra.mxu0 %v3927
        %4110 = vmatpush.msra.mxu0 %v3923
        %4111 = vmatpush.msra.mxu0 %v3919
        %4112 = vmatpush.msra.mxu0 %v3915
        %4113 = vmatpush.msra.mxu0 %v3911
        %4114 = vmatpush.msra.mxu0 %v3907
        %4115 = vmatpush.msra.mxu0 %v3903
        %4116 = vmatpush.msra.mxu0 %v3899
        %4117 = vmatmul.f32.gmra.mxu0 %v1853
        %v4118 = vpop.f32.mrf.mxu0
        %v4119 = vadd.f32 %v4093, %v4118
        %4120 = vmatmul.f32.gmra.mxu0 %v1855
        %v4121 = vpop.f32.mrf.mxu0
        %v4122 = vadd.f32 %v4096, %v4121
        %4123 = vmatmul.f32.gmra.mxu0 %v1857
        %v4124 = vpop.f32.mrf.mxu0
        %v4125 = vadd.f32 %v4099, %v4124
        %4126 = vdwg.mxu0
        %4127 = vmatpush.msra.mxu0 %v3896
        %4128 = vmatpush.msra.mxu0 %v3892
        %4129 = vmatpush.msra.mxu0 %v3888
        %4130 = vmatpush.msra.mxu0 %v3884
        %4131 = vmatpush.msra.mxu0 %v3880
        %4132 = vmatpush.msra.mxu0 %v3876
        %4133 = vmatpush.msra.mxu0 %v3872
        %4134 = vmatpush.msra.mxu0 %v3868
        %4135 = vmatpush.msra.mxu0 %v3864
        %4136 = vmatpush.msra.mxu0 %v3860
        %4137 = vmatpush.msra.mxu0 %v3856
        %4138 = vmatpush.msra.mxu0 %v3852
        %4139 = vmatpush.msra.mxu0 %v3848
        %4140 = vmatpush.msra.mxu0 %v3844
        %4141 = vmatpush.msra.mxu0 %v3840
        %4142 = vmatpush.msra.mxu0 %v3836
        %4143 = vmatmul.f32.gmra.mxu0 %v1852
        %v4144 = vpop.f32.mrf.mxu0
        %v4145 = vadd.f32 %v3966, %v4144
        %4146 = vmatmul.f32.gmra.mxu0 %v1854
        %v4147 = vpop.f32.mrf.mxu0
        %v4148 = vadd.f32 %v3966, %v4147
        %4149 = vmatmul.f32.gmra.mxu0 %v1856
        %v4150 = vpop.f32.mrf.mxu0
        %v4151 = vadd.f32 %v3966, %v4150
        %4152 = vdwg.mxu0
        %4153 = vmatpush.msra.mxu0 %v3960
        %4154 = vmatpush.msra.mxu0 %v3956
        %4155 = vmatpush.msra.mxu0 %v3952
        %4156 = vmatpush.msra.mxu0 %v3948
        %4157 = vmatpush.msra.mxu0 %v3944
        %4158 = vmatpush.msra.mxu0 %v3940
        %4159 = vmatpush.msra.mxu0 %v3936
        %4160 = vmatpush.msra.mxu0 %v3932
        %4161 = vmatpush.msra.mxu0 %v3928
        %4162 = vmatpush.msra.mxu0 %v3924
        %4163 = vmatpush.msra.mxu0 %v3920
        %4164 = vmatpush.msra.mxu0 %v3916
        %4165 = vmatpush.msra.mxu0 %v3912
        %4166 = vmatpush.msra.mxu0 %v3908
        %4167 = vmatpush.msra.mxu0 %v3904
        %4168 = vmatpush.msra.mxu0 %v3900
        %4169 = vmatmul.f32.gmra.mxu0 %v1853
        %v4170 = vpop.f32.mrf.mxu0
        %v4171 = vadd.f32 %v4145, %v4170
        %4172 = vmatmul.f32.gmra.mxu0 %v1855
        %v4173 = vpop.f32.mrf.mxu0
        %v4174 = vadd.f32 %v4148, %v4173
        %4175 = vmatmul.f32.gmra.mxu0 %v1857
        %v4176 = vpop.f32.mrf.mxu0
        %v4177 = vadd.f32 %v4151, %v4176
        %4178 = vdwg.mxu0
        %v4179 = vadd.f32 %v3821, %v4015
        %v4180 = vadd.f32 %v3822, %v4067
        %v4181 = vadd.f32 %v3823, %v4119
        %v4182 = vadd.f32 %v3824, %v4171
        %v4183 = vadd.f32 %v3825, %v4018
        %v4184 = vadd.f32 %v3826, %v4070
        %v4185 = vadd.f32 %v3827, %v4122
        %v4186 = vadd.f32 %v3828, %v4174
        %v4187 = vadd.f32 %v3829, %v4021
        %v4188 = vadd.f32 %v3830, %v4073
        %v4189 = vadd.f32 %v3831, %v4125
        %v4190 = vadd.f32 %v3832, %v4177
        %v4191 = vmax.f32 %v4179, 0.0
        %v4192 = vmax.f32 %v4180, 0.0
        %v4193 = vmax.f32 %v4181, 0.0
        %v4194 = vmax.f32 %v4182, 0.0
        %v4195 = vmax.f32 %v4183, 0.0
        %v4196 = vmax.f32 %v4184, 0.0
        %v4197 = vmax.f32 %v4185, 0.0
        %v4198 = vmax.f32 %v4186, 0.0
        %v4199 = vmax.f32 %v4187, 0.0
        %v4200 = vmax.f32 %v4188, 0.0
        %v4201 = vmax.f32 %v4189, 0.0
        %v4202 = vmax.f32 %v4190, 0.0
        %v4203 = vmax.f32 %v4191, %v4195
        %v4204 = vsel %vm1136, %v4199, -inf
        %v4205 = vmax.f32 %v4203, %v4204
        %v4206 = vrot.slane %v4205, 4
        %v4207 = vmax.f32 %v4205, %v4206
        %v4208 = vrot.slane %v4207, 2
        %v4209 = vmax.f32 %v4207, %v4208
        %v4210 = vrot.slane %v4209, 1
        %v4211 = vmax.f32 %v4209, %v4210
        %v4212 = vmax.f32 %v4192, %v4196
        %v4213 = vsel %vm1136, %v4200, -inf
        %v4214 = vmax.f32 %v4212, %v4213
        %v4215 = vrot.slane %v4214, 4
        %v4216 = vmax.f32 %v4214, %v4215
        %v4217 = vrot.slane %v4216, 2
        %v4218 = vmax.f32 %v4216, %v4217
        %v4219 = vrot.slane %v4218, 1
        %v4220 = vmax.f32 %v4218, %v4219
        %v4221 = vmax.f32 %v4193, %v4197
        %v4222 = vsel %vm1136, %v4201, -inf
        %v4223 = vmax.f32 %v4221, %v4222
        %v4224 = vrot.slane %v4223, 4
        %v4225 = vmax.f32 %v4223, %v4224
        %v4226 = vrot.slane %v4225, 2
        %v4227 = vmax.f32 %v4225, %v4226
        %v4228 = vrot.slane %v4227, 1
        %v4229 = vmax.f32 %v4227, %v4228
        %v4230 = vmax.f32 %v4194, %v4198
        %v4231 = vsel %vm1136, %v4202, -inf
        %v4232 = vmax.f32 %v4230, %v4231
        %v4233 = vrot.slane %v4232, 4
        %v4234 = vmax.f32 %v4232, %v4233
        %v4235 = vrot.slane %v4234, 2
        %v4236 = vmax.f32 %v4234, %v4235
        %v4237 = vrot.slane %v4236, 1
        %v4238 = vmax.f32 %v4236, %v4237
        %v4243 = vrot.slane %v4220, 7
        %v4244 = vrot.slane %v4229, 6
        %v4245 = vrot.slane %v4238, 5
        %v4246 = vsel %vm1136, %v4211, %v4243
        %vm4247 = vcmask 1042434
        %v4248 = vsel %vm4247, %v4244, %v4245
        %vm4249 = vcmask 1041408
        %v4250 = vsel %vm4249, %v4246, %v4248
        %v4252 = vlaneseq
        %vm4253 = vcmp.ge.s32.totalorder %v4252, 0
        %vm4254 = vcmp.lt.s32.totalorder %v4252, 512
        %vm4255 = vmand %vm4253, %vm4254
        %4256 = vst.msk [vmem:[%s944] sm:$0xf] %vm4255, %v4250
        %p4257 = scmp.lt.s32.totalorder %s42, 1
        %s4258 = scalar_select %p4257, %s42, 1
        %s4259 = smul.addr %s4258, 4
        %s4260 = scalar_lea.vmem %s21, %s4259
        // Predicated region
        $region177: #{agcn_transformer_forward.2} parent=103 // pred_check
          %p4261 = pneg %p506
        $region178: #{agcn_transformer_forward.2} parent=103 // pred_check_branch
          %4263 = sbr.rel (%p4261) target = $region180
        $region179: #{agcn_transformer_forward.2} parent=103 // pred_region
          _
        $region180: #{agcn_transformer_forward.2} parent=103 // pred_fallthru
          _
      $region104: #{agcn_transformer_forward.2} parent=5 // pred_fallthru
        _
      %p4264 = scmp.le.s32.totalorder 2, %s37
      // Predicated region
      $region181: #{agcn_transformer_forward.2} parent=5 // pred_check
        %p4265 = pneg %p4264
      $region182: #{agcn_transformer_forward.2} parent=5 // pred_check_branch
        %4267 = sbr.rel (%p4265) target = $region184
      $region183: #{agcn_transformer_forward.2} parent=5 // pred_region
        %s4268 = ssub.s32 %s37, 2
        // Predicated region
        $region185: #{agcn_transformer_forward.2} parent=183 // pred_check
          %p4269 = pneg %p512
        $region186: #{agcn_transformer_forward.2} parent=183 // pred_check_branch
          %4271 = sbr.rel (%p4269) target = $region188
        $region187: #{agcn_transformer_forward.2} parent=183 // pred_region
          %p4272 = scmp.lt.s32.totalorder %s43, 1
          %s4273 = scalar_select %p4272, %s43, 1
          %s4274 = smul.addr %s4273, 4
          %s4275 = scalar_lea.vmem %s21, %s4274
        $region188: #{agcn_transformer_forward.2} parent=183 // pred_fallthru
          _
      $region184: #{agcn_transformer_forward.2} parent=5 // pred_fallthru
        _
    $region6: #{agcn_transformer_forward.2} parent=1 // loop_footer
      %s41 = sadd.s32 1, %s37
    $region7: #{agcn_transformer_forward.2} parent=1 // loop_footer_branch
      %36 = sbr.rel target = $region3
    $region8: #{agcn_transformer_forward.2} parent=1 // loop_exit
      _
    %4276 = vsyncpa [#allocation3], 1
    %s4277 = scalar_lea.sflag [#allocation3], 1
    %4278 = vsyncpa %s4277, 1
    %4279 = vsyncpa [#allocation5], 1
    %4280 = vsyncpa [#allocation8], 1
    %4281 = vsyncpa [#allocation11], 1
    %4282 = vsyncpa [#allocation14], 1
    %4283 = vsyncpa [#allocation17], 1
    %4284 = vsyncpa [#allocation20], 1
    %4285 = vsyncpa [#allocation23], 1
    %4286 = vsyncpa [#allocation26], 1
    %4287 = vsyncpa [#allocation29], 1

</llo_original>
